<compile_context>
chip_gen: v7x
topology: tpu7x:2x2x1
jax: 0.10.0
libtpu: 0.0.40
codegen_flags: <defaults>
</compile_context>

<pallas_src>
import functools

import numpy as np

import jax
import jax.numpy as jnp
from jax.experimental import pallas as pl
from jax.experimental.pallas import tpu as pltpu


def _round_up(x, m):
    return ((x + m - 1) // m) * m


def _cdiv(a, b):
    return (a + b - 1) // b


# ---------------------------------------------------------------------------
# Kernel 1: collapsed-K matmul with fused bias (+ReLU).  Used for the 9x9
# stride-2 conv whose input has only 3 channels (im2col stays cheap there).
# ---------------------------------------------------------------------------

def _matmul_bias_act_kernel(x_ref, w_ref, b_ref, o_ref, *, relu):
    out = jnp.dot(x_ref[...], w_ref[...], preferred_element_type=jnp.float32)
    out = out + b_ref[0:1, :]
    if relu:
        out = jnp.maximum(out, 0.0)
    o_ref[...] = out.astype(o_ref.dtype)


def _choose_tm(m):
    """Multiple-of-16 M tiles (bf16 sublane pack); >= 8 grid steps when the
    problem allows it, capped at 512 rows."""
    if m >= 8 * 512:
        return 512
    return max(16, _round_up(_cdiv(m, 8), 16))


def matmul_bias_act(patches, w, b, *, relu, out_dtype=jnp.bfloat16):
    """(M, K) @ (K, Cout) + bias (+ReLU).  bf16 operands, f32 accumulation.
    Full-K weight block stays VMEM-resident across the M-tile grid."""
    M, K = patches.shape
    _, Cout = w.shape
    tm = _choose_tm(M)
    Mp = _round_up(M, tm)
    Kp = _round_up(K, 128)

    xp = jnp.pad(patches.astype(jnp.bfloat16), ((0, Mp - M), (0, Kp - K)))
    wp = jnp.pad(w.astype(jnp.bfloat16), ((0, Kp - K), (0, 0)))
    bp = b.astype(jnp.float32).reshape(1, Cout)

    out = pl.pallas_call(
        functools.partial(_matmul_bias_act_kernel, relu=relu),
        out_shape=jax.ShapeDtypeStruct((Mp, Cout), out_dtype),
        grid_spec=pltpu.PrefetchScalarGridSpec(
            num_scalar_prefetch=0,
            grid=(Mp // tm,),
            in_specs=[
                pl.BlockSpec((tm, Kp), lambda i: (i, 0)),
                pl.BlockSpec((Kp, Cout), lambda i: (0, 0)),   # VMEM-resident
                pl.BlockSpec((1, Cout), lambda i: (0, 0)),
            ],
            out_specs=pl.BlockSpec((tm, Cout), lambda i: (i, 0)),
        ),
        compiler_params=pltpu.CompilerParams(
            dimension_semantics=("parallel",)),
    )(xp, wp, bp)
    return out[:M]


# ---------------------------------------------------------------------------
# Kernel 2: stride-1 'same' KxK conv as implicit GEMM, M-tiled over output
# image rows with a (k-1)-row halo.  Each tap is a shifted row-slice matmul;
# kw-tap pairs are packed into one 2*Cout (=128) lane RHS, and the +1-row
# fix-up for the second tap of every pair is applied once in the epilogue.
# ---------------------------------------------------------------------------

def _conv_same_kernel(x_ref, w_ref, bst_ref, o_ref, *, ksize, wp, relu, bn):
    tm, cout = o_ref.shape[2], o_ref.shape[3]
    npj = (ksize + 1) // 2
    acc = jnp.zeros((tm + 1, 2 * cout), jnp.float32)
    for dh in range(ksize):
        for j in range(npj):
            start = dh * wp + 2 * j            # 16-aligned + even offset
            lhs = x_ref[0, 0, pl.ds(start, tm + 1), :]
            acc = acc + jnp.dot(lhs, w_ref[dh * npj + j],
                                preferred_element_type=jnp.float32)
    # Tap dw=2j lands in lanes [:cout]; tap dw=2j+1 in lanes [cout:] needs a
    # +1 output-row shift, applied once here for all pairs.
    out = acc[:tm, :cout] + acc[1:tm + 1, cout:2 * cout]
    out = out + bst_ref[0:1, :]                # bias
    if relu:
        out = jnp.maximum(out, 0.0)
    if bn:                                     # BatchNorm(eval) after ReLU
        out = out * bst_ref[1:2, :] + bst_ref[2:3, :]
    o_ref[0, 0] = out.astype(o_ref.dtype)


def _conv_same_cout1_kernel(x_ref, w_ref, b_ref, o_ref, *, ksize, wp, relu):
    # Cout == 1: VPU multiply-accumulate + one lane reduction (no MXU-width
    # padding waste).  Per-tile accumulator only.
    tm = o_ref.shape[2]
    cin = x_ref.shape[3]
    acc = jnp.zeros((tm, cin), jnp.float32)
    for dh in range(ksize):
        for dw in range(ksize):
            lhs = x_ref[0, 0, pl.ds(dh * wp + dw, tm), :].astype(jnp.float32)
            acc = acc + lhs * w_ref[dh * ksize + dw]
    out = jnp.sum(acc, axis=-1, keepdims=True) + b_ref[0:1, 0:1]
    if relu:
        out = jnp.maximum(out, 0.0)
    # TODO(synk): output stays (tile_m, 1); a lane-dense (tile_h, Wp) store
    # would avoid masked 1-lane writes (negligible at this layer's size).
    o_ref[0, 0] = out.astype(o_ref.dtype)


def _halo_row_tiles(x_nhwc, k, p, Wp, tile_h, Tn):
    """Zero-pad, flatten (h, w) -> rows, and cut row tiles that include the
    (k-1)-row halo so every shifted tap slice stays inside its tile."""
    N, H, W, Cin = x_nhwc.shape
    bot = Tn * tile_h + k - p - H                       # bottom zero rows
    xpad = jnp.pad(x_nhwc.astype(jnp.bfloat16),
                   ((0, 0), (p, bot), (p, Wp - W - p), (0, 0)))
    xflat = xpad.reshape(N, (Tn * tile_h + k) * Wp, Cin)
    tile_m = tile_h * Wp
    tile_in = (tile_h + k) * Wp
    xtiles = jnp.stack([xflat[:, t * tile_m: t * tile_m + tile_in, :]
                        for t in range(Tn)], axis=1)    # (N, Tn, tile_in, Cin)
    return xtiles, tile_in


def conv2d_same(x_nhwc, w_oihw, b, scale=None, shift=None, *, relu):
    """Stride-1 'same' conv (odd kernel) with fused bias / ReLU / BN(eval)."""
    N, H, W, Cin = x_nhwc.shape
    Cout, Cin_w, kh, kw = w_oihw.shape
    assert Cin_w == Cin and kh == kw
    k = kh
    p = (k - 1) // 2
    npj = (k + 1) // 2
    Wp = _round_up(W + 2 * p, 16)        # 16-aligned row stride (bf16 sublanes)

    def footprint(th):                   # per-grid-step VMEM estimate (bytes)
        tin = (th + k) * Wp * Cin * 2
        tout = th * Wp * max(Cout, 1) * 4
        acc = (th * Wp + 1) * 2 * max(Cout, 64) * 4
        wts = k * npj * Cin * 2 * max(Cout, 1) * 2
        return 2 * tin + 2 * tout + acc + 2 * wts

    tile_h = max(1, min(H, 16))
    while tile_h > 1 and footprint(tile_h) > 10 * 2 ** 20:  # fits v5e default
        tile_h = max(1, tile_h // 2)
    Tn = _cdiv(H, tile_h)
    tile_m = tile_h * Wp

    xtiles, tile_in = _halo_row_tiles(x_nhwc, k, p, Wp, tile_h, Tn)
    cparams = pltpu.CompilerParams(
        dimension_semantics=("parallel", "parallel"),
        vmem_limit_bytes=32 * 1024 * 1024)

    if Cout == 1:
        wk = jnp.transpose(w_oihw, (2, 3, 0, 1)).reshape(k * k, 1, Cin)
        wk = wk.astype(jnp.float32)
        bb = b.astype(jnp.float32).reshape(1, 1)
        out = pl.pallas_call(
            functools.partial(_conv_same_cout1_kernel, ksize=k, wp=Wp, relu=relu),
            out_shape=jax.ShapeDtypeStruct((N, Tn, tile_m, 1), jnp.float32),
            grid_spec=pltpu.PrefetchScalarGridSpec(
                num_scalar_prefetch=0,
                grid=(N, Tn),
                in_specs=[
                    pl.BlockSpec((1, 1, tile_in, Cin), lambda n, t: (n, t, 0, 0)),
                    pl.BlockSpec((k * k, 1, Cin), lambda n, t: (0, 0, 0)),
                    pl.BlockSpec((1, 1), lambda n, t: (0, 0)),
                ],
                out_specs=pl.BlockSpec((1, 1, tile_m, 1), lambda n, t: (n, t, 0, 0)),
            ),
            compiler_params=cparams,
        )(xtiles, wk, bb)
        return out.reshape(N, Tn * tile_h, Wp, 1)[:, :H, :W, :]

    # Pack kw-tap pairs into one 2*Cout (=128) lane RHS so every matmul fills
    # the MXU result lanes; the dw=last lone tap is paired with a zero tap.
    wk = jnp.transpose(w_oihw, (2, 3, 1, 0))             # (k, k, Cin, Cout)
    w_even = wk[:, 0::2]                                  # taps dw = 0, 2, 4
    w_odd = wk[:, 1::2]                                   # taps dw = 1, 3
    if k % 2 == 1:
        w_odd = jnp.concatenate([w_odd, jnp.zeros_like(wk[:, :1])], axis=1)
    w_pk = jnp.concatenate([w_even, w_odd], axis=-1)      # (k, npj, Cin, 2*Cout)
    w_pk = w_pk.reshape(k * npj, Cin, 2 * Cout).astype(jnp.bfloat16)

    bn = scale is not None
    if not bn:
        scale = jnp.ones((Cout,), jnp.float32)
        shift = jnp.zeros((Cout,), jnp.float32)
    bst = jnp.stack([b.astype(jnp.float32),
                     scale.astype(jnp.float32),
                     shift.astype(jnp.float32)], axis=0)  # (3, Cout)

    out = pl.pallas_call(
        functools.partial(_conv_same_kernel, ksize=k, wp=Wp, relu=relu, bn=bn),
        out_shape=jax.ShapeDtypeStruct((N, Tn, tile_m, Cout), jnp.bfloat16),
        grid_spec=pltpu.PrefetchScalarGridSpec(
            num_scalar_prefetch=0,
            grid=(N, Tn),
            in_specs=[
                pl.BlockSpec((1, 1, tile_in, Cin), lambda n, t: (n, t, 0, 0)),
                pl.BlockSpec((k * npj, Cin, 2 * Cout), lambda n, t: (0, 0, 0)),
                pl.BlockSpec((3, Cout), lambda n, t: (0, 0)),
            ],
            out_specs=pl.BlockSpec((1, 1, tile_m, Cout), lambda n, t: (n, t, 0, 0)),
        ),
        compiler_params=cparams,
    )(xtiles, w_pk, bst)
    return out.reshape(N, Tn * tile_h, Wp, Cout)[:, :H, :W, :]


# ---------------------------------------------------------------------------
# Kernel 3: 2x2 max pool on a lane-dense (…, Wo, 2*C = 128) view: adjacent
# column pairs live in lane halves, adjacent row pairs in the small axis.
# ---------------------------------------------------------------------------

def _maxpool_kernel(x_ref, o_ref):
    c = o_ref.shape[3]
    v = x_ref[0]                                  # (rh, 2, Wo, 2*C)
    m = jnp.maximum(v[:, 0], v[:, 1])             # row-pair max   (rh, Wo, 2*C)
    o_ref[0] = jnp.maximum(m[..., :c], m[..., c:])  # column-pair (lane-half) max


def maxpool_2x2(y_nhwc):
    N, H1, W1, C = y_nhwc.shape
    Ho, Wo = H1 // 2, W1 // 2
    y = y_nhwc[:, :2 * Ho, :2 * Wo, :]
    yr = y.reshape(N, Ho, 2, Wo, 2 * C)           # free reshape; 2*C = 128 lanes
    rh = max(1, min(Ho, 16))
    Hp = _round_up(Ho, rh)
    if Hp != Ho:
        yr = jnp.pad(yr, ((0, 0), (0, Hp - Ho), (0, 0), (0, 0), (0, 0)))
    out = pl.pallas_call(
        _maxpool_kernel,
        out_shape=jax.ShapeDtypeStruct((N, Hp, Wo, C), y_nhwc.dtype),
        grid_spec=pltpu.PrefetchScalarGridSpec(
            num_scalar_prefetch=0,
            grid=(N, Hp // rh),
            in_specs=[pl.BlockSpec((1, rh, 2, Wo, 2 * C),
                                   lambda n, r: (n, r, 0, 0, 0))],
            out_specs=pl.BlockSpec((1, rh, Wo, C), lambda n, r: (n, r, 0, 0)),
        ),
        compiler_params=pltpu.CompilerParams(
            dimension_semantics=("parallel", "parallel")),
    )(yr)
    return out[:, :Ho]


# ---------------------------------------------------------------------------
# Kernel 4: bilinear x2 upsample (align_corners=True) of a 1-channel map as
# out = A_h @ img @ A_w^T with precomputed interpolation matrices.
# ---------------------------------------------------------------------------

def _bilinear_kernel(x_ref, ah_ref, awt_ref, o_ref):
    tmp = jnp.dot(x_ref[0], awt_ref[...], preferred_element_type=jnp.float32)
    o_ref[0] = jnp.dot(ah_ref[...], tmp,
                       preferred_element_type=jnp.float32).astype(o_ref.dtype)


def _bilinear_matrix(n_in, n_out):
    # F.interpolate(mode='bilinear', align_corners=True) weights.
    src = np.arange(n_out, dtype=np.float64) * (n_in - 1) / (n_out - 1)
    i0 = np.minimum(np.floor(src).astype(np.int64), n_in - 2)
    frac = src - i0
    a = np.zeros((n_out, n_in), np.float32)
    a[np.arange(n_out), i0] = (1.0 - frac).astype(np.float32)
    a[np.arange(n_out), i0 + 1] = frac.astype(np.float32)
    return a


def bilinear_upsample_x2(y_nhw1):
    """(N, H, W, 1) -> (N, 2H, 2W, 1), bilinear, align_corners=True."""
    N, H, W, _ = y_nhw1.shape
    Ho, Wo = 2 * H, 2 * W
    a_h = jnp.asarray(_bilinear_matrix(H, Ho))          # (Ho, H)
    a_wt = jnp.asarray(_bilinear_matrix(W, Wo).T)       # (W, Wo)
    x = y_nhw1.reshape(N, H, W).astype(jnp.float32)
    out = pl.pallas_call(
        _bilinear_kernel,
        out_shape=jax.ShapeDtypeStruct((N, Ho, Wo), jnp.float32),
        grid_spec=pltpu.PrefetchScalarGridSpec(
            num_scalar_prefetch=0,
            grid=(N,),
            in_specs=[
                pl.BlockSpec((1, H, W), lambda n: (n, 0, 0)),
                pl.BlockSpec((Ho, H), lambda n: (0, 0)),
                pl.BlockSpec((W, Wo), lambda n: (0, 0)),
            ],
            out_specs=pl.BlockSpec((1, Ho, Wo), lambda n: (n, 0, 0)),
        ),
        compiler_params=pltpu.CompilerParams(dimension_semantics=("parallel",)),
    )(x, a_h, a_wt)
    return out.reshape(N, Ho, Wo, 1)


# ---------------------------------------------------------------------------
# Glue: bf16 im2col for the strided first conv, weight layout, BN folding.
# ---------------------------------------------------------------------------

def extract_patches(x_nhwc, ksize, pad, stride):
    """XLA-side im2col (bf16).  Rows ordered (n, ho, wo); cols (kh, kw, cin)."""
    # TODO(synk): could become a polyphase implicit-GEMM Pallas kernel too.
    N, H, W, C = x_nhwc.shape
    Ho = (H + 2 * pad - ksize) // stride + 1
    Wo = (W + 2 * pad - ksize) // stride + 1
    xp = jnp.pad(x_nhwc, ((0, 0), (pad, pad), (pad, pad), (0, 0)))
    cols = []
    for dh in range(ksize):
        for dw in range(ksize):
            cols.append(xp[:, dh:dh + stride * Ho:stride,
                           dw:dw + stride * Wo:stride, :])
    patches = jnp.stack(cols, axis=3)                 # (N, Ho, Wo, K*K, C)
    return patches.reshape(N * Ho * Wo, ksize * ksize * C), Ho, Wo


def _to_mat(w_oihw):
    """(Cout, Cin, KH, KW) -> (KH*KW*Cin, Cout), matching extract_patches cols."""
    cout, cin, kh, kw = w_oihw.shape
    return jnp.transpose(w_oihw, (2, 3, 1, 0)).reshape(kh * kw * cin, cout)


def bn_scale_shift(gamma, beta, mean, var, eps=1e-5):
    s = gamma * jax.lax.rsqrt(var + eps)
    return s, beta - mean * s


def init_params(key):
    ks = jax.random.split(key, 10)

    def conv_w(k, cout, cin, ksize):
        return 0.05 * jax.random.normal(k, (cout, cin, ksize, ksize), jnp.float32)

    def conv_b(k, cout):
        return 0.05 * jax.random.normal(k, (cout,), jnp.float32)

    def bn_defaults():
        return dict(gamma=jnp.ones((64,), jnp.float32),
                    beta=jnp.zeros((64,), jnp.float32),
                    mean=jnp.zeros((64,), jnp.float32),
                    var=jnp.ones((64,), jnp.float32))

    return {
        # input_img_proc: Conv2d(3, 64, 9, padding=4, stride=2)
        'w1': conv_w(ks[0], 64, 3, 9),   'b1': conv_b(ks[1], 64),
        # block
        'w2': conv_w(ks[2], 64, 128, 5), 'b2': conv_b(ks[3], 64),
        'w3': conv_w(ks[4], 64, 64, 5),  'b3': conv_b(ks[5], 64),
        'w4': conv_w(ks[6], 64, 64, 5),  'b4': conv_b(ks[7], 64),
        'w5': conv_w(ks[8], 1, 64, 5),   'b5': conv_b(ks[9], 1),
        'bn1': bn_defaults(), 'bn2': bn_defaults(), 'bn3': bn_defaults(),
    }


# ---------------------------------------------------------------------------
# Forward pass (matches Scale2.forward)
# ---------------------------------------------------------------------------

def scale2_forward(params, x, input_img):
    # x:         (N, 64, H/4, W/4)  NCHW
    # input_img: (N, 3,  H,   W)    NCHW
    img = jnp.transpose(input_img, (0, 2, 3, 1)).astype(jnp.bfloat16)   # NHWC bf16
    N = img.shape[0]

    # input_img_proc: Conv(3->64, 9x9, stride 2, pad 4) + ReLU, MaxPool 2x2
    patches, Ho1, Wo1 = extract_patches(img, ksize=9, pad=4, stride=2)
    y1 = matmul_bias_act(patches, _to_mat(params['w1']), params['b1'], relu=True)
    y1 = y1.reshape(N, Ho1, Wo1, 64)
    pooled = maxpool_2x2(y1)                                  # (N, H/4, W/4, 64) bf16

    # torch.cat((x, proc_img), dim=1): x channels first
    # TODO(synk): the concat is still materialized; w2 could be split into two
    # accumulating Cin=64 halves to skip this HBM round trip.
    x_nhwc = jnp.transpose(x, (0, 2, 3, 1)).astype(jnp.bfloat16)
    cat = jnp.concatenate([x_nhwc, pooled.astype(jnp.bfloat16)], axis=-1)

    # block: 3 x [Conv(5x5) + ReLU + BN] then Conv(64->1, 5x5)
    s1, t1 = bn_scale_shift(**params['bn1'])
    s2, t2 = bn_scale_shift(**params['bn2'])
    s3, t3 = bn_scale_shift(**params['bn3'])
    y2 = conv2d_same(cat, params['w2'], params['b2'], s1, t1, relu=True)
    y3 = conv2d_same(y2, params['w3'], params['b3'], s2, t2, relu=True)
    y4 = conv2d_same(y3, params['w4'], params['b4'], s3, t3, relu=True)
    y5 = conv2d_same(y4, params['w5'], params['b5'], relu=False)   # (N, H/4, W/4, 1)

    # F.interpolate(scale_factor=2, mode='bilinear', align_corners=True)
    out = bilinear_upsample_x2(y5)                                  # (N, H/2, W/2, 1)
    return jnp.transpose(out, (0, 3, 1, 2))                         # NCHW


if __name__ == "__main__":
    key = jax.random.PRNGKey(0)
    kp, kx, ki = jax.random.split(key, 3)

    params = init_params(kp)

    N, H, W = 2, 16, 16
    x = jax.random.normal(kx, (N, 64, H // 4, W // 4), jnp.float32)
    input_img = jax.random.normal(ki, (N, 3, H, W), jnp.float32)

    fwd = jax.jit(scale2_forward)
    out = fwd(params, x, input_img)
    jax.block_until_ready(out)

    assert out.shape == (N, 1, H // 2, W // 2), out.shape
    assert out.dtype == jnp.float32
    print("KERNEL_OK")
</pallas_src>

<mosaic_0001>
module attributes {stable_mosaic.version = 11 : i64} {
  func.func @_matmul_bias_act_kernel(%arg0: i32, %arg1: memref<16x256xbf16, #tpu.memory_space<vmem>>, %arg2: memref<256x64xbf16, #tpu.memory_space<vmem>>, %arg3: memref<1x64xf32, #tpu.memory_space<vmem>>, %arg4: memref<16x64xbf16, #tpu.memory_space<vmem>>) attributes {dimension_semantics = [#tpu.dimension_semantics<parallel>], iteration_bounds = array<i64: 8>, scalar_prefetch = 0 : i64, scratch_operands = 0 : i64, tpu.core_type = #tpu.core_type<tc>, window_params = [{transform_indices = @transform_0, window_bounds = array<i64: 16, 256>}, {pipeline_mode = #tpu.pipeline_mode<synchronous>, transform_indices = @transform_1, window_bounds = array<i64: 256, 64>}, {pipeline_mode = #tpu.pipeline_mode<synchronous>, transform_indices = @transform_2, window_bounds = array<i64: 1, 64>}, {transform_indices = @transform_3, window_bounds = array<i64: 16, 64>}]} {
    %c0 = arith.constant 0 : index
    %c0_0 = arith.constant 0 : index
    %0 = vector.load %arg1[%c0, %c0_0] : memref<16x256xbf16, #tpu.memory_space<vmem>>, vector<16x256xbf16>
    %c0_1 = arith.constant 0 : index
    %c0_2 = arith.constant 0 : index
    %1 = vector.load %arg2[%c0_1, %c0_2] : memref<256x64xbf16, #tpu.memory_space<vmem>>, vector<256x64xbf16>
    %cst = arith.constant dense<0.000000e+00> : vector<16x64xf32>
    %2 = tpu.matmul %0, %1, %cst {dimension_numbers = #tpu.dot_dimension_numbers<[1], [0], [0], [1], [0, 0, 1, 1], [], []>} : vector<16x256xbf16>, vector<256x64xbf16>, vector<16x64xf32> -> vector<16x64xf32>
    %c0_3 = arith.constant 0 : index
    %c0_4 = arith.constant 0 : index
    %3 = vector.load %arg3[%c0_3, %c0_4] : memref<1x64xf32, #tpu.memory_space<vmem>>, vector<1x64xf32>
    %4 = vector.broadcast %3 : vector<1x64xf32> to vector<16x64xf32>
    %5 = arith.addf %2, %4 : vector<16x64xf32>
    %cst_5 = arith.constant 0.000000e+00 : f32
    %6 = vector.broadcast %cst_5 : f32 to vector<16x64xf32>
    %7 = arith.maximumf %5, %6 : vector<16x64xf32>
    %8 = arith.truncf %7 : vector<16x64xf32> to vector<16x64xbf16>
    %c0_6 = arith.constant 0 : index
    %c0_7 = arith.constant 0 : index
    %9 = vector.load %arg4[%c0_6, %c0_7] : memref<16x64xbf16, #tpu.memory_space<vmem>>, vector<16x64xbf16>
    tpu.vector_store %arg4[%c0_6, %c0_7], %8 {strides = array<i32>} : memref<16x64xbf16, #tpu.memory_space<vmem>>, vector<16x64xbf16>,
    return
  }
  func.func @transform_0(%arg0: i32) -> (i32, i32) {
    %c0_i32 = arith.constant 0 : i32
    %c0_i32_0 = arith.constant 0 : i32
    return %arg0, %c0_i32 : i32, i32
  }
  func.func @transform_1(%arg0: i32) -> (i32, i32) {
    %c0_i32 = arith.constant 0 : i32
    %c0_i32_0 = arith.constant 0 : i32
    %c0_i32_1 = arith.constant 0 : i32
    return %c0_i32, %c0_i32_0 : i32, i32
  }
  func.func @transform_2(%arg0: i32) -> (i32, i32) {
    %c0_i32 = arith.constant 0 : i32
    %c0_i32_0 = arith.constant 0 : i32
    %c0_i32_1 = arith.constant 0 : i32
    return %c0_i32, %c0_i32_0 : i32, i32
  }
  func.func @transform_3(%arg0: i32) -> (i32, i32) {
    %c0_i32 = arith.constant 0 : i32
    %c0_i32_0 = arith.constant 0 : i32
    return %arg0, %c0_i32 : i32, i32
  }
}

module attributes {stable_mosaic.version = 11 : i64} {
  func.func @_maxpool_kernel(%arg0: i32, %arg1: i32, %arg2: memref<1x4x2x4x128xbf16, #tpu.memory_space<vmem>>, %arg3: memref<1x4x4x64xbf16, #tpu.memory_space<vmem>>) attributes {dimension_semantics = [#tpu.dimension_semantics<parallel>, #tpu.dimension_semantics<parallel>], iteration_bounds = array<i64: 2, 1>, scalar_prefetch = 0 : i64, scratch_operands = 0 : i64, tpu.core_type = #tpu.core_type<tc>, window_params = [{transform_indices = @transform_0, window_bounds = array<i64: 1, 4, 2, 4, 128>}, {transform_indices = @transform_1, window_bounds = array<i64: 1, 4, 4, 64>}]} {
    %c0 = arith.constant 0 : index
    %c0_0 = arith.constant 0 : index
    %c0_1 = arith.constant 0 : index
    %c0_2 = arith.constant 0 : index
    %c0_3 = arith.constant 0 : index
    %0 = vector.load %arg2[%c0, %c0_0, %c0_1, %c0_2, %c0_3] : memref<1x4x2x4x128xbf16, #tpu.memory_space<vmem>>, vector<1x4x2x4x128xbf16>
    %1 = vector.shape_cast %0 : vector<1x4x2x4x128xbf16> to vector<4x2x4x128xbf16>
    %2 = vector.extract_strided_slice %1 {offsets = [0, 0, 0, 0], sizes = [4, 1, 4, 128], strides = [1, 1, 1, 1]} : vector<4x2x4x128xbf16> to vector<4x1x4x128xbf16>
    %3 = vector.shape_cast %2 : vector<4x1x4x128xbf16> to vector<4x4x128xbf16>
    %4 = vector.extract_strided_slice %1 {offsets = [0, 1, 0, 0], sizes = [4, 1, 4, 128], strides = [1, 1, 1, 1]} : vector<4x2x4x128xbf16> to vector<4x1x4x128xbf16>
    %5 = vector.shape_cast %4 : vector<4x1x4x128xbf16> to vector<4x4x128xbf16>
    %6 = arith.maximumf %3, %5 : vector<4x4x128xbf16>
    %7 = vector.extract_strided_slice %6 {offsets = [0, 0, 0], sizes = [4, 4, 64], strides = [1, 1, 1]} : vector<4x4x128xbf16> to vector<4x4x64xbf16>
    %8 = vector.extract_strided_slice %6 {offsets = [0, 0, 64], sizes = [4, 4, 64], strides = [1, 1, 1]} : vector<4x4x128xbf16> to vector<4x4x64xbf16>
    %9 = arith.maximumf %7, %8 : vector<4x4x64xbf16>
    %c0_4 = arith.constant 0 : index
    %c0_5 = arith.constant 0 : index
    %c0_6 = arith.constant 0 : index
    %c0_7 = arith.constant 0 : index
    %10 = vector.load %arg3[%c0_4, %c0_5, %c0_6, %c0_7] : memref<1x4x4x64xbf16, #tpu.memory_space<vmem>>, vector<1x4x4x64xbf16>
    %11 = vector.shape_cast %10 : vector<1x4x4x64xbf16> to vector<4x4x64xbf16>
    %12 = vector.shape_cast %9 : vector<4x4x64xbf16> to vector<1x4x4x64xbf16>
    tpu.vector_store %arg3[%c0_4, %c0_5, %c0_6, %c0_7], %12 {strides = array<i32>} : memref<1x4x4x64xbf16, #tpu.memory_space<vmem>>, vector<1x4x4x64xbf16>,
    return
  }
  func.func @transform_0(%arg0: i32, %arg1: i32) -> (i32, i32, i32, i32, i32) {
    %c0_i32 = arith.constant 0 : i32
    %c0_i32_0 = arith.constant 0 : i32
    %c0_i32_1 = arith.constant 0 : i32
    %c0_i32_2 = arith.constant 0 : i32
    return %arg0, %arg1, %c0_i32, %c0_i32_0, %c0_i32_1 : i32, i32, i32, i32, i32
  }
  func.func @transform_1(%arg0: i32, %arg1: i32) -> (i32, i32, i32, i32) {
    %c0_i32 = arith.constant 0 : i32
    %c0_i32_0 = arith.constant 0 : i32
    %c0_i32_1 = arith.constant 0 : i32
    return %arg0, %arg1, %c0_i32, %c0_i32_0 : i32, i32, i32, i32
  }
}

module attributes {stable_mosaic.version = 11 : i64} {
  func.func @_conv_same_kernel(%arg0: i32, %arg1: i32, %arg2: memref<1x1x144x128xbf16, #tpu.memory_space<vmem>>, %arg3: memref<15x128x128xbf16, #tpu.memory_space<vmem>>, %arg4: memref<3x64xf32, #tpu.memory_space<vmem>>, %arg5: memref<1x1x64x64xbf16, #tpu.memory_space<vmem>>) attributes {dimension_semantics = [#tpu.dimension_semantics<parallel>, #tpu.dimension_semantics<parallel>], iteration_bounds = array<i64: 2, 1>, scalar_prefetch = 0 : i64, scratch_operands = 0 : i64, tpu.core_type = #tpu.core_type<tc>, window_params = [{transform_indices = @transform_0, window_bounds = array<i64: 1, 1, 144, 128>}, {pipeline_mode = #tpu.pipeline_mode<synchronous>, transform_indices = @transform_1, window_bounds = array<i64: 15, 128, 128>}, {pipeline_mode = #tpu.pipeline_mode<synchronous>, transform_indices = @transform_2, window_bounds = array<i64: 3, 64>}, {transform_indices = @transform_3, window_bounds = array<i64: 1, 1, 64, 64>}]} {
    %cst = arith.constant 0.000000e+00 : f32
    %0 = vector.broadcast %cst : f32 to vector<65x128xf32>
    %c0 = arith.constant 0 : index
    %c0_0 = arith.constant 0 : index
    %c0_1 = arith.constant 0 : index
    %c0_2 = arith.constant 0 : index
    %1 = vector.load %arg2[%c0, %c0_0, %c0_1, %c0_2] : memref<1x1x144x128xbf16, #tpu.memory_space<vmem>>, vector<1x1x65x128xbf16>
    %2 = vector.shape_cast %1 : vector<1x1x65x128xbf16> to vector<65x128xbf16>
    %c0_3 = arith.constant 0 : index
    %c0_4 = arith.constant 0 : index
    %c0_5 = arith.constant 0 : index
    %3 = vector.load %arg3[%c0_3, %c0_4, %c0_5] : memref<15x128x128xbf16, #tpu.memory_space<vmem>>, vector<1x128x128xbf16>
    %4 = vector.shape_cast %3 : vector<1x128x128xbf16> to vector<128x128xbf16>
    %cst_6 = arith.constant dense<0.000000e+00> : vector<65x128xf32>
    %5 = tpu.matmul %2, %4, %cst_6 {dimension_numbers = #tpu.dot_dimension_numbers<[1], [0], [0], [1], [0, 0, 1, 1], [], []>} : vector<65x128xbf16>, vector<128x128xbf16>, vector<65x128xf32> -> vector<65x128xf32>
    %6 = arith.addf %0, %5 : vector<65x128xf32>
    %c0_7 = arith.constant 0 : index
    %c0_8 = arith.constant 0 : index
    %c2 = arith.constant 2 : index
    %c0_9 = arith.constant 0 : index
    %7 = vector.load %arg2[%c0_7, %c0_8, %c2, %c0_9] : memref<1x1x144x128xbf16, #tpu.memory_space<vmem>>, vector<1x1x65x128xbf16>
    %8 = vector.shape_cast %7 : vector<1x1x65x128xbf16> to vector<65x128xbf16>
    %c1 = arith.constant 1 : index
    %c0_10 = arith.constant 0 : index
    %c0_11 = arith.constant 0 : index
    %9 = vector.load %arg3[%c1, %c0_10, %c0_11] : memref<15x128x128xbf16, #tpu.memory_space<vmem>>, vector<1x128x128xbf16>
    %10 = vector.shape_cast %9 : vector<1x128x128xbf16> to vector<128x128xbf16>
    %cst_12 = arith.constant dense<0.000000e+00> : vector<65x128xf32>
    %11 = tpu.matmul %8, %10, %cst_12 {dimension_numbers = #tpu.dot_dimension_numbers<[1], [0], [0], [1], [0, 0, 1, 1], [], []>} : vector<65x128xbf16>, vector<128x128xbf16>, vector<65x128xf32> -> vector<65x128xf32>
    %12 = arith.addf %6, %11 : vector<65x128xf32>
    %c0_13 = arith.constant 0 : index
    %c0_14 = arith.constant 0 : index
    %c4 = arith.constant 4 : index
    %c0_15 = arith.constant 0 : index
    %13 = vector.load %arg2[%c0_13, %c0_14, %c4, %c0_15] : memref<1x1x144x128xbf16, #tpu.memory_space<vmem>>, vector<1x1x65x128xbf16>
    %14 = vector.shape_cast %13 : vector<1x1x65x128xbf16> to vector<65x128xbf16>
    %c2_16 = arith.constant 2 : index
    %c0_17 = arith.constant 0 : index
    %c0_18 = arith.constant 0 : index
    %15 = vector.load %arg3[%c2_16, %c0_17, %c0_18] : memref<15x128x128xbf16, #tpu.memory_space<vmem>>, vector<1x128x128xbf16>
    %16 = vector.shape_cast %15 : vector<1x128x128xbf16> to vector<128x128xbf16>
    %cst_19 = arith.constant dense<0.000000e+00> : vector<65x128xf32>
    %17 = tpu.matmul %14, %16, %cst_19 {dimension_numbers = #tpu.dot_dimension_numbers<[1], [0], [0], [1], [0, 0, 1, 1], [], []>} : vector<65x128xbf16>, vector<128x128xbf16>, vector<65x128xf32> -> vector<65x128xf32>
    %18 = arith.addf %12, %17 : vector<65x128xf32>
    %c0_20 = arith.constant 0 : index
    %c0_21 = arith.constant 0 : index
    %c16 = arith.constant 16 : index
    %c0_22 = arith.constant 0 : index
    %19 = vector.load %arg2[%c0_20, %c0_21, %c16, %c0_22] : memref<1x1x144x128xbf16, #tpu.memory_space<vmem>>, vector<1x1x65x128xbf16>
    %20 = vector.shape_cast %19 : vector<1x1x65x128xbf16> to vector<65x128xbf16>
    %c3 = arith.constant 3 : index
    %c0_23 = arith.constant 0 : index
    %c0_24 = arith.constant 0 : index
    %21 = vector.load %arg3[%c3, %c0_23, %c0_24] : memref<15x128x128xbf16, #tpu.memory_space<vmem>>, vector<1x128x128xbf16>
    %22 = vector.shape_cast %21 : vector<1x128x128xbf16> to vector<128x128xbf16>
    %cst_25 = arith.constant dense<0.000000e+00> : vector<65x128xf32>
    %23 = tpu.matmul %20, %22, %cst_25 {dimension_numbers = #tpu.dot_dimension_numbers<[1], [0], [0], [1], [0, 0, 1, 1], [], []>} : vector<65x128xbf16>, vector<128x128xbf16>, vector<65x128xf32> -> vector<65x128xf32>
    %24 = arith.addf %18, %23 : vector<65x128xf32>
    %c0_26 = arith.constant 0 : index
    %c0_27 = arith.constant 0 : index
    %c18 = arith.constant 18 : index
    %c0_28 = arith.constant 0 : index
    %25 = vector.load %arg2[%c0_26, %c0_27, %c18, %c0_28] : memref<1x1x144x128xbf16, #tpu.memory_space<vmem>>, vector<1x1x65x128xbf16>
    %26 = vector.shape_cast %25 : vector<1x1x65x128xbf16> to vector<65x128xbf16>
    %c4_29 = arith.constant 4 : index
    %c0_30 = arith.constant 0 : index
    %c0_31 = arith.constant 0 : index
    %27 = vector.load %arg3[%c4_29, %c0_30, %c0_31] : memref<15x128x128xbf16, #tpu.memory_space<vmem>>, vector<1x128x128xbf16>
    %28 = vector.shape_cast %27 : vector<1x128x128xbf16> to vector<128x128xbf16>
    %cst_32 = arith.constant dense<0.000000e+00> : vector<65x128xf32>
    %29 = tpu.matmul %26, %28, %cst_32 {dimension_numbers = #tpu.dot_dimension_numbers<[1], [0], [0], [1], [0, 0, 1, 1], [], []>} : vector<65x128xbf16>, vector<128x128xbf16>, vector<65x128xf32> -> vector<65x128xf32>
    %30 = arith.addf %24, %29 : vector<65x128xf32>
    %c0_33 = arith.constant 0 : index
    %c0_34 = arith.constant 0 : index
    %c20 = arith.constant 20 : index
    %c0_35 = arith.constant 0 : index
    %31 = vector.load %arg2[%c0_33, %c0_34, %c20, %c0_35] : memref<1x1x144x128xbf16, #tpu.memory_space<vmem>>, vector<1x1x65x128xbf16>
    %32 = vector.shape_cast %31 : vector<1x1x65x128xbf16> to vector<65x128xbf16>
    %c5 = arith.constant 5 : index
    %c0_36 = arith.constant 0 : index
    %c0_37 = arith.constant 0 : index
    %33 = vector.load %arg3[%c5, %c0_36, %c0_37] : memref<15x128x128xbf16, #tpu.memory_space<vmem>>, vector<1x128x128xbf16>
    %34 = vector.shape_cast %33 : vector<1x128x128xbf16> to vector<128x128xbf16>
    %cst_38 = arith.constant dense<0.000000e+00> : vector<65x128xf32>
    %35 = tpu.matmul %32, %34, %cst_38 {dimension_numbers = #tpu.dot_dimension_numbers<[1], [0], [0], [1], [0, 0, 1, 1], [], []>} : vector<65x128xbf16>, vector<128x128xbf16>, vector<65x128xf32> -> vector<65x128xf32>
    %36 = arith.addf %30, %35 : vector<65x128xf32>
    %c0_39 = arith.constant 0 : index
    %c0_40 = arith.constant 0 : index
    %c32 = arith.constant 32 : index
    %c0_41 = arith.constant 0 : index
    %37 = vector.load %arg2[%c0_39, %c0_40, %c32, %c0_41] : memref<1x1x144x128xbf16, #tpu.memory_space<vmem>>, vector<1x1x65x128xbf16>
    %38 = vector.shape_cast %37 : vector<1x1x65x128xbf16> to vector<65x128xbf16>
    %c6 = arith.constant 6 : index
    %c0_42 = arith.constant 0 : index
    %c0_43 = arith.constant 0 : index
    %39 = vector.load %arg3[%c6, %c0_42, %c0_43] : memref<15x128x128xbf16, #tpu.memory_space<vmem>>, vector<1x128x128xbf16>
    %40 = vector.shape_cast %39 : vector<1x128x128xbf16> to vector<128x128xbf16>
    %cst_44 = arith.constant dense<0.000000e+00> : vector<65x128xf32>
    %41 = tpu.matmul %38, %40, %cst_44 {dimension_numbers = #tpu.dot_dimension_numbers<[1], [0], [0], [1], [0, 0, 1, 1], [], []>} : vector<65x128xbf16>, vector<128x128xbf16>, vector<65x128xf32> -> vector<65x128xf32>
    %42 = arith.addf %36, %41 : vector<65x128xf32>
    %c0_45 = arith.constant 0 : index
    %c0_46 = arith.constant 0 : index
    %c34 = arith.constant 34 : index
    %c0_47 = arith.constant 0 : index
    %43 = vector.load %arg2[%c0_45, %c0_46, %c34, %c0_47] : memref<1x1x144x128xbf16, #tpu.memory_space<vmem>>, vector<1x1x65x128xbf16>
    %44 = vector.shape_cast %43 : vector<1x1x65x128xbf16> to vector<65x128xbf16>
    %c7 = arith.constant 7 : index
    %c0_48 = arith.constant 0 : index
    %c0_49 = arith.constant 0 : index
    %45 = vector.load %arg3[%c7, %c0_48, %c0_49] : memref<15x128x128xbf16, #tpu.memory_space<vmem>>, vector<1x128x128xbf16>
    %46 = vector.shape_cast %45 : vector<1x128x128xbf16> to vector<128x128xbf16>
    %cst_50 = arith.constant dense<0.000000e+00> : vector<65x128xf32>
    %47 = tpu.matmul %44, %46, %cst_50 {dimension_numbers = #tpu.dot_dimension_numbers<[1], [0], [0], [1], [0, 0, 1, 1], [], []>} : vector<65x128xbf16>, vector<128x128xbf16>, vector<65x128xf32> -> vector<65x128xf32>
    %48 = arith.addf %42, %47 : vector<65x128xf32>
    %c0_51 = arith.constant 0 : index
    %c0_52 = arith.constant 0 : index
    %c36 = arith.constant 36 : index
    %c0_53 = arith.constant 0 : index
    %49 = vector.load %arg2[%c0_51, %c0_52, %c36, %c0_53] : memref<1x1x144x128xbf16, #tpu.memory_space<vmem>>, vector<1x1x65x128xbf16>
    %50 = vector.shape_cast %49 : vector<1x1x65x128xbf16> to vector<65x128xbf16>
    %c8 = arith.constant 8 : index
    %c0_54 = arith.constant 0 : index
    %c0_55 = arith.constant 0 : index
    %51 = vector.load %arg3[%c8, %c0_54, %c0_55] : memref<15x128x128xbf16, #tpu.memory_space<vmem>>, vector<1x128x128xbf16>
    %52 = vector.shape_cast %51 : vector<1x128x128xbf16> to vector<128x128xbf16>
    %cst_56 = arith.constant dense<0.000000e+00> : vector<65x128xf32>
    %53 = tpu.matmul %50, %52, %cst_56 {dimension_numbers = #tpu.dot_dimension_numbers<[1], [0], [0], [1], [0, 0, 1, 1], [], []>} : vector<65x128xbf16>, vector<128x128xbf16>, vector<65x128xf32> -> vector<65x128xf32>
    %54 = arith.addf %48, %53 : vector<65x128xf32>
    %c0_57 = arith.constant 0 : index
    %c0_58 = arith.constant 0 : index
    %c48 = arith.constant 48 : index
    %c0_59 = arith.constant 0 : index
    %55 = vector.load %arg2[%c0_57, %c0_58, %c48, %c0_59] : memref<1x1x144x128xbf16, #tpu.memory_space<vmem>>, vector<1x1x65x128xbf16>
    %56 = vector.shape_cast %55 : vector<1x1x65x128xbf16> to vector<65x128xbf16>
    %c9 = arith.constant 9 : index
    %c0_60 = arith.constant 0 : index
    %c0_61 = arith.constant 0 : index
    %57 = vector.load %arg3[%c9, %c0_60, %c0_61] : memref<15x128x128xbf16, #tpu.memory_space<vmem>>, vector<1x128x128xbf16>
    %58 = vector.shape_cast %57 : vector<1x128x128xbf16> to vector<128x128xbf16>
    %cst_62 = arith.constant dense<0.000000e+00> : vector<65x128xf32>
    %59 = tpu.matmul %56, %58, %cst_62 {dimension_numbers = #tpu.dot_dimension_numbers<[1], [0], [0], [1], [0, 0, 1, 1], [], []>} : vector<65x128xbf16>, vector<128x128xbf16>, vector<65x128xf32> -> vector<65x128xf32>
    %60 = arith.addf %54, %59 : vector<65x128xf32>
    %c0_63 = arith.constant 0 : index
    %c0_64 = arith.constant 0 : index
    %c50 = arith.constant 50 : index
    %c0_65 = arith.constant 0 : index
    %61 = vector.load %arg2[%c0_63, %c0_64, %c50, %c0_65] : memref<1x1x144x128xbf16, #tpu.memory_space<vmem>>, vector<1x1x65x128xbf16>
    %62 = vector.shape_cast %61 : vector<1x1x65x128xbf16> to vector<65x128xbf16>
    %c10 = arith.constant 10 : index
    %c0_66 = arith.constant 0 : index
    %c0_67 = arith.constant 0 : index
    %63 = vector.load %arg3[%c10, %c0_66, %c0_67] : memref<15x128x128xbf16, #tpu.memory_space<vmem>>, vector<1x128x128xbf16>
    %64 = vector.shape_cast %63 : vector<1x128x128xbf16> to vector<128x128xbf16>
    %cst_68 = arith.constant dense<0.000000e+00> : vector<65x128xf32>
    %65 = tpu.matmul %62, %64, %cst_68 {dimension_numbers = #tpu.dot_dimension_numbers<[1], [0], [0], [1], [0, 0, 1, 1], [], []>} : vector<65x128xbf16>, vector<128x128xbf16>, vector<65x128xf32> -> vector<65x128xf32>
    %66 = arith.addf %60, %65 : vector<65x128xf32>
    %c0_69 = arith.constant 0 : index
    %c0_70 = arith.constant 0 : index
    %c52 = arith.constant 52 : index
    %c0_71 = arith.constant 0 : index
    %67 = vector.load %arg2[%c0_69, %c0_70, %c52, %c0_71] : memref<1x1x144x128xbf16, #tpu.memory_space<vmem>>, vector<1x1x65x128xbf16>
    %68 = vector.shape_cast %67 : vector<1x1x65x128xbf16> to vector<65x128xbf16>
    %c11 = arith.constant 11 : index
    %c0_72 = arith.constant 0 : index
    %c0_73 = arith.constant 0 : index
    %69 = vector.load %arg3[%c11, %c0_72, %c0_73] : memref<15x128x128xbf16, #tpu.memory_space<vmem>>, vector<1x128x128xbf16>
    %70 = vector.shape_cast %69 : vector<1x128x128xbf16> to vector<128x128xbf16>
    %cst_74 = arith.constant dense<0.000000e+00> : vector<65x128xf32>
    %71 = tpu.matmul %68, %70, %cst_74 {dimension_numbers = #tpu.dot_dimension_numbers<[1], [0], [0], [1], [0, 0, 1, 1], [], []>} : vector<65x128xbf16>, vector<128x128xbf16>, vector<65x128xf32> -> vector<65x128xf32>
    %72 = arith.addf %66, %71 : vector<65x128xf32>
    %c0_75 = arith.constant 0 : index
    %c0_76 = arith.constant 0 : index
    %c64 = arith.constant 64 : index
    %c0_77 = arith.constant 0 : index
    %73 = vector.load %arg2[%c0_75, %c0_76, %c64, %c0_77] : memref<1x1x144x128xbf16, #tpu.memory_space<vmem>>, vector<1x1x65x128xbf16>
    %74 = vector.shape_cast %73 : vector<1x1x65x128xbf16> to vector<65x128xbf16>
    %c12 = arith.constant 12 : index
    %c0_78 = arith.constant 0 : index
    %c0_79 = arith.constant 0 : index
    %75 = vector.load %arg3[%c12, %c0_78, %c0_79] : memref<15x128x128xbf16, #tpu.memory_space<vmem>>, vector<1x128x128xbf16>
    %76 = vector.shape_cast %75 : vector<1x128x128xbf16> to vector<128x128xbf16>
    %cst_80 = arith.constant dense<0.000000e+00> : vector<65x128xf32>
    %77 = tpu.matmul %74, %76, %cst_80 {dimension_numbers = #tpu.dot_dimension_numbers<[1], [0], [0], [1], [0, 0, 1, 1], [], []>} : vector<65x128xbf16>, vector<128x128xbf16>, vector<65x128xf32> -> vector<65x128xf32>
    %78 = arith.addf %72, %77 : vector<65x128xf32>
    %c0_81 = arith.constant 0 : index
    %c0_82 = arith.constant 0 : index
    %c66 = arith.constant 66 : index
    %c0_83 = arith.constant 0 : index
    %79 = vector.load %arg2[%c0_81, %c0_82, %c66, %c0_83] : memref<1x1x144x128xbf16, #tpu.memory_space<vmem>>, vector<1x1x65x128xbf16>
    %80 = vector.shape_cast %79 : vector<1x1x65x128xbf16> to vector<65x128xbf16>
    %c13 = arith.constant 13 : index
    %c0_84 = arith.constant 0 : index
    %c0_85 = arith.constant 0 : index
    %81 = vector.load %arg3[%c13, %c0_84, %c0_85] : memref<15x128x128xbf16, #tpu.memory_space<vmem>>, vector<1x128x128xbf16>
    %82 = vector.shape_cast %81 : vector<1x128x128xbf16> to vector<128x128xbf16>
    %cst_86 = arith.constant dense<0.000000e+00> : vector<65x128xf32>
    %83 = tpu.matmul %80, %82, %cst_86 {dimension_numbers = #tpu.dot_dimension_numbers<[1], [0], [0], [1], [0, 0, 1, 1], [], []>} : vector<65x128xbf16>, vector<128x128xbf16>, vector<65x128xf32> -> vector<65x128xf32>
    %84 = arith.addf %78, %83 : vector<65x128xf32>
    %c0_87 = arith.constant 0 : index
    %c0_88 = arith.constant 0 : index
    %c68 = arith.constant 68 : index
    %c0_89 = arith.constant 0 : index
    %85 = vector.load %arg2[%c0_87, %c0_88, %c68, %c0_89] : memref<1x1x144x128xbf16, #tpu.memory_space<vmem>>, vector<1x1x65x128xbf16>
    %86 = vector.shape_cast %85 : vector<1x1x65x128xbf16> to vector<65x128xbf16>
    %c14 = arith.constant 14 : index
    %c0_90 = arith.constant 0 : index
    %c0_91 = arith.constant 0 : index
    %87 = vector.load %arg3[%c14, %c0_90, %c0_91] : memref<15x128x128xbf16, #tpu.memory_space<vmem>>, vector<1x128x128xbf16>
    %88 = vector.shape_cast %87 : vector<1x128x128xbf16> to vector<128x128xbf16>
    %cst_92 = arith.constant dense<0.000000e+00> : vector<65x128xf32>
    %89 = tpu.matmul %86, %88, %cst_92 {dimension_numbers = #tpu.dot_dimension_numbers<[1], [0], [0], [1], [0, 0, 1, 1], [], []>} : vector<65x128xbf16>, vector<128x128xbf16>, vector<65x128xf32> -> vector<65x128xf32>
    %90 = arith.addf %84, %89 : vector<65x128xf32>
    %91 = vector.extract_strided_slice %90 {offsets = [0, 0], sizes = [64, 64], strides = [1, 1]} : vector<65x128xf32> to vector<64x64xf32>
    %92 = vector.extract_strided_slice %90 {offsets = [1, 64], sizes = [64, 64], strides = [1, 1]} : vector<65x128xf32> to vector<64x64xf32>
    %93 = arith.addf %91, %92 : vector<64x64xf32>
    %c0_93 = arith.constant 0 : index
    %c0_94 = arith.constant 0 : index
    %94 = vector.load %arg4[%c0_93, %c0_94] : memref<3x64xf32, #tpu.memory_space<vmem>>, vector<1x64xf32>
    %95 = vector.broadcast %94 : vector<1x64xf32> to vector<64x64xf32>
    %96 = arith.addf %93, %95 : vector<64x64xf32>
    %cst_95 = arith.constant 0.000000e+00 : f32
    %97 = vector.broadcast %cst_95 : f32 to vector<64x64xf32>
    %98 = arith.maximumf %96, %97 : vector<64x64xf32>
    %c1_96 = arith.constant 1 : index
    %c0_97 = arith.constant 0 : index
    %99 = vector.load %arg4[%c1_96, %c0_97] : memref<3x64xf32, #tpu.memory_space<vmem>>, vector<1x64xf32>
    %100 = vector.broadcast %99 : vector<1x64xf32> to vector<64x64xf32>
    %101 = arith.mulf %98, %100 : vector<64x64xf32>
    %c2_98 = arith.constant 2 : index
    %c0_99 = arith.constant 0 : index
    %102 = vector.load %arg4[%c2_98, %c0_99] : memref<3x64xf32, #tpu.memory_space<vmem>>, vector<1x64xf32>
    %103 = vector.broadcast %102 : vector<1x64xf32> to vector<64x64xf32>
    %104 = arith.addf %101, %103 : vector<64x64xf32>
    %105 = arith.truncf %104 : vector<64x64xf32> to vector<64x64xbf16>
    %c0_100 = arith.constant 0 : index
    %c0_101 = arith.constant 0 : index
    %c0_102 = arith.constant 0 : index
    %c0_103 = arith.constant 0 : index
    %106 = vector.load %arg5[%c0_100, %c0_101, %c0_102, %c0_103] : memref<1x1x64x64xbf16, #tpu.memory_space<vmem>>, vector<1x1x64x64xbf16>
    %107 = vector.shape_cast %106 : vector<1x1x64x64xbf16> to vector<64x64xbf16>
    %108 = vector.shape_cast %105 : vector<64x64xbf16> to vector<1x1x64x64xbf16>
    tpu.vector_store %arg5[%c0_100, %c0_101, %c0_102, %c0_103], %108 {strides = array<i32>} : memref<1x1x64x64xbf16, #tpu.memory_space<vmem>>, vector<1x1x64x64xbf16>,
    return
  }
  func.func @transform_0(%arg0: i32, %arg1: i32) -> (i32, i32, i32, i32) {
    %c0_i32 = arith.constant 0 : i32
    %c0_i32_0 = arith.constant 0 : i32
    %c0_i32_1 = arith.constant 0 : i32
    return %arg0, %arg1, %c0_i32, %c0_i32_0 : i32, i32, i32, i32
  }
  func.func @transform_1(%arg0: i32, %arg1: i32) -> (i32, i32, i32) {
    %c0_i32 = arith.constant 0 : i32
    %c0_i32_0 = arith.constant 0 : i32
    %c0_i32_1 = arith.constant 0 : i32
    %c0_i32_2 = arith.constant 0 : i32
    return %c0_i32, %c0_i32_0, %c0_i32_1 : i32, i32, i32
  }
  func.func @transform_2(%arg0: i32, %arg1: i32) -> (i32, i32) {
    %c0_i32 = arith.constant 0 : i32
    %c0_i32_0 = arith.constant 0 : i32
    %c0_i32_1 = arith.constant 0 : i32
    return %c0_i32, %c0_i32_0 : i32, i32
  }
  func.func @transform_3(%arg0: i32, %arg1: i32) -> (i32, i32, i32, i32) {
    %c0_i32 = arith.constant 0 : i32
    %c0_i32_0 = arith.constant 0 : i32
    %c0_i32_1 = arith.constant 0 : i32
    return %arg0, %arg1, %c0_i32, %c0_i32_0 : i32, i32, i32, i32
  }
}

module attributes {stable_mosaic.version = 11 : i64} {
  func.func @_conv_same_kernel(%arg0: i32, %arg1: i32, %arg2: memref<1x1x144x64xbf16, #tpu.memory_space<vmem>>, %arg3: memref<15x64x128xbf16, #tpu.memory_space<vmem>>, %arg4: memref<3x64xf32, #tpu.memory_space<vmem>>, %arg5: memref<1x1x64x64xbf16, #tpu.memory_space<vmem>>) attributes {dimension_semantics = [#tpu.dimension_semantics<parallel>, #tpu.dimension_semantics<parallel>], iteration_bounds = array<i64: 2, 1>, scalar_prefetch = 0 : i64, scratch_operands = 0 : i64, tpu.core_type = #tpu.core_type<tc>, window_params = [{transform_indices = @transform_0, window_bounds = array<i64: 1, 1, 144, 64>}, {pipeline_mode = #tpu.pipeline_mode<synchronous>, transform_indices = @transform_1, window_bounds = array<i64: 15, 64, 128>}, {pipeline_mode = #tpu.pipeline_mode<synchronous>, transform_indices = @transform_2, window_bounds = array<i64: 3, 64>}, {transform_indices = @transform_3, window_bounds = array<i64: 1, 1, 64, 64>}]} {
    %cst = arith.constant 0.000000e+00 : f32
    %0 = vector.broadcast %cst : f32 to vector<65x128xf32>
    %c0 = arith.constant 0 : index
    %c0_0 = arith.constant 0 : index
    %c0_1 = arith.constant 0 : index
    %c0_2 = arith.constant 0 : index
    %1 = vector.load %arg2[%c0, %c0_0, %c0_1, %c0_2] : memref<1x1x144x64xbf16, #tpu.memory_space<vmem>>, vector<1x1x65x64xbf16>
    %2 = vector.shape_cast %1 : vector<1x1x65x64xbf16> to vector<65x64xbf16>
    %c0_3 = arith.constant 0 : index
    %c0_4 = arith.constant 0 : index
    %c0_5 = arith.constant 0 : index
    %3 = vector.load %arg3[%c0_3, %c0_4, %c0_5] : memref<15x64x128xbf16, #tpu.memory_space<vmem>>, vector<1x64x128xbf16>
    %4 = vector.shape_cast %3 : vector<1x64x128xbf16> to vector<64x128xbf16>
    %cst_6 = arith.constant dense<0.000000e+00> : vector<65x128xf32>
    %5 = tpu.matmul %2, %4, %cst_6 {dimension_numbers = #tpu.dot_dimension_numbers<[1], [0], [0], [1], [0, 0, 1, 1], [], []>} : vector<65x64xbf16>, vector<64x128xbf16>, vector<65x128xf32> -> vector<65x128xf32>
    %6 = arith.addf %0, %5 : vector<65x128xf32>
    %c0_7 = arith.constant 0 : index
    %c0_8 = arith.constant 0 : index
    %c2 = arith.constant 2 : index
    %c0_9 = arith.constant 0 : index
    %7 = vector.load %arg2[%c0_7, %c0_8, %c2, %c0_9] : memref<1x1x144x64xbf16, #tpu.memory_space<vmem>>, vector<1x1x65x64xbf16>
    %8 = vector.shape_cast %7 : vector<1x1x65x64xbf16> to vector<65x64xbf16>
    %c1 = arith.constant 1 : index
    %c0_10 = arith.constant 0 : index
    %c0_11 = arith.constant 0 : index
    %9 = vector.load %arg3[%c1, %c0_10, %c0_11] : memref<15x64x128xbf16, #tpu.memory_space<vmem>>, vector<1x64x128xbf16>
    %10 = vector.shape_cast %9 : vector<1x64x128xbf16> to vector<64x128xbf16>
    %cst_12 = arith.constant dense<0.000000e+00> : vector<65x128xf32>
    %11 = tpu.matmul %8, %10, %cst_12 {dimension_numbers = #tpu.dot_dimension_numbers<[1], [0], [0], [1], [0, 0, 1, 1], [], []>} : vector<65x64xbf16>, vector<64x128xbf16>, vector<65x128xf32> -> vector<65x128xf32>
    %12 = arith.addf %6, %11 : vector<65x128xf32>
    %c0_13 = arith.constant 0 : index
    %c0_14 = arith.constant 0 : index
    %c4 = arith.constant 4 : index
    %c0_15 = arith.constant 0 : index
    %13 = vector.load %arg2[%c0_13, %c0_14, %c4, %c0_15] : memref<1x1x144x64xbf16, #tpu.memory_space<vmem>>, vector<1x1x65x64xbf16>
    %14 = vector.shape_cast %13 : vector<1x1x65x64xbf16> to vector<65x64xbf16>
    %c2_16 = arith.constant 2 : index
    %c0_17 = arith.constant 0 : index
    %c0_18 = arith.constant 0 : index
    %15 = vector.load %arg3[%c2_16, %c0_17, %c0_18] : memref<15x64x128xbf16, #tpu.memory_space<vmem>>, vector<1x64x128xbf16>
    %16 = vector.shape_cast %15 : vector<1x64x128xbf16> to vector<64x128xbf16>
    %cst_19 = arith.constant dense<0.000000e+00> : vector<65x128xf32>
    %17 = tpu.matmul %14, %16, %cst_19 {dimension_numbers = #tpu.dot_dimension_numbers<[1], [0], [0], [1], [0, 0, 1, 1], [], []>} : vector<65x64xbf16>, vector<64x128xbf16>, vector<65x128xf32> -> vector<65x128xf32>
    %18 = arith.addf %12, %17 : vector<65x128xf32>
    %c0_20 = arith.constant 0 : index
    %c0_21 = arith.constant 0 : index
    %c16 = arith.constant 16 : index
    %c0_22 = arith.constant 0 : index
    %19 = vector.load %arg2[%c0_20, %c0_21, %c16, %c0_22] : memref<1x1x144x64xbf16, #tpu.memory_space<vmem>>, vector<1x1x65x64xbf16>
    %20 = vector.shape_cast %19 : vector<1x1x65x64xbf16> to vector<65x64xbf16>
    %c3 = arith.constant 3 : index
    %c0_23 = arith.constant 0 : index
    %c0_24 = arith.constant 0 : index
    %21 = vector.load %arg3[%c3, %c0_23, %c0_24] : memref<15x64x128xbf16, #tpu.memory_space<vmem>>, vector<1x64x128xbf16>
    %22 = vector.shape_cast %21 : vector<1x64x128xbf16> to vector<64x128xbf16>
    %cst_25 = arith.constant dense<0.000000e+00> : vector<65x128xf32>
    %23 = tpu.matmul %20, %22, %cst_25 {dimension_numbers = #tpu.dot_dimension_numbers<[1], [0], [0], [1], [0, 0, 1, 1], [], []>} : vector<65x64xbf16>, vector<64x128xbf16>, vector<65x128xf32> -> vector<65x128xf32>
    %24 = arith.addf %18, %23 : vector<65x128xf32>
    %c0_26 = arith.constant 0 : index
    %c0_27 = arith.constant 0 : index
    %c18 = arith.constant 18 : index
    %c0_28 = arith.constant 0 : index
    %25 = vector.load %arg2[%c0_26, %c0_27, %c18, %c0_28] : memref<1x1x144x64xbf16, #tpu.memory_space<vmem>>, vector<1x1x65x64xbf16>
    %26 = vector.shape_cast %25 : vector<1x1x65x64xbf16> to vector<65x64xbf16>
    %c4_29 = arith.constant 4 : index
    %c0_30 = arith.constant 0 : index
    %c0_31 = arith.constant 0 : index
    %27 = vector.load %arg3[%c4_29, %c0_30, %c0_31] : memref<15x64x128xbf16, #tpu.memory_space<vmem>>, vector<1x64x128xbf16>
    %28 = vector.shape_cast %27 : vector<1x64x128xbf16> to vector<64x128xbf16>
    %cst_32 = arith.constant dense<0.000000e+00> : vector<65x128xf32>
    %29 = tpu.matmul %26, %28, %cst_32 {dimension_numbers = #tpu.dot_dimension_numbers<[1], [0], [0], [1], [0, 0, 1, 1], [], []>} : vector<65x64xbf16>, vector<64x128xbf16>, vector<65x128xf32> -> vector<65x128xf32>
    %30 = arith.addf %24, %29 : vector<65x128xf32>
    %c0_33 = arith.constant 0 : index
    %c0_34 = arith.constant 0 : index
    %c20 = arith.constant 20 : index
    %c0_35 = arith.constant 0 : index
    %31 = vector.load %arg2[%c0_33, %c0_34, %c20, %c0_35] : memref<1x1x144x64xbf16, #tpu.memory_space<vmem>>, vector<1x1x65x64xbf16>
    %32 = vector.shape_cast %31 : vector<1x1x65x64xbf16> to vector<65x64xbf16>
    %c5 = arith.constant 5 : index
    %c0_36 = arith.constant 0 : index
    %c0_37 = arith.constant 0 : index
    %33 = vector.load %arg3[%c5, %c0_36, %c0_37] : memref<15x64x128xbf16, #tpu.memory_space<vmem>>, vector<1x64x128xbf16>
    %34 = vector.shape_cast %33 : vector<1x64x128xbf16> to vector<64x128xbf16>
    %cst_38 = arith.constant dense<0.000000e+00> : vector<65x128xf32>
    %35 = tpu.matmul %32, %34, %cst_38 {dimension_numbers = #tpu.dot_dimension_numbers<[1], [0], [0], [1], [0, 0, 1, 1], [], []>} : vector<65x64xbf16>, vector<64x128xbf16>, vector<65x128xf32> -> vector<65x128xf32>
    %36 = arith.addf %30, %35 : vector<65x128xf32>
    %c0_39 = arith.constant 0 : index
    %c0_40 = arith.constant 0 : index
    %c32 = arith.constant 32 : index
    %c0_41 = arith.constant 0 : index
    %37 = vector.load %arg2[%c0_39, %c0_40, %c32, %c0_41] : memref<1x1x144x64xbf16, #tpu.memory_space<vmem>>, vector<1x1x65x64xbf16>
    %38 = vector.shape_cast %37 : vector<1x1x65x64xbf16> to vector<65x64xbf16>
    %c6 = arith.constant 6 : index
    %c0_42 = arith.constant 0 : index
    %c0_43 = arith.constant 0 : index
    %39 = vector.load %arg3[%c6, %c0_42, %c0_43] : memref<15x64x128xbf16, #tpu.memory_space<vmem>>, vector<1x64x128xbf16>
    %40 = vector.shape_cast %39 : vector<1x64x128xbf16> to vector<64x128xbf16>
    %cst_44 = arith.constant dense<0.000000e+00> : vector<65x128xf32>
    %41 = tpu.matmul %38, %40, %cst_44 {dimension_numbers = #tpu.dot_dimension_numbers<[1], [0], [0], [1], [0, 0, 1, 1], [], []>} : vector<65x64xbf16>, vector<64x128xbf16>, vector<65x128xf32> -> vector<65x128xf32>
    %42 = arith.addf %36, %41 : vector<65x128xf32>
    %c0_45 = arith.constant 0 : index
    %c0_46 = arith.constant 0 : index
    %c34 = arith.constant 34 : index
    %c0_47 = arith.constant 0 : index
    %43 = vector.load %arg2[%c0_45, %c0_46, %c34, %c0_47] : memref<1x1x144x64xbf16, #tpu.memory_space<vmem>>, vector<1x1x65x64xbf16>
    %44 = vector.shape_cast %43 : vector<1x1x65x64xbf16> to vector<65x64xbf16>
    %c7 = arith.constant 7 : index
    %c0_48 = arith.constant 0 : index
    %c0_49 = arith.constant 0 : index
    %45 = vector.load %arg3[%c7, %c0_48, %c0_49] : memref<15x64x128xbf16, #tpu.memory_space<vmem>>, vector<1x64x128xbf16>
    %46 = vector.shape_cast %45 : vector<1x64x128xbf16> to vector<64x128xbf16>
    %cst_50 = arith.constant dense<0.000000e+00> : vector<65x128xf32>
    %47 = tpu.matmul %44, %46, %cst_50 {dimension_numbers = #tpu.dot_dimension_numbers<[1], [0], [0], [1], [0, 0, 1, 1], [], []>} : vector<65x64xbf16>, vector<64x128xbf16>, vector<65x128xf32> -> vector<65x128xf32>
    %48 = arith.addf %42, %47 : vector<65x128xf32>
    %c0_51 = arith.constant 0 : index
    %c0_52 = arith.constant 0 : index
    %c36 = arith.constant 36 : index
    %c0_53 = arith.constant 0 : index
    %49 = vector.load %arg2[%c0_51, %c0_52, %c36, %c0_53] : memref<1x1x144x64xbf16, #tpu.memory_space<vmem>>, vector<1x1x65x64xbf16>
    %50 = vector.shape_cast %49 : vector<1x1x65x64xbf16> to vector<65x64xbf16>
    %c8 = arith.constant 8 : index
    %c0_54 = arith.constant 0 : index
    %c0_55 = arith.constant 0 : index
    %51 = vector.load %arg3[%c8, %c0_54, %c0_55] : memref<15x64x128xbf16, #tpu.memory_space<vmem>>, vector<1x64x128xbf16>
    %52 = vector.shape_cast %51 : vector<1x64x128xbf16> to vector<64x128xbf16>
    %cst_56 = arith.constant dense<0.000000e+00> : vector<65x128xf32>
    %53 = tpu.matmul %50, %52, %cst_56 {dimension_numbers = #tpu.dot_dimension_numbers<[1], [0], [0], [1], [0, 0, 1, 1], [], []>} : vector<65x64xbf16>, vector<64x128xbf16>, vector<65x128xf32> -> vector<65x128xf32>
    %54 = arith.addf %48, %53 : vector<65x128xf32>
    %c0_57 = arith.constant 0 : index
    %c0_58 = arith.constant 0 : index
    %c48 = arith.constant 48 : index
    %c0_59 = arith.constant 0 : index
    %55 = vector.load %arg2[%c0_57, %c0_58, %c48, %c0_59] : memref<1x1x144x64xbf16, #tpu.memory_space<vmem>>, vector<1x1x65x64xbf16>
    %56 = vector.shape_cast %55 : vector<1x1x65x64xbf16> to vector<65x64xbf16>
    %c9 = arith.constant 9 : index
    %c0_60 = arith.constant 0 : index
    %c0_61 = arith.constant 0 : index
    %57 = vector.load %arg3[%c9, %c0_60, %c0_61] : memref<15x64x128xbf16, #tpu.memory_space<vmem>>, vector<1x64x128xbf16>
    %58 = vector.shape_cast %57 : vector<1x64x128xbf16> to vector<64x128xbf16>
    %cst_62 = arith.constant dense<0.000000e+00> : vector<65x128xf32>
    %59 = tpu.matmul %56, %58, %cst_62 {dimension_numbers = #tpu.dot_dimension_numbers<[1], [0], [0], [1], [0, 0, 1, 1], [], []>} : vector<65x64xbf16>, vector<64x128xbf16>, vector<65x128xf32> -> vector<65x128xf32>
    %60 = arith.addf %54, %59 : vector<65x128xf32>
    %c0_63 = arith.constant 0 : index
    %c0_64 = arith.constant 0 : index
    %c50 = arith.constant 50 : index
    %c0_65 = arith.constant 0 : index
    %61 = vector.load %arg2[%c0_63, %c0_64, %c50, %c0_65] : memref<1x1x144x64xbf16, #tpu.memory_space<vmem>>, vector<1x1x65x64xbf16>
    %62 = vector.shape_cast %61 : vector<1x1x65x64xbf16> to vector<65x64xbf16>
    %c10 = arith.constant 10 : index
    %c0_66 = arith.constant 0 : index
    %c0_67 = arith.constant 0 : index
    %63 = vector.load %arg3[%c10, %c0_66, %c0_67] : memref<15x64x128xbf16, #tpu.memory_space<vmem>>, vector<1x64x128xbf16>
    %64 = vector.shape_cast %63 : vector<1x64x128xbf16> to vector<64x128xbf16>
    %cst_68 = arith.constant dense<0.000000e+00> : vector<65x128xf32>
    %65 = tpu.matmul %62, %64, %cst_68 {dimension_numbers = #tpu.dot_dimension_numbers<[1], [0], [0], [1], [0, 0, 1, 1], [], []>} : vector<65x64xbf16>, vector<64x128xbf16>, vector<65x128xf32> -> vector<65x128xf32>
    %66 = arith.addf %60, %65 : vector<65x128xf32>
    %c0_69 = arith.constant 0 : index
    %c0_70 = arith.constant 0 : index
    %c52 = arith.constant 52 : index
    %c0_71 = arith.constant 0 : index
    %67 = vector.load %arg2[%c0_69, %c0_70, %c52, %c0_71] : memref<1x1x144x64xbf16, #tpu.memory_space<vmem>>, vector<1x1x65x64xbf16>
    %68 = vector.shape_cast %67 : vector<1x1x65x64xbf16> to vector<65x64xbf16>
    %c11 = arith.constant 11 : index
    %c0_72 = arith.constant 0 : index
    %c0_73 = arith.constant 0 : index
    %69 = vector.load %arg3[%c11, %c0_72, %c0_73] : memref<15x64x128xbf16, #tpu.memory_space<vmem>>, vector<1x64x128xbf16>
    %70 = vector.shape_cast %69 : vector<1x64x128xbf16> to vector<64x128xbf16>
    %cst_74 = arith.constant dense<0.000000e+00> : vector<65x128xf32>
    %71 = tpu.matmul %68, %70, %cst_74 {dimension_numbers = #tpu.dot_dimension_numbers<[1], [0], [0], [1], [0, 0, 1, 1], [], []>} : vector<65x64xbf16>, vector<64x128xbf16>, vector<65x128xf32> -> vector<65x128xf32>
    %72 = arith.addf %66, %71 : vector<65x128xf32>
    %c0_75 = arith.constant 0 : index
    %c0_76 = arith.constant 0 : index
    %c64 = arith.constant 64 : index
    %c0_77 = arith.constant 0 : index
    %73 = vector.load %arg2[%c0_75, %c0_76, %c64, %c0_77] : memref<1x1x144x64xbf16, #tpu.memory_space<vmem>>, vector<1x1x65x64xbf16>
    %74 = vector.shape_cast %73 : vector<1x1x65x64xbf16> to vector<65x64xbf16>
    %c12 = arith.constant 12 : index
    %c0_78 = arith.constant 0 : index
    %c0_79 = arith.constant 0 : index
    %75 = vector.load %arg3[%c12, %c0_78, %c0_79] : memref<15x64x128xbf16, #tpu.memory_space<vmem>>, vector<1x64x128xbf16>
    %76 = vector.shape_cast %75 : vector<1x64x128xbf16> to vector<64x128xbf16>
    %cst_80 = arith.constant dense<0.000000e+00> : vector<65x128xf32>
    %77 = tpu.matmul %74, %76, %cst_80 {dimension_numbers = #tpu.dot_dimension_numbers<[1], [0], [0], [1], [0, 0, 1, 1], [], []>} : vector<65x64xbf16>, vector<64x128xbf16>, vector<65x128xf32> -> vector<65x128xf32>
    %78 = arith.addf %72, %77 : vector<65x128xf32>
    %c0_81 = arith.constant 0 : index
    %c0_82 = arith.constant 0 : index
    %c66 = arith.constant 66 : index
    %c0_83 = arith.constant 0 : index
    %79 = vector.load %arg2[%c0_81, %c0_82, %c66, %c0_83] : memref<1x1x144x64xbf16, #tpu.memory_space<vmem>>, vector<1x1x65x64xbf16>
    %80 = vector.shape_cast %79 : vector<1x1x65x64xbf16> to vector<65x64xbf16>
    %c13 = arith.constant 13 : index
    %c0_84 = arith.constant 0 : index
    %c0_85 = arith.constant 0 : index
    %81 = vector.load %arg3[%c13, %c0_84, %c0_85] : memref<15x64x128xbf16, #tpu.memory_space<vmem>>, vector<1x64x128xbf16>
    %82 = vector.shape_cast %81 : vector<1x64x128xbf16> to vector<64x128xbf16>
    %cst_86 = arith.constant dense<0.000000e+00> : vector<65x128xf32>
    %83 = tpu.matmul %80, %82, %cst_86 {dimension_numbers = #tpu.dot_dimension_numbers<[1], [0], [0], [1], [0, 0, 1, 1], [], []>} : vector<65x64xbf16>, vector<64x128xbf16>, vector<65x128xf32> -> vector<65x128xf32>
    %84 = arith.addf %78, %83 : vector<65x128xf32>
    %c0_87 = arith.constant 0 : index
    %c0_88 = arith.constant 0 : index
    %c68 = arith.constant 68 : index
    %c0_89 = arith.constant 0 : index
    %85 = vector.load %arg2[%c0_87, %c0_88, %c68, %c0_89] : memref<1x1x144x64xbf16, #tpu.memory_space<vmem>>, vector<1x1x65x64xbf16>
    %86 = vector.shape_cast %85 : vector<1x1x65x64xbf16> to vector<65x64xbf16>
    %c14 = arith.constant 14 : index
    %c0_90 = arith.constant 0 : index
    %c0_91 = arith.constant 0 : index
    %87 = vector.load %arg3[%c14, %c0_90, %c0_91] : memref<15x64x128xbf16, #tpu.memory_space<vmem>>, vector<1x64x128xbf16>
    %88 = vector.shape_cast %87 : vector<1x64x128xbf16> to vector<64x128xbf16>
    %cst_92 = arith.constant dense<0.000000e+00> : vector<65x128xf32>
    %89 = tpu.matmul %86, %88, %cst_92 {dimension_numbers = #tpu.dot_dimension_numbers<[1], [0], [0], [1], [0, 0, 1, 1], [], []>} : vector<65x64xbf16>, vector<64x128xbf16>, vector<65x128xf32> -> vector<65x128xf32>
    %90 = arith.addf %84, %89 : vector<65x128xf32>
    %91 = vector.extract_strided_slice %90 {offsets = [0, 0], sizes = [64, 64], strides = [1, 1]} : vector<65x128xf32> to vector<64x64xf32>
    %92 = vector.extract_strided_slice %90 {offsets = [1, 64], sizes = [64, 64], strides = [1, 1]} : vector<65x128xf32> to vector<64x64xf32>
    %93 = arith.addf %91, %92 : vector<64x64xf32>
    %c0_93 = arith.constant 0 : index
    %c0_94 = arith.constant 0 : index
    %94 = vector.load %arg4[%c0_93, %c0_94] : memref<3x64xf32, #tpu.memory_space<vmem>>, vector<1x64xf32>
    %95 = vector.broadcast %94 : vector<1x64xf32> to vector<64x64xf32>
    %96 = arith.addf %93, %95 : vector<64x64xf32>
    %cst_95 = arith.constant 0.000000e+00 : f32
    %97 = vector.broadcast %cst_95 : f32 to vector<64x64xf32>
    %98 = arith.maximumf %96, %97 : vector<64x64xf32>
    %c1_96 = arith.constant 1 : index
    %c0_97 = arith.constant 0 : index
    %99 = vector.load %arg4[%c1_96, %c0_97] : memref<3x64xf32, #tpu.memory_space<vmem>>, vector<1x64xf32>
    %100 = vector.broadcast %99 : vector<1x64xf32> to vector<64x64xf32>
    %101 = arith.mulf %98, %100 : vector<64x64xf32>
    %c2_98 = arith.constant 2 : index
    %c0_99 = arith.constant 0 : index
    %102 = vector.load %arg4[%c2_98, %c0_99] : memref<3x64xf32, #tpu.memory_space<vmem>>, vector<1x64xf32>
    %103 = vector.broadcast %102 : vector<1x64xf32> to vector<64x64xf32>
    %104 = arith.addf %101, %103 : vector<64x64xf32>
    %105 = arith.truncf %104 : vector<64x64xf32> to vector<64x64xbf16>
    %c0_100 = arith.constant 0 : index
    %c0_101 = arith.constant 0 : index
    %c0_102 = arith.constant 0 : index
    %c0_103 = arith.constant 0 : index
    %106 = vector.load %arg5[%c0_100, %c0_101, %c0_102, %c0_103] : memref<1x1x64x64xbf16, #tpu.memory_space<vmem>>, vector<1x1x64x64xbf16>
    %107 = vector.shape_cast %106 : vector<1x1x64x64xbf16> to vector<64x64xbf16>
    %108 = vector.shape_cast %105 : vector<64x64xbf16> to vector<1x1x64x64xbf16>
    tpu.vector_store %arg5[%c0_100, %c0_101, %c0_102, %c0_103], %108 {strides = array<i32>} : memref<1x1x64x64xbf16, #tpu.memory_space<vmem>>, vector<1x1x64x64xbf16>,
    return
  }
  func.func @transform_0(%arg0: i32, %arg1: i32) -> (i32, i32, i32, i32) {
    %c0_i32 = arith.constant 0 : i32
    %c0_i32_0 = arith.constant 0 : i32
    %c0_i32_1 = arith.constant 0 : i32
    return %arg0, %arg1, %c0_i32, %c0_i32_0 : i32, i32, i32, i32
  }
  func.func @transform_1(%arg0: i32, %arg1: i32) -> (i32, i32, i32) {
    %c0_i32 = arith.constant 0 : i32
    %c0_i32_0 = arith.constant 0 : i32
    %c0_i32_1 = arith.constant 0 : i32
    %c0_i32_2 = arith.constant 0 : i32
    return %c0_i32, %c0_i32_0, %c0_i32_1 : i32, i32, i32
  }
  func.func @transform_2(%arg0: i32, %arg1: i32) -> (i32, i32) {
    %c0_i32 = arith.constant 0 : i32
    %c0_i32_0 = arith.constant 0 : i32
    %c0_i32_1 = arith.constant 0 : i32
    return %c0_i32, %c0_i32_0 : i32, i32
  }
  func.func @transform_3(%arg0: i32, %arg1: i32) -> (i32, i32, i32, i32) {
    %c0_i32 = arith.constant 0 : i32
    %c0_i32_0 = arith.constant 0 : i32
    %c0_i32_1 = arith.constant 0 : i32
    return %arg0, %arg1, %c0_i32, %c0_i32_0 : i32, i32, i32, i32
  }
}

module attributes {stable_mosaic.version = 11 : i64} {
  func.func @_conv_same_cout1_kernel(%arg0: i32, %arg1: i32, %arg2: memref<1x1x144x64xbf16, #tpu.memory_space<vmem>>, %arg3: memref<25x1x64xf32, #tpu.memory_space<vmem>>, %arg4: memref<1x1xf32, #tpu.memory_space<vmem>>, %arg5: memref<1x1x64x1xf32, #tpu.memory_space<vmem>>) attributes {dimension_semantics = [#tpu.dimension_semantics<parallel>, #tpu.dimension_semantics<parallel>], iteration_bounds = array<i64: 2, 1>, scalar_prefetch = 0 : i64, scratch_operands = 0 : i64, tpu.core_type = #tpu.core_type<tc>, window_params = [{transform_indices = @transform_0, window_bounds = array<i64: 1, 1, 144, 64>}, {pipeline_mode = #tpu.pipeline_mode<synchronous>, transform_indices = @transform_1, window_bounds = array<i64: 25, 1, 64>}, {pipeline_mode = #tpu.pipeline_mode<synchronous>, transform_indices = @transform_2, window_bounds = array<i64: 1, 1>}, {transform_indices = @transform_3, window_bounds = array<i64: 1, 1, 64, 1>}]} {
    %cst = arith.constant 0.000000e+00 : f32
    %0 = vector.broadcast %cst : f32 to vector<64x64xf32>
    %c0 = arith.constant 0 : index
    %c0_0 = arith.constant 0 : index
    %c0_1 = arith.constant 0 : index
    %c0_2 = arith.constant 0 : index
    %1 = vector.load %arg2[%c0, %c0_0, %c0_1, %c0_2] : memref<1x1x144x64xbf16, #tpu.memory_space<vmem>>, vector<1x1x64x64xbf16>
    %2 = vector.shape_cast %1 : vector<1x1x64x64xbf16> to vector<64x64xbf16>
    %3 = arith.extf %2 : vector<64x64xbf16> to vector<64x64xf32>
    %c0_3 = arith.constant 0 : index
    %c0_4 = arith.constant 0 : index
    %c0_5 = arith.constant 0 : index
    %4 = vector.load %arg3[%c0_3, %c0_4, %c0_5] : memref<25x1x64xf32, #tpu.memory_space<vmem>>, vector<1x1x64xf32>
    %5 = vector.shape_cast %4 : vector<1x1x64xf32> to vector<1x64xf32>
    %6 = vector.broadcast %5 : vector<1x64xf32> to vector<64x64xf32>
    %7 = arith.mulf %3, %6 : vector<64x64xf32>
    %8 = arith.addf %0, %7 : vector<64x64xf32>
    %c0_6 = arith.constant 0 : index
    %c0_7 = arith.constant 0 : index
    %c1 = arith.constant 1 : index
    %c0_8 = arith.constant 0 : index
    %9 = vector.load %arg2[%c0_6, %c0_7, %c1, %c0_8] : memref<1x1x144x64xbf16, #tpu.memory_space<vmem>>, vector<1x1x64x64xbf16>
    %10 = vector.shape_cast %9 : vector<1x1x64x64xbf16> to vector<64x64xbf16>
    %11 = arith.extf %10 : vector<64x64xbf16> to vector<64x64xf32>
    %c1_9 = arith.constant 1 : index
    %c0_10 = arith.constant 0 : index
    %c0_11 = arith.constant 0 : index
    %12 = vector.load %arg3[%c1_9, %c0_10, %c0_11] : memref<25x1x64xf32, #tpu.memory_space<vmem>>, vector<1x1x64xf32>
    %13 = vector.shape_cast %12 : vector<1x1x64xf32> to vector<1x64xf32>
    %14 = vector.broadcast %13 : vector<1x64xf32> to vector<64x64xf32>
    %15 = arith.mulf %11, %14 : vector<64x64xf32>
    %16 = arith.addf %8, %15 : vector<64x64xf32>
    %c0_12 = arith.constant 0 : index
    %c0_13 = arith.constant 0 : index
    %c2 = arith.constant 2 : index
    %c0_14 = arith.constant 0 : index
    %17 = vector.load %arg2[%c0_12, %c0_13, %c2, %c0_14] : memref<1x1x144x64xbf16, #tpu.memory_space<vmem>>, vector<1x1x64x64xbf16>
    %18 = vector.shape_cast %17 : vector<1x1x64x64xbf16> to vector<64x64xbf16>
    %19 = arith.extf %18 : vector<64x64xbf16> to vector<64x64xf32>
    %c2_15 = arith.constant 2 : index
    %c0_16 = arith.constant 0 : index
    %c0_17 = arith.constant 0 : index
    %20 = vector.load %arg3[%c2_15, %c0_16, %c0_17] : memref<25x1x64xf32, #tpu.memory_space<vmem>>, vector<1x1x64xf32>
    %21 = vector.shape_cast %20 : vector<1x1x64xf32> to vector<1x64xf32>
    %22 = vector.broadcast %21 : vector<1x64xf32> to vector<64x64xf32>
    %23 = arith.mulf %19, %22 : vector<64x64xf32>
    %24 = arith.addf %16, %23 : vector<64x64xf32>
    %c0_18 = arith.constant 0 : index
    %c0_19 = arith.constant 0 : index
    %c3 = arith.constant 3 : index
    %c0_20 = arith.constant 0 : index
    %25 = vector.load %arg2[%c0_18, %c0_19, %c3, %c0_20] : memref<1x1x144x64xbf16, #tpu.memory_space<vmem>>, vector<1x1x64x64xbf16>
    %26 = vector.shape_cast %25 : vector<1x1x64x64xbf16> to vector<64x64xbf16>
    %27 = arith.extf %26 : vector<64x64xbf16> to vector<64x64xf32>
    %c3_21 = arith.constant 3 : index
    %c0_22 = arith.constant 0 : index
    %c0_23 = arith.constant 0 : index
    %28 = vector.load %arg3[%c3_21, %c0_22, %c0_23] : memref<25x1x64xf32, #tpu.memory_space<vmem>>, vector<1x1x64xf32>
    %29 = vector.shape_cast %28 : vector<1x1x64xf32> to vector<1x64xf32>
    %30 = vector.broadcast %29 : vector<1x64xf32> to vector<64x64xf32>
    %31 = arith.mulf %27, %30 : vector<64x64xf32>
    %32 = arith.addf %24, %31 : vector<64x64xf32>
    %c0_24 = arith.constant 0 : index
    %c0_25 = arith.constant 0 : index
    %c4 = arith.constant 4 : index
    %c0_26 = arith.constant 0 : index
    %33 = vector.load %arg2[%c0_24, %c0_25, %c4, %c0_26] : memref<1x1x144x64xbf16, #tpu.memory_space<vmem>>, vector<1x1x64x64xbf16>
    %34 = vector.shape_cast %33 : vector<1x1x64x64xbf16> to vector<64x64xbf16>
    %35 = arith.extf %34 : vector<64x64xbf16> to vector<64x64xf32>
    %c4_27 = arith.constant 4 : index
    %c0_28 = arith.constant 0 : index
    %c0_29 = arith.constant 0 : index
    %36 = vector.load %arg3[%c4_27, %c0_28, %c0_29] : memref<25x1x64xf32, #tpu.memory_space<vmem>>, vector<1x1x64xf32>
    %37 = vector.shape_cast %36 : vector<1x1x64xf32> to vector<1x64xf32>
    %38 = vector.broadcast %37 : vector<1x64xf32> to vector<64x64xf32>
    %39 = arith.mulf %35, %38 : vector<64x64xf32>
    %40 = arith.addf %32, %39 : vector<64x64xf32>
    %c0_30 = arith.constant 0 : index
    %c0_31 = arith.constant 0 : index
    %c16 = arith.constant 16 : index
    %c0_32 = arith.constant 0 : index
    %41 = vector.load %arg2[%c0_30, %c0_31, %c16, %c0_32] : memref<1x1x144x64xbf16, #tpu.memory_space<vmem>>, vector<1x1x64x64xbf16>
    %42 = vector.shape_cast %41 : vector<1x1x64x64xbf16> to vector<64x64xbf16>
    %43 = arith.extf %42 : vector<64x64xbf16> to vector<64x64xf32>
    %c5 = arith.constant 5 : index
    %c0_33 = arith.constant 0 : index
    %c0_34 = arith.constant 0 : index
    %44 = vector.load %arg3[%c5, %c0_33, %c0_34] : memref<25x1x64xf32, #tpu.memory_space<vmem>>, vector<1x1x64xf32>
    %45 = vector.shape_cast %44 : vector<1x1x64xf32> to vector<1x64xf32>
    %46 = vector.broadcast %45 : vector<1x64xf32> to vector<64x64xf32>
    %47 = arith.mulf %43, %46 : vector<64x64xf32>
    %48 = arith.addf %40, %47 : vector<64x64xf32>
    %c0_35 = arith.constant 0 : index
    %c0_36 = arith.constant 0 : index
    %c17 = arith.constant 17 : index
    %c0_37 = arith.constant 0 : index
    %49 = vector.load %arg2[%c0_35, %c0_36, %c17, %c0_37] : memref<1x1x144x64xbf16, #tpu.memory_space<vmem>>, vector<1x1x64x64xbf16>
    %50 = vector.shape_cast %49 : vector<1x1x64x64xbf16> to vector<64x64xbf16>
    %51 = arith.extf %50 : vector<64x64xbf16> to vector<64x64xf32>
    %c6 = arith.constant 6 : index
    %c0_38 = arith.constant 0 : index
    %c0_39 = arith.constant 0 : index
    %52 = vector.load %arg3[%c6, %c0_38, %c0_39] : memref<25x1x64xf32, #tpu.memory_space<vmem>>, vector<1x1x64xf32>
    %53 = vector.shape_cast %52 : vector<1x1x64xf32> to vector<1x64xf32>
    %54 = vector.broadcast %53 : vector<1x64xf32> to vector<64x64xf32>
    %55 = arith.mulf %51, %54 : vector<64x64xf32>
    %56 = arith.addf %48, %55 : vector<64x64xf32>
    %c0_40 = arith.constant 0 : index
    %c0_41 = arith.constant 0 : index
    %c18 = arith.constant 18 : index
    %c0_42 = arith.constant 0 : index
    %57 = vector.load %arg2[%c0_40, %c0_41, %c18, %c0_42] : memref<1x1x144x64xbf16, #tpu.memory_space<vmem>>, vector<1x1x64x64xbf16>
    %58 = vector.shape_cast %57 : vector<1x1x64x64xbf16> to vector<64x64xbf16>
    %59 = arith.extf %58 : vector<64x64xbf16> to vector<64x64xf32>
    %c7 = arith.constant 7 : index
    %c0_43 = arith.constant 0 : index
    %c0_44 = arith.constant 0 : index
    %60 = vector.load %arg3[%c7, %c0_43, %c0_44] : memref<25x1x64xf32, #tpu.memory_space<vmem>>, vector<1x1x64xf32>
    %61 = vector.shape_cast %60 : vector<1x1x64xf32> to vector<1x64xf32>
    %62 = vector.broadcast %61 : vector<1x64xf32> to vector<64x64xf32>
    %63 = arith.mulf %59, %62 : vector<64x64xf32>
    %64 = arith.addf %56, %63 : vector<64x64xf32>
    %c0_45 = arith.constant 0 : index
    %c0_46 = arith.constant 0 : index
    %c19 = arith.constant 19 : index
    %c0_47 = arith.constant 0 : index
    %65 = vector.load %arg2[%c0_45, %c0_46, %c19, %c0_47] : memref<1x1x144x64xbf16, #tpu.memory_space<vmem>>, vector<1x1x64x64xbf16>
    %66 = vector.shape_cast %65 : vector<1x1x64x64xbf16> to vector<64x64xbf16>
    %67 = arith.extf %66 : vector<64x64xbf16> to vector<64x64xf32>
    %c8 = arith.constant 8 : index
    %c0_48 = arith.constant 0 : index
    %c0_49 = arith.constant 0 : index
    %68 = vector.load %arg3[%c8, %c0_48, %c0_49] : memref<25x1x64xf32, #tpu.memory_space<vmem>>, vector<1x1x64xf32>
    %69 = vector.shape_cast %68 : vector<1x1x64xf32> to vector<1x64xf32>
    %70 = vector.broadcast %69 : vector<1x64xf32> to vector<64x64xf32>
    %71 = arith.mulf %67, %70 : vector<64x64xf32>
    %72 = arith.addf %64, %71 : vector<64x64xf32>
    %c0_50 = arith.constant 0 : index
    %c0_51 = arith.constant 0 : index
    %c20 = arith.constant 20 : index
    %c0_52 = arith.constant 0 : index
    %73 = vector.load %arg2[%c0_50, %c0_51, %c20, %c0_52] : memref<1x1x144x64xbf16, #tpu.memory_space<vmem>>, vector<1x1x64x64xbf16>
    %74 = vector.shape_cast %73 : vector<1x1x64x64xbf16> to vector<64x64xbf16>
    %75 = arith.extf %74 : vector<64x64xbf16> to vector<64x64xf32>
    %c9 = arith.constant 9 : index
    %c0_53 = arith.constant 0 : index
    %c0_54 = arith.constant 0 : index
    %76 = vector.load %arg3[%c9, %c0_53, %c0_54] : memref<25x1x64xf32, #tpu.memory_space<vmem>>, vector<1x1x64xf32>
    %77 = vector.shape_cast %76 : vector<1x1x64xf32> to vector<1x64xf32>
    %78 = vector.broadcast %77 : vector<1x64xf32> to vector<64x64xf32>
    %79 = arith.mulf %75, %78 : vector<64x64xf32>
    %80 = arith.addf %72, %79 : vector<64x64xf32>
    %c0_55 = arith.constant 0 : index
    %c0_56 = arith.constant 0 : index
    %c32 = arith.constant 32 : index
    %c0_57 = arith.constant 0 : index
    %81 = vector.load %arg2[%c0_55, %c0_56, %c32, %c0_57] : memref<1x1x144x64xbf16, #tpu.memory_space<vmem>>, vector<1x1x64x64xbf16>
    %82 = vector.shape_cast %81 : vector<1x1x64x64xbf16> to vector<64x64xbf16>
    %83 = arith.extf %82 : vector<64x64xbf16> to vector<64x64xf32>
    %c10 = arith.constant 10 : index
    %c0_58 = arith.constant 0 : index
    %c0_59 = arith.constant 0 : index
    %84 = vector.load %arg3[%c10, %c0_58, %c0_59] : memref<25x1x64xf32, #tpu.memory_space<vmem>>, vector<1x1x64xf32>
    %85 = vector.shape_cast %84 : vector<1x1x64xf32> to vector<1x64xf32>
    %86 = vector.broadcast %85 : vector<1x64xf32> to vector<64x64xf32>
    %87 = arith.mulf %83, %86 : vector<64x64xf32>
    %88 = arith.addf %80, %87 : vector<64x64xf32>
    %c0_60 = arith.constant 0 : index
    %c0_61 = arith.constant 0 : index
    %c33 = arith.constant 33 : index
    %c0_62 = arith.constant 0 : index
    %89 = vector.load %arg2[%c0_60, %c0_61, %c33, %c0_62] : memref<1x1x144x64xbf16, #tpu.memory_space<vmem>>, vector<1x1x64x64xbf16>
    %90 = vector.shape_cast %89 : vector<1x1x64x64xbf16> to vector<64x64xbf16>
    %91 = arith.extf %90 : vector<64x64xbf16> to vector<64x64xf32>
    %c11 = arith.constant 11 : index
    %c0_63 = arith.constant 0 : index
    %c0_64 = arith.constant 0 : index
    %92 = vector.load %arg3[%c11, %c0_63, %c0_64] : memref<25x1x64xf32, #tpu.memory_space<vmem>>, vector<1x1x64xf32>
    %93 = vector.shape_cast %92 : vector<1x1x64xf32> to vector<1x64xf32>
    %94 = vector.broadcast %93 : vector<1x64xf32> to vector<64x64xf32>
    %95 = arith.mulf %91, %94 : vector<64x64xf32>
    %96 = arith.addf %88, %95 : vector<64x64xf32>
    %c0_65 = arith.constant 0 : index
    %c0_66 = arith.constant 0 : index
    %c34 = arith.constant 34 : index
    %c0_67 = arith.constant 0 : index
    %97 = vector.load %arg2[%c0_65, %c0_66, %c34, %c0_67] : memref<1x1x144x64xbf16, #tpu.memory_space<vmem>>, vector<1x1x64x64xbf16>
    %98 = vector.shape_cast %97 : vector<1x1x64x64xbf16> to vector<64x64xbf16>
    %99 = arith.extf %98 : vector<64x64xbf16> to vector<64x64xf32>
    %c12 = arith.constant 12 : index
    %c0_68 = arith.constant 0 : index
    %c0_69 = arith.constant 0 : index
    %100 = vector.load %arg3[%c12, %c0_68, %c0_69] : memref<25x1x64xf32, #tpu.memory_space<vmem>>, vector<1x1x64xf32>
    %101 = vector.shape_cast %100 : vector<1x1x64xf32> to vector<1x64xf32>
    %102 = vector.broadcast %101 : vector<1x64xf32> to vector<64x64xf32>
    %103 = arith.mulf %99, %102 : vector<64x64xf32>
    %104 = arith.addf %96, %103 : vector<64x64xf32>
    %c0_70 = arith.constant 0 : index
    %c0_71 = arith.constant 0 : index
    %c35 = arith.constant 35 : index
    %c0_72 = arith.constant 0 : index
    %105 = vector.load %arg2[%c0_70, %c0_71, %c35, %c0_72] : memref<1x1x144x64xbf16, #tpu.memory_space<vmem>>, vector<1x1x64x64xbf16>
    %106 = vector.shape_cast %105 : vector<1x1x64x64xbf16> to vector<64x64xbf16>
    %107 = arith.extf %106 : vector<64x64xbf16> to vector<64x64xf32>
    %c13 = arith.constant 13 : index
    %c0_73 = arith.constant 0 : index
    %c0_74 = arith.constant 0 : index
    %108 = vector.load %arg3[%c13, %c0_73, %c0_74] : memref<25x1x64xf32, #tpu.memory_space<vmem>>, vector<1x1x64xf32>
    %109 = vector.shape_cast %108 : vector<1x1x64xf32> to vector<1x64xf32>
    %110 = vector.broadcast %109 : vector<1x64xf32> to vector<64x64xf32>
    %111 = arith.mulf %107, %110 : vector<64x64xf32>
    %112 = arith.addf %104, %111 : vector<64x64xf32>
    %c0_75 = arith.constant 0 : index
    %c0_76 = arith.constant 0 : index
    %c36 = arith.constant 36 : index
    %c0_77 = arith.constant 0 : index
    %113 = vector.load %arg2[%c0_75, %c0_76, %c36, %c0_77] : memref<1x1x144x64xbf16, #tpu.memory_space<vmem>>, vector<1x1x64x64xbf16>
    %114 = vector.shape_cast %113 : vector<1x1x64x64xbf16> to vector<64x64xbf16>
    %115 = arith.extf %114 : vector<64x64xbf16> to vector<64x64xf32>
    %c14 = arith.constant 14 : index
    %c0_78 = arith.constant 0 : index
    %c0_79 = arith.constant 0 : index
    %116 = vector.load %arg3[%c14, %c0_78, %c0_79] : memref<25x1x64xf32, #tpu.memory_space<vmem>>, vector<1x1x64xf32>
    %117 = vector.shape_cast %116 : vector<1x1x64xf32> to vector<1x64xf32>
    %118 = vector.broadcast %117 : vector<1x64xf32> to vector<64x64xf32>
    %119 = arith.mulf %115, %118 : vector<64x64xf32>
    %120 = arith.addf %112, %119 : vector<64x64xf32>
    %c0_80 = arith.constant 0 : index
    %c0_81 = arith.constant 0 : index
    %c48 = arith.constant 48 : index
    %c0_82 = arith.constant 0 : index
    %121 = vector.load %arg2[%c0_80, %c0_81, %c48, %c0_82] : memref<1x1x144x64xbf16, #tpu.memory_space<vmem>>, vector<1x1x64x64xbf16>
    %122 = vector.shape_cast %121 : vector<1x1x64x64xbf16> to vector<64x64xbf16>
    %123 = arith.extf %122 : vector<64x64xbf16> to vector<64x64xf32>
    %c15 = arith.constant 15 : index
    %c0_83 = arith.constant 0 : index
    %c0_84 = arith.constant 0 : index
    %124 = vector.load %arg3[%c15, %c0_83, %c0_84] : memref<25x1x64xf32, #tpu.memory_space<vmem>>, vector<1x1x64xf32>
    %125 = vector.shape_cast %124 : vector<1x1x64xf32> to vector<1x64xf32>
    %126 = vector.broadcast %125 : vector<1x64xf32> to vector<64x64xf32>
    %127 = arith.mulf %123, %126 : vector<64x64xf32>
    %128 = arith.addf %120, %127 : vector<64x64xf32>
    %c0_85 = arith.constant 0 : index
    %c0_86 = arith.constant 0 : index
    %c49 = arith.constant 49 : index
    %c0_87 = arith.constant 0 : index
    %129 = vector.load %arg2[%c0_85, %c0_86, %c49, %c0_87] : memref<1x1x144x64xbf16, #tpu.memory_space<vmem>>, vector<1x1x64x64xbf16>
    %130 = vector.shape_cast %129 : vector<1x1x64x64xbf16> to vector<64x64xbf16>
    %131 = arith.extf %130 : vector<64x64xbf16> to vector<64x64xf32>
    %c16_88 = arith.constant 16 : index
    %c0_89 = arith.constant 0 : index
    %c0_90 = arith.constant 0 : index
    %132 = vector.load %arg3[%c16_88, %c0_89, %c0_90] : memref<25x1x64xf32, #tpu.memory_space<vmem>>, vector<1x1x64xf32>
    %133 = vector.shape_cast %132 : vector<1x1x64xf32> to vector<1x64xf32>
    %134 = vector.broadcast %133 : vector<1x64xf32> to vector<64x64xf32>
    %135 = arith.mulf %131, %134 : vector<64x64xf32>
    %136 = arith.addf %128, %135 : vector<64x64xf32>
    %c0_91 = arith.constant 0 : index
    %c0_92 = arith.constant 0 : index
    %c50 = arith.constant 50 : index
    %c0_93 = arith.constant 0 : index
    %137 = vector.load %arg2[%c0_91, %c0_92, %c50, %c0_93] : memref<1x1x144x64xbf16, #tpu.memory_space<vmem>>, vector<1x1x64x64xbf16>
    %138 = vector.shape_cast %137 : vector<1x1x64x64xbf16> to vector<64x64xbf16>
    %139 = arith.extf %138 : vector<64x64xbf16> to vector<64x64xf32>
    %c17_94 = arith.constant 17 : index
    %c0_95 = arith.constant 0 : index
    %c0_96 = arith.constant 0 : index
    %140 = vector.load %arg3[%c17_94, %c0_95, %c0_96] : memref<25x1x64xf32, #tpu.memory_space<vmem>>, vector<1x1x64xf32>
    %141 = vector.shape_cast %140 : vector<1x1x64xf32> to vector<1x64xf32>
    %142 = vector.broadcast %141 : vector<1x64xf32> to vector<64x64xf32>
    %143 = arith.mulf %139, %142 : vector<64x64xf32>
    %144 = arith.addf %136, %143 : vector<64x64xf32>
    %c0_97 = arith.constant 0 : index
    %c0_98 = arith.constant 0 : index
    %c51 = arith.constant 51 : index
    %c0_99 = arith.constant 0 : index
    %145 = vector.load %arg2[%c0_97, %c0_98, %c51, %c0_99] : memref<1x1x144x64xbf16, #tpu.memory_space<vmem>>, vector<1x1x64x64xbf16>
    %146 = vector.shape_cast %145 : vector<1x1x64x64xbf16> to vector<64x64xbf16>
    %147 = arith.extf %146 : vector<64x64xbf16> to vector<64x64xf32>
    %c18_100 = arith.constant 18 : index
    %c0_101 = arith.constant 0 : index
    %c0_102 = arith.constant 0 : index
    %148 = vector.load %arg3[%c18_100, %c0_101, %c0_102] : memref<25x1x64xf32, #tpu.memory_space<vmem>>, vector<1x1x64xf32>
    %149 = vector.shape_cast %148 : vector<1x1x64xf32> to vector<1x64xf32>
    %150 = vector.broadcast %149 : vector<1x64xf32> to vector<64x64xf32>
    %151 = arith.mulf %147, %150 : vector<64x64xf32>
    %152 = arith.addf %144, %151 : vector<64x64xf32>
    %c0_103 = arith.constant 0 : index
    %c0_104 = arith.constant 0 : index
    %c52 = arith.constant 52 : index
    %c0_105 = arith.constant 0 : index
    %153 = vector.load %arg2[%c0_103, %c0_104, %c52, %c0_105] : memref<1x1x144x64xbf16, #tpu.memory_space<vmem>>, vector<1x1x64x64xbf16>
    %154 = vector.shape_cast %153 : vector<1x1x64x64xbf16> to vector<64x64xbf16>
    %155 = arith.extf %154 : vector<64x64xbf16> to vector<64x64xf32>
    %c19_106 = arith.constant 19 : index
    %c0_107 = arith.constant 0 : index
    %c0_108 = arith.constant 0 : index
    %156 = vector.load %arg3[%c19_106, %c0_107, %c0_108] : memref<25x1x64xf32, #tpu.memory_space<vmem>>, vector<1x1x64xf32>
    %157 = vector.shape_cast %156 : vector<1x1x64xf32> to vector<1x64xf32>
    %158 = vector.broadcast %157 : vector<1x64xf32> to vector<64x64xf32>
    %159 = arith.mulf %155, %158 : vector<64x64xf32>
    %160 = arith.addf %152, %159 : vector<64x64xf32>
    %c0_109 = arith.constant 0 : index
    %c0_110 = arith.constant 0 : index
    %c64 = arith.constant 64 : index
    %c0_111 = arith.constant 0 : index
    %161 = vector.load %arg2[%c0_109, %c0_110, %c64, %c0_111] : memref<1x1x144x64xbf16, #tpu.memory_space<vmem>>, vector<1x1x64x64xbf16>
    %162 = vector.shape_cast %161 : vector<1x1x64x64xbf16> to vector<64x64xbf16>
    %163 = arith.extf %162 : vector<64x64xbf16> to vector<64x64xf32>
    %c20_112 = arith.constant 20 : index
    %c0_113 = arith.constant 0 : index
    %c0_114 = arith.constant 0 : index
    %164 = vector.load %arg3[%c20_112, %c0_113, %c0_114] : memref<25x1x64xf32, #tpu.memory_space<vmem>>, vector<1x1x64xf32>
    %165 = vector.shape_cast %164 : vector<1x1x64xf32> to vector<1x64xf32>
    %166 = vector.broadcast %165 : vector<1x64xf32> to vector<64x64xf32>
    %167 = arith.mulf %163, %166 : vector<64x64xf32>
    %168 = arith.addf %160, %167 : vector<64x64xf32>
    %c0_115 = arith.constant 0 : index
    %c0_116 = arith.constant 0 : index
    %c65 = arith.constant 65 : index
    %c0_117 = arith.constant 0 : index
    %169 = vector.load %arg2[%c0_115, %c0_116, %c65, %c0_117] : memref<1x1x144x64xbf16, #tpu.memory_space<vmem>>, vector<1x1x64x64xbf16>
    %170 = vector.shape_cast %169 : vector<1x1x64x64xbf16> to vector<64x64xbf16>
    %171 = arith.extf %170 : vector<64x64xbf16> to vector<64x64xf32>
    %c21 = arith.constant 21 : index
    %c0_118 = arith.constant 0 : index
    %c0_119 = arith.constant 0 : index
    %172 = vector.load %arg3[%c21, %c0_118, %c0_119] : memref<25x1x64xf32, #tpu.memory_space<vmem>>, vector<1x1x64xf32>
    %173 = vector.shape_cast %172 : vector<1x1x64xf32> to vector<1x64xf32>
    %174 = vector.broadcast %173 : vector<1x64xf32> to vector<64x64xf32>
    %175 = arith.mulf %171, %174 : vector<64x64xf32>
    %176 = arith.addf %168, %175 : vector<64x64xf32>
    %c0_120 = arith.constant 0 : index
    %c0_121 = arith.constant 0 : index
    %c66 = arith.constant 66 : index
    %c0_122 = arith.constant 0 : index
    %177 = vector.load %arg2[%c0_120, %c0_121, %c66, %c0_122] : memref<1x1x144x64xbf16, #tpu.memory_space<vmem>>, vector<1x1x64x64xbf16>
    %178 = vector.shape_cast %177 : vector<1x1x64x64xbf16> to vector<64x64xbf16>
    %179 = arith.extf %178 : vector<64x64xbf16> to vector<64x64xf32>
    %c22 = arith.constant 22 : index
    %c0_123 = arith.constant 0 : index
    %c0_124 = arith.constant 0 : index
    %180 = vector.load %arg3[%c22, %c0_123, %c0_124] : memref<25x1x64xf32, #tpu.memory_space<vmem>>, vector<1x1x64xf32>
    %181 = vector.shape_cast %180 : vector<1x1x64xf32> to vector<1x64xf32>
    %182 = vector.broadcast %181 : vector<1x64xf32> to vector<64x64xf32>
    %183 = arith.mulf %179, %182 : vector<64x64xf32>
    %184 = arith.addf %176, %183 : vector<64x64xf32>
    %c0_125 = arith.constant 0 : index
    %c0_126 = arith.constant 0 : index
    %c67 = arith.constant 67 : index
    %c0_127 = arith.constant 0 : index
    %185 = vector.load %arg2[%c0_125, %c0_126, %c67, %c0_127] : memref<1x1x144x64xbf16, #tpu.memory_space<vmem>>, vector<1x1x64x64xbf16>
    %186 = vector.shape_cast %185 : vector<1x1x64x64xbf16> to vector<64x64xbf16>
    %187 = arith.extf %186 : vector<64x64xbf16> to vector<64x64xf32>
    %c23 = arith.constant 23 : index
    %c0_128 = arith.constant 0 : index
    %c0_129 = arith.constant 0 : index
    %188 = vector.load %arg3[%c23, %c0_128, %c0_129] : memref<25x1x64xf32, #tpu.memory_space<vmem>>, vector<1x1x64xf32>
    %189 = vector.shape_cast %188 : vector<1x1x64xf32> to vector<1x64xf32>
    %190 = vector.broadcast %189 : vector<1x64xf32> to vector<64x64xf32>
    %191 = arith.mulf %187, %190 : vector<64x64xf32>
    %192 = arith.addf %184, %191 : vector<64x64xf32>
    %c0_130 = arith.constant 0 : index
    %c0_131 = arith.constant 0 : index
    %c68 = arith.constant 68 : index
    %c0_132 = arith.constant 0 : index
    %193 = vector.load %arg2[%c0_130, %c0_131, %c68, %c0_132] : memref<1x1x144x64xbf16, #tpu.memory_space<vmem>>, vector<1x1x64x64xbf16>
    %194 = vector.shape_cast %193 : vector<1x1x64x64xbf16> to vector<64x64xbf16>
    %195 = arith.extf %194 : vector<64x64xbf16> to vector<64x64xf32>
    %c24 = arith.constant 24 : index
    %c0_133 = arith.constant 0 : index
    %c0_134 = arith.constant 0 : index
    %196 = vector.load %arg3[%c24, %c0_133, %c0_134] : memref<25x1x64xf32, #tpu.memory_space<vmem>>, vector<1x1x64xf32>
    %197 = vector.shape_cast %196 : vector<1x1x64xf32> to vector<1x64xf32>
    %198 = vector.broadcast %197 : vector<1x64xf32> to vector<64x64xf32>
    %199 = arith.mulf %195, %198 : vector<64x64xf32>
    %200 = arith.addf %192, %199 : vector<64x64xf32>
    %cst_135 = arith.constant dense<0.000000e+00> : vector<64xf32>
    %201 = vector.multi_reduction <add>, %200, %cst_135 [1] : vector<64x64xf32> to vector<64xf32>
    %202 = vector.shape_cast %201 : vector<64xf32> to vector<64x1xf32>
    %c0_136 = arith.constant 0 : index
    %c0_137 = arith.constant 0 : index
    %203 = vector.load %arg4[%c0_136, %c0_137] : memref<1x1xf32, #tpu.memory_space<vmem>>, vector<1x1xf32>
    %204 = vector.broadcast %203 : vector<1x1xf32> to vector<64x1xf32>
    %205 = arith.addf %202, %204 : vector<64x1xf32>
    %c0_138 = arith.constant 0 : index
    %c0_139 = arith.constant 0 : index
    %c0_140 = arith.constant 0 : index
    %c0_141 = arith.constant 0 : index
    %206 = vector.load %arg5[%c0_138, %c0_139, %c0_140, %c0_141] : memref<1x1x64x1xf32, #tpu.memory_space<vmem>>, vector<1x1x64x1xf32>
    %207 = vector.shape_cast %206 : vector<1x1x64x1xf32> to vector<64x1xf32>
    %208 = vector.shape_cast %205 : vector<64x1xf32> to vector<1x1x64x1xf32>
    tpu.vector_store %arg5[%c0_138, %c0_139, %c0_140, %c0_141], %208 {strides = array<i32>} : memref<1x1x64x1xf32, #tpu.memory_space<vmem>>, vector<1x1x64x1xf32>,
    return
  }
  func.func @transform_0(%arg0: i32, %arg1: i32) -> (i32, i32, i32, i32) {
    %c0_i32 = arith.constant 0 : i32
    %c0_i32_0 = arith.constant 0 : i32
    %c0_i32_1 = arith.constant 0 : i32
    return %arg0, %arg1, %c0_i32, %c0_i32_0 : i32, i32, i32, i32
  }
  func.func @transform_1(%arg0: i32, %arg1: i32) -> (i32, i32, i32) {
    %c0_i32 = arith.constant 0 : i32
    %c0_i32_0 = arith.constant 0 : i32
    %c0_i32_1 = arith.constant 0 : i32
    %c0_i32_2 = arith.constant 0 : i32
    return %c0_i32, %c0_i32_0, %c0_i32_1 : i32, i32, i32
  }
  func.func @transform_2(%arg0: i32, %arg1: i32) -> (i32, i32) {
    %c0_i32 = arith.constant 0 : i32
    %c0_i32_0 = arith.constant 0 : i32
    %c0_i32_1 = arith.constant 0 : i32
    return %c0_i32, %c0_i32_0 : i32, i32
  }
  func.func @transform_3(%arg0: i32, %arg1: i32) -> (i32, i32, i32, i32) {
    %c0_i32 = arith.constant 0 : i32
    %c0_i32_0 = arith.constant 0 : i32
    %c0_i32_1 = arith.constant 0 : i32
    return %arg0, %arg1, %c0_i32, %c0_i32_0 : i32, i32, i32, i32
  }
}

module attributes {stable_mosaic.version = 11 : i64} {
  func.func @_bilinear_kernel(%arg0: i32, %arg1: memref<1x4x4xf32, #tpu.memory_space<vmem>>, %arg2: memref<8x4xf32, #tpu.memory_space<vmem>>, %arg3: memref<4x8xf32, #tpu.memory_space<vmem>>, %arg4: memref<1x8x8xf32, #tpu.memory_space<vmem>>) attributes {dimension_semantics = [#tpu.dimension_semantics<parallel>], iteration_bounds = array<i64: 2>, scalar_prefetch = 0 : i64, scratch_operands = 0 : i64, tpu.core_type = #tpu.core_type<tc>, window_params = [{transform_indices = @transform_0, window_bounds = array<i64: 1, 4, 4>}, {pipeline_mode = #tpu.pipeline_mode<synchronous>, transform_indices = @transform_1, window_bounds = array<i64: 8, 4>}, {pipeline_mode = #tpu.pipeline_mode<synchronous>, transform_indices = @transform_2, window_bounds = array<i64: 4, 8>}, {transform_indices = @transform_3, window_bounds = array<i64: 1, 8, 8>}]} {
    %c0 = arith.constant 0 : index
    %c0_0 = arith.constant 0 : index
    %c0_1 = arith.constant 0 : index
    %0 = vector.load %arg1[%c0, %c0_0, %c0_1] : memref<1x4x4xf32, #tpu.memory_space<vmem>>, vector<1x4x4xf32>
    %1 = vector.shape_cast %0 : vector<1x4x4xf32> to vector<4x4xf32>
    %c0_2 = arith.constant 0 : index
    %c0_3 = arith.constant 0 : index
    %2 = vector.load %arg3[%c0_2, %c0_3] : memref<4x8xf32, #tpu.memory_space<vmem>>, vector<4x8xf32>
    %cst = arith.constant dense<0.000000e+00> : vector<4x8xf32>
    %3 = tpu.matmul %1, %2, %cst {dimension_numbers = #tpu.dot_dimension_numbers<[1], [0], [0], [1], [0, 0, 1, 1], [], []>} : vector<4x4xf32>, vector<4x8xf32>, vector<4x8xf32> -> vector<4x8xf32>
    %c0_4 = arith.constant 0 : index
    %c0_5 = arith.constant 0 : index
    %4 = vector.load %arg2[%c0_4, %c0_5] : memref<8x4xf32, #tpu.memory_space<vmem>>, vector<8x4xf32>
    %cst_6 = arith.constant dense<0.000000e+00> : vector<8x8xf32>
    %5 = tpu.matmul %4, %3, %cst_6 {dimension_numbers = #tpu.dot_dimension_numbers<[1], [0], [0], [1], [0, 0, 1, 1], [], []>} : vector<8x4xf32>, vector<4x8xf32>, vector<8x8xf32> -> vector<8x8xf32>
    %c0_7 = arith.constant 0 : index
    %c0_8 = arith.constant 0 : index
    %c0_9 = arith.constant 0 : index
    %6 = vector.load %arg4[%c0_7, %c0_8, %c0_9] : memref<1x8x8xf32, #tpu.memory_space<vmem>>, vector<1x8x8xf32>
    %7 = vector.shape_cast %6 : vector<1x8x8xf32> to vector<8x8xf32>
    %8 = vector.shape_cast %5 : vector<8x8xf32> to vector<1x8x8xf32>
    tpu.vector_store %arg4[%c0_7, %c0_8, %c0_9], %8 {strides = array<i32>} : memref<1x8x8xf32, #tpu.memory_space<vmem>>, vector<1x8x8xf32>,
    return
  }
  func.func @transform_0(%arg0: i32) -> (i32, i32, i32) {
    %c0_i32 = arith.constant 0 : i32
    %c0_i32_0 = arith.constant 0 : i32
    %c0_i32_1 = arith.constant 0 : i32
    return %arg0, %c0_i32, %c0_i32_0 : i32, i32, i32
  }
  func.func @transform_1(%arg0: i32) -> (i32, i32) {
    %c0_i32 = arith.constant 0 : i32
    %c0_i32_0 = arith.constant 0 : i32
    %c0_i32_1 = arith.constant 0 : i32
    return %c0_i32, %c0_i32_0 : i32, i32
  }
  func.func @transform_2(%arg0: i32) -> (i32, i32) {
    %c0_i32 = arith.constant 0 : i32
    %c0_i32_0 = arith.constant 0 : i32
    %c0_i32_1 = arith.constant 0 : i32
    return %c0_i32, %c0_i32_0 : i32, i32
  }
  func.func @transform_3(%arg0: i32) -> (i32, i32, i32) {
    %c0_i32 = arith.constant 0 : i32
    %c0_i32_0 = arith.constant 0 : i32
    %c0_i32_1 = arith.constant 0 : i32
    return %arg0, %c0_i32, %c0_i32_0 : i32, i32, i32
  }
}

</mosaic_0001>

<llo_original>
// kernel: scale2_forward.8
$region0: #{scale2_forward.8}
  #allocation0 [shape = 'u32[]', space=smem, size = 0x4, offset = 0x4, fixed_abs, tag = 'smem constant byte address 0x4 - core index']
  #allocation1 [shape = 'u32[144,128]{1,0:T(1,128)}', space=vmem, size = 0x12000, scoped, tag = 'internal scratch']
  %s0 = inlined_call_operand.vmem [shape: bf16[2,4,2,4,128], index: 0, kind: input, shape index: {}]
  %s1 = inlined_call_operand.vmem [shape: bf16[2,4,4,64], index: 1, kind: output, shape index: {}]
  %s2 = sld [smem:[#allocation0]]
  $region37: #{scale2_forward.8} parent=0
    _
  %s4 = ssub.s32 1, %s2
  %s5 = scalar_select 0, %s4, %s2
  loop: start=0, step=1, limit=4
  $region2: #{scale2_forward.8} parent=0 // loop_pre_header
    _
  $region3: #{scale2_forward.8} parent=0 // loop_header
    %s7 = sphi 0, %s11
    %p8 = scmp.ge.s32.totalorder %s7, 4
    %s14 = sphi 0, %s26
    %s15 = sphi 0, %s22
    %s16 = sphi 0, %s14
    %s17 = sphi 0, %s15
    %s18 = sphi 0, %s16
    %s19 = sphi 0, %s17
    %s31 = sphi 0, %s33
    %s34 = sphi 0, %s31
    %s35 = sphi 0, %s34
    %s51 = sphi 0, %s35
    %s59 = sphi 0, %s61
    %s62 = sphi 0, %s59
    %s63 = sphi 0, %s62
    %s79 = sphi 0, %s63
  $region4: #{scale2_forward.8} parent=0 // loop_header_branch
    %10 = sbr.rel (%p8) target = $region8
  $region5: #{scale2_forward.8} parent=0 // loop_body
    %s12 = ssub.s32 %s7, 1
    %s13 = ssub.s32 %s7, 2
    %s20 = sadd.s32 1, %s15
    %p21 = scmp.ge.s32.totalorder %s20, 1
    %s22 = scalar_select %p21, 0, %s20
    %s23 = sadd.s32 1, %s14
    %s24 = scalar_select %p21, %s23, %s14
    %p25 = scmp.ge.s32.totalorder %s24, 2
    %s26 = scalar_select %p25, 0, %s24
    %s27 = ssub.s32 %s14, %s26
    %s28 = ssub.s32 %s15, %s22
    %s29 = sor.u32 %s27, %s28
    %p30 = scmp.eq.s32.totalorder %s29, 0
    %s32 = sadd.s32 %s31, 1
    %s33 = scalar_select %p30, %s31, %s32
    %p36 = pneg %p30
    %p37 = scmp.eq.s32.totalorder %s7, 1
    %p38 = por %p36, %p37
    %p39 = scmp.ne.s32.totalorder %s31, %s34
    %p40 = scmp.eq.s32.totalorder %s7, 0
    %p41 = por %p39, %p40
    %p42 = scmp.ne.s32.totalorder %s31, %s34
    %p43 = scmp.eq.s32.totalorder %s12, 1
    %p44 = por %p42, %p43
    %p45 = scmp.ne.s32.totalorder %s34, %s35
    %p46 = scmp.eq.s32.totalorder %s12, 0
    %p47 = por %p45, %p46
    %p48 = scmp.ne.s32.totalorder %s34, %s35
    %p49 = scmp.eq.s32.totalorder %s13, 1
    %p50 = por %p48, %p49
    %p52 = scmp.ne.s32.totalorder %s35, %s51
    %p53 = scmp.eq.s32.totalorder %s13, 0
    %p54 = por %p52, %p53
    %s55 = ssub.s32 %s14, %s26
    %s56 = ssub.s32 %s15, %s22
    %s57 = sor.u32 %s55, %s56
    %p58 = scmp.eq.s32.totalorder %s57, 0
    %s60 = sadd.s32 %s59, 1
    %s61 = scalar_select %p58, %s59, %s60
    %p64 = pneg %p58
    %p65 = scmp.eq.s32.totalorder %s7, 1
    %p66 = por %p64, %p65
    %p67 = scmp.ne.s32.totalorder %s59, %s62
    %p68 = scmp.eq.s32.totalorder %s7, 0
    %p69 = por %p67, %p68
    %p70 = scmp.ne.s32.totalorder %s59, %s62
    %p71 = scmp.eq.s32.totalorder %s12, 1
    %p72 = por %p70, %p71
    %p73 = scmp.ne.s32.totalorder %s62, %s63
    %p74 = scmp.eq.s32.totalorder %s12, 0
    %p75 = por %p73, %p74
    %p76 = scmp.ne.s32.totalorder %s62, %s63
    %p77 = scmp.eq.s32.totalorder %s13, 1
    %p78 = por %p76, %p77
    %p80 = scmp.ne.s32.totalorder %s63, %s79
    %p81 = scmp.eq.s32.totalorder %s13, 0
    %p82 = por %p80, %p81
    %p83 = scmp.le.s32.totalorder 1, %s7
    %p84 = scmp.lt.s32.totalorder %s7, 3
    %p85 = pnand %p83, %p84
    %p86 = pneg %p85
    // Predicated region
    $region9: #{scale2_forward.8} parent=5 // pred_check
      _
    $region10: #{scale2_forward.8} parent=5 // pred_check_branch
      %88 = sbr.rel (%p85) target = $region12
    $region11: #{scale2_forward.8} parent=5 // pred_region
      %s89 = ssub.s32 %s7, 1
    $region12: #{scale2_forward.8} parent=5 // pred_fallthru
      _
    %p90 = scmp.lt.s32.totalorder %s7, 2
    // Predicated region
    $region13: #{scale2_forward.8} parent=5 // pred_check
      %p91 = pneg %p90
    $region14: #{scale2_forward.8} parent=5 // pred_check_branch
      %93 = sbr.rel (%p91) target = $region16
    $region15: #{scale2_forward.8} parent=5 // pred_region
      // Predicated region
      $region17: #{scale2_forward.8} parent=15 // pred_check
        %p94 = pneg %p41
      $region18: #{scale2_forward.8} parent=15 // pred_check_branch
        %96 = sbr.rel (%p94) target = $region20
      $region19: #{scale2_forward.8} parent=15 // pred_region
        %s97 = smul.u32 4, %s15
        %p98 = scmp.lt.s32.totalorder %s14, 1
        %s99 = scalar_select %p98, %s14, 1
        %p100 = scmp.lt.s32.totalorder %s97, 3
        %s101 = scalar_select %p100, %s97, 3
        %s102 = smul.addr %s101, 2
        %s103 = smul.addr %s99, 8
        %s104 = sadd.s32 %s102, %s103
        %s105 = smul.addr %s104, 2
        %s106 = scalar_lea.vmem %s0, %s105
        %s107 = smul.u32 4, %s15
      $region20: #{scale2_forward.8} parent=15 // pred_fallthru
        _
    $region16: #{scale2_forward.8} parent=5 // pred_fallthru
      _
    %p108 = scmp.le.s32.totalorder 1, %s7
    %p109 = scmp.lt.s32.totalorder %s7, 3
    %p110 = pnand %p108, %p109
    %p111 = pneg %p110
    // Predicated region
    $region21: #{scale2_forward.8} parent=5 // pred_check
      _
    $region22: #{scale2_forward.8} parent=5 // pred_check_branch
      %113 = sbr.rel (%p110) target = $region24
    $region23: #{scale2_forward.8} parent=5 // pred_region
      %s114 = ssub.s32 %s7, 1
      %s115 = smul.u32 4, %s17
      %p116 = scmp.lt.s32.totalorder %s16, 1
      %s117 = scalar_select %p116, %s16, 1
      %p118 = scmp.lt.s32.totalorder %s115, 3
      %s119 = scalar_select %p118, %s115, 3
      %s120 = smul.addr %s119, 2
      %s121 = smul.addr %s117, 8
      %s122 = sadd.s32 %s120, %s121
      %s123 = smul.addr %s122, 2
      %s124 = scalar_lea.vmem %s0, %s123
      %p125 = pneg %p47
      %p126 = pneg %p44
      %p127 = pneg %p75
      %p128 = pneg %p72
      %s129 = smul.u32 4, %s17
      %p130 = scmp.lt.s32.totalorder %s16, 1
      %s131 = scalar_select %p130, %s16, 1
      %p132 = scmp.lt.s32.totalorder %s129, 3
      %s133 = scalar_select %p132, %s129, 3
      %s134 = smul.addr %s131, 4
      %s135 = sadd.s32 %s133, %s134
      %s136 = smul.addr %s135, 2
      %s137 = scalar_lea.vmem %s1, %s136
      %s138 = smul.u32 4, %s17
      %p139 = scmp.lt.s32.totalorder %s16, 1
      %s140 = scalar_select %p139, %s16, 1
      %p141 = scmp.lt.s32.totalorder %s138, 3
      %s142 = scalar_select %p141, %s138, 3
      %s143 = smul.addr %s142, 2
      %s144 = smul.addr %s140, 8
      %s145 = sadd.s32 %s143, %s144
      %s146 = smul.addr %s145, 2
      %s147 = scalar_lea.vmem %s0, %s146
      %s148 = smul.u32 4, %s17
      %s149 = smul.u32 4, %s17
      %p150 = scmp.lt.s32.totalorder %s16, 1
      %s151 = scalar_select %p150, %s16, 1
      %p152 = scmp.lt.s32.totalorder %s149, 3
      %s153 = scalar_select %p152, %s149, 3
      %s154 = smul.addr %s151, 4
      %s155 = sadd.s32 %s153, %s154
      %s156 = smul.addr %s155, 2
      %s157 = scalar_lea.vmem %s1, %s156
      %s158 = smul.u32 4, %s17
      %v159 = vld [vmem:[%s147] sm:$0x3]
      %v160 = vld [vmem:[%s147 + $0x2] sm:$0x3]
      %v161 = vld [vmem:[%s147 + $0x4] sm:$0x3]
      %v162 = vld [vmem:[%s147 + $0x6] sm:$0x3]
      %v163 = vld [vmem:[%s147 + $0x8] sm:$0x3]
      %v164 = vld [vmem:[%s147 + $0xa] sm:$0x3]
      %v165 = vld [vmem:[%s147 + $0xc] sm:$0x3]
      %v166 = vld [vmem:[%s147 + $0xe] sm:$0x3]
      %v167 = vmax.bf16 %v159, %v160
      %v168 = vmax.bf16 %v161, %v162
      %v169 = vmax.bf16 %v163, %v164
      %v170 = vmax.bf16 %v165, %v166
      %175 = vrot.lane.b32.xlu0 %v167, 64
      %v176 = vpop.permute.xlu0 %175
      %177 = vrot.lane.b32.xlu0 %v168, 64
      %v178 = vpop.permute.xlu0 %177
      %179 = vrot.lane.b32.xlu0 %v169, 64
      %v180 = vpop.permute.xlu0 %179
      %181 = vrot.lane.b32.xlu0 %v170, 64
      %v182 = vpop.permute.xlu0 %181
      %v187 = vmax.bf16 %v167, %v176
      %v188 = vmax.bf16 %v168, %v178
      %v189 = vmax.bf16 %v169, %v180
      %v190 = vmax.bf16 %v170, %v182
      %vm191 = vcmask 517120
      %192 = vst.msk [vmem:[%s157] sm:$0x3] %vm191, %v187
      %193 = vst.msk [vmem:[%s157 + $0x2] sm:$0x3] %vm191, %v188
      %194 = vst.msk [vmem:[%s157 + $0x4] sm:$0x3] %vm191, %v189
      %195 = vst.msk [vmem:[%s157 + $0x6] sm:$0x3] %vm191, %v190
      %s196 = smul.u32 4, %s17
      %p197 = scmp.lt.s32.totalorder %s16, 1
      %s198 = scalar_select %p197, %s16, 1
      %p199 = scmp.lt.s32.totalorder %s196, 3
      %s200 = scalar_select %p199, %s196, 3
      %s201 = smul.addr %s198, 4
      %s202 = sadd.s32 %s200, %s201
      %s203 = smul.addr %s202, 2
      %s204 = scalar_lea.vmem %s1, %s203
      // Predicated region
      $region25: #{scale2_forward.8} parent=23 // pred_check
        %p205 = pneg %p72
      $region26: #{scale2_forward.8} parent=23 // pred_check_branch
        %207 = sbr.rel (%p205) target = $region28
      $region27: #{scale2_forward.8} parent=23 // pred_region
        %s208 = smul.u32 4, %s17
      $region28: #{scale2_forward.8} parent=23 // pred_fallthru
        _
    $region24: #{scale2_forward.8} parent=5 // pred_fallthru
      _
    %p209 = scmp.le.s32.totalorder 2, %s7
    // Predicated region
    $region29: #{scale2_forward.8} parent=5 // pred_check
      %p210 = pneg %p209
    $region30: #{scale2_forward.8} parent=5 // pred_check_branch
      %212 = sbr.rel (%p210) target = $region32
    $region31: #{scale2_forward.8} parent=5 // pred_region
      %s213 = ssub.s32 %s7, 2
      // Predicated region
      $region33: #{scale2_forward.8} parent=31 // pred_check
        %p214 = pneg %p78
      $region34: #{scale2_forward.8} parent=31 // pred_check_branch
        %216 = sbr.rel (%p214) target = $region36
      $region35: #{scale2_forward.8} parent=31 // pred_region
        %s217 = smul.u32 4, %s19
        %p218 = scmp.lt.s32.totalorder %s18, 1
        %s219 = scalar_select %p218, %s18, 1
        %p220 = scmp.lt.s32.totalorder %s217, 3
        %s221 = scalar_select %p220, %s217, 3
        %s222 = smul.addr %s219, 4
        %s223 = sadd.s32 %s221, %s222
        %s224 = smul.addr %s223, 2
        %s225 = scalar_lea.vmem %s1, %s224
      $region36: #{scale2_forward.8} parent=31 // pred_fallthru
        _
    $region32: #{scale2_forward.8} parent=5 // pred_fallthru
      _
  $region6: #{scale2_forward.8} parent=0 // loop_footer
    %s11 = sadd.s32 1, %s7
  $region7: #{scale2_forward.8} parent=0 // loop_footer_branch
    %6 = sbr.rel target = $region3
  $region8: #{scale2_forward.8} parent=0 // loop_exit
    _

// kernel: scale2_forward.7
$region0: #{scale2_forward.7}
  #allocation0 [shape = 'u32[]', space=smem, size = 0x4, offset = 0x4, fixed_abs, tag = 'smem constant byte address 0x4 - core index']
  #allocation1 [shape = 'u32[144,128]{1,0:T(1,128)}', space=vmem, size = 0x12000, scoped, tag = 'internal scratch']
  %s0 = inlined_call_operand.vmem [shape: bf16[128,256], index: 0, kind: input, shape index: {}]
  %s1 = inlined_call_operand.vmem [shape: bf16[256,64], index: 1, kind: input, shape index: {}]
  %s2 = inlined_call_operand.vmem [shape: f32[1,64], index: 2, kind: input, shape index: {}]
  %s3 = inlined_call_operand.vmem [shape: bf16[128,64], index: 3, kind: output, shape index: {}]
  %s4 = sld [smem:[#allocation0]]
  $region45: #{scale2_forward.7} parent=0
    _
  %s6 = ssub.s32 1, %s4
  %s7 = scalar_select 0, %s6, %s4
  loop: start=0, step=1, limit=10
  $region2: #{scale2_forward.7} parent=0 // loop_pre_header
    _
  $region3: #{scale2_forward.7} parent=0 // loop_header
    %s9 = sphi 0, %s13
    %p10 = scmp.ge.s32.totalorder %s9, 10
    %s19 = sphi 0, %s21
    %s22 = sphi 0, %s19
    %s23 = sphi 0, %s22
    %s39 = sphi 0, %s23
    %s43 = sphi 0, %s43
    %s45 = sphi 0, %s43
    %s46 = sphi 0, %s45
    %s60 = sphi 0, %s46
    %s64 = sphi 0, %s64
    %s66 = sphi 0, %s64
    %s67 = sphi 0, %s66
    %s81 = sphi 0, %s67
    %s87 = sphi 0, %s89
    %s90 = sphi 0, %s87
    %s91 = sphi 0, %s90
    %s107 = sphi 0, %s91
  $region4: #{scale2_forward.7} parent=0 // loop_header_branch
    %12 = sbr.rel (%p10) target = $region8
  $region5: #{scale2_forward.7} parent=0 // loop_body
    %s14 = ssub.s32 %s9, 1
    %s15 = ssub.s32 %s9, 2
    %s16 = sadd.s32 %s9, 1
    %s17 = ssub.s32 %s9, %s16
    %p18 = scmp.eq.s32.totalorder %s17, 0
    %s20 = sadd.s32 %s19, 1
    %s21 = scalar_select %p18, %s19, %s20
    %p24 = pneg %p18
    %p25 = scmp.eq.s32.totalorder %s9, 7
    %p26 = por %p24, %p25
    %p27 = scmp.ne.s32.totalorder %s19, %s22
    %p28 = scmp.eq.s32.totalorder %s9, 0
    %p29 = por %p27, %p28
    %p30 = scmp.ne.s32.totalorder %s19, %s22
    %p31 = scmp.eq.s32.totalorder %s14, 7
    %p32 = por %p30, %p31
    %p33 = scmp.ne.s32.totalorder %s22, %s23
    %p34 = scmp.eq.s32.totalorder %s14, 0
    %p35 = por %p33, %p34
    %p36 = scmp.ne.s32.totalorder %s22, %s23
    %p37 = scmp.eq.s32.totalorder %s15, 7
    %p38 = por %p36, %p37
    %p40 = scmp.ne.s32.totalorder %s23, %s39
    %p41 = scmp.eq.s32.totalorder %s15, 0
    %p42 = por %p40, %p41
    %s44 = sadd.s32 %s43, 1
    %p47 = scmp.eq.s32.totalorder %s9, 7
    %p48 = scmp.ne.s32.totalorder %s43, %s45
    %p49 = scmp.eq.s32.totalorder %s9, 0
    %p50 = por %p48, %p49
    %p51 = scmp.ne.s32.totalorder %s43, %s45
    %p52 = scmp.eq.s32.totalorder %s14, 7
    %p53 = por %p51, %p52
    %p54 = scmp.ne.s32.totalorder %s45, %s46
    %p55 = scmp.eq.s32.totalorder %s14, 0
    %p56 = por %p54, %p55
    %p57 = scmp.ne.s32.totalorder %s45, %s46
    %p58 = scmp.eq.s32.totalorder %s15, 7
    %p59 = por %p57, %p58
    %p61 = scmp.ne.s32.totalorder %s46, %s60
    %p62 = scmp.eq.s32.totalorder %s15, 0
    %p63 = por %p61, %p62
    %s65 = sadd.s32 %s64, 1
    %p68 = scmp.eq.s32.totalorder %s9, 7
    %p69 = scmp.ne.s32.totalorder %s64, %s66
    %p70 = scmp.eq.s32.totalorder %s9, 0
    %p71 = por %p69, %p70
    %p72 = scmp.ne.s32.totalorder %s64, %s66
    %p73 = scmp.eq.s32.totalorder %s14, 7
    %p74 = por %p72, %p73
    %p75 = scmp.ne.s32.totalorder %s66, %s67
    %p76 = scmp.eq.s32.totalorder %s14, 0
    %p77 = por %p75, %p76
    %p78 = scmp.ne.s32.totalorder %s66, %s67
    %p79 = scmp.eq.s32.totalorder %s15, 7
    %p80 = por %p78, %p79
    %p82 = scmp.ne.s32.totalorder %s67, %s81
    %p83 = scmp.eq.s32.totalorder %s15, 0
    %p84 = por %p82, %p83
    %s85 = ssub.s32 %s9, %s16
    %p86 = scmp.eq.s32.totalorder %s85, 0
    %s88 = sadd.s32 %s87, 1
    %s89 = scalar_select %p86, %s87, %s88
    %p92 = pneg %p86
    %p93 = scmp.eq.s32.totalorder %s9, 7
    %p94 = por %p92, %p93
    %p95 = scmp.ne.s32.totalorder %s87, %s90
    %p96 = scmp.eq.s32.totalorder %s9, 0
    %p97 = por %p95, %p96
    %p98 = scmp.ne.s32.totalorder %s87, %s90
    %p99 = scmp.eq.s32.totalorder %s14, 7
    %p100 = por %p98, %p99
    %p101 = scmp.ne.s32.totalorder %s90, %s91
    %p102 = scmp.eq.s32.totalorder %s14, 0
    %p103 = por %p101, %p102
    %p104 = scmp.ne.s32.totalorder %s90, %s91
    %p105 = scmp.eq.s32.totalorder %s15, 7
    %p106 = por %p104, %p105
    %p108 = scmp.ne.s32.totalorder %s91, %s107
    %p109 = scmp.eq.s32.totalorder %s15, 0
    %p110 = por %p108, %p109
    %p111 = scmp.le.s32.totalorder 1, %s9
    %p112 = scmp.lt.s32.totalorder %s9, 9
    %p113 = pnand %p111, %p112
    %p114 = pneg %p113
    // Predicated region
    $region9: #{scale2_forward.7} parent=5 // pred_check
      _
    $region10: #{scale2_forward.7} parent=5 // pred_check_branch
      %116 = sbr.rel (%p113) target = $region12
    $region11: #{scale2_forward.7} parent=5 // pred_region
      %s117 = ssub.s32 %s9, 1
      // Predicated region
      $region13: #{scale2_forward.7} parent=11 // pred_check
        %p118 = pneg %p56
      $region14: #{scale2_forward.7} parent=11 // pred_check_branch
        %120 = sbr.rel (%p118) target = $region16
      $region15: #{scale2_forward.7} parent=11 // pred_region
        _
      $region16: #{scale2_forward.7} parent=11 // pred_fallthru
        _
      // Predicated region
      $region17: #{scale2_forward.7} parent=11 // pred_check
        %p121 = pneg %p77
      $region18: #{scale2_forward.7} parent=11 // pred_check_branch
        %123 = sbr.rel (%p121) target = $region20
      $region19: #{scale2_forward.7} parent=11 // pred_region
        _
      $region20: #{scale2_forward.7} parent=11 // pred_fallthru
        _
    $region12: #{scale2_forward.7} parent=5 // pred_fallthru
      _
    %p124 = scmp.lt.s32.totalorder %s9, 8
    // Predicated region
    $region21: #{scale2_forward.7} parent=5 // pred_check
      %p125 = pneg %p124
    $region22: #{scale2_forward.7} parent=5 // pred_check_branch
      %127 = sbr.rel (%p125) target = $region24
    $region23: #{scale2_forward.7} parent=5 // pred_region
      // Predicated region
      $region25: #{scale2_forward.7} parent=23 // pred_check
        %p128 = pneg %p29
      $region26: #{scale2_forward.7} parent=23 // pred_check_branch
        %130 = sbr.rel (%p128) target = $region28
      $region27: #{scale2_forward.7} parent=23 // pred_region
        %s131 = smul.u32 2, %s9
        %p132 = scmp.lt.s32.totalorder %s131, 15
        %s133 = scalar_select %p132, %s131, 15
        %s134 = smul.addr %s133, 2
        %s135 = smul.addr %s134, 4
        %s136 = scalar_lea.vmem %s0, %s135
        %s137 = smul.u32 2, %s9
      $region28: #{scale2_forward.7} parent=23 // pred_fallthru
        _
    $region24: #{scale2_forward.7} parent=5 // pred_fallthru
      _
    %p138 = scmp.le.s32.totalorder 1, %s9
    %p139 = scmp.lt.s32.totalorder %s9, 9
    %p140 = pnand %p138, %p139
    %p141 = pneg %p140
    // Predicated region
    $region29: #{scale2_forward.7} parent=5 // pred_check
      _
    $region30: #{scale2_forward.7} parent=5 // pred_check_branch
      %143 = sbr.rel (%p140) target = $region32
    $region31: #{scale2_forward.7} parent=5 // pred_region
      %s144 = ssub.s32 %s9, 1
      %s145 = smul.u32 2, %s14
      %p146 = scmp.lt.s32.totalorder %s145, 15
      %s147 = scalar_select %p146, %s145, 15
      %s148 = smul.addr %s147, 2
      %s149 = smul.addr %s148, 4
      %s150 = scalar_lea.vmem %s0, %s149
      %p151 = pneg %p35
      %p152 = pneg %p32
      %p153 = pneg %p56
      %p154 = pneg %p53
      %p155 = pneg %p77
      %p156 = pneg %p74
      %p157 = pneg %p103
      %p158 = pneg %p100
      %s159 = smul.u32 2, %s14
      %p160 = scmp.lt.s32.totalorder %s159, 15
      %s161 = scalar_select %p160, %s159, 15
      %s162 = smul.addr %s161, 4
      %s163 = scalar_lea.vmem %s3, %s162
      %s164 = smul.u32 2, %s14
      %p165 = scmp.lt.s32.totalorder %s164, 15
      %s166 = scalar_select %p165, %s164, 15
      %s167 = smul.addr %s166, 2
      %s168 = smul.addr %s167, 4
      %s169 = scalar_lea.vmem %s0, %s168
      %s170 = smul.u32 2, %s14
      %s171 = smul.u32 2, %s14
      %p172 = scmp.lt.s32.totalorder %s171, 15
      %s173 = scalar_select %p172, %s171, 15
      %s174 = smul.addr %s173, 4
      %s175 = scalar_lea.vmem %s3, %s174
      %s176 = smul.u32 2, %s14
      %v178 = vld [vmem:[%s169] sm:$0xff]
      %v179 = vld [vmem:[%s169 + $0x8] sm:$0xff]
      %v180 = vld [vmem:[%s1] sm:$0xf]
      %v181 = vld [vmem:[%s1 + $0x4] sm:$0xf]
      %v182 = vld [vmem:[%s1 + $0x8] sm:$0xf]
      %v183 = vld [vmem:[%s1 + $0xc] sm:$0xf]
      %v184 = vld [vmem:[%s1 + $0x10] sm:$0xf]
      %v185 = vld [vmem:[%s1 + $0x14] sm:$0xf]
      %v186 = vld [vmem:[%s1 + $0x18] sm:$0xf]
      %v187 = vld [vmem:[%s1 + $0x1c] sm:$0xf]
      %v188 = vld [vmem:[%s1 + $0x20] sm:$0xf]
      %v189 = vld [vmem:[%s1 + $0x24] sm:$0xf]
      %v190 = vld [vmem:[%s1 + $0x28] sm:$0xf]
      %v191 = vld [vmem:[%s1 + $0x2c] sm:$0xf]
      %v192 = vld [vmem:[%s1 + $0x30] sm:$0xf]
      %v193 = vld [vmem:[%s1 + $0x34] sm:$0xf]
      %v194 = vld [vmem:[%s1 + $0x38] sm:$0xf]
      %v195 = vld [vmem:[%s1 + $0x3c] sm:$0xf]
      %v196 = vld [vmem:[%s1 + $0x40] sm:$0xf]
      %v197 = vld [vmem:[%s1 + $0x44] sm:$0xf]
      %v198 = vld [vmem:[%s1 + $0x48] sm:$0xf]
      %v199 = vld [vmem:[%s1 + $0x4c] sm:$0xf]
      %v200 = vld [vmem:[%s1 + $0x50] sm:$0xf]
      %v201 = vld [vmem:[%s1 + $0x54] sm:$0xf]
      %v202 = vld [vmem:[%s1 + $0x58] sm:$0xf]
      %v203 = vld [vmem:[%s1 + $0x5c] sm:$0xf]
      %v204 = vld [vmem:[%s1 + $0x60] sm:$0xf]
      %v205 = vld [vmem:[%s1 + $0x64] sm:$0xf]
      %v206 = vld [vmem:[%s1 + $0x68] sm:$0xf]
      %v207 = vld [vmem:[%s1 + $0x6c] sm:$0xf]
      %v208 = vld [vmem:[%s1 + $0x70] sm:$0xf]
      %v209 = vld [vmem:[%s1 + $0x74] sm:$0xf]
      %v210 = vld [vmem:[%s1 + $0x78] sm:$0xf]
      %v211 = vld [vmem:[%s1 + $0x7c] sm:$0xf]
      %v212 = vld [vmem:[%s2] sm:$0x1]
      %v214 = vlaneseq
      %v215 = vshrl.u32 %v214, 7
      %v216 = vsub.s32 0, %v215
      %v217 = vrot.slane %v212, %v216
      %v221 = vunpack.c.l.b16 %v178
      %v222 = vunpack.c.h.b16 %v178
      %v223 = vunpack.c.l.b16 %v179
      %v224 = vunpack.c.h.b16 %v179
      %v225 = vpack.c.b16 %v223, %v221
      %v226 = vpack.c.b16 %v224, %v222
      %v261 = vunpack.c.l.b16 %v180
      %v262 = vunpack.c.l.b16 %v181
      %v263 = vunpack.c.l.b16 %v182
      %v264 = vunpack.c.l.b16 %v183
      %v265 = vunpack.c.l.b16 %v184
      %v266 = vunpack.c.l.b16 %v185
      %v267 = vunpack.c.l.b16 %v186
      %v268 = vunpack.c.l.b16 %v187
      %v269 = vunpack.c.l.b16 %v188
      %v270 = vunpack.c.l.b16 %v189
      %v271 = vunpack.c.l.b16 %v190
      %v272 = vunpack.c.l.b16 %v191
      %v273 = vunpack.c.l.b16 %v192
      %v274 = vunpack.c.l.b16 %v193
      %v275 = vunpack.c.l.b16 %v194
      %v276 = vunpack.c.l.b16 %v195
      %v277 = vunpack.c.l.b16 %v196
      %v278 = vunpack.c.l.b16 %v197
      %v279 = vunpack.c.l.b16 %v198
      %v280 = vunpack.c.l.b16 %v199
      %v281 = vunpack.c.l.b16 %v200
      %v282 = vunpack.c.l.b16 %v201
      %v283 = vunpack.c.l.b16 %v202
      %v284 = vunpack.c.l.b16 %v203
      %v285 = vunpack.c.l.b16 %v204
      %v286 = vunpack.c.l.b16 %v205
      %v287 = vunpack.c.l.b16 %v206
      %v288 = vunpack.c.l.b16 %v207
      %v289 = vunpack.c.l.b16 %v208
      %v290 = vunpack.c.l.b16 %v209
      %v291 = vunpack.c.l.b16 %v210
      %v292 = vunpack.c.l.b16 %v211
      %v293 = vpack.c.b16 %v262, %v261
      %v294 = vpack.c.b16 %v264, %v263
      %v295 = vpack.c.b16 %v266, %v265
      %v296 = vpack.c.b16 %v268, %v267
      %v297 = vpack.c.b16 %v270, %v269
      %v298 = vpack.c.b16 %v272, %v271
      %v299 = vpack.c.b16 %v274, %v273
      %v300 = vpack.c.b16 %v276, %v275
      %v301 = vpack.c.b16 %v278, %v277
      %v302 = vpack.c.b16 %v280, %v279
      %v303 = vpack.c.b16 %v282, %v281
      %v304 = vpack.c.b16 %v284, %v283
      %v305 = vpack.c.b16 %v286, %v285
      %v306 = vpack.c.b16 %v288, %v287
      %v307 = vpack.c.b16 %v290, %v289
      %v308 = vpack.c.b16 %v292, %v291
      %325 = vmatprep.subr.bf16.mxu0 0
      %326 = vmatpush1.bf16.msra.mxu0 %v293
      %327 = vmatprep.subr.bf16.mxu0 0
      %328 = vmatpush1.bf16.msra.mxu0 %v294
      %329 = vmatprep.subr.bf16.mxu0 0
      %330 = vmatpush1.bf16.msra.mxu0 %v295
      %331 = vmatprep.subr.bf16.mxu0 0
      %332 = vmatpush1.bf16.msra.mxu0 %v296
      %333 = vmatprep.subr.bf16.mxu0 0
      %334 = vmatpush1.bf16.msra.mxu0 %v297
      %335 = vmatprep.subr.bf16.mxu0 0
      %336 = vmatpush1.bf16.msra.mxu0 %v298
      %337 = vmatprep.subr.bf16.mxu0 0
      %338 = vmatpush1.bf16.msra.mxu0 %v299
      %339 = vmatprep.subr.bf16.mxu0 0
      %340 = vmatpush1.bf16.msra.mxu0 %v300
      %341 = vmatprep.subr.bf16.mxu0 0
      %342 = vmatpush1.bf16.msra.mxu0 %v301
      %343 = vmatprep.subr.bf16.mxu0 0
      %344 = vmatpush1.bf16.msra.mxu0 %v302
      %345 = vmatprep.subr.bf16.mxu0 0
      %346 = vmatpush1.bf16.msra.mxu0 %v303
      %347 = vmatprep.subr.bf16.mxu0 0
      %348 = vmatpush1.bf16.msra.mxu0 %v304
      %349 = vmatprep.subr.bf16.mxu0 0
      %350 = vmatpush1.bf16.msra.mxu0 %v305
      %351 = vmatprep.subr.bf16.mxu0 0
      %352 = vmatpush1.bf16.msra.mxu0 %v306
      %353 = vmatprep.subr.bf16.mxu0 0
      %354 = vmatpush1.bf16.msra.mxu0 %v307
      %355 = vmatprep.subr.bf16.mxu0 0
      %356 = vmatpush1.bf16.msra.mxu0 %v308
      %357 = vmatprep.mubr.bf16.mxu0 %v226
      %358 = vmatmul.mubr.bf16.gmra.mrb[0].mxu0 %v225
      %v359 = vpop.f32.mrb[0].mxu0
      %v360 = vadd.f32 %v217, %v359
      %v361 = vpop.f32.mrb[0].mxu0
      %v362 = vpop.f32.mrb[0].mxu0
      %v363 = vadd.f32 %v217, %v362
      %v364 = vpop.f32.mrb[0].mxu0
      %365 = vdwg.mxu0
      %v366 = vmax.f32 %v360, 0.0
      %v367 = vmax.f32 %v363, 0.0
      %v368 = vpack.c.bf16 %v367, %v366
      %v370 = vunpack.c.l.b16 %v368
      %v371 = vunpack.c.h.b16 %v368
      %v372 = vpack.c.b16 %v370, %v370
      %v373 = vpack.c.b16 %v371, %v371
      %vm376 = vcmask 519168
      %377 = vst.msk [vmem:[%s175] sm:$0xf] %vm376, %v372
      %378 = vst.msk [vmem:[%s175 + $0x4] sm:$0xf] %vm376, %v373
      %s379 = smul.u32 2, %s14
      %p380 = scmp.lt.s32.totalorder %s379, 15
      %s381 = scalar_select %p380, %s379, 15
      %s382 = smul.addr %s381, 4
      %s383 = scalar_lea.vmem %s3, %s382
      // Predicated region
      $region33: #{scale2_forward.7} parent=31 // pred_check
        %p384 = pneg %p100
      $region34: #{scale2_forward.7} parent=31 // pred_check_branch
        %386 = sbr.rel (%p384) target = $region36
      $region35: #{scale2_forward.7} parent=31 // pred_region
        %s387 = smul.u32 2, %s14
      $region36: #{scale2_forward.7} parent=31 // pred_fallthru
        _
    $region32: #{scale2_forward.7} parent=5 // pred_fallthru
      _
    %p388 = scmp.le.s32.totalorder 2, %s9
    // Predicated region
    $region37: #{scale2_forward.7} parent=5 // pred_check
      %p389 = pneg %p388
    $region38: #{scale2_forward.7} parent=5 // pred_check_branch
      %391 = sbr.rel (%p389) target = $region40
    $region39: #{scale2_forward.7} parent=5 // pred_region
      %s392 = ssub.s32 %s9, 2
      // Predicated region
      $region41: #{scale2_forward.7} parent=39 // pred_check
        %p393 = pneg %p106
      $region42: #{scale2_forward.7} parent=39 // pred_check_branch
        %395 = sbr.rel (%p393) target = $region44
      $region43: #{scale2_forward.7} parent=39 // pred_region
        %s396 = smul.u32 2, %s15
        %p397 = scmp.lt.s32.totalorder %s396, 15
        %s398 = scalar_select %p397, %s396, 15
        %s399 = smul.addr %s398, 4
        %s400 = scalar_lea.vmem %s3, %s399
      $region44: #{scale2_forward.7} parent=39 // pred_fallthru
        _
    $region40: #{scale2_forward.7} parent=5 // pred_fallthru
      _
  $region6: #{scale2_forward.7} parent=0 // loop_footer
    %s13 = sadd.s32 1, %s9
  $region7: #{scale2_forward.7} parent=0 // loop_footer_branch
    %8 = sbr.rel target = $region3
  $region8: #{scale2_forward.7} parent=0 // loop_exit
    _

// kernel: scale2_forward.9
$region0: #{scale2_forward.9}
  #allocation0 [shape = 'u32[]', space=smem, size = 0x4, offset = 0x4, fixed_abs, tag = 'smem constant byte address 0x4 - core index']
  #allocation1 [shape = 'u32[144,128]{1,0:T(1,128)}', space=vmem, size = 0x12000, scoped, tag = 'internal scratch']
  %s0 = inlined_call_operand.vmem [shape: bf16[2,1,144,128], index: 0, kind: input, shape index: {}]
  %s1 = inlined_call_operand.vmem [shape: bf16[15,128,128], index: 1, kind: input, shape index: {}]
  %s2 = inlined_call_operand.vmem [shape: f32[3,64], index: 2, kind: input, shape index: {}]
  %s3 = inlined_call_operand.vmem [shape: bf16[2,1,64,64], index: 3, kind: output, shape index: {}]
  %s4 = sld [smem:[#allocation0]]
  $region45: #{scale2_forward.9} parent=0
    _
  %s6 = ssub.s32 1, %s4
  %s7 = scalar_select 0, %s6, %s4
  loop: start=0, step=1, limit=4
  $region2: #{scale2_forward.9} parent=0 // loop_pre_header
    _
  $region3: #{scale2_forward.9} parent=0 // loop_header
    %s9 = sphi 0, %s13
    %p10 = scmp.ge.s32.totalorder %s9, 4
    %s16 = sphi 0, %s28
    %s17 = sphi 0, %s24
    %s18 = sphi 0, %s16
    %s19 = sphi 0, %s17
    %s20 = sphi 0, %s18
    %s21 = sphi 0, %s19
    %s33 = sphi 0, %s35
    %s36 = sphi 0, %s33
    %s37 = sphi 0, %s36
    %s53 = sphi 0, %s37
    %s57 = sphi 0, %s57
    %s59 = sphi 0, %s57
    %s60 = sphi 0, %s59
    %s74 = sphi 0, %s60
    %s78 = sphi 0, %s78
    %s80 = sphi 0, %s78
    %s81 = sphi 0, %s80
    %s95 = sphi 0, %s81
    %s103 = sphi 0, %s105
    %s106 = sphi 0, %s103
    %s107 = sphi 0, %s106
    %s123 = sphi 0, %s107
  $region4: #{scale2_forward.9} parent=0 // loop_header_branch
    %12 = sbr.rel (%p10) target = $region8
  $region5: #{scale2_forward.9} parent=0 // loop_body
    %s14 = ssub.s32 %s9, 1
    %s15 = ssub.s32 %s9, 2
    %s22 = sadd.s32 1, %s17
    %p23 = scmp.ge.s32.totalorder %s22, 1
    %s24 = scalar_select %p23, 0, %s22
    %s25 = sadd.s32 1, %s16
    %s26 = scalar_select %p23, %s25, %s16
    %p27 = scmp.ge.s32.totalorder %s26, 2
    %s28 = scalar_select %p27, 0, %s26
    %s29 = ssub.s32 %s16, %s28
    %s30 = ssub.s32 %s17, %s24
    %s31 = sor.u32 %s29, %s30
    %p32 = scmp.eq.s32.totalorder %s31, 0
    %s34 = sadd.s32 %s33, 1
    %s35 = scalar_select %p32, %s33, %s34
    %p38 = pneg %p32
    %p39 = scmp.eq.s32.totalorder %s9, 1
    %p40 = por %p38, %p39
    %p41 = scmp.ne.s32.totalorder %s33, %s36
    %p42 = scmp.eq.s32.totalorder %s9, 0
    %p43 = por %p41, %p42
    %p44 = scmp.ne.s32.totalorder %s33, %s36
    %p45 = scmp.eq.s32.totalorder %s14, 1
    %p46 = por %p44, %p45
    %p47 = scmp.ne.s32.totalorder %s36, %s37
    %p48 = scmp.eq.s32.totalorder %s14, 0
    %p49 = por %p47, %p48
    %p50 = scmp.ne.s32.totalorder %s36, %s37
    %p51 = scmp.eq.s32.totalorder %s15, 1
    %p52 = por %p50, %p51
    %p54 = scmp.ne.s32.totalorder %s37, %s53
    %p55 = scmp.eq.s32.totalorder %s15, 0
    %p56 = por %p54, %p55
    %s58 = sadd.s32 %s57, 1
    %p61 = scmp.eq.s32.totalorder %s9, 1
    %p62 = scmp.ne.s32.totalorder %s57, %s59
    %p63 = scmp.eq.s32.totalorder %s9, 0
    %p64 = por %p62, %p63
    %p65 = scmp.ne.s32.totalorder %s57, %s59
    %p66 = scmp.eq.s32.totalorder %s14, 1
    %p67 = por %p65, %p66
    %p68 = scmp.ne.s32.totalorder %s59, %s60
    %p69 = scmp.eq.s32.totalorder %s14, 0
    %p70 = por %p68, %p69
    %p71 = scmp.ne.s32.totalorder %s59, %s60
    %p72 = scmp.eq.s32.totalorder %s15, 1
    %p73 = por %p71, %p72
    %p75 = scmp.ne.s32.totalorder %s60, %s74
    %p76 = scmp.eq.s32.totalorder %s15, 0
    %p77 = por %p75, %p76
    %s79 = sadd.s32 %s78, 1
    %p82 = scmp.eq.s32.totalorder %s9, 1
    %p83 = scmp.ne.s32.totalorder %s78, %s80
    %p84 = scmp.eq.s32.totalorder %s9, 0
    %p85 = por %p83, %p84
    %p86 = scmp.ne.s32.totalorder %s78, %s80
    %p87 = scmp.eq.s32.totalorder %s14, 1
    %p88 = por %p86, %p87
    %p89 = scmp.ne.s32.totalorder %s80, %s81
    %p90 = scmp.eq.s32.totalorder %s14, 0
    %p91 = por %p89, %p90
    %p92 = scmp.ne.s32.totalorder %s80, %s81
    %p93 = scmp.eq.s32.totalorder %s15, 1
    %p94 = por %p92, %p93
    %p96 = scmp.ne.s32.totalorder %s81, %s95
    %p97 = scmp.eq.s32.totalorder %s15, 0
    %p98 = por %p96, %p97
    %s99 = ssub.s32 %s16, %s28
    %s100 = ssub.s32 %s17, %s24
    %s101 = sor.u32 %s99, %s100
    %p102 = scmp.eq.s32.totalorder %s101, 0
    %s104 = sadd.s32 %s103, 1
    %s105 = scalar_select %p102, %s103, %s104
    %p108 = pneg %p102
    %p109 = scmp.eq.s32.totalorder %s9, 1
    %p110 = por %p108, %p109
    %p111 = scmp.ne.s32.totalorder %s103, %s106
    %p112 = scmp.eq.s32.totalorder %s9, 0
    %p113 = por %p111, %p112
    %p114 = scmp.ne.s32.totalorder %s103, %s106
    %p115 = scmp.eq.s32.totalorder %s14, 1
    %p116 = por %p114, %p115
    %p117 = scmp.ne.s32.totalorder %s106, %s107
    %p118 = scmp.eq.s32.totalorder %s14, 0
    %p119 = por %p117, %p118
    %p120 = scmp.ne.s32.totalorder %s106, %s107
    %p121 = scmp.eq.s32.totalorder %s15, 1
    %p122 = por %p120, %p121
    %p124 = scmp.ne.s32.totalorder %s107, %s123
    %p125 = scmp.eq.s32.totalorder %s15, 0
    %p126 = por %p124, %p125
    %p127 = scmp.le.s32.totalorder 1, %s9
    %p128 = scmp.lt.s32.totalorder %s9, 3
    %p129 = pnand %p127, %p128
    %p130 = pneg %p129
    // Predicated region
    $region9: #{scale2_forward.9} parent=5 // pred_check
      _
    $region10: #{scale2_forward.9} parent=5 // pred_check_branch
      %132 = sbr.rel (%p129) target = $region12
    $region11: #{scale2_forward.9} parent=5 // pred_region
      %s133 = ssub.s32 %s9, 1
      // Predicated region
      $region13: #{scale2_forward.9} parent=11 // pred_check
        %p134 = pneg %p70
      $region14: #{scale2_forward.9} parent=11 // pred_check_branch
        %136 = sbr.rel (%p134) target = $region16
      $region15: #{scale2_forward.9} parent=11 // pred_region
        _
      $region16: #{scale2_forward.9} parent=11 // pred_fallthru
        _
      // Predicated region
      $region17: #{scale2_forward.9} parent=11 // pred_check
        %p137 = pneg %p91
      $region18: #{scale2_forward.9} parent=11 // pred_check_branch
        %139 = sbr.rel (%p137) target = $region20
      $region19: #{scale2_forward.9} parent=11 // pred_region
        _
      $region20: #{scale2_forward.9} parent=11 // pred_fallthru
        _
    $region12: #{scale2_forward.9} parent=5 // pred_fallthru
      _
    %p140 = scmp.lt.s32.totalorder %s9, 2
    // Predicated region
    $region21: #{scale2_forward.9} parent=5 // pred_check
      %p141 = pneg %p140
    $region22: #{scale2_forward.9} parent=5 // pred_check_branch
      %143 = sbr.rel (%p141) target = $region24
    $region23: #{scale2_forward.9} parent=5 // pred_region
      // Predicated region
      $region25: #{scale2_forward.9} parent=23 // pred_check
        %p144 = pneg %p43
      $region26: #{scale2_forward.9} parent=23 // pred_check_branch
        %146 = sbr.rel (%p144) target = $region28
      $region27: #{scale2_forward.9} parent=23 // pred_region
        %p147 = scmp.lt.s32.totalorder %s16, 1
        %s148 = scalar_select %p147, %s16, 1
        %p149 = scmp.lt.s32.totalorder %s17, 0
        %s150 = scalar_select %p149, %s17, 0
        %s151 = smul.addr %s150, 18
        %s152 = smul.addr %s148, 18
        %s153 = sadd.s32 %s151, %s152
        %s154 = smul.addr %s153, 4
        %s155 = scalar_lea.vmem %s0, %s154
      $region28: #{scale2_forward.9} parent=23 // pred_fallthru
        _
    $region24: #{scale2_forward.9} parent=5 // pred_fallthru
      _
    %p156 = scmp.le.s32.totalorder 1, %s9
    %p157 = scmp.lt.s32.totalorder %s9, 3
    %p158 = pnand %p156, %p157
    %p159 = pneg %p158
    // Predicated region
    $region29: #{scale2_forward.9} parent=5 // pred_check
      _
    $region30: #{scale2_forward.9} parent=5 // pred_check_branch
      %161 = sbr.rel (%p158) target = $region32
    $region31: #{scale2_forward.9} parent=5 // pred_region
      %s162 = ssub.s32 %s9, 1
      %p163 = scmp.lt.s32.totalorder %s18, 1
      %s164 = scalar_select %p163, %s18, 1
      %p165 = scmp.lt.s32.totalorder %s19, 0
      %s166 = scalar_select %p165, %s19, 0
      %s167 = smul.addr %s166, 18
      %s168 = smul.addr %s164, 18
      %s169 = sadd.s32 %s167, %s168
      %s170 = smul.addr %s169, 4
      %s171 = scalar_lea.vmem %s0, %s170
      %p172 = pneg %p49
      %p173 = pneg %p46
      %p174 = pneg %p70
      %p175 = pneg %p67
      %p176 = pneg %p91
      %p177 = pneg %p88
      %p178 = pneg %p119
      %p179 = pneg %p116
      %p180 = scmp.lt.s32.totalorder %s18, 1
      %s181 = scalar_select %p180, %s18, 1
      %p182 = scmp.lt.s32.totalorder %s19, 0
      %s183 = scalar_select %p182, %s19, 0
      %s184 = smul.addr %s183, 8
      %s185 = smul.addr %s181, 8
      %s186 = sadd.s32 %s184, %s185
      %s187 = smul.addr %s186, 4
      %s188 = scalar_lea.vmem %s3, %s187
      %p189 = scmp.lt.s32.totalorder %s18, 1
      %s190 = scalar_select %p189, %s18, 1
      %p191 = scmp.lt.s32.totalorder %s19, 0
      %s192 = scalar_select %p191, %s19, 0
      %s193 = smul.addr %s192, 18
      %s194 = smul.addr %s190, 18
      %s195 = sadd.s32 %s193, %s194
      %s196 = smul.addr %s195, 4
      %s197 = scalar_lea.vmem %s0, %s196
      %p198 = scmp.lt.s32.totalorder %s18, 1
      %s199 = scalar_select %p198, %s18, 1
      %p200 = scmp.lt.s32.totalorder %s19, 0
      %s201 = scalar_select %p200, %s19, 0
      %s202 = smul.addr %s201, 8
      %s203 = smul.addr %s199, 8
      %s204 = sadd.s32 %s202, %s203
      %s205 = smul.addr %s204, 4
      %s206 = scalar_lea.vmem %s3, %s205
      %v208 = vld [vmem:[%s197] sm:$0xf]
      %v209 = vld [vmem:[%s197 + $0x4] sm:$0xf]
      %v210 = vld [vmem:[%s197 + $0x8] sm:$0xf]
      %v211 = vld [vmem:[%s197 + $0xc] sm:$0xf]
      %v212 = vld [vmem:[%s197 + $0x10] sm:$0xf]
      %v213 = vld [vmem:[%s197 + $0x14] sm:$0xf]
      %v214 = vld [vmem:[%s197 + $0x18] sm:$0xf]
      %v215 = vld [vmem:[%s197 + $0x1c] sm:$0xf]
      %v216 = vld [vmem:[%s197 + $0x20] sm:$0x1]
      %v217 = vld [vmem:[%s1] sm:$0xf]
      %v218 = vld [vmem:[%s1 + $0x4] sm:$0xf]
      %v219 = vld [vmem:[%s1 + $0x8] sm:$0xf]
      %v220 = vld [vmem:[%s1 + $0xc] sm:$0xf]
      %v221 = vld [vmem:[%s1 + $0x10] sm:$0xf]
      %v222 = vld [vmem:[%s1 + $0x14] sm:$0xf]
      %v223 = vld [vmem:[%s1 + $0x18] sm:$0xf]
      %v224 = vld [vmem:[%s1 + $0x1c] sm:$0xf]
      %v225 = vld [vmem:[%s1 + $0x20] sm:$0xf]
      %v226 = vld [vmem:[%s1 + $0x24] sm:$0xf]
      %v227 = vld [vmem:[%s1 + $0x28] sm:$0xf]
      %v228 = vld [vmem:[%s1 + $0x2c] sm:$0xf]
      %v229 = vld [vmem:[%s1 + $0x30] sm:$0xf]
      %v230 = vld [vmem:[%s1 + $0x34] sm:$0xf]
      %v231 = vld [vmem:[%s1 + $0x38] sm:$0xf]
      %v232 = vld [vmem:[%s1 + $0x3c] sm:$0xf]
      %v233 = vld [vmem:[%s197] sm:$0xe]
      %v234 = vld [vmem:[%s197 + $0x20] sm:$0x3]
      %s235 = scalar_lea.vmem %s1, 64
      %v236 = vld [vmem:[%s235] sm:$0xf]
      %v237 = vld [vmem:[%s235 + $0x4] sm:$0xf]
      %v238 = vld [vmem:[%s235 + $0x8] sm:$0xf]
      %v239 = vld [vmem:[%s235 + $0xc] sm:$0xf]
      %v240 = vld [vmem:[%s235 + $0x10] sm:$0xf]
      %v241 = vld [vmem:[%s235 + $0x14] sm:$0xf]
      %v242 = vld [vmem:[%s235 + $0x18] sm:$0xf]
      %v243 = vld [vmem:[%s235 + $0x1c] sm:$0xf]
      %v244 = vld [vmem:[%s235 + $0x20] sm:$0xf]
      %v245 = vld [vmem:[%s235 + $0x24] sm:$0xf]
      %v246 = vld [vmem:[%s235 + $0x28] sm:$0xf]
      %v247 = vld [vmem:[%s235 + $0x2c] sm:$0xf]
      %v248 = vld [vmem:[%s235 + $0x30] sm:$0xf]
      %v249 = vld [vmem:[%s235 + $0x34] sm:$0xf]
      %v250 = vld [vmem:[%s235 + $0x38] sm:$0xf]
      %v251 = vld [vmem:[%s235 + $0x3c] sm:$0xf]
      %v261 = vunpack.c.l.b16 %v233
      %v262 = vunpack.c.l.b16 %v209
      %v263 = vunpack.c.l.b16 %v210
      %v264 = vunpack.c.l.b16 %v211
      %v265 = vunpack.c.l.b16 %v212
      %v266 = vunpack.c.l.b16 %v213
      %v267 = vunpack.c.l.b16 %v214
      %v268 = vunpack.c.l.b16 %v215
      %v269 = vunpack.c.l.b16 %v234
      %v270 = vpack.c.b16 %v262, %v261
      %v271 = vpack.c.b16 %v264, %v263
      %v272 = vpack.c.b16 %v266, %v265
      %v273 = vpack.c.b16 %v268, %v267
      %v274 = vpack.c.b16 %v269, %v269
      %vm275 = vcmask 1046528
      %v276 = vrot.slane %v270, 1
      %v277 = vrot.slane %v271, 1
      %v278 = vsel %vm275, %v276, %v277
      %v279 = vrot.slane %v272, 1
      %v280 = vsel %vm275, %v277, %v279
      %v281 = vrot.slane %v273, 1
      %v282 = vsel %vm275, %v279, %v281
      %v283 = vrot.slane %v274, 1
      %v284 = vsel %vm275, %v281, %v283
      %v306 = vunpack.c.l.b16 %v236
      %v307 = vunpack.c.l.b16 %v237
      %v308 = vunpack.c.l.b16 %v238
      %v309 = vunpack.c.l.b16 %v239
      %v310 = vunpack.c.l.b16 %v240
      %v311 = vunpack.c.l.b16 %v241
      %v312 = vunpack.c.l.b16 %v242
      %v313 = vunpack.c.l.b16 %v243
      %v314 = vunpack.c.l.b16 %v244
      %v315 = vunpack.c.l.b16 %v245
      %v316 = vunpack.c.l.b16 %v246
      %v317 = vunpack.c.l.b16 %v247
      %v318 = vunpack.c.l.b16 %v248
      %v319 = vunpack.c.l.b16 %v249
      %v320 = vunpack.c.l.b16 %v250
      %v321 = vunpack.c.l.b16 %v251
      %v322 = vpack.c.b16 %v307, %v306
      %v323 = vpack.c.b16 %v309, %v308
      %v324 = vpack.c.b16 %v311, %v310
      %v325 = vpack.c.b16 %v313, %v312
      %v326 = vpack.c.b16 %v315, %v314
      %v327 = vpack.c.b16 %v317, %v316
      %v328 = vpack.c.b16 %v319, %v318
      %v329 = vpack.c.b16 %v321, %v320
      %338 = vmatprep.subr.bf16.mxu0 0
      %339 = vmatpush1.bf16.msra.mxu0 %v322
      %340 = vmatprep.subr.bf16.mxu0 0
      %341 = vmatpush1.bf16.msra.mxu0 %v323
      %342 = vmatprep.subr.bf16.mxu0 0
      %343 = vmatpush1.bf16.msra.mxu0 %v324
      %344 = vmatprep.subr.bf16.mxu0 0
      %345 = vmatpush1.bf16.msra.mxu0 %v325
      %346 = vmatprep.subr.bf16.mxu0 0
      %347 = vmatpush1.bf16.msra.mxu0 %v326
      %348 = vmatprep.subr.bf16.mxu0 0
      %349 = vmatpush1.bf16.msra.mxu0 %v327
      %350 = vmatprep.subr.bf16.mxu0 0
      %351 = vmatpush1.bf16.msra.mxu0 %v328
      %352 = vmatprep.subr.bf16.mxu0 0
      %353 = vmatpush1.bf16.msra.mxu0 %v329
      %354 = vmatprep.subr.bf16.mxu0 0
      %355 = vmatpush1.bf16.msra.mxu0 0
      %356 = vmatprep.subr.bf16.mxu0 0
      %357 = vmatpush1.bf16.msra.mxu0 0
      %358 = vmatprep.subr.bf16.mxu0 0
      %359 = vmatpush1.bf16.msra.mxu0 0
      %360 = vmatprep.subr.bf16.mxu0 0
      %361 = vmatpush1.bf16.msra.mxu0 0
      %362 = vmatprep.subr.bf16.mxu0 0
      %363 = vmatpush1.bf16.msra.mxu0 0
      %364 = vmatprep.subr.bf16.mxu0 0
      %365 = vmatpush1.bf16.msra.mxu0 0
      %366 = vmatprep.subr.bf16.mxu0 0
      %367 = vmatpush1.bf16.msra.mxu0 0
      %368 = vmatprep.subr.bf16.mxu0 0
      %369 = vmatpush1.bf16.msra.mxu0 0
      %370 = vmatprep.mubr.bf16.mxu0 0
      %371 = vmatmul.mubr.bf16.gmra.mrb[0].mxu0 %v278
      %v372 = vpop.f32.mrb[0].mxu0
      %v373 = vadd.f32 0.0, %v372
      %v374 = vpop.f32.mrb[0].mxu0
      %v375 = vpop.f32.mrb[0].mxu0
      %v376 = vadd.f32 0.0, %v375
      %v377 = vpop.f32.mrb[0].mxu0
      %378 = vmatprep.mubr.bf16.mxu0 0
      %379 = vmatmul.mubr.bf16.gmra.mrb[0].mxu0 %v280
      %v380 = vpop.f32.mrb[0].mxu0
      %v381 = vadd.f32 0.0, %v380
      %v382 = vpop.f32.mrb[0].mxu0
      %v383 = vpop.f32.mrb[0].mxu0
      %v384 = vadd.f32 0.0, %v383
      %v385 = vpop.f32.mrb[0].mxu0
      %386 = vmatprep.mubr.bf16.mxu0 0
      %387 = vmatmul.mubr.bf16.gmra.mrb[0].mxu0 %v282
      %v388 = vpop.f32.mrb[0].mxu0
      %v389 = vadd.f32 0.0, %v388
      %v390 = vpop.f32.mrb[0].mxu0
      %v391 = vpop.f32.mrb[0].mxu0
      %v392 = vadd.f32 0.0, %v391
      %v393 = vpop.f32.mrb[0].mxu0
      %394 = vmatprep.mubr.bf16.mxu0 0
      %395 = vmatmul.mubr.bf16.gmra.mrb[0].mxu0 %v284
      %v396 = vpop.f32.mrb[0].mxu0
      %v397 = vadd.f32 0.0, %v396
      %v398 = vpop.f32.mrb[0].mxu0
      %v399 = vpop.f32.mrb[0].mxu0
      %v400 = vadd.f32 0.0, %v399
      %v401 = vpop.f32.mrb[0].mxu0
      %402 = vmatprep.mubr.bf16.mxu0 0
      %403 = vmatmul.mubr.bf16.gmra.mrb[0].mxu0 %v283
      %v404 = vpop.f32.mrb[0].mxu0
      %v405 = vadd.f32 0.0, %v404
      %v406 = vpop.f32.mrb[0].mxu0
      %v407 = vpop.f32.mrb[0].mxu0
      %v408 = vpop.f32.mrb[0].mxu0
      %409 = vdwg.mxu0
      %v412 = vunpack.c.l.b16 %v208
      %v413 = vunpack.c.l.b16 %v216
      %v414 = vpack.c.b16 %v262, %v412
      %v415 = vpack.c.b16 %v413, %v413
      %v437 = vunpack.c.l.b16 %v217
      %v438 = vunpack.c.l.b16 %v218
      %v439 = vunpack.c.l.b16 %v219
      %v440 = vunpack.c.l.b16 %v220
      %v441 = vunpack.c.l.b16 %v221
      %v442 = vunpack.c.l.b16 %v222
      %v443 = vunpack.c.l.b16 %v223
      %v444 = vunpack.c.l.b16 %v224
      %v445 = vunpack.c.l.b16 %v225
      %v446 = vunpack.c.l.b16 %v226
      %v447 = vunpack.c.l.b16 %v227
      %v448 = vunpack.c.l.b16 %v228
      %v449 = vunpack.c.l.b16 %v229
      %v450 = vunpack.c.l.b16 %v230
      %v451 = vunpack.c.l.b16 %v231
      %v452 = vunpack.c.l.b16 %v232
      %v453 = vpack.c.b16 %v438, %v437
      %v454 = vpack.c.b16 %v440, %v439
      %v455 = vpack.c.b16 %v442, %v441
      %v456 = vpack.c.b16 %v444, %v443
      %v457 = vpack.c.b16 %v446, %v445
      %v458 = vpack.c.b16 %v448, %v447
      %v459 = vpack.c.b16 %v450, %v449
      %v460 = vpack.c.b16 %v452, %v451
      %469 = vmatprep.subr.bf16.mxu0 0
      %470 = vmatpush1.bf16.msra.mxu0 %v453
      %471 = vmatprep.subr.bf16.mxu0 0
      %472 = vmatpush1.bf16.msra.mxu0 %v454
      %473 = vmatprep.subr.bf16.mxu0 0
      %474 = vmatpush1.bf16.msra.mxu0 %v455
      %475 = vmatprep.subr.bf16.mxu0 0
      %476 = vmatpush1.bf16.msra.mxu0 %v456
      %477 = vmatprep.subr.bf16.mxu0 0
      %478 = vmatpush1.bf16.msra.mxu0 %v457
      %479 = vmatprep.subr.bf16.mxu0 0
      %480 = vmatpush1.bf16.msra.mxu0 %v458
      %481 = vmatprep.subr.bf16.mxu0 0
      %482 = vmatpush1.bf16.msra.mxu0 %v459
      %483 = vmatprep.subr.bf16.mxu0 0
      %484 = vmatpush1.bf16.msra.mxu0 %v460
      %485 = vmatprep.subr.bf16.mxu0 0
      %486 = vmatpush1.bf16.msra.mxu0 0
      %487 = vmatprep.subr.bf16.mxu0 0
      %488 = vmatpush1.bf16.msra.mxu0 0
      %489 = vmatprep.subr.bf16.mxu0 0
      %490 = vmatpush1.bf16.msra.mxu0 0
      %491 = vmatprep.subr.bf16.mxu0 0
      %492 = vmatpush1.bf16.msra.mxu0 0
      %493 = vmatprep.subr.bf16.mxu0 0
      %494 = vmatpush1.bf16.msra.mxu0 0
      %495 = vmatprep.subr.bf16.mxu0 0
      %496 = vmatpush1.bf16.msra.mxu0 0
      %497 = vmatprep.subr.bf16.mxu0 0
      %498 = vmatpush1.bf16.msra.mxu0 0
      %499 = vmatprep.subr.bf16.mxu0 0
      %500 = vmatpush1.bf16.msra.mxu0 0
      %501 = vmatprep.mubr.bf16.mxu0 0
      %502 = vmatmul.mubr.bf16.gmra.mrb[0].mxu0 %v414
      %v503 = vpop.f32.mrb[0].mxu0
      %v504 = vadd.f32 %v373, %v503
      %v505 = vpop.f32.mrb[0].mxu0
      %v506 = vpop.f32.mrb[0].mxu0
      %v507 = vadd.f32 %v376, %v506
      %v508 = vpop.f32.mrb[0].mxu0
      %509 = vmatprep.mubr.bf16.mxu0 0
      %510 = vmatmul.mubr.bf16.gmra.mrb[0].mxu0 %v271
      %v511 = vpop.f32.mrb[0].mxu0
      %v512 = vadd.f32 %v381, %v511
      %v513 = vpop.f32.mrb[0].mxu0
      %v514 = vpop.f32.mrb[0].mxu0
      %v515 = vadd.f32 %v384, %v514
      %v516 = vpop.f32.mrb[0].mxu0
      %517 = vmatprep.mubr.bf16.mxu0 0
      %518 = vmatmul.mubr.bf16.gmra.mrb[0].mxu0 %v272
      %v519 = vpop.f32.mrb[0].mxu0
      %v520 = vadd.f32 %v389, %v519
      %v521 = vpop.f32.mrb[0].mxu0
      %v522 = vpop.f32.mrb[0].mxu0
      %v523 = vadd.f32 %v392, %v522
      %v524 = vpop.f32.mrb[0].mxu0
      %525 = vmatprep.mubr.bf16.mxu0 0
      %526 = vmatmul.mubr.bf16.gmra.mrb[0].mxu0 %v273
      %v527 = vpop.f32.mrb[0].mxu0
      %v528 = vadd.f32 %v397, %v527
      %v529 = vpop.f32.mrb[0].mxu0
      %v530 = vpop.f32.mrb[0].mxu0
      %v531 = vadd.f32 %v400, %v530
      %v532 = vpop.f32.mrb[0].mxu0
      %533 = vmatprep.mubr.bf16.mxu0 0
      %534 = vmatmul.mubr.bf16.gmra.mrb[0].mxu0 %v415
      %v535 = vpop.f32.mrb[0].mxu0
      %v536 = vadd.f32 %v405, %v535
      %v537 = vpop.f32.mrb[0].mxu0
      %v538 = vpop.f32.mrb[0].mxu0
      %v539 = vpop.f32.mrb[0].mxu0
      %540 = vdwg.mxu0
      %v541 = vld [vmem:[%s197] sm:$0xc]
      %v542 = vld [vmem:[%s197 + $0x20] sm:$0x7]
      %s543 = scalar_lea.vmem %s1, 128
      %v544 = vld [vmem:[%s543] sm:$0xf]
      %v545 = vld [vmem:[%s543 + $0x4] sm:$0xf]
      %v546 = vld [vmem:[%s543 + $0x8] sm:$0xf]
      %v547 = vld [vmem:[%s543 + $0xc] sm:$0xf]
      %v548 = vld [vmem:[%s543 + $0x10] sm:$0xf]
      %v549 = vld [vmem:[%s543 + $0x14] sm:$0xf]
      %v550 = vld [vmem:[%s543 + $0x18] sm:$0xf]
      %v551 = vld [vmem:[%s543 + $0x1c] sm:$0xf]
      %v552 = vld [vmem:[%s543 + $0x20] sm:$0xf]
      %v553 = vld [vmem:[%s543 + $0x24] sm:$0xf]
      %v554 = vld [vmem:[%s543 + $0x28] sm:$0xf]
      %v555 = vld [vmem:[%s543 + $0x2c] sm:$0xf]
      %v556 = vld [vmem:[%s543 + $0x30] sm:$0xf]
      %v557 = vld [vmem:[%s543 + $0x34] sm:$0xf]
      %v558 = vld [vmem:[%s543 + $0x38] sm:$0xf]
      %v559 = vld [vmem:[%s543 + $0x3c] sm:$0xf]
      %v562 = vunpack.c.l.b16 %v541
      %v563 = vunpack.c.l.b16 %v542
      %v564 = vpack.c.b16 %v262, %v562
      %v565 = vpack.c.b16 %v563, %v563
      %vm566 = vcmask 1045504
      %v567 = vrot.slane %v564, 2
      %v568 = vrot.slane %v271, 2
      %v569 = vsel %vm566, %v567, %v568
      %v570 = vrot.slane %v272, 2
      %v571 = vsel %vm566, %v568, %v570
      %v572 = vrot.slane %v273, 2
      %v573 = vsel %vm566, %v570, %v572
      %v574 = vrot.slane %v565, 2
      %v575 = vsel %vm566, %v572, %v574
      %v597 = vunpack.c.l.b16 %v544
      %v598 = vunpack.c.l.b16 %v545
      %v599 = vunpack.c.l.b16 %v546
      %v600 = vunpack.c.l.b16 %v547
      %v601 = vunpack.c.l.b16 %v548
      %v602 = vunpack.c.l.b16 %v549
      %v603 = vunpack.c.l.b16 %v550
      %v604 = vunpack.c.l.b16 %v551
      %v605 = vunpack.c.l.b16 %v552
      %v606 = vunpack.c.l.b16 %v553
      %v607 = vunpack.c.l.b16 %v554
      %v608 = vunpack.c.l.b16 %v555
      %v609 = vunpack.c.l.b16 %v556
      %v610 = vunpack.c.l.b16 %v557
      %v611 = vunpack.c.l.b16 %v558
      %v612 = vunpack.c.l.b16 %v559
      %v613 = vpack.c.b16 %v598, %v597
      %v614 = vpack.c.b16 %v600, %v599
      %v615 = vpack.c.b16 %v602, %v601
      %v616 = vpack.c.b16 %v604, %v603
      %v617 = vpack.c.b16 %v606, %v605
      %v618 = vpack.c.b16 %v608, %v607
      %v619 = vpack.c.b16 %v610, %v609
      %v620 = vpack.c.b16 %v612, %v611
      %629 = vmatprep.subr.bf16.mxu0 0
      %630 = vmatpush1.bf16.msra.mxu0 %v613
      %631 = vmatprep.subr.bf16.mxu0 0
      %632 = vmatpush1.bf16.msra.mxu0 %v614
      %633 = vmatprep.subr.bf16.mxu0 0
      %634 = vmatpush1.bf16.msra.mxu0 %v615
      %635 = vmatprep.subr.bf16.mxu0 0
      %636 = vmatpush1.bf16.msra.mxu0 %v616
      %637 = vmatprep.subr.bf16.mxu0 0
      %638 = vmatpush1.bf16.msra.mxu0 %v617
      %639 = vmatprep.subr.bf16.mxu0 0
      %640 = vmatpush1.bf16.msra.mxu0 %v618
      %641 = vmatprep.subr.bf16.mxu0 0
      %642 = vmatpush1.bf16.msra.mxu0 %v619
      %643 = vmatprep.subr.bf16.mxu0 0
      %644 = vmatpush1.bf16.msra.mxu0 %v620
      %645 = vmatprep.subr.bf16.mxu0 0
      %646 = vmatpush1.bf16.msra.mxu0 0
      %647 = vmatprep.subr.bf16.mxu0 0
      %648 = vmatpush1.bf16.msra.mxu0 0
      %649 = vmatprep.subr.bf16.mxu0 0
      %650 = vmatpush1.bf16.msra.mxu0 0
      %651 = vmatprep.subr.bf16.mxu0 0
      %652 = vmatpush1.bf16.msra.mxu0 0
      %653 = vmatprep.subr.bf16.mxu0 0
      %654 = vmatpush1.bf16.msra.mxu0 0
      %655 = vmatprep.subr.bf16.mxu0 0
      %656 = vmatpush1.bf16.msra.mxu0 0
      %657 = vmatprep.subr.bf16.mxu0 0
      %658 = vmatpush1.bf16.msra.mxu0 0
      %659 = vmatprep.subr.bf16.mxu0 0
      %660 = vmatpush1.bf16.msra.mxu0 0
      %661 = vmatprep.mubr.bf16.mxu0 0
      %662 = vmatmul.mubr.bf16.gmra.mrb[0].mxu0 %v569
      %v663 = vpop.f32.mrb[0].mxu0
      %v664 = vadd.f32 0.0, %v663
      %v665 = vpop.f32.mrb[0].mxu0
      %v666 = vpop.f32.mrb[0].mxu0
      %v667 = vadd.f32 0.0, %v666
      %v668 = vpop.f32.mrb[0].mxu0
      %669 = vmatprep.mubr.bf16.mxu0 0
      %670 = vmatmul.mubr.bf16.gmra.mrb[0].mxu0 %v571
      %v671 = vpop.f32.mrb[0].mxu0
      %v672 = vadd.f32 0.0, %v671
      %v673 = vpop.f32.mrb[0].mxu0
      %v674 = vpop.f32.mrb[0].mxu0
      %v675 = vadd.f32 0.0, %v674
      %v676 = vpop.f32.mrb[0].mxu0
      %677 = vmatprep.mubr.bf16.mxu0 0
      %678 = vmatmul.mubr.bf16.gmra.mrb[0].mxu0 %v573
      %v679 = vpop.f32.mrb[0].mxu0
      %v680 = vadd.f32 0.0, %v679
      %v681 = vpop.f32.mrb[0].mxu0
      %v682 = vpop.f32.mrb[0].mxu0
      %v683 = vadd.f32 0.0, %v682
      %v684 = vpop.f32.mrb[0].mxu0
      %685 = vmatprep.mubr.bf16.mxu0 0
      %686 = vmatmul.mubr.bf16.gmra.mrb[0].mxu0 %v575
      %v687 = vpop.f32.mrb[0].mxu0
      %v688 = vadd.f32 0.0, %v687
      %v689 = vpop.f32.mrb[0].mxu0
      %v690 = vpop.f32.mrb[0].mxu0
      %v691 = vadd.f32 0.0, %v690
      %v692 = vpop.f32.mrb[0].mxu0
      %693 = vmatprep.mubr.bf16.mxu0 0
      %694 = vmatmul.mubr.bf16.gmra.mrb[0].mxu0 %v574
      %v695 = vpop.f32.mrb[0].mxu0
      %v696 = vadd.f32 0.0, %v695
      %v697 = vpop.f32.mrb[0].mxu0
      %v698 = vpop.f32.mrb[0].mxu0
      %v699 = vpop.f32.mrb[0].mxu0
      %700 = vdwg.mxu0
      %v701 = vadd.f32 %v504, %v664
      %v702 = vadd.f32 %v507, %v667
      %v703 = vadd.f32 %v512, %v672
      %v704 = vadd.f32 %v515, %v675
      %v705 = vadd.f32 %v520, %v680
      %v706 = vadd.f32 %v523, %v683
      %v707 = vadd.f32 %v528, %v688
      %v708 = vadd.f32 %v531, %v691
      %v709 = vadd.f32 %v536, %v696
      %v710 = vld [vmem:[%s197 + $0x8] sm:$0xf]
      %v711 = vld [vmem:[%s197 + $0xc] sm:$0xf]
      %v712 = vld [vmem:[%s197 + $0x10] sm:$0xf]
      %v713 = vld [vmem:[%s197 + $0x14] sm:$0xf]
      %v714 = vld [vmem:[%s197 + $0x18] sm:$0xf]
      %v715 = vld [vmem:[%s197 + $0x1c] sm:$0xf]
      %v716 = vld [vmem:[%s197 + $0x20] sm:$0xf]
      %v717 = vld [vmem:[%s197 + $0x24] sm:$0xf]
      %v718 = vld [vmem:[%s197 + $0x28] sm:$0x1]
      %s719 = scalar_lea.vmem %s1, 192
      %v720 = vld [vmem:[%s719] sm:$0xf]
      %v721 = vld [vmem:[%s719 + $0x4] sm:$0xf]
      %v722 = vld [vmem:[%s719 + $0x8] sm:$0xf]
      %v723 = vld [vmem:[%s719 + $0xc] sm:$0xf]
      %v724 = vld [vmem:[%s719 + $0x10] sm:$0xf]
      %v725 = vld [vmem:[%s719 + $0x14] sm:$0xf]
      %v726 = vld [vmem:[%s719 + $0x18] sm:$0xf]
      %v727 = vld [vmem:[%s719 + $0x1c] sm:$0xf]
      %v728 = vld [vmem:[%s719 + $0x20] sm:$0xf]
      %v729 = vld [vmem:[%s719 + $0x24] sm:$0xf]
      %v730 = vld [vmem:[%s719 + $0x28] sm:$0xf]
      %v731 = vld [vmem:[%s719 + $0x2c] sm:$0xf]
      %v732 = vld [vmem:[%s719 + $0x30] sm:$0xf]
      %v733 = vld [vmem:[%s719 + $0x34] sm:$0xf]
      %v734 = vld [vmem:[%s719 + $0x38] sm:$0xf]
      %v735 = vld [vmem:[%s719 + $0x3c] sm:$0xf]
      %v745 = vunpack.c.l.b16 %v710
      %v746 = vunpack.c.l.b16 %v711
      %v747 = vunpack.c.l.b16 %v712
      %v748 = vunpack.c.l.b16 %v713
      %v749 = vunpack.c.l.b16 %v714
      %v750 = vunpack.c.l.b16 %v715
      %v751 = vunpack.c.l.b16 %v716
      %v752 = vunpack.c.l.b16 %v717
      %v753 = vunpack.c.l.b16 %v718
      %v754 = vpack.c.b16 %v746, %v745
      %v755 = vpack.c.b16 %v748, %v747
      %v756 = vpack.c.b16 %v750, %v749
      %v757 = vpack.c.b16 %v752, %v751
      %v758 = vpack.c.b16 %v753, %v753
      %v780 = vunpack.c.l.b16 %v720
      %v781 = vunpack.c.l.b16 %v721
      %v782 = vunpack.c.l.b16 %v722
      %v783 = vunpack.c.l.b16 %v723
      %v784 = vunpack.c.l.b16 %v724
      %v785 = vunpack.c.l.b16 %v725
      %v786 = vunpack.c.l.b16 %v726
      %v787 = vunpack.c.l.b16 %v727
      %v788 = vunpack.c.l.b16 %v728
      %v789 = vunpack.c.l.b16 %v729
      %v790 = vunpack.c.l.b16 %v730
      %v791 = vunpack.c.l.b16 %v731
      %v792 = vunpack.c.l.b16 %v732
      %v793 = vunpack.c.l.b16 %v733
      %v794 = vunpack.c.l.b16 %v734
      %v795 = vunpack.c.l.b16 %v735
      %v796 = vpack.c.b16 %v781, %v780
      %v797 = vpack.c.b16 %v783, %v782
      %v798 = vpack.c.b16 %v785, %v784
      %v799 = vpack.c.b16 %v787, %v786
      %v800 = vpack.c.b16 %v789, %v788
      %v801 = vpack.c.b16 %v791, %v790
      %v802 = vpack.c.b16 %v793, %v792
      %v803 = vpack.c.b16 %v795, %v794
      %812 = vmatprep.subr.bf16.mxu0 0
      %813 = vmatpush1.bf16.msra.mxu0 %v796
      %814 = vmatprep.subr.bf16.mxu0 0
      %815 = vmatpush1.bf16.msra.mxu0 %v797
      %816 = vmatprep.subr.bf16.mxu0 0
      %817 = vmatpush1.bf16.msra.mxu0 %v798
      %818 = vmatprep.subr.bf16.mxu0 0
      %819 = vmatpush1.bf16.msra.mxu0 %v799
      %820 = vmatprep.subr.bf16.mxu0 0
      %821 = vmatpush1.bf16.msra.mxu0 %v800
      %822 = vmatprep.subr.bf16.mxu0 0
      %823 = vmatpush1.bf16.msra.mxu0 %v801
      %824 = vmatprep.subr.bf16.mxu0 0
      %825 = vmatpush1.bf16.msra.mxu0 %v802
      %826 = vmatprep.subr.bf16.mxu0 0
      %827 = vmatpush1.bf16.msra.mxu0 %v803
      %828 = vmatprep.subr.bf16.mxu0 0
      %829 = vmatpush1.bf16.msra.mxu0 0
      %830 = vmatprep.subr.bf16.mxu0 0
      %831 = vmatpush1.bf16.msra.mxu0 0
      %832 = vmatprep.subr.bf16.mxu0 0
      %833 = vmatpush1.bf16.msra.mxu0 0
      %834 = vmatprep.subr.bf16.mxu0 0
      %835 = vmatpush1.bf16.msra.mxu0 0
      %836 = vmatprep.subr.bf16.mxu0 0
      %837 = vmatpush1.bf16.msra.mxu0 0
      %838 = vmatprep.subr.bf16.mxu0 0
      %839 = vmatpush1.bf16.msra.mxu0 0
      %840 = vmatprep.subr.bf16.mxu0 0
      %841 = vmatpush1.bf16.msra.mxu0 0
      %842 = vmatprep.subr.bf16.mxu0 0
      %843 = vmatpush1.bf16.msra.mxu0 0
      %844 = vmatprep.mubr.bf16.mxu0 0
      %845 = vmatmul.mubr.bf16.gmra.mrb[0].mxu0 %v754
      %v846 = vpop.f32.mrb[0].mxu0
      %v847 = vadd.f32 0.0, %v846
      %v848 = vpop.f32.mrb[0].mxu0
      %v849 = vpop.f32.mrb[0].mxu0
      %v850 = vadd.f32 0.0, %v849
      %v851 = vpop.f32.mrb[0].mxu0
      %852 = vmatprep.mubr.bf16.mxu0 0
      %853 = vmatmul.mubr.bf16.gmra.mrb[0].mxu0 %v755
      %v854 = vpop.f32.mrb[0].mxu0
      %v855 = vadd.f32 0.0, %v854
      %v856 = vpop.f32.mrb[0].mxu0
      %v857 = vpop.f32.mrb[0].mxu0
      %v858 = vadd.f32 0.0, %v857
      %v859 = vpop.f32.mrb[0].mxu0
      %860 = vmatprep.mubr.bf16.mxu0 0
      %861 = vmatmul.mubr.bf16.gmra.mrb[0].mxu0 %v756
      %v862 = vpop.f32.mrb[0].mxu0
      %v863 = vadd.f32 0.0, %v862
      %v864 = vpop.f32.mrb[0].mxu0
      %v865 = vpop.f32.mrb[0].mxu0
      %v866 = vadd.f32 0.0, %v865
      %v867 = vpop.f32.mrb[0].mxu0
      %868 = vmatprep.mubr.bf16.mxu0 0
      %869 = vmatmul.mubr.bf16.gmra.mrb[0].mxu0 %v757
      %v870 = vpop.f32.mrb[0].mxu0
      %v871 = vadd.f32 0.0, %v870
      %v872 = vpop.f32.mrb[0].mxu0
      %v873 = vpop.f32.mrb[0].mxu0
      %v874 = vadd.f32 0.0, %v873
      %v875 = vpop.f32.mrb[0].mxu0
      %876 = vmatprep.mubr.bf16.mxu0 0
      %877 = vmatmul.mubr.bf16.gmra.mrb[0].mxu0 %v758
      %v878 = vpop.f32.mrb[0].mxu0
      %v879 = vadd.f32 0.0, %v878
      %v880 = vpop.f32.mrb[0].mxu0
      %v881 = vpop.f32.mrb[0].mxu0
      %v882 = vpop.f32.mrb[0].mxu0
      %883 = vdwg.mxu0
      %v884 = vadd.f32 %v701, %v847
      %v885 = vadd.f32 %v702, %v850
      %v886 = vadd.f32 %v703, %v855
      %v887 = vadd.f32 %v704, %v858
      %v888 = vadd.f32 %v705, %v863
      %v889 = vadd.f32 %v706, %v866
      %v890 = vadd.f32 %v707, %v871
      %v891 = vadd.f32 %v708, %v874
      %v892 = vadd.f32 %v709, %v879
      %v893 = vld [vmem:[%s197 + $0x8] sm:$0xe]
      %v894 = vld [vmem:[%s197 + $0x28] sm:$0x3]
      %s895 = scalar_lea.vmem %s1, 256
      %v896 = vld [vmem:[%s895] sm:$0xf]
      %v897 = vld [vmem:[%s895 + $0x4] sm:$0xf]
      %v898 = vld [vmem:[%s895 + $0x8] sm:$0xf]
      %v899 = vld [vmem:[%s895 + $0xc] sm:$0xf]
      %v900 = vld [vmem:[%s895 + $0x10] sm:$0xf]
      %v901 = vld [vmem:[%s895 + $0x14] sm:$0xf]
      %v902 = vld [vmem:[%s895 + $0x18] sm:$0xf]
      %v903 = vld [vmem:[%s895 + $0x1c] sm:$0xf]
      %v904 = vld [vmem:[%s895 + $0x20] sm:$0xf]
      %v905 = vld [vmem:[%s895 + $0x24] sm:$0xf]
      %v906 = vld [vmem:[%s895 + $0x28] sm:$0xf]
      %v907 = vld [vmem:[%s895 + $0x2c] sm:$0xf]
      %v908 = vld [vmem:[%s895 + $0x30] sm:$0xf]
      %v909 = vld [vmem:[%s895 + $0x34] sm:$0xf]
      %v910 = vld [vmem:[%s895 + $0x38] sm:$0xf]
      %v911 = vld [vmem:[%s895 + $0x3c] sm:$0xf]
      %v914 = vunpack.c.l.b16 %v893
      %v915 = vunpack.c.l.b16 %v894
      %v916 = vpack.c.b16 %v746, %v914
      %v917 = vpack.c.b16 %v915, %v915
      %v918 = vrot.slane %v916, 1
      %v919 = vrot.slane %v755, 1
      %v920 = vsel %vm275, %v918, %v919
      %v921 = vrot.slane %v756, 1
      %v922 = vsel %vm275, %v919, %v921
      %v923 = vrot.slane %v757, 1
      %v924 = vsel %vm275, %v921, %v923
      %v925 = vrot.slane %v917, 1
      %v926 = vsel %vm275, %v923, %v925
      %v948 = vunpack.c.l.b16 %v896
      %v949 = vunpack.c.l.b16 %v897
      %v950 = vunpack.c.l.b16 %v898
      %v951 = vunpack.c.l.b16 %v899
      %v952 = vunpack.c.l.b16 %v900
      %v953 = vunpack.c.l.b16 %v901
      %v954 = vunpack.c.l.b16 %v902
      %v955 = vunpack.c.l.b16 %v903
      %v956 = vunpack.c.l.b16 %v904
      %v957 = vunpack.c.l.b16 %v905
      %v958 = vunpack.c.l.b16 %v906
      %v959 = vunpack.c.l.b16 %v907
      %v960 = vunpack.c.l.b16 %v908
      %v961 = vunpack.c.l.b16 %v909
      %v962 = vunpack.c.l.b16 %v910
      %v963 = vunpack.c.l.b16 %v911
      %v964 = vpack.c.b16 %v949, %v948
      %v965 = vpack.c.b16 %v951, %v950
      %v966 = vpack.c.b16 %v953, %v952
      %v967 = vpack.c.b16 %v955, %v954
      %v968 = vpack.c.b16 %v957, %v956
      %v969 = vpack.c.b16 %v959, %v958
      %v970 = vpack.c.b16 %v961, %v960
      %v971 = vpack.c.b16 %v963, %v962
      %980 = vmatprep.subr.bf16.mxu0 0
      %981 = vmatpush1.bf16.msra.mxu0 %v964
      %982 = vmatprep.subr.bf16.mxu0 0
      %983 = vmatpush1.bf16.msra.mxu0 %v965
      %984 = vmatprep.subr.bf16.mxu0 0
      %985 = vmatpush1.bf16.msra.mxu0 %v966
      %986 = vmatprep.subr.bf16.mxu0 0
      %987 = vmatpush1.bf16.msra.mxu0 %v967
      %988 = vmatprep.subr.bf16.mxu0 0
      %989 = vmatpush1.bf16.msra.mxu0 %v968
      %990 = vmatprep.subr.bf16.mxu0 0
      %991 = vmatpush1.bf16.msra.mxu0 %v969
      %992 = vmatprep.subr.bf16.mxu0 0
      %993 = vmatpush1.bf16.msra.mxu0 %v970
      %994 = vmatprep.subr.bf16.mxu0 0
      %995 = vmatpush1.bf16.msra.mxu0 %v971
      %996 = vmatprep.subr.bf16.mxu0 0
      %997 = vmatpush1.bf16.msra.mxu0 0
      %998 = vmatprep.subr.bf16.mxu0 0
      %999 = vmatpush1.bf16.msra.mxu0 0
      %1000 = vmatprep.subr.bf16.mxu0 0
      %1001 = vmatpush1.bf16.msra.mxu0 0
      %1002 = vmatprep.subr.bf16.mxu0 0
      %1003 = vmatpush1.bf16.msra.mxu0 0
      %1004 = vmatprep.subr.bf16.mxu0 0
      %1005 = vmatpush1.bf16.msra.mxu0 0
      %1006 = vmatprep.subr.bf16.mxu0 0
      %1007 = vmatpush1.bf16.msra.mxu0 0
      %1008 = vmatprep.subr.bf16.mxu0 0
      %1009 = vmatpush1.bf16.msra.mxu0 0
      %1010 = vmatprep.subr.bf16.mxu0 0
      %1011 = vmatpush1.bf16.msra.mxu0 0
      %1012 = vmatprep.mubr.bf16.mxu0 0
      %1013 = vmatmul.mubr.bf16.gmra.mrb[0].mxu0 %v920
      %v1014 = vpop.f32.mrb[0].mxu0
      %v1015 = vadd.f32 0.0, %v1014
      %v1016 = vpop.f32.mrb[0].mxu0
      %v1017 = vpop.f32.mrb[0].mxu0
      %v1018 = vadd.f32 0.0, %v1017
      %v1019 = vpop.f32.mrb[0].mxu0
      %1020 = vmatprep.mubr.bf16.mxu0 0
      %1021 = vmatmul.mubr.bf16.gmra.mrb[0].mxu0 %v922
      %v1022 = vpop.f32.mrb[0].mxu0
      %v1023 = vadd.f32 0.0, %v1022
      %v1024 = vpop.f32.mrb[0].mxu0
      %v1025 = vpop.f32.mrb[0].mxu0
      %v1026 = vadd.f32 0.0, %v1025
      %v1027 = vpop.f32.mrb[0].mxu0
      %1028 = vmatprep.mubr.bf16.mxu0 0
      %1029 = vmatmul.mubr.bf16.gmra.mrb[0].mxu0 %v924
      %v1030 = vpop.f32.mrb[0].mxu0
      %v1031 = vadd.f32 0.0, %v1030
      %v1032 = vpop.f32.mrb[0].mxu0
      %v1033 = vpop.f32.mrb[0].mxu0
      %v1034 = vadd.f32 0.0, %v1033
      %v1035 = vpop.f32.mrb[0].mxu0
      %1036 = vmatprep.mubr.bf16.mxu0 0
      %1037 = vmatmul.mubr.bf16.gmra.mrb[0].mxu0 %v926
      %v1038 = vpop.f32.mrb[0].mxu0
      %v1039 = vadd.f32 0.0, %v1038
      %v1040 = vpop.f32.mrb[0].mxu0
      %v1041 = vpop.f32.mrb[0].mxu0
      %v1042 = vadd.f32 0.0, %v1041
      %v1043 = vpop.f32.mrb[0].mxu0
      %1044 = vmatprep.mubr.bf16.mxu0 0
      %1045 = vmatmul.mubr.bf16.gmra.mrb[0].mxu0 %v925
      %v1046 = vpop.f32.mrb[0].mxu0
      %v1047 = vadd.f32 0.0, %v1046
      %v1048 = vpop.f32.mrb[0].mxu0
      %v1049 = vpop.f32.mrb[0].mxu0
      %v1050 = vpop.f32.mrb[0].mxu0
      %1051 = vdwg.mxu0
      %v1052 = vadd.f32 %v884, %v1015
      %v1053 = vadd.f32 %v885, %v1018
      %v1054 = vadd.f32 %v886, %v1023
      %v1055 = vadd.f32 %v887, %v1026
      %v1056 = vadd.f32 %v888, %v1031
      %v1057 = vadd.f32 %v889, %v1034
      %v1058 = vadd.f32 %v890, %v1039
      %v1059 = vadd.f32 %v891, %v1042
      %v1060 = vadd.f32 %v892, %v1047
      %v1061 = vld [vmem:[%s197 + $0x8] sm:$0xc]
      %v1062 = vld [vmem:[%s197 + $0x28] sm:$0x7]
      %s1063 = scalar_lea.vmem %s1, 320
      %v1064 = vld [vmem:[%s1063] sm:$0xf]
      %v1065 = vld [vmem:[%s1063 + $0x4] sm:$0xf]
      %v1066 = vld [vmem:[%s1063 + $0x8] sm:$0xf]
      %v1067 = vld [vmem:[%s1063 + $0xc] sm:$0xf]
      %v1068 = vld [vmem:[%s1063 + $0x10] sm:$0xf]
      %v1069 = vld [vmem:[%s1063 + $0x14] sm:$0xf]
      %v1070 = vld [vmem:[%s1063 + $0x18] sm:$0xf]
      %v1071 = vld [vmem:[%s1063 + $0x1c] sm:$0xf]
      %v1072 = vld [vmem:[%s1063 + $0x20] sm:$0xf]
      %v1073 = vld [vmem:[%s1063 + $0x24] sm:$0xf]
      %v1074 = vld [vmem:[%s1063 + $0x28] sm:$0xf]
      %v1075 = vld [vmem:[%s1063 + $0x2c] sm:$0xf]
      %v1076 = vld [vmem:[%s1063 + $0x30] sm:$0xf]
      %v1077 = vld [vmem:[%s1063 + $0x34] sm:$0xf]
      %v1078 = vld [vmem:[%s1063 + $0x38] sm:$0xf]
      %v1079 = vld [vmem:[%s1063 + $0x3c] sm:$0xf]
      %v1082 = vunpack.c.l.b16 %v1061
      %v1083 = vunpack.c.l.b16 %v1062
      %v1084 = vpack.c.b16 %v746, %v1082
      %v1085 = vpack.c.b16 %v1083, %v1083
      %v1086 = vrot.slane %v1084, 2
      %v1087 = vrot.slane %v755, 2
      %v1088 = vsel %vm566, %v1086, %v1087
      %v1089 = vrot.slane %v756, 2
      %v1090 = vsel %vm566, %v1087, %v1089
      %v1091 = vrot.slane %v757, 2
      %v1092 = vsel %vm566, %v1089, %v1091
      %v1093 = vrot.slane %v1085, 2
      %v1094 = vsel %vm566, %v1091, %v1093
      %v1116 = vunpack.c.l.b16 %v1064
      %v1117 = vunpack.c.l.b16 %v1065
      %v1118 = vunpack.c.l.b16 %v1066
      %v1119 = vunpack.c.l.b16 %v1067
      %v1120 = vunpack.c.l.b16 %v1068
      %v1121 = vunpack.c.l.b16 %v1069
      %v1122 = vunpack.c.l.b16 %v1070
      %v1123 = vunpack.c.l.b16 %v1071
      %v1124 = vunpack.c.l.b16 %v1072
      %v1125 = vunpack.c.l.b16 %v1073
      %v1126 = vunpack.c.l.b16 %v1074
      %v1127 = vunpack.c.l.b16 %v1075
      %v1128 = vunpack.c.l.b16 %v1076
      %v1129 = vunpack.c.l.b16 %v1077
      %v1130 = vunpack.c.l.b16 %v1078
      %v1131 = vunpack.c.l.b16 %v1079
      %v1132 = vpack.c.b16 %v1117, %v1116
      %v1133 = vpack.c.b16 %v1119, %v1118
      %v1134 = vpack.c.b16 %v1121, %v1120
      %v1135 = vpack.c.b16 %v1123, %v1122
      %v1136 = vpack.c.b16 %v1125, %v1124
      %v1137 = vpack.c.b16 %v1127, %v1126
      %v1138 = vpack.c.b16 %v1129, %v1128
      %v1139 = vpack.c.b16 %v1131, %v1130
      %1148 = vmatprep.subr.bf16.mxu0 0
      %1149 = vmatpush1.bf16.msra.mxu0 %v1132
      %1150 = vmatprep.subr.bf16.mxu0 0
      %1151 = vmatpush1.bf16.msra.mxu0 %v1133
      %1152 = vmatprep.subr.bf16.mxu0 0
      %1153 = vmatpush1.bf16.msra.mxu0 %v1134
      %1154 = vmatprep.subr.bf16.mxu0 0
      %1155 = vmatpush1.bf16.msra.mxu0 %v1135
      %1156 = vmatprep.subr.bf16.mxu0 0
      %1157 = vmatpush1.bf16.msra.mxu0 %v1136
      %1158 = vmatprep.subr.bf16.mxu0 0
      %1159 = vmatpush1.bf16.msra.mxu0 %v1137
      %1160 = vmatprep.subr.bf16.mxu0 0
      %1161 = vmatpush1.bf16.msra.mxu0 %v1138
      %1162 = vmatprep.subr.bf16.mxu0 0
      %1163 = vmatpush1.bf16.msra.mxu0 %v1139
      %1164 = vmatprep.subr.bf16.mxu0 0
      %1165 = vmatpush1.bf16.msra.mxu0 0
      %1166 = vmatprep.subr.bf16.mxu0 0
      %1167 = vmatpush1.bf16.msra.mxu0 0
      %1168 = vmatprep.subr.bf16.mxu0 0
      %1169 = vmatpush1.bf16.msra.mxu0 0
      %1170 = vmatprep.subr.bf16.mxu0 0
      %1171 = vmatpush1.bf16.msra.mxu0 0
      %1172 = vmatprep.subr.bf16.mxu0 0
      %1173 = vmatpush1.bf16.msra.mxu0 0
      %1174 = vmatprep.subr.bf16.mxu0 0
      %1175 = vmatpush1.bf16.msra.mxu0 0
      %1176 = vmatprep.subr.bf16.mxu0 0
      %1177 = vmatpush1.bf16.msra.mxu0 0
      %1178 = vmatprep.subr.bf16.mxu0 0
      %1179 = vmatpush1.bf16.msra.mxu0 0
      %1180 = vmatprep.mubr.bf16.mxu0 0
      %1181 = vmatmul.mubr.bf16.gmra.mrb[0].mxu0 %v1088
      %v1182 = vpop.f32.mrb[0].mxu0
      %v1183 = vadd.f32 0.0, %v1182
      %v1184 = vpop.f32.mrb[0].mxu0
      %v1185 = vpop.f32.mrb[0].mxu0
      %v1186 = vadd.f32 0.0, %v1185
      %v1187 = vpop.f32.mrb[0].mxu0
      %1188 = vmatprep.mubr.bf16.mxu0 0
      %1189 = vmatmul.mubr.bf16.gmra.mrb[0].mxu0 %v1090
      %v1190 = vpop.f32.mrb[0].mxu0
      %v1191 = vadd.f32 0.0, %v1190
      %v1192 = vpop.f32.mrb[0].mxu0
      %v1193 = vpop.f32.mrb[0].mxu0
      %v1194 = vadd.f32 0.0, %v1193
      %v1195 = vpop.f32.mrb[0].mxu0
      %1196 = vmatprep.mubr.bf16.mxu0 0
      %1197 = vmatmul.mubr.bf16.gmra.mrb[0].mxu0 %v1092
      %v1198 = vpop.f32.mrb[0].mxu0
      %v1199 = vadd.f32 0.0, %v1198
      %v1200 = vpop.f32.mrb[0].mxu0
      %v1201 = vpop.f32.mrb[0].mxu0
      %v1202 = vadd.f32 0.0, %v1201
      %v1203 = vpop.f32.mrb[0].mxu0
      %1204 = vmatprep.mubr.bf16.mxu0 0
      %1205 = vmatmul.mubr.bf16.gmra.mrb[0].mxu0 %v1094
      %v1206 = vpop.f32.mrb[0].mxu0
      %v1207 = vadd.f32 0.0, %v1206
      %v1208 = vpop.f32.mrb[0].mxu0
      %v1209 = vpop.f32.mrb[0].mxu0
      %v1210 = vadd.f32 0.0, %v1209
      %v1211 = vpop.f32.mrb[0].mxu0
      %1212 = vmatprep.mubr.bf16.mxu0 0
      %1213 = vmatmul.mubr.bf16.gmra.mrb[0].mxu0 %v1093
      %v1214 = vpop.f32.mrb[0].mxu0
      %v1215 = vadd.f32 0.0, %v1214
      %v1216 = vpop.f32.mrb[0].mxu0
      %v1217 = vpop.f32.mrb[0].mxu0
      %v1218 = vpop.f32.mrb[0].mxu0
      %1219 = vdwg.mxu0
      %v1220 = vadd.f32 %v1052, %v1183
      %v1221 = vadd.f32 %v1053, %v1186
      %v1222 = vadd.f32 %v1054, %v1191
      %v1223 = vadd.f32 %v1055, %v1194
      %v1224 = vadd.f32 %v1056, %v1199
      %v1225 = vadd.f32 %v1057, %v1202
      %v1226 = vadd.f32 %v1058, %v1207
      %v1227 = vadd.f32 %v1059, %v1210
      %v1228 = vadd.f32 %v1060, %v1215
      %v1229 = vld [vmem:[%s197 + $0x10] sm:$0xf]
      %v1230 = vld [vmem:[%s197 + $0x14] sm:$0xf]
      %v1231 = vld [vmem:[%s197 + $0x18] sm:$0xf]
      %v1232 = vld [vmem:[%s197 + $0x1c] sm:$0xf]
      %v1233 = vld [vmem:[%s197 + $0x20] sm:$0xf]
      %v1234 = vld [vmem:[%s197 + $0x24] sm:$0xf]
      %v1235 = vld [vmem:[%s197 + $0x28] sm:$0xf]
      %v1236 = vld [vmem:[%s197 + $0x2c] sm:$0xf]
      %v1237 = vld [vmem:[%s197 + $0x30] sm:$0x1]
      %s1238 = scalar_lea.vmem %s1, 384
      %v1239 = vld [vmem:[%s1238] sm:$0xf]
      %v1240 = vld [vmem:[%s1238 + $0x4] sm:$0xf]
      %v1241 = vld [vmem:[%s1238 + $0x8] sm:$0xf]
      %v1242 = vld [vmem:[%s1238 + $0xc] sm:$0xf]
      %v1243 = vld [vmem:[%s1238 + $0x10] sm:$0xf]
      %v1244 = vld [vmem:[%s1238 + $0x14] sm:$0xf]
      %v1245 = vld [vmem:[%s1238 + $0x18] sm:$0xf]
      %v1246 = vld [vmem:[%s1238 + $0x1c] sm:$0xf]
      %v1247 = vld [vmem:[%s1238 + $0x20] sm:$0xf]
      %v1248 = vld [vmem:[%s1238 + $0x24] sm:$0xf]
      %v1249 = vld [vmem:[%s1238 + $0x28] sm:$0xf]
      %v1250 = vld [vmem:[%s1238 + $0x2c] sm:$0xf]
      %v1251 = vld [vmem:[%s1238 + $0x30] sm:$0xf]
      %v1252 = vld [vmem:[%s1238 + $0x34] sm:$0xf]
      %v1253 = vld [vmem:[%s1238 + $0x38] sm:$0xf]
      %v1254 = vld [vmem:[%s1238 + $0x3c] sm:$0xf]
      %v1264 = vunpack.c.l.b16 %v1229
      %v1265 = vunpack.c.l.b16 %v1230
      %v1266 = vunpack.c.l.b16 %v1231
      %v1267 = vunpack.c.l.b16 %v1232
      %v1268 = vunpack.c.l.b16 %v1233
      %v1269 = vunpack.c.l.b16 %v1234
      %v1270 = vunpack.c.l.b16 %v1235
      %v1271 = vunpack.c.l.b16 %v1236
      %v1272 = vunpack.c.l.b16 %v1237
      %v1273 = vpack.c.b16 %v1265, %v1264
      %v1274 = vpack.c.b16 %v1267, %v1266
      %v1275 = vpack.c.b16 %v1269, %v1268
      %v1276 = vpack.c.b16 %v1271, %v1270
      %v1277 = vpack.c.b16 %v1272, %v1272
      %v1299 = vunpack.c.l.b16 %v1239
      %v1300 = vunpack.c.l.b16 %v1240
      %v1301 = vunpack.c.l.b16 %v1241
      %v1302 = vunpack.c.l.b16 %v1242
      %v1303 = vunpack.c.l.b16 %v1243
      %v1304 = vunpack.c.l.b16 %v1244
      %v1305 = vunpack.c.l.b16 %v1245
      %v1306 = vunpack.c.l.b16 %v1246
      %v1307 = vunpack.c.l.b16 %v1247
      %v1308 = vunpack.c.l.b16 %v1248
      %v1309 = vunpack.c.l.b16 %v1249
      %v1310 = vunpack.c.l.b16 %v1250
      %v1311 = vunpack.c.l.b16 %v1251
      %v1312 = vunpack.c.l.b16 %v1252
      %v1313 = vunpack.c.l.b16 %v1253
      %v1314 = vunpack.c.l.b16 %v1254
      %v1315 = vpack.c.b16 %v1300, %v1299
      %v1316 = vpack.c.b16 %v1302, %v1301
      %v1317 = vpack.c.b16 %v1304, %v1303
      %v1318 = vpack.c.b16 %v1306, %v1305
      %v1319 = vpack.c.b16 %v1308, %v1307
      %v1320 = vpack.c.b16 %v1310, %v1309
      %v1321 = vpack.c.b16 %v1312, %v1311
      %v1322 = vpack.c.b16 %v1314, %v1313
      %1331 = vmatprep.subr.bf16.mxu0 0
      %1332 = vmatpush1.bf16.msra.mxu0 %v1315
      %1333 = vmatprep.subr.bf16.mxu0 0
      %1334 = vmatpush1.bf16.msra.mxu0 %v1316
      %1335 = vmatprep.subr.bf16.mxu0 0
      %1336 = vmatpush1.bf16.msra.mxu0 %v1317
      %1337 = vmatprep.subr.bf16.mxu0 0
      %1338 = vmatpush1.bf16.msra.mxu0 %v1318
      %1339 = vmatprep.subr.bf16.mxu0 0
      %1340 = vmatpush1.bf16.msra.mxu0 %v1319
      %1341 = vmatprep.subr.bf16.mxu0 0
      %1342 = vmatpush1.bf16.msra.mxu0 %v1320
      %1343 = vmatprep.subr.bf16.mxu0 0
      %1344 = vmatpush1.bf16.msra.mxu0 %v1321
      %1345 = vmatprep.subr.bf16.mxu0 0
      %1346 = vmatpush1.bf16.msra.mxu0 %v1322
      %1347 = vmatprep.subr.bf16.mxu0 0
      %1348 = vmatpush1.bf16.msra.mxu0 0
      %1349 = vmatprep.subr.bf16.mxu0 0
      %1350 = vmatpush1.bf16.msra.mxu0 0
      %1351 = vmatprep.subr.bf16.mxu0 0
      %1352 = vmatpush1.bf16.msra.mxu0 0
      %1353 = vmatprep.subr.bf16.mxu0 0
      %1354 = vmatpush1.bf16.msra.mxu0 0
      %1355 = vmatprep.subr.bf16.mxu0 0
      %1356 = vmatpush1.bf16.msra.mxu0 0
      %1357 = vmatprep.subr.bf16.mxu0 0
      %1358 = vmatpush1.bf16.msra.mxu0 0
      %1359 = vmatprep.subr.bf16.mxu0 0
      %1360 = vmatpush1.bf16.msra.mxu0 0
      %1361 = vmatprep.subr.bf16.mxu0 0
      %1362 = vmatpush1.bf16.msra.mxu0 0
      %1363 = vmatprep.mubr.bf16.mxu0 0
      %1364 = vmatmul.mubr.bf16.gmra.mrb[0].mxu0 %v1273
      %v1365 = vpop.f32.mrb[0].mxu0
      %v1366 = vadd.f32 0.0, %v1365
      %v1367 = vpop.f32.mrb[0].mxu0
      %v1368 = vpop.f32.mrb[0].mxu0
      %v1369 = vadd.f32 0.0, %v1368
      %v1370 = vpop.f32.mrb[0].mxu0
      %1371 = vmatprep.mubr.bf16.mxu0 0
      %1372 = vmatmul.mubr.bf16.gmra.mrb[0].mxu0 %v1274
      %v1373 = vpop.f32.mrb[0].mxu0
      %v1374 = vadd.f32 0.0, %v1373
      %v1375 = vpop.f32.mrb[0].mxu0
      %v1376 = vpop.f32.mrb[0].mxu0
      %v1377 = vadd.f32 0.0, %v1376
      %v1378 = vpop.f32.mrb[0].mxu0
      %1379 = vmatprep.mubr.bf16.mxu0 0
      %1380 = vmatmul.mubr.bf16.gmra.mrb[0].mxu0 %v1275
      %v1381 = vpop.f32.mrb[0].mxu0
      %v1382 = vadd.f32 0.0, %v1381
      %v1383 = vpop.f32.mrb[0].mxu0
      %v1384 = vpop.f32.mrb[0].mxu0
      %v1385 = vadd.f32 0.0, %v1384
      %v1386 = vpop.f32.mrb[0].mxu0
      %1387 = vmatprep.mubr.bf16.mxu0 0
      %1388 = vmatmul.mubr.bf16.gmra.mrb[0].mxu0 %v1276
      %v1389 = vpop.f32.mrb[0].mxu0
      %v1390 = vadd.f32 0.0, %v1389
      %v1391 = vpop.f32.mrb[0].mxu0
      %v1392 = vpop.f32.mrb[0].mxu0
      %v1393 = vadd.f32 0.0, %v1392
      %v1394 = vpop.f32.mrb[0].mxu0
      %1395 = vmatprep.mubr.bf16.mxu0 0
      %1396 = vmatmul.mubr.bf16.gmra.mrb[0].mxu0 %v1277
      %v1397 = vpop.f32.mrb[0].mxu0
      %v1398 = vadd.f32 0.0, %v1397
      %v1399 = vpop.f32.mrb[0].mxu0
      %v1400 = vpop.f32.mrb[0].mxu0
      %v1401 = vpop.f32.mrb[0].mxu0
      %1402 = vdwg.mxu0
      %v1403 = vadd.f32 %v1220, %v1366
      %v1404 = vadd.f32 %v1221, %v1369
      %v1405 = vadd.f32 %v1222, %v1374
      %v1406 = vadd.f32 %v1223, %v1377
      %v1407 = vadd.f32 %v1224, %v1382
      %v1408 = vadd.f32 %v1225, %v1385
      %v1409 = vadd.f32 %v1226, %v1390
      %v1410 = vadd.f32 %v1227, %v1393
      %v1411 = vadd.f32 %v1228, %v1398
      %v1412 = vld [vmem:[%s197 + $0x10] sm:$0xe]
      %v1413 = vld [vmem:[%s197 + $0x30] sm:$0x3]
      %s1414 = scalar_lea.vmem %s1, 448
      %v1415 = vld [vmem:[%s1414] sm:$0xf]
      %v1416 = vld [vmem:[%s1414 + $0x4] sm:$0xf]
      %v1417 = vld [vmem:[%s1414 + $0x8] sm:$0xf]
      %v1418 = vld [vmem:[%s1414 + $0xc] sm:$0xf]
      %v1419 = vld [vmem:[%s1414 + $0x10] sm:$0xf]
      %v1420 = vld [vmem:[%s1414 + $0x14] sm:$0xf]
      %v1421 = vld [vmem:[%s1414 + $0x18] sm:$0xf]
      %v1422 = vld [vmem:[%s1414 + $0x1c] sm:$0xf]
      %v1423 = vld [vmem:[%s1414 + $0x20] sm:$0xf]
      %v1424 = vld [vmem:[%s1414 + $0x24] sm:$0xf]
      %v1425 = vld [vmem:[%s1414 + $0x28] sm:$0xf]
      %v1426 = vld [vmem:[%s1414 + $0x2c] sm:$0xf]
      %v1427 = vld [vmem:[%s1414 + $0x30] sm:$0xf]
      %v1428 = vld [vmem:[%s1414 + $0x34] sm:$0xf]
      %v1429 = vld [vmem:[%s1414 + $0x38] sm:$0xf]
      %v1430 = vld [vmem:[%s1414 + $0x3c] sm:$0xf]
      %v1433 = vunpack.c.l.b16 %v1412
      %v1434 = vunpack.c.l.b16 %v1413
      %v1435 = vpack.c.b16 %v1265, %v1433
      %v1436 = vpack.c.b16 %v1434, %v1434
      %v1437 = vrot.slane %v1435, 1
      %v1438 = vrot.slane %v1274, 1
      %v1439 = vsel %vm275, %v1437, %v1438
      %v1440 = vrot.slane %v1275, 1
      %v1441 = vsel %vm275, %v1438, %v1440
      %v1442 = vrot.slane %v1276, 1
      %v1443 = vsel %vm275, %v1440, %v1442
      %v1444 = vrot.slane %v1436, 1
      %v1445 = vsel %vm275, %v1442, %v1444
      %v1467 = vunpack.c.l.b16 %v1415
      %v1468 = vunpack.c.l.b16 %v1416
      %v1469 = vunpack.c.l.b16 %v1417
      %v1470 = vunpack.c.l.b16 %v1418
      %v1471 = vunpack.c.l.b16 %v1419
      %v1472 = vunpack.c.l.b16 %v1420
      %v1473 = vunpack.c.l.b16 %v1421
      %v1474 = vunpack.c.l.b16 %v1422
      %v1475 = vunpack.c.l.b16 %v1423
      %v1476 = vunpack.c.l.b16 %v1424
      %v1477 = vunpack.c.l.b16 %v1425
      %v1478 = vunpack.c.l.b16 %v1426
      %v1479 = vunpack.c.l.b16 %v1427
      %v1480 = vunpack.c.l.b16 %v1428
      %v1481 = vunpack.c.l.b16 %v1429
      %v1482 = vunpack.c.l.b16 %v1430
      %v1483 = vpack.c.b16 %v1468, %v1467
      %v1484 = vpack.c.b16 %v1470, %v1469
      %v1485 = vpack.c.b16 %v1472, %v1471
      %v1486 = vpack.c.b16 %v1474, %v1473
      %v1487 = vpack.c.b16 %v1476, %v1475
      %v1488 = vpack.c.b16 %v1478, %v1477
      %v1489 = vpack.c.b16 %v1480, %v1479
      %v1490 = vpack.c.b16 %v1482, %v1481
      %1499 = vmatprep.subr.bf16.mxu0 0
      %1500 = vmatpush1.bf16.msra.mxu0 %v1483
      %1501 = vmatprep.subr.bf16.mxu0 0
      %1502 = vmatpush1.bf16.msra.mxu0 %v1484
      %1503 = vmatprep.subr.bf16.mxu0 0
      %1504 = vmatpush1.bf16.msra.mxu0 %v1485
      %1505 = vmatprep.subr.bf16.mxu0 0
      %1506 = vmatpush1.bf16.msra.mxu0 %v1486
      %1507 = vmatprep.subr.bf16.mxu0 0
      %1508 = vmatpush1.bf16.msra.mxu0 %v1487
      %1509 = vmatprep.subr.bf16.mxu0 0
      %1510 = vmatpush1.bf16.msra.mxu0 %v1488
      %1511 = vmatprep.subr.bf16.mxu0 0
      %1512 = vmatpush1.bf16.msra.mxu0 %v1489
      %1513 = vmatprep.subr.bf16.mxu0 0
      %1514 = vmatpush1.bf16.msra.mxu0 %v1490
      %1515 = vmatprep.subr.bf16.mxu0 0
      %1516 = vmatpush1.bf16.msra.mxu0 0
      %1517 = vmatprep.subr.bf16.mxu0 0
      %1518 = vmatpush1.bf16.msra.mxu0 0
      %1519 = vmatprep.subr.bf16.mxu0 0
      %1520 = vmatpush1.bf16.msra.mxu0 0
      %1521 = vmatprep.subr.bf16.mxu0 0
      %1522 = vmatpush1.bf16.msra.mxu0 0
      %1523 = vmatprep.subr.bf16.mxu0 0
      %1524 = vmatpush1.bf16.msra.mxu0 0
      %1525 = vmatprep.subr.bf16.mxu0 0
      %1526 = vmatpush1.bf16.msra.mxu0 0
      %1527 = vmatprep.subr.bf16.mxu0 0
      %1528 = vmatpush1.bf16.msra.mxu0 0
      %1529 = vmatprep.subr.bf16.mxu0 0
      %1530 = vmatpush1.bf16.msra.mxu0 0
      %1531 = vmatprep.mubr.bf16.mxu0 0
      %1532 = vmatmul.mubr.bf16.gmra.mrb[0].mxu0 %v1439
      %v1533 = vpop.f32.mrb[0].mxu0
      %v1534 = vadd.f32 0.0, %v1533
      %v1535 = vpop.f32.mrb[0].mxu0
      %v1536 = vpop.f32.mrb[0].mxu0
      %v1537 = vadd.f32 0.0, %v1536
      %v1538 = vpop.f32.mrb[0].mxu0
      %1539 = vmatprep.mubr.bf16.mxu0 0
      %1540 = vmatmul.mubr.bf16.gmra.mrb[0].mxu0 %v1441
      %v1541 = vpop.f32.mrb[0].mxu0
      %v1542 = vadd.f32 0.0, %v1541
      %v1543 = vpop.f32.mrb[0].mxu0
      %v1544 = vpop.f32.mrb[0].mxu0
      %v1545 = vadd.f32 0.0, %v1544
      %v1546 = vpop.f32.mrb[0].mxu0
      %1547 = vmatprep.mubr.bf16.mxu0 0
      %1548 = vmatmul.mubr.bf16.gmra.mrb[0].mxu0 %v1443
      %v1549 = vpop.f32.mrb[0].mxu0
      %v1550 = vadd.f32 0.0, %v1549
      %v1551 = vpop.f32.mrb[0].mxu0
      %v1552 = vpop.f32.mrb[0].mxu0
      %v1553 = vadd.f32 0.0, %v1552
      %v1554 = vpop.f32.mrb[0].mxu0
      %1555 = vmatprep.mubr.bf16.mxu0 0
      %1556 = vmatmul.mubr.bf16.gmra.mrb[0].mxu0 %v1445
      %v1557 = vpop.f32.mrb[0].mxu0
      %v1558 = vadd.f32 0.0, %v1557
      %v1559 = vpop.f32.mrb[0].mxu0
      %v1560 = vpop.f32.mrb[0].mxu0
      %v1561 = vadd.f32 0.0, %v1560
      %v1562 = vpop.f32.mrb[0].mxu0
      %1563 = vmatprep.mubr.bf16.mxu0 0
      %1564 = vmatmul.mubr.bf16.gmra.mrb[0].mxu0 %v1444
      %v1565 = vpop.f32.mrb[0].mxu0
      %v1566 = vadd.f32 0.0, %v1565
      %v1567 = vpop.f32.mrb[0].mxu0
      %v1568 = vpop.f32.mrb[0].mxu0
      %v1569 = vpop.f32.mrb[0].mxu0
      %1570 = vdwg.mxu0
      %v1571 = vadd.f32 %v1403, %v1534
      %v1572 = vadd.f32 %v1404, %v1537
      %v1573 = vadd.f32 %v1405, %v1542
      %v1574 = vadd.f32 %v1406, %v1545
      %v1575 = vadd.f32 %v1407, %v1550
      %v1576 = vadd.f32 %v1408, %v1553
      %v1577 = vadd.f32 %v1409, %v1558
      %v1578 = vadd.f32 %v1410, %v1561
      %v1579 = vadd.f32 %v1411, %v1566
      %v1580 = vld [vmem:[%s197 + $0x10] sm:$0xc]
      %v1581 = vld [vmem:[%s197 + $0x30] sm:$0x7]
      %s1582 = scalar_lea.vmem %s1, 512
      %v1583 = vld [vmem:[%s1582] sm:$0xf]
      %v1584 = vld [vmem:[%s1582 + $0x4] sm:$0xf]
      %v1585 = vld [vmem:[%s1582 + $0x8] sm:$0xf]
      %v1586 = vld [vmem:[%s1582 + $0xc] sm:$0xf]
      %v1587 = vld [vmem:[%s1582 + $0x10] sm:$0xf]
      %v1588 = vld [vmem:[%s1582 + $0x14] sm:$0xf]
      %v1589 = vld [vmem:[%s1582 + $0x18] sm:$0xf]
      %v1590 = vld [vmem:[%s1582 + $0x1c] sm:$0xf]
      %v1591 = vld [vmem:[%s1582 + $0x20] sm:$0xf]
      %v1592 = vld [vmem:[%s1582 + $0x24] sm:$0xf]
      %v1593 = vld [vmem:[%s1582 + $0x28] sm:$0xf]
      %v1594 = vld [vmem:[%s1582 + $0x2c] sm:$0xf]
      %v1595 = vld [vmem:[%s1582 + $0x30] sm:$0xf]
      %v1596 = vld [vmem:[%s1582 + $0x34] sm:$0xf]
      %v1597 = vld [vmem:[%s1582 + $0x38] sm:$0xf]
      %v1598 = vld [vmem:[%s1582 + $0x3c] sm:$0xf]
      %v1601 = vunpack.c.l.b16 %v1580
      %v1602 = vunpack.c.l.b16 %v1581
      %v1603 = vpack.c.b16 %v1265, %v1601
      %v1604 = vpack.c.b16 %v1602, %v1602
      %v1605 = vrot.slane %v1603, 2
      %v1606 = vrot.slane %v1274, 2
      %v1607 = vsel %vm566, %v1605, %v1606
      %v1608 = vrot.slane %v1275, 2
      %v1609 = vsel %vm566, %v1606, %v1608
      %v1610 = vrot.slane %v1276, 2
      %v1611 = vsel %vm566, %v1608, %v1610
      %v1612 = vrot.slane %v1604, 2
      %v1613 = vsel %vm566, %v1610, %v1612
      %v1635 = vunpack.c.l.b16 %v1583
      %v1636 = vunpack.c.l.b16 %v1584
      %v1637 = vunpack.c.l.b16 %v1585
      %v1638 = vunpack.c.l.b16 %v1586
      %v1639 = vunpack.c.l.b16 %v1587
      %v1640 = vunpack.c.l.b16 %v1588
      %v1641 = vunpack.c.l.b16 %v1589
      %v1642 = vunpack.c.l.b16 %v1590
      %v1643 = vunpack.c.l.b16 %v1591
      %v1644 = vunpack.c.l.b16 %v1592
      %v1645 = vunpack.c.l.b16 %v1593
      %v1646 = vunpack.c.l.b16 %v1594
      %v1647 = vunpack.c.l.b16 %v1595
      %v1648 = vunpack.c.l.b16 %v1596
      %v1649 = vunpack.c.l.b16 %v1597
      %v1650 = vunpack.c.l.b16 %v1598
      %v1651 = vpack.c.b16 %v1636, %v1635
      %v1652 = vpack.c.b16 %v1638, %v1637
      %v1653 = vpack.c.b16 %v1640, %v1639
      %v1654 = vpack.c.b16 %v1642, %v1641
      %v1655 = vpack.c.b16 %v1644, %v1643
      %v1656 = vpack.c.b16 %v1646, %v1645
      %v1657 = vpack.c.b16 %v1648, %v1647
      %v1658 = vpack.c.b16 %v1650, %v1649
      %1667 = vmatprep.subr.bf16.mxu0 0
      %1668 = vmatpush1.bf16.msra.mxu0 %v1651
      %1669 = vmatprep.subr.bf16.mxu0 0
      %1670 = vmatpush1.bf16.msra.mxu0 %v1652
      %1671 = vmatprep.subr.bf16.mxu0 0
      %1672 = vmatpush1.bf16.msra.mxu0 %v1653
      %1673 = vmatprep.subr.bf16.mxu0 0
      %1674 = vmatpush1.bf16.msra.mxu0 %v1654
      %1675 = vmatprep.subr.bf16.mxu0 0
      %1676 = vmatpush1.bf16.msra.mxu0 %v1655
      %1677 = vmatprep.subr.bf16.mxu0 0
      %1678 = vmatpush1.bf16.msra.mxu0 %v1656
      %1679 = vmatprep.subr.bf16.mxu0 0
      %1680 = vmatpush1.bf16.msra.mxu0 %v1657
      %1681 = vmatprep.subr.bf16.mxu0 0
      %1682 = vmatpush1.bf16.msra.mxu0 %v1658
      %1683 = vmatprep.subr.bf16.mxu0 0
      %1684 = vmatpush1.bf16.msra.mxu0 0
      %1685 = vmatprep.subr.bf16.mxu0 0
      %1686 = vmatpush1.bf16.msra.mxu0 0
      %1687 = vmatprep.subr.bf16.mxu0 0
      %1688 = vmatpush1.bf16.msra.mxu0 0
      %1689 = vmatprep.subr.bf16.mxu0 0
      %1690 = vmatpush1.bf16.msra.mxu0 0
      %1691 = vmatprep.subr.bf16.mxu0 0
      %1692 = vmatpush1.bf16.msra.mxu0 0
      %1693 = vmatprep.subr.bf16.mxu0 0
      %1694 = vmatpush1.bf16.msra.mxu0 0
      %1695 = vmatprep.subr.bf16.mxu0 0
      %1696 = vmatpush1.bf16.msra.mxu0 0
      %1697 = vmatprep.subr.bf16.mxu0 0
      %1698 = vmatpush1.bf16.msra.mxu0 0
      %1699 = vmatprep.mubr.bf16.mxu0 0
      %1700 = vmatmul.mubr.bf16.gmra.mrb[0].mxu0 %v1607
      %v1701 = vpop.f32.mrb[0].mxu0
      %v1702 = vadd.f32 0.0, %v1701
      %v1703 = vpop.f32.mrb[0].mxu0
      %v1704 = vpop.f32.mrb[0].mxu0
      %v1705 = vadd.f32 0.0, %v1704
      %v1706 = vpop.f32.mrb[0].mxu0
      %1707 = vmatprep.mubr.bf16.mxu0 0
      %1708 = vmatmul.mubr.bf16.gmra.mrb[0].mxu0 %v1609
      %v1709 = vpop.f32.mrb[0].mxu0
      %v1710 = vadd.f32 0.0, %v1709
      %v1711 = vpop.f32.mrb[0].mxu0
      %v1712 = vpop.f32.mrb[0].mxu0
      %v1713 = vadd.f32 0.0, %v1712
      %v1714 = vpop.f32.mrb[0].mxu0
      %1715 = vmatprep.mubr.bf16.mxu0 0
      %1716 = vmatmul.mubr.bf16.gmra.mrb[0].mxu0 %v1611
      %v1717 = vpop.f32.mrb[0].mxu0
      %v1718 = vadd.f32 0.0, %v1717
      %v1719 = vpop.f32.mrb[0].mxu0
      %v1720 = vpop.f32.mrb[0].mxu0
      %v1721 = vadd.f32 0.0, %v1720
      %v1722 = vpop.f32.mrb[0].mxu0
      %1723 = vmatprep.mubr.bf16.mxu0 0
      %1724 = vmatmul.mubr.bf16.gmra.mrb[0].mxu0 %v1613
      %v1725 = vpop.f32.mrb[0].mxu0
      %v1726 = vadd.f32 0.0, %v1725
      %v1727 = vpop.f32.mrb[0].mxu0
      %v1728 = vpop.f32.mrb[0].mxu0
      %v1729 = vadd.f32 0.0, %v1728
      %v1730 = vpop.f32.mrb[0].mxu0
      %1731 = vmatprep.mubr.bf16.mxu0 0
      %1732 = vmatmul.mubr.bf16.gmra.mrb[0].mxu0 %v1612
      %v1733 = vpop.f32.mrb[0].mxu0
      %v1734 = vadd.f32 0.0, %v1733
      %v1735 = vpop.f32.mrb[0].mxu0
      %v1736 = vpop.f32.mrb[0].mxu0
      %v1737 = vpop.f32.mrb[0].mxu0
      %1738 = vdwg.mxu0
      %v1739 = vadd.f32 %v1571, %v1702
      %v1740 = vadd.f32 %v1572, %v1705
      %v1741 = vadd.f32 %v1573, %v1710
      %v1742 = vadd.f32 %v1574, %v1713
      %v1743 = vadd.f32 %v1575, %v1718
      %v1744 = vadd.f32 %v1576, %v1721
      %v1745 = vadd.f32 %v1577, %v1726
      %v1746 = vadd.f32 %v1578, %v1729
      %v1747 = vadd.f32 %v1579, %v1734
      %v1748 = vld [vmem:[%s197 + $0x18] sm:$0xf]
      %v1749 = vld [vmem:[%s197 + $0x1c] sm:$0xf]
      %v1750 = vld [vmem:[%s197 + $0x20] sm:$0xf]
      %v1751 = vld [vmem:[%s197 + $0x24] sm:$0xf]
      %v1752 = vld [vmem:[%s197 + $0x28] sm:$0xf]
      %v1753 = vld [vmem:[%s197 + $0x2c] sm:$0xf]
      %v1754 = vld [vmem:[%s197 + $0x30] sm:$0xf]
      %v1755 = vld [vmem:[%s197 + $0x34] sm:$0xf]
      %v1756 = vld [vmem:[%s197 + $0x38] sm:$0x1]
      %s1757 = scalar_lea.vmem %s1, 576
      %v1758 = vld [vmem:[%s1757] sm:$0xf]
      %v1759 = vld [vmem:[%s1757 + $0x4] sm:$0xf]
      %v1760 = vld [vmem:[%s1757 + $0x8] sm:$0xf]
      %v1761 = vld [vmem:[%s1757 + $0xc] sm:$0xf]
      %v1762 = vld [vmem:[%s1757 + $0x10] sm:$0xf]
      %v1763 = vld [vmem:[%s1757 + $0x14] sm:$0xf]
      %v1764 = vld [vmem:[%s1757 + $0x18] sm:$0xf]
      %v1765 = vld [vmem:[%s1757 + $0x1c] sm:$0xf]
      %v1766 = vld [vmem:[%s1757 + $0x20] sm:$0xf]
      %v1767 = vld [vmem:[%s1757 + $0x24] sm:$0xf]
      %v1768 = vld [vmem:[%s1757 + $0x28] sm:$0xf]
      %v1769 = vld [vmem:[%s1757 + $0x2c] sm:$0xf]
      %v1770 = vld [vmem:[%s1757 + $0x30] sm:$0xf]
      %v1771 = vld [vmem:[%s1757 + $0x34] sm:$0xf]
      %v1772 = vld [vmem:[%s1757 + $0x38] sm:$0xf]
      %v1773 = vld [vmem:[%s1757 + $0x3c] sm:$0xf]
      %v1783 = vunpack.c.l.b16 %v1748
      %v1784 = vunpack.c.l.b16 %v1749
      %v1785 = vunpack.c.l.b16 %v1750
      %v1786 = vunpack.c.l.b16 %v1751
      %v1787 = vunpack.c.l.b16 %v1752
      %v1788 = vunpack.c.l.b16 %v1753
      %v1789 = vunpack.c.l.b16 %v1754
      %v1790 = vunpack.c.l.b16 %v1755
      %v1791 = vunpack.c.l.b16 %v1756
      %v1792 = vpack.c.b16 %v1784, %v1783
      %v1793 = vpack.c.b16 %v1786, %v1785
      %v1794 = vpack.c.b16 %v1788, %v1787
      %v1795 = vpack.c.b16 %v1790, %v1789
      %v1796 = vpack.c.b16 %v1791, %v1791
      %v1818 = vunpack.c.l.b16 %v1758
      %v1819 = vunpack.c.l.b16 %v1759
      %v1820 = vunpack.c.l.b16 %v1760
      %v1821 = vunpack.c.l.b16 %v1761
      %v1822 = vunpack.c.l.b16 %v1762
      %v1823 = vunpack.c.l.b16 %v1763
      %v1824 = vunpack.c.l.b16 %v1764
      %v1825 = vunpack.c.l.b16 %v1765
      %v1826 = vunpack.c.l.b16 %v1766
      %v1827 = vunpack.c.l.b16 %v1767
      %v1828 = vunpack.c.l.b16 %v1768
      %v1829 = vunpack.c.l.b16 %v1769
      %v1830 = vunpack.c.l.b16 %v1770
      %v1831 = vunpack.c.l.b16 %v1771
      %v1832 = vunpack.c.l.b16 %v1772
      %v1833 = vunpack.c.l.b16 %v1773
      %v1834 = vpack.c.b16 %v1819, %v1818
      %v1835 = vpack.c.b16 %v1821, %v1820
      %v1836 = vpack.c.b16 %v1823, %v1822
      %v1837 = vpack.c.b16 %v1825, %v1824
      %v1838 = vpack.c.b16 %v1827, %v1826
      %v1839 = vpack.c.b16 %v1829, %v1828
      %v1840 = vpack.c.b16 %v1831, %v1830
      %v1841 = vpack.c.b16 %v1833, %v1832
      %1850 = vmatprep.subr.bf16.mxu0 0
      %1851 = vmatpush1.bf16.msra.mxu0 %v1834
      %1852 = vmatprep.subr.bf16.mxu0 0
      %1853 = vmatpush1.bf16.msra.mxu0 %v1835
      %1854 = vmatprep.subr.bf16.mxu0 0
      %1855 = vmatpush1.bf16.msra.mxu0 %v1836
      %1856 = vmatprep.subr.bf16.mxu0 0
      %1857 = vmatpush1.bf16.msra.mxu0 %v1837
      %1858 = vmatprep.subr.bf16.mxu0 0
      %1859 = vmatpush1.bf16.msra.mxu0 %v1838
      %1860 = vmatprep.subr.bf16.mxu0 0
      %1861 = vmatpush1.bf16.msra.mxu0 %v1839
      %1862 = vmatprep.subr.bf16.mxu0 0
      %1863 = vmatpush1.bf16.msra.mxu0 %v1840
      %1864 = vmatprep.subr.bf16.mxu0 0
      %1865 = vmatpush1.bf16.msra.mxu0 %v1841
      %1866 = vmatprep.subr.bf16.mxu0 0
      %1867 = vmatpush1.bf16.msra.mxu0 0
      %1868 = vmatprep.subr.bf16.mxu0 0
      %1869 = vmatpush1.bf16.msra.mxu0 0
      %1870 = vmatprep.subr.bf16.mxu0 0
      %1871 = vmatpush1.bf16.msra.mxu0 0
      %1872 = vmatprep.subr.bf16.mxu0 0
      %1873 = vmatpush1.bf16.msra.mxu0 0
      %1874 = vmatprep.subr.bf16.mxu0 0
      %1875 = vmatpush1.bf16.msra.mxu0 0
      %1876 = vmatprep.subr.bf16.mxu0 0
      %1877 = vmatpush1.bf16.msra.mxu0 0
      %1878 = vmatprep.subr.bf16.mxu0 0
      %1879 = vmatpush1.bf16.msra.mxu0 0
      %1880 = vmatprep.subr.bf16.mxu0 0
      %1881 = vmatpush1.bf16.msra.mxu0 0
      %1882 = vmatprep.mubr.bf16.mxu0 0
      %1883 = vmatmul.mubr.bf16.gmra.mrb[0].mxu0 %v1792
      %v1884 = vpop.f32.mrb[0].mxu0
      %v1885 = vadd.f32 0.0, %v1884
      %v1886 = vpop.f32.mrb[0].mxu0
      %v1887 = vpop.f32.mrb[0].mxu0
      %v1888 = vadd.f32 0.0, %v1887
      %v1889 = vpop.f32.mrb[0].mxu0
      %1890 = vmatprep.mubr.bf16.mxu0 0
      %1891 = vmatmul.mubr.bf16.gmra.mrb[0].mxu0 %v1793
      %v1892 = vpop.f32.mrb[0].mxu0
      %v1893 = vadd.f32 0.0, %v1892
      %v1894 = vpop.f32.mrb[0].mxu0
      %v1895 = vpop.f32.mrb[0].mxu0
      %v1896 = vadd.f32 0.0, %v1895
      %v1897 = vpop.f32.mrb[0].mxu0
      %1898 = vmatprep.mubr.bf16.mxu0 0
      %1899 = vmatmul.mubr.bf16.gmra.mrb[0].mxu0 %v1794
      %v1900 = vpop.f32.mrb[0].mxu0
      %v1901 = vadd.f32 0.0, %v1900
      %v1902 = vpop.f32.mrb[0].mxu0
      %v1903 = vpop.f32.mrb[0].mxu0
      %v1904 = vadd.f32 0.0, %v1903
      %v1905 = vpop.f32.mrb[0].mxu0
      %1906 = vmatprep.mubr.bf16.mxu0 0
      %1907 = vmatmul.mubr.bf16.gmra.mrb[0].mxu0 %v1795
      %v1908 = vpop.f32.mrb[0].mxu0
      %v1909 = vadd.f32 0.0, %v1908
      %v1910 = vpop.f32.mrb[0].mxu0
      %v1911 = vpop.f32.mrb[0].mxu0
      %v1912 = vadd.f32 0.0, %v1911
      %v1913 = vpop.f32.mrb[0].mxu0
      %1914 = vmatprep.mubr.bf16.mxu0 0
      %1915 = vmatmul.mubr.bf16.gmra.mrb[0].mxu0 %v1796
      %v1916 = vpop.f32.mrb[0].mxu0
      %v1917 = vadd.f32 0.0, %v1916
      %v1918 = vpop.f32.mrb[0].mxu0
      %v1919 = vpop.f32.mrb[0].mxu0
      %v1920 = vpop.f32.mrb[0].mxu0
      %1921 = vdwg.mxu0
      %v1922 = vadd.f32 %v1739, %v1885
      %v1923 = vadd.f32 %v1740, %v1888
      %v1924 = vadd.f32 %v1741, %v1893
      %v1925 = vadd.f32 %v1742, %v1896
      %v1926 = vadd.f32 %v1743, %v1901
      %v1927 = vadd.f32 %v1744, %v1904
      %v1928 = vadd.f32 %v1745, %v1909
      %v1929 = vadd.f32 %v1746, %v1912
      %v1930 = vadd.f32 %v1747, %v1917
      %v1931 = vld [vmem:[%s197 + $0x18] sm:$0xe]
      %v1932 = vld [vmem:[%s197 + $0x38] sm:$0x3]
      %s1933 = scalar_lea.vmem %s1, 640
      %v1934 = vld [vmem:[%s1933] sm:$0xf]
      %v1935 = vld [vmem:[%s1933 + $0x4] sm:$0xf]
      %v1936 = vld [vmem:[%s1933 + $0x8] sm:$0xf]
      %v1937 = vld [vmem:[%s1933 + $0xc] sm:$0xf]
      %v1938 = vld [vmem:[%s1933 + $0x10] sm:$0xf]
      %v1939 = vld [vmem:[%s1933 + $0x14] sm:$0xf]
      %v1940 = vld [vmem:[%s1933 + $0x18] sm:$0xf]
      %v1941 = vld [vmem:[%s1933 + $0x1c] sm:$0xf]
      %v1942 = vld [vmem:[%s1933 + $0x20] sm:$0xf]
      %v1943 = vld [vmem:[%s1933 + $0x24] sm:$0xf]
      %v1944 = vld [vmem:[%s1933 + $0x28] sm:$0xf]
      %v1945 = vld [vmem:[%s1933 + $0x2c] sm:$0xf]
      %v1946 = vld [vmem:[%s1933 + $0x30] sm:$0xf]
      %v1947 = vld [vmem:[%s1933 + $0x34] sm:$0xf]
      %v1948 = vld [vmem:[%s1933 + $0x38] sm:$0xf]
      %v1949 = vld [vmem:[%s1933 + $0x3c] sm:$0xf]
      %v1952 = vunpack.c.l.b16 %v1931
      %v1953 = vunpack.c.l.b16 %v1932
      %v1954 = vpack.c.b16 %v1784, %v1952
      %v1955 = vpack.c.b16 %v1953, %v1953
      %v1956 = vrot.slane %v1954, 1
      %v1957 = vrot.slane %v1793, 1
      %v1958 = vsel %vm275, %v1956, %v1957
      %v1959 = vrot.slane %v1794, 1
      %v1960 = vsel %vm275, %v1957, %v1959
      %v1961 = vrot.slane %v1795, 1
      %v1962 = vsel %vm275, %v1959, %v1961
      %v1963 = vrot.slane %v1955, 1
      %v1964 = vsel %vm275, %v1961, %v1963
      %v1986 = vunpack.c.l.b16 %v1934
      %v1987 = vunpack.c.l.b16 %v1935
      %v1988 = vunpack.c.l.b16 %v1936
      %v1989 = vunpack.c.l.b16 %v1937
      %v1990 = vunpack.c.l.b16 %v1938
      %v1991 = vunpack.c.l.b16 %v1939
      %v1992 = vunpack.c.l.b16 %v1940
      %v1993 = vunpack.c.l.b16 %v1941
      %v1994 = vunpack.c.l.b16 %v1942
      %v1995 = vunpack.c.l.b16 %v1943
      %v1996 = vunpack.c.l.b16 %v1944
      %v1997 = vunpack.c.l.b16 %v1945
      %v1998 = vunpack.c.l.b16 %v1946
      %v1999 = vunpack.c.l.b16 %v1947
      %v2000 = vunpack.c.l.b16 %v1948
      %v2001 = vunpack.c.l.b16 %v1949
      %v2002 = vpack.c.b16 %v1987, %v1986
      %v2003 = vpack.c.b16 %v1989, %v1988
      %v2004 = vpack.c.b16 %v1991, %v1990
      %v2005 = vpack.c.b16 %v1993, %v1992
      %v2006 = vpack.c.b16 %v1995, %v1994
      %v2007 = vpack.c.b16 %v1997, %v1996
      %v2008 = vpack.c.b16 %v1999, %v1998
      %v2009 = vpack.c.b16 %v2001, %v2000
      %2018 = vmatprep.subr.bf16.mxu0 0
      %2019 = vmatpush1.bf16.msra.mxu0 %v2002
      %2020 = vmatprep.subr.bf16.mxu0 0
      %2021 = vmatpush1.bf16.msra.mxu0 %v2003
      %2022 = vmatprep.subr.bf16.mxu0 0
      %2023 = vmatpush1.bf16.msra.mxu0 %v2004
      %2024 = vmatprep.subr.bf16.mxu0 0
      %2025 = vmatpush1.bf16.msra.mxu0 %v2005
      %2026 = vmatprep.subr.bf16.mxu0 0
      %2027 = vmatpush1.bf16.msra.mxu0 %v2006
      %2028 = vmatprep.subr.bf16.mxu0 0
      %2029 = vmatpush1.bf16.msra.mxu0 %v2007
      %2030 = vmatprep.subr.bf16.mxu0 0
      %2031 = vmatpush1.bf16.msra.mxu0 %v2008
      %2032 = vmatprep.subr.bf16.mxu0 0
      %2033 = vmatpush1.bf16.msra.mxu0 %v2009
      %2034 = vmatprep.subr.bf16.mxu0 0
      %2035 = vmatpush1.bf16.msra.mxu0 0
      %2036 = vmatprep.subr.bf16.mxu0 0
      %2037 = vmatpush1.bf16.msra.mxu0 0
      %2038 = vmatprep.subr.bf16.mxu0 0
      %2039 = vmatpush1.bf16.msra.mxu0 0
      %2040 = vmatprep.subr.bf16.mxu0 0
      %2041 = vmatpush1.bf16.msra.mxu0 0
      %2042 = vmatprep.subr.bf16.mxu0 0
      %2043 = vmatpush1.bf16.msra.mxu0 0
      %2044 = vmatprep.subr.bf16.mxu0 0
      %2045 = vmatpush1.bf16.msra.mxu0 0
      %2046 = vmatprep.subr.bf16.mxu0 0
      %2047 = vmatpush1.bf16.msra.mxu0 0
      %2048 = vmatprep.subr.bf16.mxu0 0
      %2049 = vmatpush1.bf16.msra.mxu0 0
      %2050 = vmatprep.mubr.bf16.mxu0 0
      %2051 = vmatmul.mubr.bf16.gmra.mrb[0].mxu0 %v1958
      %v2052 = vpop.f32.mrb[0].mxu0
      %v2053 = vadd.f32 0.0, %v2052
      %v2054 = vpop.f32.mrb[0].mxu0
      %v2055 = vpop.f32.mrb[0].mxu0
      %v2056 = vadd.f32 0.0, %v2055
      %v2057 = vpop.f32.mrb[0].mxu0
      %2058 = vmatprep.mubr.bf16.mxu0 0
      %2059 = vmatmul.mubr.bf16.gmra.mrb[0].mxu0 %v1960
      %v2060 = vpop.f32.mrb[0].mxu0
      %v2061 = vadd.f32 0.0, %v2060
      %v2062 = vpop.f32.mrb[0].mxu0
      %v2063 = vpop.f32.mrb[0].mxu0
      %v2064 = vadd.f32 0.0, %v2063
      %v2065 = vpop.f32.mrb[0].mxu0
      %2066 = vmatprep.mubr.bf16.mxu0 0
      %2067 = vmatmul.mubr.bf16.gmra.mrb[0].mxu0 %v1962
      %v2068 = vpop.f32.mrb[0].mxu0
      %v2069 = vadd.f32 0.0, %v2068
      %v2070 = vpop.f32.mrb[0].mxu0
      %v2071 = vpop.f32.mrb[0].mxu0
      %v2072 = vadd.f32 0.0, %v2071
      %v2073 = vpop.f32.mrb[0].mxu0
      %2074 = vmatprep.mubr.bf16.mxu0 0
      %2075 = vmatmul.mubr.bf16.gmra.mrb[0].mxu0 %v1964
      %v2076 = vpop.f32.mrb[0].mxu0
      %v2077 = vadd.f32 0.0, %v2076
      %v2078 = vpop.f32.mrb[0].mxu0
      %v2079 = vpop.f32.mrb[0].mxu0
      %v2080 = vadd.f32 0.0, %v2079
      %v2081 = vpop.f32.mrb[0].mxu0
      %2082 = vmatprep.mubr.bf16.mxu0 0
      %2083 = vmatmul.mubr.bf16.gmra.mrb[0].mxu0 %v1963
      %v2084 = vpop.f32.mrb[0].mxu0
      %v2085 = vadd.f32 0.0, %v2084
      %v2086 = vpop.f32.mrb[0].mxu0
      %v2087 = vpop.f32.mrb[0].mxu0
      %v2088 = vpop.f32.mrb[0].mxu0
      %2089 = vdwg.mxu0
      %v2090 = vadd.f32 %v1922, %v2053
      %v2091 = vadd.f32 %v1923, %v2056
      %v2092 = vadd.f32 %v1924, %v2061
      %v2093 = vadd.f32 %v1925, %v2064
      %v2094 = vadd.f32 %v1926, %v2069
      %v2095 = vadd.f32 %v1927, %v2072
      %v2096 = vadd.f32 %v1928, %v2077
      %v2097 = vadd.f32 %v1929, %v2080
      %v2098 = vadd.f32 %v1930, %v2085
      %v2099 = vld [vmem:[%s197 + $0x18] sm:$0xc]
      %v2100 = vld [vmem:[%s197 + $0x38] sm:$0x7]
      %s2101 = scalar_lea.vmem %s1, 704
      %v2102 = vld [vmem:[%s2101] sm:$0xf]
      %v2103 = vld [vmem:[%s2101 + $0x4] sm:$0xf]
      %v2104 = vld [vmem:[%s2101 + $0x8] sm:$0xf]
      %v2105 = vld [vmem:[%s2101 + $0xc] sm:$0xf]
      %v2106 = vld [vmem:[%s2101 + $0x10] sm:$0xf]
      %v2107 = vld [vmem:[%s2101 + $0x14] sm:$0xf]
      %v2108 = vld [vmem:[%s2101 + $0x18] sm:$0xf]
      %v2109 = vld [vmem:[%s2101 + $0x1c] sm:$0xf]
      %v2110 = vld [vmem:[%s2101 + $0x20] sm:$0xf]
      %v2111 = vld [vmem:[%s2101 + $0x24] sm:$0xf]
      %v2112 = vld [vmem:[%s2101 + $0x28] sm:$0xf]
      %v2113 = vld [vmem:[%s2101 + $0x2c] sm:$0xf]
      %v2114 = vld [vmem:[%s2101 + $0x30] sm:$0xf]
      %v2115 = vld [vmem:[%s2101 + $0x34] sm:$0xf]
      %v2116 = vld [vmem:[%s2101 + $0x38] sm:$0xf]
      %v2117 = vld [vmem:[%s2101 + $0x3c] sm:$0xf]
      %v2120 = vunpack.c.l.b16 %v2099
      %v2121 = vunpack.c.l.b16 %v2100
      %v2122 = vpack.c.b16 %v1784, %v2120
      %v2123 = vpack.c.b16 %v2121, %v2121
      %v2124 = vrot.slane %v2122, 2
      %v2125 = vrot.slane %v1793, 2
      %v2126 = vsel %vm566, %v2124, %v2125
      %v2127 = vrot.slane %v1794, 2
      %v2128 = vsel %vm566, %v2125, %v2127
      %v2129 = vrot.slane %v1795, 2
      %v2130 = vsel %vm566, %v2127, %v2129
      %v2131 = vrot.slane %v2123, 2
      %v2132 = vsel %vm566, %v2129, %v2131
      %v2154 = vunpack.c.l.b16 %v2102
      %v2155 = vunpack.c.l.b16 %v2103
      %v2156 = vunpack.c.l.b16 %v2104
      %v2157 = vunpack.c.l.b16 %v2105
      %v2158 = vunpack.c.l.b16 %v2106
      %v2159 = vunpack.c.l.b16 %v2107
      %v2160 = vunpack.c.l.b16 %v2108
      %v2161 = vunpack.c.l.b16 %v2109
      %v2162 = vunpack.c.l.b16 %v2110
      %v2163 = vunpack.c.l.b16 %v2111
      %v2164 = vunpack.c.l.b16 %v2112
      %v2165 = vunpack.c.l.b16 %v2113
      %v2166 = vunpack.c.l.b16 %v2114
      %v2167 = vunpack.c.l.b16 %v2115
      %v2168 = vunpack.c.l.b16 %v2116
      %v2169 = vunpack.c.l.b16 %v2117
      %v2170 = vpack.c.b16 %v2155, %v2154
      %v2171 = vpack.c.b16 %v2157, %v2156
      %v2172 = vpack.c.b16 %v2159, %v2158
      %v2173 = vpack.c.b16 %v2161, %v2160
      %v2174 = vpack.c.b16 %v2163, %v2162
      %v2175 = vpack.c.b16 %v2165, %v2164
      %v2176 = vpack.c.b16 %v2167, %v2166
      %v2177 = vpack.c.b16 %v2169, %v2168
      %2186 = vmatprep.subr.bf16.mxu0 0
      %2187 = vmatpush1.bf16.msra.mxu0 %v2170
      %2188 = vmatprep.subr.bf16.mxu0 0
      %2189 = vmatpush1.bf16.msra.mxu0 %v2171
      %2190 = vmatprep.subr.bf16.mxu0 0
      %2191 = vmatpush1.bf16.msra.mxu0 %v2172
      %2192 = vmatprep.subr.bf16.mxu0 0
      %2193 = vmatpush1.bf16.msra.mxu0 %v2173
      %2194 = vmatprep.subr.bf16.mxu0 0
      %2195 = vmatpush1.bf16.msra.mxu0 %v2174
      %2196 = vmatprep.subr.bf16.mxu0 0
      %2197 = vmatpush1.bf16.msra.mxu0 %v2175
      %2198 = vmatprep.subr.bf16.mxu0 0
      %2199 = vmatpush1.bf16.msra.mxu0 %v2176
      %2200 = vmatprep.subr.bf16.mxu0 0
      %2201 = vmatpush1.bf16.msra.mxu0 %v2177
      %2202 = vmatprep.subr.bf16.mxu0 0
      %2203 = vmatpush1.bf16.msra.mxu0 0
      %2204 = vmatprep.subr.bf16.mxu0 0
      %2205 = vmatpush1.bf16.msra.mxu0 0
      %2206 = vmatprep.subr.bf16.mxu0 0
      %2207 = vmatpush1.bf16.msra.mxu0 0
      %2208 = vmatprep.subr.bf16.mxu0 0
      %2209 = vmatpush1.bf16.msra.mxu0 0
      %2210 = vmatprep.subr.bf16.mxu0 0
      %2211 = vmatpush1.bf16.msra.mxu0 0
      %2212 = vmatprep.subr.bf16.mxu0 0
      %2213 = vmatpush1.bf16.msra.mxu0 0
      %2214 = vmatprep.subr.bf16.mxu0 0
      %2215 = vmatpush1.bf16.msra.mxu0 0
      %2216 = vmatprep.subr.bf16.mxu0 0
      %2217 = vmatpush1.bf16.msra.mxu0 0
      %2218 = vmatprep.mubr.bf16.mxu0 0
      %2219 = vmatmul.mubr.bf16.gmra.mrb[0].mxu0 %v2126
      %v2220 = vpop.f32.mrb[0].mxu0
      %v2221 = vadd.f32 0.0, %v2220
      %v2222 = vpop.f32.mrb[0].mxu0
      %v2223 = vpop.f32.mrb[0].mxu0
      %v2224 = vadd.f32 0.0, %v2223
      %v2225 = vpop.f32.mrb[0].mxu0
      %2226 = vmatprep.mubr.bf16.mxu0 0
      %2227 = vmatmul.mubr.bf16.gmra.mrb[0].mxu0 %v2128
      %v2228 = vpop.f32.mrb[0].mxu0
      %v2229 = vadd.f32 0.0, %v2228
      %v2230 = vpop.f32.mrb[0].mxu0
      %v2231 = vpop.f32.mrb[0].mxu0
      %v2232 = vadd.f32 0.0, %v2231
      %v2233 = vpop.f32.mrb[0].mxu0
      %2234 = vmatprep.mubr.bf16.mxu0 0
      %2235 = vmatmul.mubr.bf16.gmra.mrb[0].mxu0 %v2130
      %v2236 = vpop.f32.mrb[0].mxu0
      %v2237 = vadd.f32 0.0, %v2236
      %v2238 = vpop.f32.mrb[0].mxu0
      %v2239 = vpop.f32.mrb[0].mxu0
      %v2240 = vadd.f32 0.0, %v2239
      %v2241 = vpop.f32.mrb[0].mxu0
      %2242 = vmatprep.mubr.bf16.mxu0 0
      %2243 = vmatmul.mubr.bf16.gmra.mrb[0].mxu0 %v2132
      %v2244 = vpop.f32.mrb[0].mxu0
      %v2245 = vadd.f32 0.0, %v2244
      %v2246 = vpop.f32.mrb[0].mxu0
      %v2247 = vpop.f32.mrb[0].mxu0
      %v2248 = vadd.f32 0.0, %v2247
      %v2249 = vpop.f32.mrb[0].mxu0
      %2250 = vmatprep.mubr.bf16.mxu0 0
      %2251 = vmatmul.mubr.bf16.gmra.mrb[0].mxu0 %v2131
      %v2252 = vpop.f32.mrb[0].mxu0
      %v2253 = vadd.f32 0.0, %v2252
      %v2254 = vpop.f32.mrb[0].mxu0
      %v2255 = vpop.f32.mrb[0].mxu0
      %v2256 = vpop.f32.mrb[0].mxu0
      %2257 = vdwg.mxu0
      %v2258 = vadd.f32 %v2090, %v2221
      %v2259 = vadd.f32 %v2091, %v2224
      %v2260 = vadd.f32 %v2092, %v2229
      %v2261 = vadd.f32 %v2093, %v2232
      %v2262 = vadd.f32 %v2094, %v2237
      %v2263 = vadd.f32 %v2095, %v2240
      %v2264 = vadd.f32 %v2096, %v2245
      %v2265 = vadd.f32 %v2097, %v2248
      %v2266 = vadd.f32 %v2098, %v2253
      %v2267 = vld [vmem:[%s197 + $0x20] sm:$0xf]
      %v2268 = vld [vmem:[%s197 + $0x24] sm:$0xf]
      %v2269 = vld [vmem:[%s197 + $0x28] sm:$0xf]
      %v2270 = vld [vmem:[%s197 + $0x2c] sm:$0xf]
      %v2271 = vld [vmem:[%s197 + $0x30] sm:$0xf]
      %v2272 = vld [vmem:[%s197 + $0x34] sm:$0xf]
      %v2273 = vld [vmem:[%s197 + $0x38] sm:$0xf]
      %v2274 = vld [vmem:[%s197 + $0x3c] sm:$0xf]
      %v2275 = vld [vmem:[%s197 + $0x40] sm:$0x1]
      %s2276 = scalar_lea.vmem %s1, 768
      %v2277 = vld [vmem:[%s2276] sm:$0xf]
      %v2278 = vld [vmem:[%s2276 + $0x4] sm:$0xf]
      %v2279 = vld [vmem:[%s2276 + $0x8] sm:$0xf]
      %v2280 = vld [vmem:[%s2276 + $0xc] sm:$0xf]
      %v2281 = vld [vmem:[%s2276 + $0x10] sm:$0xf]
      %v2282 = vld [vmem:[%s2276 + $0x14] sm:$0xf]
      %v2283 = vld [vmem:[%s2276 + $0x18] sm:$0xf]
      %v2284 = vld [vmem:[%s2276 + $0x1c] sm:$0xf]
      %v2285 = vld [vmem:[%s2276 + $0x20] sm:$0xf]
      %v2286 = vld [vmem:[%s2276 + $0x24] sm:$0xf]
      %v2287 = vld [vmem:[%s2276 + $0x28] sm:$0xf]
      %v2288 = vld [vmem:[%s2276 + $0x2c] sm:$0xf]
      %v2289 = vld [vmem:[%s2276 + $0x30] sm:$0xf]
      %v2290 = vld [vmem:[%s2276 + $0x34] sm:$0xf]
      %v2291 = vld [vmem:[%s2276 + $0x38] sm:$0xf]
      %v2292 = vld [vmem:[%s2276 + $0x3c] sm:$0xf]
      %v2302 = vunpack.c.l.b16 %v2267
      %v2303 = vunpack.c.l.b16 %v2268
      %v2304 = vunpack.c.l.b16 %v2269
      %v2305 = vunpack.c.l.b16 %v2270
      %v2306 = vunpack.c.l.b16 %v2271
      %v2307 = vunpack.c.l.b16 %v2272
      %v2308 = vunpack.c.l.b16 %v2273
      %v2309 = vunpack.c.l.b16 %v2274
      %v2310 = vunpack.c.l.b16 %v2275
      %v2311 = vpack.c.b16 %v2303, %v2302
      %v2312 = vpack.c.b16 %v2305, %v2304
      %v2313 = vpack.c.b16 %v2307, %v2306
      %v2314 = vpack.c.b16 %v2309, %v2308
      %v2315 = vpack.c.b16 %v2310, %v2310
      %v2337 = vunpack.c.l.b16 %v2277
      %v2338 = vunpack.c.l.b16 %v2278
      %v2339 = vunpack.c.l.b16 %v2279
      %v2340 = vunpack.c.l.b16 %v2280
      %v2341 = vunpack.c.l.b16 %v2281
      %v2342 = vunpack.c.l.b16 %v2282
      %v2343 = vunpack.c.l.b16 %v2283
      %v2344 = vunpack.c.l.b16 %v2284
      %v2345 = vunpack.c.l.b16 %v2285
      %v2346 = vunpack.c.l.b16 %v2286
      %v2347 = vunpack.c.l.b16 %v2287
      %v2348 = vunpack.c.l.b16 %v2288
      %v2349 = vunpack.c.l.b16 %v2289
      %v2350 = vunpack.c.l.b16 %v2290
      %v2351 = vunpack.c.l.b16 %v2291
      %v2352 = vunpack.c.l.b16 %v2292
      %v2353 = vpack.c.b16 %v2338, %v2337
      %v2354 = vpack.c.b16 %v2340, %v2339
      %v2355 = vpack.c.b16 %v2342, %v2341
      %v2356 = vpack.c.b16 %v2344, %v2343
      %v2357 = vpack.c.b16 %v2346, %v2345
      %v2358 = vpack.c.b16 %v2348, %v2347
      %v2359 = vpack.c.b16 %v2350, %v2349
      %v2360 = vpack.c.b16 %v2352, %v2351
      %2369 = vmatprep.subr.bf16.mxu0 0
      %2370 = vmatpush1.bf16.msra.mxu0 %v2353
      %2371 = vmatprep.subr.bf16.mxu0 0
      %2372 = vmatpush1.bf16.msra.mxu0 %v2354
      %2373 = vmatprep.subr.bf16.mxu0 0
      %2374 = vmatpush1.bf16.msra.mxu0 %v2355
      %2375 = vmatprep.subr.bf16.mxu0 0
      %2376 = vmatpush1.bf16.msra.mxu0 %v2356
      %2377 = vmatprep.subr.bf16.mxu0 0
      %2378 = vmatpush1.bf16.msra.mxu0 %v2357
      %2379 = vmatprep.subr.bf16.mxu0 0
      %2380 = vmatpush1.bf16.msra.mxu0 %v2358
      %2381 = vmatprep.subr.bf16.mxu0 0
      %2382 = vmatpush1.bf16.msra.mxu0 %v2359
      %2383 = vmatprep.subr.bf16.mxu0 0
      %2384 = vmatpush1.bf16.msra.mxu0 %v2360
      %2385 = vmatprep.subr.bf16.mxu0 0
      %2386 = vmatpush1.bf16.msra.mxu0 0
      %2387 = vmatprep.subr.bf16.mxu0 0
      %2388 = vmatpush1.bf16.msra.mxu0 0
      %2389 = vmatprep.subr.bf16.mxu0 0
      %2390 = vmatpush1.bf16.msra.mxu0 0
      %2391 = vmatprep.subr.bf16.mxu0 0
      %2392 = vmatpush1.bf16.msra.mxu0 0
      %2393 = vmatprep.subr.bf16.mxu0 0
      %2394 = vmatpush1.bf16.msra.mxu0 0
      %2395 = vmatprep.subr.bf16.mxu0 0
      %2396 = vmatpush1.bf16.msra.mxu0 0
      %2397 = vmatprep.subr.bf16.mxu0 0
      %2398 = vmatpush1.bf16.msra.mxu0 0
      %2399 = vmatprep.subr.bf16.mxu0 0
      %2400 = vmatpush1.bf16.msra.mxu0 0
      %2401 = vmatprep.mubr.bf16.mxu0 0
      %2402 = vmatmul.mubr.bf16.gmra.mrb[0].mxu0 %v2311
      %v2403 = vpop.f32.mrb[0].mxu0
      %v2404 = vadd.f32 0.0, %v2403
      %v2405 = vpop.f32.mrb[0].mxu0
      %v2406 = vpop.f32.mrb[0].mxu0
      %v2407 = vadd.f32 0.0, %v2406
      %v2408 = vpop.f32.mrb[0].mxu0
      %2409 = vmatprep.mubr.bf16.mxu0 0
      %2410 = vmatmul.mubr.bf16.gmra.mrb[0].mxu0 %v2312
      %v2411 = vpop.f32.mrb[0].mxu0
      %v2412 = vadd.f32 0.0, %v2411
      %v2413 = vpop.f32.mrb[0].mxu0
      %v2414 = vpop.f32.mrb[0].mxu0
      %v2415 = vadd.f32 0.0, %v2414
      %v2416 = vpop.f32.mrb[0].mxu0
      %2417 = vmatprep.mubr.bf16.mxu0 0
      %2418 = vmatmul.mubr.bf16.gmra.mrb[0].mxu0 %v2313
      %v2419 = vpop.f32.mrb[0].mxu0
      %v2420 = vadd.f32 0.0, %v2419
      %v2421 = vpop.f32.mrb[0].mxu0
      %v2422 = vpop.f32.mrb[0].mxu0
      %v2423 = vadd.f32 0.0, %v2422
      %v2424 = vpop.f32.mrb[0].mxu0
      %2425 = vmatprep.mubr.bf16.mxu0 0
      %2426 = vmatmul.mubr.bf16.gmra.mrb[0].mxu0 %v2314
      %v2427 = vpop.f32.mrb[0].mxu0
      %v2428 = vadd.f32 0.0, %v2427
      %v2429 = vpop.f32.mrb[0].mxu0
      %v2430 = vpop.f32.mrb[0].mxu0
      %v2431 = vadd.f32 0.0, %v2430
      %v2432 = vpop.f32.mrb[0].mxu0
      %2433 = vmatprep.mubr.bf16.mxu0 0
      %2434 = vmatmul.mubr.bf16.gmra.mrb[0].mxu0 %v2315
      %v2435 = vpop.f32.mrb[0].mxu0
      %v2436 = vadd.f32 0.0, %v2435
      %v2437 = vpop.f32.mrb[0].mxu0
      %v2438 = vpop.f32.mrb[0].mxu0
      %v2439 = vpop.f32.mrb[0].mxu0
      %2440 = vdwg.mxu0
      %v2441 = vadd.f32 %v2258, %v2404
      %v2442 = vadd.f32 %v2259, %v2407
      %v2443 = vadd.f32 %v2260, %v2412
      %v2444 = vadd.f32 %v2261, %v2415
      %v2445 = vadd.f32 %v2262, %v2420
      %v2446 = vadd.f32 %v2263, %v2423
      %v2447 = vadd.f32 %v2264, %v2428
      %v2448 = vadd.f32 %v2265, %v2431
      %v2449 = vadd.f32 %v2266, %v2436
      %v2450 = vld [vmem:[%s197 + $0x20] sm:$0xe]
      %v2451 = vld [vmem:[%s197 + $0x40] sm:$0x3]
      %s2452 = scalar_lea.vmem %s1, 832
      %v2453 = vld [vmem:[%s2452] sm:$0xf]
      %v2454 = vld [vmem:[%s2452 + $0x4] sm:$0xf]
      %v2455 = vld [vmem:[%s2452 + $0x8] sm:$0xf]
      %v2456 = vld [vmem:[%s2452 + $0xc] sm:$0xf]
      %v2457 = vld [vmem:[%s2452 + $0x10] sm:$0xf]
      %v2458 = vld [vmem:[%s2452 + $0x14] sm:$0xf]
      %v2459 = vld [vmem:[%s2452 + $0x18] sm:$0xf]
      %v2460 = vld [vmem:[%s2452 + $0x1c] sm:$0xf]
      %v2461 = vld [vmem:[%s2452 + $0x20] sm:$0xf]
      %v2462 = vld [vmem:[%s2452 + $0x24] sm:$0xf]
      %v2463 = vld [vmem:[%s2452 + $0x28] sm:$0xf]
      %v2464 = vld [vmem:[%s2452 + $0x2c] sm:$0xf]
      %v2465 = vld [vmem:[%s2452 + $0x30] sm:$0xf]
      %v2466 = vld [vmem:[%s2452 + $0x34] sm:$0xf]
      %v2467 = vld [vmem:[%s2452 + $0x38] sm:$0xf]
      %v2468 = vld [vmem:[%s2452 + $0x3c] sm:$0xf]
      %v2471 = vunpack.c.l.b16 %v2450
      %v2472 = vunpack.c.l.b16 %v2451
      %v2473 = vpack.c.b16 %v2303, %v2471
      %v2474 = vpack.c.b16 %v2472, %v2472
      %v2475 = vrot.slane %v2473, 1
      %v2476 = vrot.slane %v2312, 1
      %v2477 = vsel %vm275, %v2475, %v2476
      %v2478 = vrot.slane %v2313, 1
      %v2479 = vsel %vm275, %v2476, %v2478
      %v2480 = vrot.slane %v2314, 1
      %v2481 = vsel %vm275, %v2478, %v2480
      %v2482 = vrot.slane %v2474, 1
      %v2483 = vsel %vm275, %v2480, %v2482
      %v2505 = vunpack.c.l.b16 %v2453
      %v2506 = vunpack.c.l.b16 %v2454
      %v2507 = vunpack.c.l.b16 %v2455
      %v2508 = vunpack.c.l.b16 %v2456
      %v2509 = vunpack.c.l.b16 %v2457
      %v2510 = vunpack.c.l.b16 %v2458
      %v2511 = vunpack.c.l.b16 %v2459
      %v2512 = vunpack.c.l.b16 %v2460
      %v2513 = vunpack.c.l.b16 %v2461
      %v2514 = vunpack.c.l.b16 %v2462
      %v2515 = vunpack.c.l.b16 %v2463
      %v2516 = vunpack.c.l.b16 %v2464
      %v2517 = vunpack.c.l.b16 %v2465
      %v2518 = vunpack.c.l.b16 %v2466
      %v2519 = vunpack.c.l.b16 %v2467
      %v2520 = vunpack.c.l.b16 %v2468
      %v2521 = vpack.c.b16 %v2506, %v2505
      %v2522 = vpack.c.b16 %v2508, %v2507
      %v2523 = vpack.c.b16 %v2510, %v2509
      %v2524 = vpack.c.b16 %v2512, %v2511
      %v2525 = vpack.c.b16 %v2514, %v2513
      %v2526 = vpack.c.b16 %v2516, %v2515
      %v2527 = vpack.c.b16 %v2518, %v2517
      %v2528 = vpack.c.b16 %v2520, %v2519
      %2537 = vmatprep.subr.bf16.mxu0 0
      %2538 = vmatpush1.bf16.msra.mxu0 %v2521
      %2539 = vmatprep.subr.bf16.mxu0 0
      %2540 = vmatpush1.bf16.msra.mxu0 %v2522
      %2541 = vmatprep.subr.bf16.mxu0 0
      %2542 = vmatpush1.bf16.msra.mxu0 %v2523
      %2543 = vmatprep.subr.bf16.mxu0 0
      %2544 = vmatpush1.bf16.msra.mxu0 %v2524
      %2545 = vmatprep.subr.bf16.mxu0 0
      %2546 = vmatpush1.bf16.msra.mxu0 %v2525
      %2547 = vmatprep.subr.bf16.mxu0 0
      %2548 = vmatpush1.bf16.msra.mxu0 %v2526
      %2549 = vmatprep.subr.bf16.mxu0 0
      %2550 = vmatpush1.bf16.msra.mxu0 %v2527
      %2551 = vmatprep.subr.bf16.mxu0 0
      %2552 = vmatpush1.bf16.msra.mxu0 %v2528
      %2553 = vmatprep.subr.bf16.mxu0 0
      %2554 = vmatpush1.bf16.msra.mxu0 0
      %2555 = vmatprep.subr.bf16.mxu0 0
      %2556 = vmatpush1.bf16.msra.mxu0 0
      %2557 = vmatprep.subr.bf16.mxu0 0
      %2558 = vmatpush1.bf16.msra.mxu0 0
      %2559 = vmatprep.subr.bf16.mxu0 0
      %2560 = vmatpush1.bf16.msra.mxu0 0
      %2561 = vmatprep.subr.bf16.mxu0 0
      %2562 = vmatpush1.bf16.msra.mxu0 0
      %2563 = vmatprep.subr.bf16.mxu0 0
      %2564 = vmatpush1.bf16.msra.mxu0 0
      %2565 = vmatprep.subr.bf16.mxu0 0
      %2566 = vmatpush1.bf16.msra.mxu0 0
      %2567 = vmatprep.subr.bf16.mxu0 0
      %2568 = vmatpush1.bf16.msra.mxu0 0
      %2569 = vmatprep.mubr.bf16.mxu0 0
      %2570 = vmatmul.mubr.bf16.gmra.mrb[0].mxu0 %v2477
      %v2571 = vpop.f32.mrb[0].mxu0
      %v2572 = vadd.f32 0.0, %v2571
      %v2573 = vpop.f32.mrb[0].mxu0
      %v2574 = vpop.f32.mrb[0].mxu0
      %v2575 = vadd.f32 0.0, %v2574
      %v2576 = vpop.f32.mrb[0].mxu0
      %2577 = vmatprep.mubr.bf16.mxu0 0
      %2578 = vmatmul.mubr.bf16.gmra.mrb[0].mxu0 %v2479
      %v2579 = vpop.f32.mrb[0].mxu0
      %v2580 = vadd.f32 0.0, %v2579
      %v2581 = vpop.f32.mrb[0].mxu0
      %v2582 = vpop.f32.mrb[0].mxu0
      %v2583 = vadd.f32 0.0, %v2582
      %v2584 = vpop.f32.mrb[0].mxu0
      %2585 = vmatprep.mubr.bf16.mxu0 0
      %2586 = vmatmul.mubr.bf16.gmra.mrb[0].mxu0 %v2481
      %v2587 = vpop.f32.mrb[0].mxu0
      %v2588 = vadd.f32 0.0, %v2587
      %v2589 = vpop.f32.mrb[0].mxu0
      %v2590 = vpop.f32.mrb[0].mxu0
      %v2591 = vadd.f32 0.0, %v2590
      %v2592 = vpop.f32.mrb[0].mxu0
      %2593 = vmatprep.mubr.bf16.mxu0 0
      %2594 = vmatmul.mubr.bf16.gmra.mrb[0].mxu0 %v2483
      %v2595 = vpop.f32.mrb[0].mxu0
      %v2596 = vadd.f32 0.0, %v2595
      %v2597 = vpop.f32.mrb[0].mxu0
      %v2598 = vpop.f32.mrb[0].mxu0
      %v2599 = vadd.f32 0.0, %v2598
      %v2600 = vpop.f32.mrb[0].mxu0
      %2601 = vmatprep.mubr.bf16.mxu0 0
      %2602 = vmatmul.mubr.bf16.gmra.mrb[0].mxu0 %v2482
      %v2603 = vpop.f32.mrb[0].mxu0
      %v2604 = vadd.f32 0.0, %v2603
      %v2605 = vpop.f32.mrb[0].mxu0
      %v2606 = vpop.f32.mrb[0].mxu0
      %v2607 = vpop.f32.mrb[0].mxu0
      %2608 = vdwg.mxu0
      %v2609 = vadd.f32 %v2441, %v2572
      %v2610 = vadd.f32 %v2442, %v2575
      %v2611 = vadd.f32 %v2443, %v2580
      %v2612 = vadd.f32 %v2444, %v2583
      %v2613 = vadd.f32 %v2445, %v2588
      %v2614 = vadd.f32 %v2446, %v2591
      %v2615 = vadd.f32 %v2447, %v2596
      %v2616 = vadd.f32 %v2448, %v2599
      %v2617 = vadd.f32 %v2449, %v2604
      %v2618 = vld [vmem:[%s197 + $0x20] sm:$0xc]
      %v2619 = vld [vmem:[%s197 + $0x40] sm:$0x7]
      %s2620 = scalar_lea.vmem %s1, 896
      %v2621 = vld [vmem:[%s2620] sm:$0xf]
      %v2622 = vld [vmem:[%s2620 + $0x4] sm:$0xf]
      %v2623 = vld [vmem:[%s2620 + $0x8] sm:$0xf]
      %v2624 = vld [vmem:[%s2620 + $0xc] sm:$0xf]
      %v2625 = vld [vmem:[%s2620 + $0x10] sm:$0xf]
      %v2626 = vld [vmem:[%s2620 + $0x14] sm:$0xf]
      %v2627 = vld [vmem:[%s2620 + $0x18] sm:$0xf]
      %v2628 = vld [vmem:[%s2620 + $0x1c] sm:$0xf]
      %v2629 = vld [vmem:[%s2620 + $0x20] sm:$0xf]
      %v2630 = vld [vmem:[%s2620 + $0x24] sm:$0xf]
      %v2631 = vld [vmem:[%s2620 + $0x28] sm:$0xf]
      %v2632 = vld [vmem:[%s2620 + $0x2c] sm:$0xf]
      %v2633 = vld [vmem:[%s2620 + $0x30] sm:$0xf]
      %v2634 = vld [vmem:[%s2620 + $0x34] sm:$0xf]
      %v2635 = vld [vmem:[%s2620 + $0x38] sm:$0xf]
      %v2636 = vld [vmem:[%s2620 + $0x3c] sm:$0xf]
      %v2639 = vunpack.c.l.b16 %v2618
      %v2640 = vunpack.c.l.b16 %v2619
      %v2641 = vpack.c.b16 %v2303, %v2639
      %v2642 = vpack.c.b16 %v2640, %v2640
      %v2643 = vrot.slane %v2641, 2
      %v2644 = vrot.slane %v2312, 2
      %v2645 = vsel %vm566, %v2643, %v2644
      %v2646 = vrot.slane %v2313, 2
      %v2647 = vsel %vm566, %v2644, %v2646
      %v2648 = vrot.slane %v2314, 2
      %v2649 = vsel %vm566, %v2646, %v2648
      %v2650 = vrot.slane %v2642, 2
      %v2651 = vsel %vm566, %v2648, %v2650
      %v2673 = vunpack.c.l.b16 %v2621
      %v2674 = vunpack.c.l.b16 %v2622
      %v2675 = vunpack.c.l.b16 %v2623
      %v2676 = vunpack.c.l.b16 %v2624
      %v2677 = vunpack.c.l.b16 %v2625
      %v2678 = vunpack.c.l.b16 %v2626
      %v2679 = vunpack.c.l.b16 %v2627
      %v2680 = vunpack.c.l.b16 %v2628
      %v2681 = vunpack.c.l.b16 %v2629
      %v2682 = vunpack.c.l.b16 %v2630
      %v2683 = vunpack.c.l.b16 %v2631
      %v2684 = vunpack.c.l.b16 %v2632
      %v2685 = vunpack.c.l.b16 %v2633
      %v2686 = vunpack.c.l.b16 %v2634
      %v2687 = vunpack.c.l.b16 %v2635
      %v2688 = vunpack.c.l.b16 %v2636
      %v2689 = vpack.c.b16 %v2674, %v2673
      %v2690 = vpack.c.b16 %v2676, %v2675
      %v2691 = vpack.c.b16 %v2678, %v2677
      %v2692 = vpack.c.b16 %v2680, %v2679
      %v2693 = vpack.c.b16 %v2682, %v2681
      %v2694 = vpack.c.b16 %v2684, %v2683
      %v2695 = vpack.c.b16 %v2686, %v2685
      %v2696 = vpack.c.b16 %v2688, %v2687
      %2705 = vmatprep.subr.bf16.mxu0 0
      %2706 = vmatpush1.bf16.msra.mxu0 %v2689
      %2707 = vmatprep.subr.bf16.mxu0 0
      %2708 = vmatpush1.bf16.msra.mxu0 %v2690
      %2709 = vmatprep.subr.bf16.mxu0 0
      %2710 = vmatpush1.bf16.msra.mxu0 %v2691
      %2711 = vmatprep.subr.bf16.mxu0 0
      %2712 = vmatpush1.bf16.msra.mxu0 %v2692
      %2713 = vmatprep.subr.bf16.mxu0 0
      %2714 = vmatpush1.bf16.msra.mxu0 %v2693
      %2715 = vmatprep.subr.bf16.mxu0 0
      %2716 = vmatpush1.bf16.msra.mxu0 %v2694
      %2717 = vmatprep.subr.bf16.mxu0 0
      %2718 = vmatpush1.bf16.msra.mxu0 %v2695
      %2719 = vmatprep.subr.bf16.mxu0 0
      %2720 = vmatpush1.bf16.msra.mxu0 %v2696
      %2721 = vmatprep.subr.bf16.mxu0 0
      %2722 = vmatpush1.bf16.msra.mxu0 0
      %2723 = vmatprep.subr.bf16.mxu0 0
      %2724 = vmatpush1.bf16.msra.mxu0 0
      %2725 = vmatprep.subr.bf16.mxu0 0
      %2726 = vmatpush1.bf16.msra.mxu0 0
      %2727 = vmatprep.subr.bf16.mxu0 0
      %2728 = vmatpush1.bf16.msra.mxu0 0
      %2729 = vmatprep.subr.bf16.mxu0 0
      %2730 = vmatpush1.bf16.msra.mxu0 0
      %2731 = vmatprep.subr.bf16.mxu0 0
      %2732 = vmatpush1.bf16.msra.mxu0 0
      %2733 = vmatprep.subr.bf16.mxu0 0
      %2734 = vmatpush1.bf16.msra.mxu0 0
      %2735 = vmatprep.subr.bf16.mxu0 0
      %2736 = vmatpush1.bf16.msra.mxu0 0
      %2737 = vmatprep.mubr.bf16.mxu0 0
      %2738 = vmatmul.mubr.bf16.gmra.mrb[0].mxu0 %v2645
      %v2739 = vpop.f32.mrb[0].mxu0
      %v2740 = vadd.f32 0.0, %v2739
      %v2741 = vpop.f32.mrb[0].mxu0
      %v2742 = vpop.f32.mrb[0].mxu0
      %v2743 = vadd.f32 0.0, %v2742
      %v2744 = vpop.f32.mrb[0].mxu0
      %2745 = vmatprep.mubr.bf16.mxu0 0
      %2746 = vmatmul.mubr.bf16.gmra.mrb[0].mxu0 %v2647
      %v2747 = vpop.f32.mrb[0].mxu0
      %v2748 = vadd.f32 0.0, %v2747
      %v2749 = vpop.f32.mrb[0].mxu0
      %v2750 = vpop.f32.mrb[0].mxu0
      %v2751 = vadd.f32 0.0, %v2750
      %v2752 = vpop.f32.mrb[0].mxu0
      %2753 = vmatprep.mubr.bf16.mxu0 0
      %2754 = vmatmul.mubr.bf16.gmra.mrb[0].mxu0 %v2649
      %v2755 = vpop.f32.mrb[0].mxu0
      %v2756 = vadd.f32 0.0, %v2755
      %v2757 = vpop.f32.mrb[0].mxu0
      %v2758 = vpop.f32.mrb[0].mxu0
      %v2759 = vadd.f32 0.0, %v2758
      %v2760 = vpop.f32.mrb[0].mxu0
      %2761 = vmatprep.mubr.bf16.mxu0 0
      %2762 = vmatmul.mubr.bf16.gmra.mrb[0].mxu0 %v2651
      %v2763 = vpop.f32.mrb[0].mxu0
      %v2764 = vadd.f32 0.0, %v2763
      %v2765 = vpop.f32.mrb[0].mxu0
      %v2766 = vpop.f32.mrb[0].mxu0
      %v2767 = vadd.f32 0.0, %v2766
      %v2768 = vpop.f32.mrb[0].mxu0
      %2769 = vmatprep.mubr.bf16.mxu0 0
      %2770 = vmatmul.mubr.bf16.gmra.mrb[0].mxu0 %v2650
      %v2771 = vpop.f32.mrb[0].mxu0
      %v2772 = vadd.f32 0.0, %v2771
      %v2773 = vpop.f32.mrb[0].mxu0
      %v2774 = vpop.f32.mrb[0].mxu0
      %v2775 = vpop.f32.mrb[0].mxu0
      %2776 = vdwg.mxu0
      %v2777 = vadd.f32 %v2609, %v2740
      %v2778 = vadd.f32 %v2610, %v2743
      %v2779 = vadd.f32 %v2611, %v2748
      %v2780 = vadd.f32 %v2612, %v2751
      %v2781 = vadd.f32 %v2613, %v2756
      %v2782 = vadd.f32 %v2614, %v2759
      %v2783 = vadd.f32 %v2615, %v2764
      %v2784 = vadd.f32 %v2616, %v2767
      %v2785 = vadd.f32 %v2617, %v2772
      %vm2795 = vcmask 1046528
      %v2796 = vrot.slane %v2777, 1
      %v2797 = vrot.slane %v2778, 1
      %v2798 = vsel %vm2795, %v2796, %v2797
      %v2799 = vrot.slane %v2779, 1
      %v2800 = vsel %vm2795, %v2797, %v2799
      %v2801 = vrot.slane %v2780, 1
      %v2802 = vsel %vm2795, %v2799, %v2801
      %v2803 = vrot.slane %v2781, 1
      %v2804 = vsel %vm2795, %v2801, %v2803
      %v2805 = vrot.slane %v2782, 1
      %v2806 = vsel %vm2795, %v2803, %v2805
      %v2807 = vrot.slane %v2783, 1
      %v2808 = vsel %vm2795, %v2805, %v2807
      %v2809 = vrot.slane %v2784, 1
      %v2810 = vsel %vm2795, %v2807, %v2809
      %v2811 = vrot.slane %v2785, 1
      %v2812 = vsel %vm2795, %v2809, %v2811
      %2813 = vrot.lane.b32.xlu0 %v2798, 64
      %v2814 = vpop.permute.xlu0 %2813
      %2815 = vrot.lane.b32.xlu0 %v2800, 64
      %v2816 = vpop.permute.xlu0 %2815
      %2817 = vrot.lane.b32.xlu0 %v2802, 64
      %v2818 = vpop.permute.xlu0 %2817
      %2819 = vrot.lane.b32.xlu0 %v2804, 64
      %v2820 = vpop.permute.xlu0 %2819
      %2821 = vrot.lane.b32.xlu0 %v2806, 64
      %v2822 = vpop.permute.xlu0 %2821
      %2823 = vrot.lane.b32.xlu0 %v2808, 64
      %v2824 = vpop.permute.xlu0 %2823
      %2825 = vrot.lane.b32.xlu0 %v2810, 64
      %v2826 = vpop.permute.xlu0 %2825
      %2827 = vrot.lane.b32.xlu0 %v2812, 64
      %v2828 = vpop.permute.xlu0 %2827
      %v2837 = vadd.f32 %v2777, %v2814
      %v2838 = vadd.f32 %v2778, %v2816
      %v2839 = vadd.f32 %v2779, %v2818
      %v2840 = vadd.f32 %v2780, %v2820
      %v2841 = vadd.f32 %v2781, %v2822
      %v2842 = vadd.f32 %v2782, %v2824
      %v2843 = vadd.f32 %v2783, %v2826
      %v2844 = vadd.f32 %v2784, %v2828
      %v2845 = vld [vmem:[%s2] sm:$0x1]
      %v2846 = vlaneseq
      %v2847 = vshrl.u32 %v2846, 7
      %v2848 = vsub.s32 0, %v2847
      %v2849 = vrot.slane %v2845, %v2848
      %v2850 = vadd.f32 %v2837, %v2849
      %v2851 = vadd.f32 %v2838, %v2849
      %v2852 = vadd.f32 %v2839, %v2849
      %v2853 = vadd.f32 %v2840, %v2849
      %v2854 = vadd.f32 %v2841, %v2849
      %v2855 = vadd.f32 %v2842, %v2849
      %v2856 = vadd.f32 %v2843, %v2849
      %v2857 = vadd.f32 %v2844, %v2849
      %v2858 = vmax.f32 %v2850, 0.0
      %v2859 = vmax.f32 %v2851, 0.0
      %v2860 = vmax.f32 %v2852, 0.0
      %v2861 = vmax.f32 %v2853, 0.0
      %v2862 = vmax.f32 %v2854, 0.0
      %v2863 = vmax.f32 %v2855, 0.0
      %v2864 = vmax.f32 %v2856, 0.0
      %v2865 = vmax.f32 %v2857, 0.0
      %v2866 = vld [vmem:[%s2 + $0x1] sm:$0x1]
      %v2867 = vlaneseq
      %v2868 = vshrl.u32 %v2867, 7
      %v2869 = vsub.s32 0, %v2868
      %v2870 = vrot.slane %v2866, %v2869
      %v2871 = vmul.f32 %v2858, %v2870
      %v2872 = vmul.f32 %v2859, %v2870
      %v2873 = vmul.f32 %v2860, %v2870
      %v2874 = vmul.f32 %v2861, %v2870
      %v2875 = vmul.f32 %v2862, %v2870
      %v2876 = vmul.f32 %v2863, %v2870
      %v2877 = vmul.f32 %v2864, %v2870
      %v2878 = vmul.f32 %v2865, %v2870
      %v2879 = vld [vmem:[%s2 + $0x2] sm:$0x1]
      %v2880 = vlaneseq
      %v2881 = vshrl.u32 %v2880, 7
      %v2882 = vsub.s32 0, %v2881
      %v2883 = vrot.slane %v2879, %v2882
      %v2884 = vadd.f32 %v2871, %v2883
      %v2885 = vadd.f32 %v2872, %v2883
      %v2886 = vadd.f32 %v2873, %v2883
      %v2887 = vadd.f32 %v2874, %v2883
      %v2888 = vadd.f32 %v2875, %v2883
      %v2889 = vadd.f32 %v2876, %v2883
      %v2890 = vadd.f32 %v2877, %v2883
      %v2891 = vadd.f32 %v2878, %v2883
      %v2892 = vpack.c.bf16 %v2885, %v2884
      %v2893 = vpack.c.bf16 %v2887, %v2886
      %v2894 = vpack.c.bf16 %v2889, %v2888
      %v2895 = vpack.c.bf16 %v2891, %v2890
      %v2900 = vunpack.c.l.b16 %v2892
      %v2901 = vunpack.c.h.b16 %v2892
      %v2902 = vunpack.c.l.b16 %v2893
      %v2903 = vunpack.c.h.b16 %v2893
      %v2904 = vunpack.c.l.b16 %v2894
      %v2905 = vunpack.c.h.b16 %v2894
      %v2906 = vunpack.c.l.b16 %v2895
      %v2907 = vunpack.c.h.b16 %v2895
      %v2908 = vpack.c.b16 %v2900, %v2900
      %v2909 = vpack.c.b16 %v2901, %v2901
      %v2910 = vpack.c.b16 %v2902, %v2902
      %v2911 = vpack.c.b16 %v2903, %v2903
      %v2912 = vpack.c.b16 %v2904, %v2904
      %v2913 = vpack.c.b16 %v2905, %v2905
      %v2914 = vpack.c.b16 %v2906, %v2906
      %v2915 = vpack.c.b16 %v2907, %v2907
      %vm2924 = vcmask 519168
      %2925 = vst.msk [vmem:[%s206] sm:$0xf] %vm2924, %v2908
      %2926 = vst.msk [vmem:[%s206 + $0x4] sm:$0xf] %vm2924, %v2909
      %2927 = vst.msk [vmem:[%s206 + $0x8] sm:$0xf] %vm2924, %v2910
      %2928 = vst.msk [vmem:[%s206 + $0xc] sm:$0xf] %vm2924, %v2911
      %2929 = vst.msk [vmem:[%s206 + $0x10] sm:$0xf] %vm2924, %v2912
      %2930 = vst.msk [vmem:[%s206 + $0x14] sm:$0xf] %vm2924, %v2913
      %2931 = vst.msk [vmem:[%s206 + $0x18] sm:$0xf] %vm2924, %v2914
      %2932 = vst.msk [vmem:[%s206 + $0x1c] sm:$0xf] %vm2924, %v2915
      %p2933 = scmp.lt.s32.totalorder %s18, 1
      %s2934 = scalar_select %p2933, %s18, 1
      %p2935 = scmp.lt.s32.totalorder %s19, 0
      %s2936 = scalar_select %p2935, %s19, 0
      %s2937 = smul.addr %s2936, 8
      %s2938 = smul.addr %s2934, 8
      %s2939 = sadd.s32 %s2937, %s2938
      %s2940 = smul.addr %s2939, 4
      %s2941 = scalar_lea.vmem %s3, %s2940
      // Predicated region
      $region33: #{scale2_forward.9} parent=31 // pred_check
        %p2942 = pneg %p116
      $region34: #{scale2_forward.9} parent=31 // pred_check_branch
        %2944 = sbr.rel (%p2942) target = $region36
      $region35: #{scale2_forward.9} parent=31 // pred_region
        _
      $region36: #{scale2_forward.9} parent=31 // pred_fallthru
        _
    $region32: #{scale2_forward.9} parent=5 // pred_fallthru
      _
    %p2945 = scmp.le.s32.totalorder 2, %s9
    // Predicated region
    $region37: #{scale2_forward.9} parent=5 // pred_check
      %p2946 = pneg %p2945
    $region38: #{scale2_forward.9} parent=5 // pred_check_branch
      %2948 = sbr.rel (%p2946) target = $region40
    $region39: #{scale2_forward.9} parent=5 // pred_region
      %s2949 = ssub.s32 %s9, 2
      // Predicated region
      $region41: #{scale2_forward.9} parent=39 // pred_check
        %p2950 = pneg %p122
      $region42: #{scale2_forward.9} parent=39 // pred_check_branch
        %2952 = sbr.rel (%p2950) target = $region44
      $region43: #{scale2_forward.9} parent=39 // pred_region
        %p2953 = scmp.lt.s32.totalorder %s20, 1
        %s2954 = scalar_select %p2953, %s20, 1
        %p2955 = scmp.lt.s32.totalorder %s21, 0
        %s2956 = scalar_select %p2955, %s21, 0
        %s2957 = smul.addr %s2956, 8
        %s2958 = smul.addr %s2954, 8
        %s2959 = sadd.s32 %s2957, %s2958
        %s2960 = smul.addr %s2959, 4
        %s2961 = scalar_lea.vmem %s3, %s2960
      $region44: #{scale2_forward.9} parent=39 // pred_fallthru
        _
    $region40: #{scale2_forward.9} parent=5 // pred_fallthru
      _
  $region6: #{scale2_forward.9} parent=0 // loop_footer
    %s13 = sadd.s32 1, %s9
  $region7: #{scale2_forward.9} parent=0 // loop_footer_branch
    %8 = sbr.rel target = $region3
  $region8: #{scale2_forward.9} parent=0 // loop_exit
    _

// kernel: scale2_forward.13
$region0: #{scale2_forward.13}
  #allocation0 [shape = 'u32[]', space=smem, size = 0x4, offset = 0x4, fixed_abs, tag = 'smem constant byte address 0x4 - core index']
  #allocation1 [shape = 'u32[144,128]{1,0:T(1,128)}', space=vmem, size = 0x12000, scoped, tag = 'internal scratch']
  %s0 = inlined_call_operand.vmem [shape: f32[2,4,4], index: 0, kind: input, shape index: {}]
  %s1 = inlined_call_operand.vmem [shape: f32[8,4], index: 1, kind: input, shape index: {}]
  %s2 = inlined_call_operand.vmem [shape: f32[4,8], index: 2, kind: input, shape index: {}]
  %s3 = inlined_call_operand.hbm [shape: f32[2,8,8], index: 3, kind: output, shape index: {}]
  %s4 = sld [smem:[#allocation0]]
  $region45: #{scale2_forward.13} parent=0
    _
  %s6 = ssub.s32 1, %s4
  %s7 = scalar_select 0, %s6, %s4
  $region1: #{scale2_forward.13} parent=0
    #allocation2 [shape = 'u8[8192]{0}', space=vmem, size = 0x2000, scoped, tag = 'output window, operand 0']
    #allocation3 [shape = 's32[2]{0}', space=sflag, size = 0x8, scoped, tag = 'scoped memory for scale2_forward.13']
    %8 = vsyncpa [#allocation3], 0
    %s9 = scalar_lea.sflag [#allocation3], 1
    %10 = vsyncpa %s9, 0
    loop: start=0, step=1, limit=4
    $region2: #{scale2_forward.13} parent=1 // loop_pre_header
      _
    $region3: #{scale2_forward.13} parent=1 // loop_header
      %s12 = sphi 0, %s16
      %p13 = scmp.ge.s32.totalorder %s12, 4
      %s22 = sphi 0, %s24
      %s25 = sphi 0, %s22
      %s26 = sphi 0, %s25
      %s42 = sphi 0, %s26
      %s46 = sphi 0, %s46
      %s48 = sphi 0, %s46
      %s49 = sphi 0, %s48
      %s63 = sphi 0, %s49
      %s67 = sphi 0, %s67
      %s69 = sphi 0, %s67
      %s70 = sphi 0, %s69
      %s84 = sphi 0, %s70
      %s90 = sphi 0, %s92
      %s93 = sphi 0, %s90
      %s94 = sphi 0, %s93
      %s110 = sphi 0, %s94
    $region4: #{scale2_forward.13} parent=1 // loop_header_branch
      %15 = sbr.rel (%p13) target = $region8
    $region5: #{scale2_forward.13} parent=1 // loop_body
      %s17 = ssub.s32 %s12, 1
      %s18 = ssub.s32 %s12, 2
      %s19 = sadd.s32 %s12, 1
      %s20 = ssub.s32 %s12, %s19
      %p21 = scmp.eq.s32.totalorder %s20, 0
      %s23 = sadd.s32 %s22, 1
      %s24 = scalar_select %p21, %s22, %s23
      %p27 = pneg %p21
      %p28 = scmp.eq.s32.totalorder %s12, 1
      %p29 = por %p27, %p28
      %p30 = scmp.ne.s32.totalorder %s22, %s25
      %p31 = scmp.eq.s32.totalorder %s12, 0
      %p32 = por %p30, %p31
      %p33 = scmp.ne.s32.totalorder %s22, %s25
      %p34 = scmp.eq.s32.totalorder %s17, 1
      %p35 = por %p33, %p34
      %p36 = scmp.ne.s32.totalorder %s25, %s26
      %p37 = scmp.eq.s32.totalorder %s17, 0
      %p38 = por %p36, %p37
      %p39 = scmp.ne.s32.totalorder %s25, %s26
      %p40 = scmp.eq.s32.totalorder %s18, 1
      %p41 = por %p39, %p40
      %p43 = scmp.ne.s32.totalorder %s26, %s42
      %p44 = scmp.eq.s32.totalorder %s18, 0
      %p45 = por %p43, %p44
      %s47 = sadd.s32 %s46, 1
      %p50 = scmp.eq.s32.totalorder %s12, 1
      %p51 = scmp.ne.s32.totalorder %s46, %s48
      %p52 = scmp.eq.s32.totalorder %s12, 0
      %p53 = por %p51, %p52
      %p54 = scmp.ne.s32.totalorder %s46, %s48
      %p55 = scmp.eq.s32.totalorder %s17, 1
      %p56 = por %p54, %p55
      %p57 = scmp.ne.s32.totalorder %s48, %s49
      %p58 = scmp.eq.s32.totalorder %s17, 0
      %p59 = por %p57, %p58
      %p60 = scmp.ne.s32.totalorder %s48, %s49
      %p61 = scmp.eq.s32.totalorder %s18, 1
      %p62 = por %p60, %p61
      %p64 = scmp.ne.s32.totalorder %s49, %s63
      %p65 = scmp.eq.s32.totalorder %s18, 0
      %p66 = por %p64, %p65
      %s68 = sadd.s32 %s67, 1
      %p71 = scmp.eq.s32.totalorder %s12, 1
      %p72 = scmp.ne.s32.totalorder %s67, %s69
      %p73 = scmp.eq.s32.totalorder %s12, 0
      %p74 = por %p72, %p73
      %p75 = scmp.ne.s32.totalorder %s67, %s69
      %p76 = scmp.eq.s32.totalorder %s17, 1
      %p77 = por %p75, %p76
      %p78 = scmp.ne.s32.totalorder %s69, %s70
      %p79 = scmp.eq.s32.totalorder %s17, 0
      %p80 = por %p78, %p79
      %p81 = scmp.ne.s32.totalorder %s69, %s70
      %p82 = scmp.eq.s32.totalorder %s18, 1
      %p83 = por %p81, %p82
      %p85 = scmp.ne.s32.totalorder %s70, %s84
      %p86 = scmp.eq.s32.totalorder %s18, 0
      %p87 = por %p85, %p86
      %s88 = ssub.s32 %s12, %s19
      %p89 = scmp.eq.s32.totalorder %s88, 0
      %s91 = sadd.s32 %s90, 1
      %s92 = scalar_select %p89, %s90, %s91
      %p95 = pneg %p89
      %p96 = scmp.eq.s32.totalorder %s12, 1
      %p97 = por %p95, %p96
      %p98 = scmp.ne.s32.totalorder %s90, %s93
      %p99 = scmp.eq.s32.totalorder %s12, 0
      %p100 = por %p98, %p99
      %p101 = scmp.ne.s32.totalorder %s90, %s93
      %p102 = scmp.eq.s32.totalorder %s17, 1
      %p103 = por %p101, %p102
      %p104 = scmp.ne.s32.totalorder %s93, %s94
      %p105 = scmp.eq.s32.totalorder %s17, 0
      %p106 = por %p104, %p105
      %p107 = scmp.ne.s32.totalorder %s93, %s94
      %p108 = scmp.eq.s32.totalorder %s18, 1
      %p109 = por %p107, %p108
      %p111 = scmp.ne.s32.totalorder %s94, %s110
      %p112 = scmp.eq.s32.totalorder %s18, 0
      %p113 = por %p111, %p112
      %p114 = scmp.le.s32.totalorder 1, %s12
      %p115 = scmp.lt.s32.totalorder %s12, 3
      %p116 = pnand %p114, %p115
      %p117 = pneg %p116
      // Predicated region
      $region9: #{scale2_forward.13} parent=5 // pred_check
        _
      $region10: #{scale2_forward.13} parent=5 // pred_check_branch
        %119 = sbr.rel (%p116) target = $region12
      $region11: #{scale2_forward.13} parent=5 // pred_region
        %s120 = ssub.s32 %s12, 1
        // Predicated region
        $region13: #{scale2_forward.13} parent=11 // pred_check
          %p121 = pneg %p59
        $region14: #{scale2_forward.13} parent=11 // pred_check_branch
          %123 = sbr.rel (%p121) target = $region16
        $region15: #{scale2_forward.13} parent=11 // pred_region
          _
        $region16: #{scale2_forward.13} parent=11 // pred_fallthru
          _
        // Predicated region
        $region17: #{scale2_forward.13} parent=11 // pred_check
          %p124 = pneg %p80
        $region18: #{scale2_forward.13} parent=11 // pred_check_branch
          %126 = sbr.rel (%p124) target = $region20
        $region19: #{scale2_forward.13} parent=11 // pred_region
          _
        $region20: #{scale2_forward.13} parent=11 // pred_fallthru
          _
      $region12: #{scale2_forward.13} parent=5 // pred_fallthru
        _
      %p127 = scmp.lt.s32.totalorder %s12, 2
      // Predicated region
      $region21: #{scale2_forward.13} parent=5 // pred_check
        %p128 = pneg %p127
      $region22: #{scale2_forward.13} parent=5 // pred_check_branch
        %130 = sbr.rel (%p128) target = $region24
      $region23: #{scale2_forward.13} parent=5 // pred_region
        // Predicated region
        $region25: #{scale2_forward.13} parent=23 // pred_check
          %p131 = pneg %p32
        $region26: #{scale2_forward.13} parent=23 // pred_check_branch
          %133 = sbr.rel (%p131) target = $region28
        $region27: #{scale2_forward.13} parent=23 // pred_region
          %p134 = scmp.lt.s32.totalorder %s12, 1
          %s135 = scalar_select %p134, %s12, 1
          %s136 = smul.addr %s135, 4
          %s137 = scalar_lea.vmem %s0, %s136
        $region28: #{scale2_forward.13} parent=23 // pred_fallthru
          _
      $region24: #{scale2_forward.13} parent=5 // pred_fallthru
        _
      %p138 = scmp.le.s32.totalorder 1, %s12
      %p139 = scmp.lt.s32.totalorder %s12, 3
      %p140 = pnand %p138, %p139
      %p141 = pneg %p140
      // Predicated region
      $region29: #{scale2_forward.13} parent=5 // pred_check
        _
      $region30: #{scale2_forward.13} parent=5 // pred_check_branch
        %143 = sbr.rel (%p140) target = $region32
      $region31: #{scale2_forward.13} parent=5 // pred_region
        %s144 = ssub.s32 %s12, 1
        %p145 = scmp.lt.s32.totalorder %s17, 1
        %s146 = scalar_select %p145, %s17, 1
        %s147 = smul.addr %s146, 4
        %s148 = scalar_lea.vmem %s0, %s147
        %p149 = pneg %p38
        %p150 = pneg %p35
        %p151 = pneg %p59
        %p152 = pneg %p56
        %p153 = pneg %p80
        %p154 = pneg %p77
        %p155 = pneg %p106
        %p156 = pneg %p103
        %s157 = sand.u32 %s93, 1
        %s158 = scalar_lea.sflag [#allocation3], %s157
        %s159 = sand.u32 %s93, 1
        %s160 = smul.addr %s159, 8
        %s161 = scalar_lea.vmem [#allocation2], %s160
        %p162 = scmp.lt.s32.totalorder %s17, 1
        %s163 = scalar_select %p162, %s17, 1
        %s164 = smul.addr %s163, 4
        %s165 = scalar_lea.vmem %s0, %s164
        %v166 = vld [vmem:[%s165] sm:$0xf]
        %v167 = vld [vmem:[%s2] sm:$0xf]
        %vm168 = vcmask 31744
        %v170 = vsel %vm168, %v166, 0
        %vm172 = vcmask 1043456
        %v174 = vsel %vm172, %v167, 0
        %176 = vmatprep.subr.mxu0 0.0
        %177 = vmatpush1.msra.mxu0 %v174
        %178 = vmatprep.subr.mxu0 0.0
        %179 = vmatpush1.msra.mxu0 0.0
        %180 = vmatprep.subr.mxu0 0.0
        %181 = vmatpush1.msra.mxu0 0.0
        %182 = vmatprep.subr.mxu0 0.0
        %183 = vmatpush1.msra.mxu0 0.0
        %184 = vmatprep.subr.mxu0 0.0
        %185 = vmatpush1.msra.mxu0 0.0
        %186 = vmatprep.subr.mxu0 0.0
        %187 = vmatpush1.msra.mxu0 0.0
        %188 = vmatprep.subr.mxu0 0.0
        %189 = vmatpush1.msra.mxu0 0.0
        %190 = vmatprep.subr.mxu0 0.0
        %191 = vmatpush1.msra.mxu0 0.0
        %192 = vmatprep.subr.mxu0 0.0
        %193 = vmatpush1.msra.mxu0 0.0
        %194 = vmatprep.subr.mxu0 0.0
        %195 = vmatpush1.msra.mxu0 0.0
        %196 = vmatprep.subr.mxu0 0.0
        %197 = vmatpush1.msra.mxu0 0.0
        %198 = vmatprep.subr.mxu0 0.0
        %199 = vmatpush1.msra.mxu0 0.0
        %200 = vmatprep.subr.mxu0 0.0
        %201 = vmatpush1.msra.mxu0 0.0
        %202 = vmatprep.subr.mxu0 0.0
        %203 = vmatpush1.msra.mxu0 0.0
        %204 = vmatprep.subr.mxu0 0.0
        %205 = vmatpush1.msra.mxu0 0.0
        %206 = vmatprep.subr.mxu0 0.0
        %207 = vmatpush1.msra.mxu0 0.0
        %208 = vmatprep.subr.mxu0 0.0
        %209 = vmatpush1.msra.mxu0 0.0
        %210 = vmatprep.subr.mxu0 0.0
        %211 = vmatpush1.msra.mxu0 0.0
        %212 = vmatprep.subr.mxu0 0.0
        %213 = vmatpush1.msra.mxu0 0.0
        %214 = vmatprep.subr.mxu0 0.0
        %215 = vmatpush1.msra.mxu0 0.0
        %216 = vmatprep.subr.mxu0 0.0
        %217 = vmatpush1.msra.mxu0 0.0
        %218 = vmatprep.subr.mxu0 0.0
        %219 = vmatpush1.msra.mxu0 0.0
        %220 = vmatprep.subr.mxu0 0.0
        %221 = vmatpush1.msra.mxu0 0.0
        %222 = vmatprep.subr.mxu0 0.0
        %223 = vmatpush1.msra.mxu0 0.0
        %224 = vmatprep.subr.mxu0 0.0
        %225 = vmatpush1.msra.mxu0 0.0
        %226 = vmatprep.subr.mxu0 0.0
        %227 = vmatpush1.msra.mxu0 0.0
        %228 = vmatprep.subr.mxu0 0.0
        %229 = vmatpush1.msra.mxu0 0.0
        %230 = vmatprep.subr.mxu0 0.0
        %231 = vmatpush1.msra.mxu0 0.0
        %232 = vmatprep.subr.mxu0 0.0
        %233 = vmatpush1.msra.mxu0 0.0
        %234 = vmatprep.subr.mxu0 0.0
        %235 = vmatpush1.msra.mxu0 0.0
        %236 = vmatprep.subr.mxu0 0.0
        %237 = vmatpush1.msra.mxu0 0.0
        %238 = vmatprep.subr.mxu0 0.0
        %239 = vmatpush1.msra.mxu0 0.0
        %240 = vmatprep.mubr.f32.mxu0 0.0
        %241 = vmatmul.mubr.f32.gmra.mrb[0].mxu0 %v170
        %v242 = vpop.f32.mrb[0].mxu0
        %v243 = vadd.f32 0.0, %v242
        %v244 = vpop.f32.mrb[0].mxu0
        %245 = vdwg.mxu0
        %v246 = vld [vmem:[%s1] sm:$0xff]
        %v248 = vsel %vm168, %v246, 0
        %v251 = vsel %vm172, %v243, 0
        %253 = vmatprep.subr.mxu0 0.0
        %254 = vmatpush1.msra.mxu0 %v251
        %255 = vmatprep.subr.mxu0 0.0
        %256 = vmatpush1.msra.mxu0 0.0
        %257 = vmatprep.subr.mxu0 0.0
        %258 = vmatpush1.msra.mxu0 0.0
        %259 = vmatprep.subr.mxu0 0.0
        %260 = vmatpush1.msra.mxu0 0.0
        %261 = vmatprep.subr.mxu0 0.0
        %262 = vmatpush1.msra.mxu0 0.0
        %263 = vmatprep.subr.mxu0 0.0
        %264 = vmatpush1.msra.mxu0 0.0
        %265 = vmatprep.subr.mxu0 0.0
        %266 = vmatpush1.msra.mxu0 0.0
        %267 = vmatprep.subr.mxu0 0.0
        %268 = vmatpush1.msra.mxu0 0.0
        %269 = vmatprep.subr.mxu0 0.0
        %270 = vmatpush1.msra.mxu0 0.0
        %271 = vmatprep.subr.mxu0 0.0
        %272 = vmatpush1.msra.mxu0 0.0
        %273 = vmatprep.subr.mxu0 0.0
        %274 = vmatpush1.msra.mxu0 0.0
        %275 = vmatprep.subr.mxu0 0.0
        %276 = vmatpush1.msra.mxu0 0.0
        %277 = vmatprep.subr.mxu0 0.0
        %278 = vmatpush1.msra.mxu0 0.0
        %279 = vmatprep.subr.mxu0 0.0
        %280 = vmatpush1.msra.mxu0 0.0
        %281 = vmatprep.subr.mxu0 0.0
        %282 = vmatpush1.msra.mxu0 0.0
        %283 = vmatprep.subr.mxu0 0.0
        %284 = vmatpush1.msra.mxu0 0.0
        %285 = vmatprep.subr.mxu0 0.0
        %286 = vmatpush1.msra.mxu0 0.0
        %287 = vmatprep.subr.mxu0 0.0
        %288 = vmatpush1.msra.mxu0 0.0
        %289 = vmatprep.subr.mxu0 0.0
        %290 = vmatpush1.msra.mxu0 0.0
        %291 = vmatprep.subr.mxu0 0.0
        %292 = vmatpush1.msra.mxu0 0.0
        %293 = vmatprep.subr.mxu0 0.0
        %294 = vmatpush1.msra.mxu0 0.0
        %295 = vmatprep.subr.mxu0 0.0
        %296 = vmatpush1.msra.mxu0 0.0
        %297 = vmatprep.subr.mxu0 0.0
        %298 = vmatpush1.msra.mxu0 0.0
        %299 = vmatprep.subr.mxu0 0.0
        %300 = vmatpush1.msra.mxu0 0.0
        %301 = vmatprep.subr.mxu0 0.0
        %302 = vmatpush1.msra.mxu0 0.0
        %303 = vmatprep.subr.mxu0 0.0
        %304 = vmatpush1.msra.mxu0 0.0
        %305 = vmatprep.subr.mxu0 0.0
        %306 = vmatpush1.msra.mxu0 0.0
        %307 = vmatprep.subr.mxu0 0.0
        %308 = vmatpush1.msra.mxu0 0.0
        %309 = vmatprep.subr.mxu0 0.0
        %310 = vmatpush1.msra.mxu0 0.0
        %311 = vmatprep.subr.mxu0 0.0
        %312 = vmatpush1.msra.mxu0 0.0
        %313 = vmatprep.subr.mxu0 0.0
        %314 = vmatpush1.msra.mxu0 0.0
        %315 = vmatprep.subr.mxu0 0.0
        %316 = vmatpush1.msra.mxu0 0.0
        %317 = vmatprep.mubr.f32.mxu0 0.0
        %318 = vmatmul.mubr.f32.gmra.mrb[0].mxu0 %v248
        %v319 = vpop.f32.mrb[0].mxu0
        %v320 = vadd.f32 0.0, %v319
        %v321 = vpop.f32.mrb[0].mxu0
        %322 = vdwg.mxu0
        %vm323 = vcmask 64512
        %324 = vst.msk [vmem:[%s161] sm:$0xff] %vm323, %v320
        %s325 = sand.u32 %s93, 1
        %s326 = scalar_lea.sflag [#allocation3], %s325
        %s327 = sand.u32 %s93, 1
        %s328 = smul.addr %s327, 8
        %s329 = scalar_lea.vmem [#allocation2], %s328
        // Predicated region
        $region33: #{scale2_forward.13} parent=31 // pred_check
          %p330 = pneg %p103
        $region34: #{scale2_forward.13} parent=31 // pred_check_branch
          %332 = sbr.rel (%p330) target = $region36
        $region35: #{scale2_forward.13} parent=31 // pred_region
          %s334 = ssub.s32 128, 128
          %335 = vsyncadd %s326, %s334
          %s336 = smul.addr %s17, 128
          %s337 = scalar_lea.hbm %s3, %s336
          %s339 = sshll.u32 %s329, 4
          %s340 = int_to_ptr.vmem [resolvable:$true] %s339
          %342 = dma.vmem_to_hbm [thread:$0]  %s340, 128, %s337, %s326
        $region36: #{scale2_forward.13} parent=31 // pred_fallthru
          _
      $region32: #{scale2_forward.13} parent=5 // pred_fallthru
        _
      %p343 = scmp.le.s32.totalorder 2, %s12
      // Predicated region
      $region37: #{scale2_forward.13} parent=5 // pred_check
        %p344 = pneg %p343
      $region38: #{scale2_forward.13} parent=5 // pred_check_branch
        %346 = sbr.rel (%p344) target = $region40
      $region39: #{scale2_forward.13} parent=5 // pred_region
        %s347 = ssub.s32 %s12, 2
        // Predicated region
        $region41: #{scale2_forward.13} parent=39 // pred_check
          %p348 = pneg %p109
        $region42: #{scale2_forward.13} parent=39 // pred_check_branch
          %350 = sbr.rel (%p348) target = $region44
        $region43: #{scale2_forward.13} parent=39 // pred_region
          %s351 = sand.u32 %s94, 1
          %s352 = scalar_lea.sflag [#allocation3], %s351
          %s353 = sand.u32 %s94, 1
          %s354 = smul.addr %s353, 8
          %s355 = scalar_lea.vmem [#allocation2], %s354
          %356 = dma.done %s352, 128
        $region44: #{scale2_forward.13} parent=39 // pred_fallthru
          _
      $region40: #{scale2_forward.13} parent=5 // pred_fallthru
        _
    $region6: #{scale2_forward.13} parent=1 // loop_footer
      %s16 = sadd.s32 1, %s12
    $region7: #{scale2_forward.13} parent=1 // loop_footer_branch
      %11 = sbr.rel target = $region3
    $region8: #{scale2_forward.13} parent=1 // loop_exit
      _
    %357 = vsyncpa [#allocation3], 1
    %s358 = scalar_lea.sflag [#allocation3], 1
    %359 = vsyncpa %s358, 1

// kernel: scale2_forward.12
$region0: #{scale2_forward.12}
  #allocation0 [shape = 'u32[]', space=smem, size = 0x4, offset = 0x4, fixed_abs, tag = 'smem constant byte address 0x4 - core index']
  #allocation1 [shape = 'u32[144,128]{1,0:T(1,128)}', space=vmem, size = 0x12000, scoped, tag = 'internal scratch']
  #allocation2 [shape = 'f32[1,1]{1,0:T(1,128)S(1)}', space=vmem, size = 0x200, scoped, tag = 'scoped memory for scale2_forward.12']
  %s0 = inlined_call_operand.vmem [shape: bf16[2,1,144,64], index: 0, kind: input, shape index: {}]
  %s1 = inlined_call_operand.vmem [shape: f32[25,1,64], index: 1, kind: input, shape index: {}]
  %s2 = inlined_call_operand.<no memory space> [shape: f32[1,1], index: 2, kind: input, shape index: {}]
  %s3 = inlined_call_operand.vmem [shape: f32[2,1,64,1], index: 3, kind: output, shape index: {}]
  %s4 = sld [smem:[#allocation0]]
  $region45: #{scale2_forward.12} parent=0
    _
  %s6 = ssub.s32 1, %s4
  %s7 = scalar_select 0, %s6, %s4
  %v8 = vstv %s2
  %9 = vst [vmem:[#allocation2] sm:$0x1] %v8
  loop: start=0, step=1, limit=4
  $region2: #{scale2_forward.12} parent=0 // loop_pre_header
    _
  $region3: #{scale2_forward.12} parent=0 // loop_header
    %s11 = sphi 0, %s15
    %p12 = scmp.ge.s32.totalorder %s11, 4
    %s18 = sphi 0, %s30
    %s19 = sphi 0, %s26
    %s20 = sphi 0, %s18
    %s21 = sphi 0, %s19
    %s22 = sphi 0, %s20
    %s23 = sphi 0, %s21
    %s35 = sphi 0, %s37
    %s38 = sphi 0, %s35
    %s39 = sphi 0, %s38
    %s55 = sphi 0, %s39
    %s59 = sphi 0, %s59
    %s61 = sphi 0, %s59
    %s62 = sphi 0, %s61
    %s76 = sphi 0, %s62
    %s80 = sphi 0, %s80
    %s82 = sphi 0, %s80
    %s83 = sphi 0, %s82
    %s97 = sphi 0, %s83
    %s105 = sphi 0, %s107
    %s108 = sphi 0, %s105
    %s109 = sphi 0, %s108
    %s125 = sphi 0, %s109
  $region4: #{scale2_forward.12} parent=0 // loop_header_branch
    %14 = sbr.rel (%p12) target = $region8
  $region5: #{scale2_forward.12} parent=0 // loop_body
    %s16 = ssub.s32 %s11, 1
    %s17 = ssub.s32 %s11, 2
    %s24 = sadd.s32 1, %s19
    %p25 = scmp.ge.s32.totalorder %s24, 1
    %s26 = scalar_select %p25, 0, %s24
    %s27 = sadd.s32 1, %s18
    %s28 = scalar_select %p25, %s27, %s18
    %p29 = scmp.ge.s32.totalorder %s28, 2
    %s30 = scalar_select %p29, 0, %s28
    %s31 = ssub.s32 %s18, %s30
    %s32 = ssub.s32 %s19, %s26
    %s33 = sor.u32 %s31, %s32
    %p34 = scmp.eq.s32.totalorder %s33, 0
    %s36 = sadd.s32 %s35, 1
    %s37 = scalar_select %p34, %s35, %s36
    %p40 = pneg %p34
    %p41 = scmp.eq.s32.totalorder %s11, 1
    %p42 = por %p40, %p41
    %p43 = scmp.ne.s32.totalorder %s35, %s38
    %p44 = scmp.eq.s32.totalorder %s11, 0
    %p45 = por %p43, %p44
    %p46 = scmp.ne.s32.totalorder %s35, %s38
    %p47 = scmp.eq.s32.totalorder %s16, 1
    %p48 = por %p46, %p47
    %p49 = scmp.ne.s32.totalorder %s38, %s39
    %p50 = scmp.eq.s32.totalorder %s16, 0
    %p51 = por %p49, %p50
    %p52 = scmp.ne.s32.totalorder %s38, %s39
    %p53 = scmp.eq.s32.totalorder %s17, 1
    %p54 = por %p52, %p53
    %p56 = scmp.ne.s32.totalorder %s39, %s55
    %p57 = scmp.eq.s32.totalorder %s17, 0
    %p58 = por %p56, %p57
    %s60 = sadd.s32 %s59, 1
    %p63 = scmp.eq.s32.totalorder %s11, 1
    %p64 = scmp.ne.s32.totalorder %s59, %s61
    %p65 = scmp.eq.s32.totalorder %s11, 0
    %p66 = por %p64, %p65
    %p67 = scmp.ne.s32.totalorder %s59, %s61
    %p68 = scmp.eq.s32.totalorder %s16, 1
    %p69 = por %p67, %p68
    %p70 = scmp.ne.s32.totalorder %s61, %s62
    %p71 = scmp.eq.s32.totalorder %s16, 0
    %p72 = por %p70, %p71
    %p73 = scmp.ne.s32.totalorder %s61, %s62
    %p74 = scmp.eq.s32.totalorder %s17, 1
    %p75 = por %p73, %p74
    %p77 = scmp.ne.s32.totalorder %s62, %s76
    %p78 = scmp.eq.s32.totalorder %s17, 0
    %p79 = por %p77, %p78
    %s81 = sadd.s32 %s80, 1
    %p84 = scmp.eq.s32.totalorder %s11, 1
    %p85 = scmp.ne.s32.totalorder %s80, %s82
    %p86 = scmp.eq.s32.totalorder %s11, 0
    %p87 = por %p85, %p86
    %p88 = scmp.ne.s32.totalorder %s80, %s82
    %p89 = scmp.eq.s32.totalorder %s16, 1
    %p90 = por %p88, %p89
    %p91 = scmp.ne.s32.totalorder %s82, %s83
    %p92 = scmp.eq.s32.totalorder %s16, 0
    %p93 = por %p91, %p92
    %p94 = scmp.ne.s32.totalorder %s82, %s83
    %p95 = scmp.eq.s32.totalorder %s17, 1
    %p96 = por %p94, %p95
    %p98 = scmp.ne.s32.totalorder %s83, %s97
    %p99 = scmp.eq.s32.totalorder %s17, 0
    %p100 = por %p98, %p99
    %s101 = ssub.s32 %s18, %s30
    %s102 = ssub.s32 %s19, %s26
    %s103 = sor.u32 %s101, %s102
    %p104 = scmp.eq.s32.totalorder %s103, 0
    %s106 = sadd.s32 %s105, 1
    %s107 = scalar_select %p104, %s105, %s106
    %p110 = pneg %p104
    %p111 = scmp.eq.s32.totalorder %s11, 1
    %p112 = por %p110, %p111
    %p113 = scmp.ne.s32.totalorder %s105, %s108
    %p114 = scmp.eq.s32.totalorder %s11, 0
    %p115 = por %p113, %p114
    %p116 = scmp.ne.s32.totalorder %s105, %s108
    %p117 = scmp.eq.s32.totalorder %s16, 1
    %p118 = por %p116, %p117
    %p119 = scmp.ne.s32.totalorder %s108, %s109
    %p120 = scmp.eq.s32.totalorder %s16, 0
    %p121 = por %p119, %p120
    %p122 = scmp.ne.s32.totalorder %s108, %s109
    %p123 = scmp.eq.s32.totalorder %s17, 1
    %p124 = por %p122, %p123
    %p126 = scmp.ne.s32.totalorder %s109, %s125
    %p127 = scmp.eq.s32.totalorder %s17, 0
    %p128 = por %p126, %p127
    %p129 = scmp.le.s32.totalorder 1, %s11
    %p130 = scmp.lt.s32.totalorder %s11, 3
    %p131 = pnand %p129, %p130
    %p132 = pneg %p131
    // Predicated region
    $region9: #{scale2_forward.12} parent=5 // pred_check
      _
    $region10: #{scale2_forward.12} parent=5 // pred_check_branch
      %134 = sbr.rel (%p131) target = $region12
    $region11: #{scale2_forward.12} parent=5 // pred_region
      %s135 = ssub.s32 %s11, 1
      // Predicated region
      $region13: #{scale2_forward.12} parent=11 // pred_check
        %p136 = pneg %p72
      $region14: #{scale2_forward.12} parent=11 // pred_check_branch
        %138 = sbr.rel (%p136) target = $region16
      $region15: #{scale2_forward.12} parent=11 // pred_region
        _
      $region16: #{scale2_forward.12} parent=11 // pred_fallthru
        _
      // Predicated region
      $region17: #{scale2_forward.12} parent=11 // pred_check
        %p139 = pneg %p93
      $region18: #{scale2_forward.12} parent=11 // pred_check_branch
        %141 = sbr.rel (%p139) target = $region20
      $region19: #{scale2_forward.12} parent=11 // pred_region
        _
      $region20: #{scale2_forward.12} parent=11 // pred_fallthru
        _
    $region12: #{scale2_forward.12} parent=5 // pred_fallthru
      _
    %p142 = scmp.lt.s32.totalorder %s11, 2
    // Predicated region
    $region21: #{scale2_forward.12} parent=5 // pred_check
      %p143 = pneg %p142
    $region22: #{scale2_forward.12} parent=5 // pred_check_branch
      %145 = sbr.rel (%p143) target = $region24
    $region23: #{scale2_forward.12} parent=5 // pred_region
      // Predicated region
      $region25: #{scale2_forward.12} parent=23 // pred_check
        %p146 = pneg %p45
      $region26: #{scale2_forward.12} parent=23 // pred_check_branch
        %148 = sbr.rel (%p146) target = $region28
      $region27: #{scale2_forward.12} parent=23 // pred_region
        %p149 = scmp.lt.s32.totalorder %s18, 1
        %s150 = scalar_select %p149, %s18, 1
        %p151 = scmp.lt.s32.totalorder %s19, 0
        %s152 = scalar_select %p151, %s19, 0
        %s153 = smul.addr %s152, 18
        %s154 = smul.addr %s150, 18
        %s155 = sadd.s32 %s153, %s154
        %s156 = smul.addr %s155, 4
        %s157 = scalar_lea.vmem %s0, %s156
      $region28: #{scale2_forward.12} parent=23 // pred_fallthru
        _
    $region24: #{scale2_forward.12} parent=5 // pred_fallthru
      _
    %p158 = scmp.le.s32.totalorder 1, %s11
    %p159 = scmp.lt.s32.totalorder %s11, 3
    %p160 = pnand %p158, %p159
    %p161 = pneg %p160
    // Predicated region
    $region29: #{scale2_forward.12} parent=5 // pred_check
      _
    $region30: #{scale2_forward.12} parent=5 // pred_check_branch
      %163 = sbr.rel (%p160) target = $region32
    $region31: #{scale2_forward.12} parent=5 // pred_region
      %s164 = ssub.s32 %s11, 1
      %p165 = scmp.lt.s32.totalorder %s20, 1
      %s166 = scalar_select %p165, %s20, 1
      %p167 = scmp.lt.s32.totalorder %s21, 0
      %s168 = scalar_select %p167, %s21, 0
      %s169 = smul.addr %s168, 18
      %s170 = smul.addr %s166, 18
      %s171 = sadd.s32 %s169, %s170
      %s172 = smul.addr %s171, 4
      %s173 = scalar_lea.vmem %s0, %s172
      %p174 = pneg %p51
      %p175 = pneg %p48
      %p176 = pneg %p72
      %p177 = pneg %p69
      %p178 = pneg %p93
      %p179 = pneg %p90
      %p180 = pneg %p121
      %p181 = pneg %p118
      %p182 = scmp.lt.s32.totalorder %s20, 1
      %s183 = scalar_select %p182, %s20, 1
      %p184 = scmp.lt.s32.totalorder %s21, 0
      %s185 = scalar_select %p184, %s21, 0
      %s186 = smul.addr %s185, 8
      %s187 = smul.addr %s183, 8
      %s188 = sadd.s32 %s186, %s187
      %s189 = smul.addr %s188, 8
      %s190 = scalar_lea.vmem %s3, %s189
      %p191 = scmp.lt.s32.totalorder %s20, 1
      %s192 = scalar_select %p191, %s20, 1
      %p193 = scmp.lt.s32.totalorder %s21, 0
      %s194 = scalar_select %p193, %s21, 0
      %s195 = smul.addr %s194, 18
      %s196 = smul.addr %s192, 18
      %s197 = sadd.s32 %s195, %s196
      %s198 = smul.addr %s197, 4
      %s199 = scalar_lea.vmem %s0, %s198
      %p200 = scmp.lt.s32.totalorder %s20, 1
      %s201 = scalar_select %p200, %s20, 1
      %p202 = scmp.lt.s32.totalorder %s21, 0
      %s203 = scalar_select %p202, %s21, 0
      %s204 = smul.addr %s203, 8
      %s205 = smul.addr %s201, 8
      %s206 = sadd.s32 %s204, %s205
      %s207 = smul.addr %s206, 8
      %s208 = scalar_lea.vmem %s3, %s207
      %v209 = vld [vmem:[%s199] sm:$0xf]
      %v210 = vld [vmem:[%s199 + $0x4] sm:$0xf]
      %v211 = vld [vmem:[%s199 + $0x8] sm:$0xf]
      %v212 = vld [vmem:[%s199 + $0xc] sm:$0xf]
      %v213 = vld [vmem:[%s199 + $0x10] sm:$0xf]
      %v214 = vld [vmem:[%s199 + $0x14] sm:$0xf]
      %v215 = vld [vmem:[%s199 + $0x18] sm:$0xf]
      %v216 = vld [vmem:[%s199 + $0x1c] sm:$0xf]
      %v217 = vunpack.c.l.bf16 %v209
      %v218 = vunpack.c.l.bf16 %v210
      %v219 = vunpack.c.l.bf16 %v211
      %v220 = vunpack.c.l.bf16 %v212
      %v221 = vunpack.c.l.bf16 %v213
      %v222 = vunpack.c.l.bf16 %v214
      %v223 = vunpack.c.l.bf16 %v215
      %v224 = vunpack.c.l.bf16 %v216
      %v225 = vld [vmem:[%s1] sm:$0x1]
      %v227 = vlaneseq
      %v228 = vshrl.u32 %v227, 7
      %v229 = vsub.s32 0, %v228
      %v230 = vrot.slane %v225, %v229
      %v232 = vmul.f32 %v217, %v230
      %v233 = vmul.f32 %v218, %v230
      %v234 = vmul.f32 %v219, %v230
      %v235 = vmul.f32 %v220, %v230
      %v236 = vmul.f32 %v221, %v230
      %v237 = vmul.f32 %v222, %v230
      %v238 = vmul.f32 %v223, %v230
      %v239 = vmul.f32 %v224, %v230
      %v240 = vadd.f32 %v232, 0.0
      %v241 = vadd.f32 %v233, 0.0
      %v242 = vadd.f32 %v234, 0.0
      %v243 = vadd.f32 %v235, 0.0
      %v244 = vadd.f32 %v236, 0.0
      %v245 = vadd.f32 %v237, 0.0
      %v246 = vadd.f32 %v238, 0.0
      %v247 = vadd.f32 %v239, 0.0
      %v248 = vld [vmem:[%s199 + $0x20] sm:$0x1]
      %v249 = vunpack.c.l.bf16 %v248
      %s250 = scalar_lea.vmem %s1, 1
      %v251 = vld [vmem:[%s250] sm:$0x1]
      %v253 = vlaneseq
      %v254 = vshrl.u32 %v253, 7
      %v255 = vsub.s32 0, %v254
      %v256 = vrot.slane %v251, %v255
      %v258 = vmul.f32 %v217, %v256
      %v259 = vmul.f32 %v218, %v256
      %v260 = vmul.f32 %v219, %v256
      %v261 = vmul.f32 %v220, %v256
      %v262 = vmul.f32 %v221, %v256
      %v263 = vmul.f32 %v222, %v256
      %v264 = vmul.f32 %v223, %v256
      %v265 = vmul.f32 %v224, %v256
      %v266 = vmul.f32 %v249, %v256
      %vm276 = vcmask 1046528
      %v277 = vrot.slane %v258, 1
      %v278 = vrot.slane %v259, 1
      %v279 = vsel %vm276, %v277, %v278
      %v280 = vrot.slane %v260, 1
      %v281 = vsel %vm276, %v278, %v280
      %v282 = vrot.slane %v261, 1
      %v283 = vsel %vm276, %v280, %v282
      %v284 = vrot.slane %v262, 1
      %v285 = vsel %vm276, %v282, %v284
      %v286 = vrot.slane %v263, 1
      %v287 = vsel %vm276, %v284, %v286
      %v288 = vrot.slane %v264, 1
      %v289 = vsel %vm276, %v286, %v288
      %v290 = vrot.slane %v265, 1
      %v291 = vsel %vm276, %v288, %v290
      %v292 = vrot.slane %v266, 1
      %v293 = vsel %vm276, %v290, %v292
      %v302 = vadd.f32 %v240, %v279
      %v303 = vadd.f32 %v241, %v281
      %v304 = vadd.f32 %v242, %v283
      %v305 = vadd.f32 %v243, %v285
      %v306 = vadd.f32 %v244, %v287
      %v307 = vadd.f32 %v245, %v289
      %v308 = vadd.f32 %v246, %v291
      %v309 = vadd.f32 %v247, %v293
      %v310 = vld [vmem:[%s199] sm:$0xe]
      %v311 = vunpack.c.l.bf16 %v310
      %s312 = scalar_lea.vmem %s1, 2
      %v313 = vld [vmem:[%s312] sm:$0x1]
      %v315 = vlaneseq
      %v316 = vshrl.u32 %v315, 7
      %v317 = vsub.s32 0, %v316
      %v318 = vrot.slane %v313, %v317
      %v320 = vmul.f32 %v311, %v318
      %v321 = vmul.f32 %v218, %v318
      %v322 = vmul.f32 %v219, %v318
      %v323 = vmul.f32 %v220, %v318
      %v324 = vmul.f32 %v221, %v318
      %v325 = vmul.f32 %v222, %v318
      %v326 = vmul.f32 %v223, %v318
      %v327 = vmul.f32 %v224, %v318
      %v328 = vmul.f32 %v249, %v318
      %vm338 = vcmask 1045504
      %v339 = vrot.slane %v320, 2
      %v340 = vrot.slane %v321, 2
      %v341 = vsel %vm338, %v339, %v340
      %v342 = vrot.slane %v322, 2
      %v343 = vsel %vm338, %v340, %v342
      %v344 = vrot.slane %v323, 2
      %v345 = vsel %vm338, %v342, %v344
      %v346 = vrot.slane %v324, 2
      %v347 = vsel %vm338, %v344, %v346
      %v348 = vrot.slane %v325, 2
      %v349 = vsel %vm338, %v346, %v348
      %v350 = vrot.slane %v326, 2
      %v351 = vsel %vm338, %v348, %v350
      %v352 = vrot.slane %v327, 2
      %v353 = vsel %vm338, %v350, %v352
      %v354 = vrot.slane %v328, 2
      %v355 = vsel %vm338, %v352, %v354
      %v364 = vadd.f32 %v302, %v341
      %v365 = vadd.f32 %v303, %v343
      %v366 = vadd.f32 %v304, %v345
      %v367 = vadd.f32 %v305, %v347
      %v368 = vadd.f32 %v306, %v349
      %v369 = vadd.f32 %v307, %v351
      %v370 = vadd.f32 %v308, %v353
      %v371 = vadd.f32 %v309, %v355
      %v372 = vld [vmem:[%s199 + $0x20] sm:$0x3]
      %v373 = vunpack.c.l.bf16 %v372
      %s374 = scalar_lea.vmem %s1, 3
      %v375 = vld [vmem:[%s374] sm:$0x1]
      %v377 = vlaneseq
      %v378 = vshrl.u32 %v377, 7
      %v379 = vsub.s32 0, %v378
      %v380 = vrot.slane %v375, %v379
      %v382 = vmul.f32 %v311, %v380
      %v383 = vmul.f32 %v218, %v380
      %v384 = vmul.f32 %v219, %v380
      %v385 = vmul.f32 %v220, %v380
      %v386 = vmul.f32 %v221, %v380
      %v387 = vmul.f32 %v222, %v380
      %v388 = vmul.f32 %v223, %v380
      %v389 = vmul.f32 %v224, %v380
      %v390 = vmul.f32 %v373, %v380
      %vm400 = vcmask 1044480
      %v401 = vrot.slane %v382, 3
      %v402 = vrot.slane %v383, 3
      %v403 = vsel %vm400, %v401, %v402
      %v404 = vrot.slane %v384, 3
      %v405 = vsel %vm400, %v402, %v404
      %v406 = vrot.slane %v385, 3
      %v407 = vsel %vm400, %v404, %v406
      %v408 = vrot.slane %v386, 3
      %v409 = vsel %vm400, %v406, %v408
      %v410 = vrot.slane %v387, 3
      %v411 = vsel %vm400, %v408, %v410
      %v412 = vrot.slane %v388, 3
      %v413 = vsel %vm400, %v410, %v412
      %v414 = vrot.slane %v389, 3
      %v415 = vsel %vm400, %v412, %v414
      %v416 = vrot.slane %v390, 3
      %v417 = vsel %vm400, %v414, %v416
      %v426 = vadd.f32 %v364, %v403
      %v427 = vadd.f32 %v365, %v405
      %v428 = vadd.f32 %v366, %v407
      %v429 = vadd.f32 %v367, %v409
      %v430 = vadd.f32 %v368, %v411
      %v431 = vadd.f32 %v369, %v413
      %v432 = vadd.f32 %v370, %v415
      %v433 = vadd.f32 %v371, %v417
      %v434 = vld [vmem:[%s199] sm:$0xc]
      %v435 = vunpack.c.l.bf16 %v434
      %s436 = scalar_lea.vmem %s1, 4
      %v437 = vld [vmem:[%s436] sm:$0x1]
      %v439 = vlaneseq
      %v440 = vshrl.u32 %v439, 7
      %v441 = vsub.s32 0, %v440
      %v442 = vrot.slane %v437, %v441
      %v444 = vmul.f32 %v435, %v442
      %v445 = vmul.f32 %v218, %v442
      %v446 = vmul.f32 %v219, %v442
      %v447 = vmul.f32 %v220, %v442
      %v448 = vmul.f32 %v221, %v442
      %v449 = vmul.f32 %v222, %v442
      %v450 = vmul.f32 %v223, %v442
      %v451 = vmul.f32 %v224, %v442
      %v452 = vmul.f32 %v373, %v442
      %vm462 = vcmask 1043456
      %v463 = vrot.slane %v444, 4
      %v464 = vrot.slane %v445, 4
      %v465 = vsel %vm462, %v463, %v464
      %v466 = vrot.slane %v446, 4
      %v467 = vsel %vm462, %v464, %v466
      %v468 = vrot.slane %v447, 4
      %v469 = vsel %vm462, %v466, %v468
      %v470 = vrot.slane %v448, 4
      %v471 = vsel %vm462, %v468, %v470
      %v472 = vrot.slane %v449, 4
      %v473 = vsel %vm462, %v470, %v472
      %v474 = vrot.slane %v450, 4
      %v475 = vsel %vm462, %v472, %v474
      %v476 = vrot.slane %v451, 4
      %v477 = vsel %vm462, %v474, %v476
      %v478 = vrot.slane %v452, 4
      %v479 = vsel %vm462, %v476, %v478
      %v488 = vadd.f32 %v426, %v465
      %v489 = vadd.f32 %v427, %v467
      %v490 = vadd.f32 %v428, %v469
      %v491 = vadd.f32 %v429, %v471
      %v492 = vadd.f32 %v430, %v473
      %v493 = vadd.f32 %v431, %v475
      %v494 = vadd.f32 %v432, %v477
      %v495 = vadd.f32 %v433, %v479
      %v496 = vld [vmem:[%s199 + $0x20] sm:$0xf]
      %v497 = vld [vmem:[%s199 + $0x24] sm:$0xf]
      %v498 = vunpack.c.l.bf16 %v496
      %v499 = vunpack.c.l.bf16 %v497
      %s500 = scalar_lea.vmem %s1, 5
      %v501 = vld [vmem:[%s500] sm:$0x1]
      %v503 = vlaneseq
      %v504 = vshrl.u32 %v503, 7
      %v505 = vsub.s32 0, %v504
      %v506 = vrot.slane %v501, %v505
      %v508 = vmul.f32 %v219, %v506
      %v509 = vmul.f32 %v220, %v506
      %v510 = vmul.f32 %v221, %v506
      %v511 = vmul.f32 %v222, %v506
      %v512 = vmul.f32 %v223, %v506
      %v513 = vmul.f32 %v224, %v506
      %v514 = vmul.f32 %v498, %v506
      %v515 = vmul.f32 %v499, %v506
      %v516 = vadd.f32 %v488, %v508
      %v517 = vadd.f32 %v489, %v509
      %v518 = vadd.f32 %v490, %v510
      %v519 = vadd.f32 %v491, %v511
      %v520 = vadd.f32 %v492, %v512
      %v521 = vadd.f32 %v493, %v513
      %v522 = vadd.f32 %v494, %v514
      %v523 = vadd.f32 %v495, %v515
      %v524 = vld [vmem:[%s199 + $0x28] sm:$0x1]
      %v525 = vunpack.c.l.bf16 %v524
      %s526 = scalar_lea.vmem %s1, 6
      %v527 = vld [vmem:[%s526] sm:$0x1]
      %v529 = vlaneseq
      %v530 = vshrl.u32 %v529, 7
      %v531 = vsub.s32 0, %v530
      %v532 = vrot.slane %v527, %v531
      %v534 = vmul.f32 %v219, %v532
      %v535 = vmul.f32 %v220, %v532
      %v536 = vmul.f32 %v221, %v532
      %v537 = vmul.f32 %v222, %v532
      %v538 = vmul.f32 %v223, %v532
      %v539 = vmul.f32 %v224, %v532
      %v540 = vmul.f32 %v498, %v532
      %v541 = vmul.f32 %v499, %v532
      %v542 = vmul.f32 %v525, %v532
      %v552 = vrot.slane %v534, 1
      %v553 = vrot.slane %v535, 1
      %v554 = vsel %vm276, %v552, %v553
      %v555 = vrot.slane %v536, 1
      %v556 = vsel %vm276, %v553, %v555
      %v557 = vrot.slane %v537, 1
      %v558 = vsel %vm276, %v555, %v557
      %v559 = vrot.slane %v538, 1
      %v560 = vsel %vm276, %v557, %v559
      %v561 = vrot.slane %v539, 1
      %v562 = vsel %vm276, %v559, %v561
      %v563 = vrot.slane %v540, 1
      %v564 = vsel %vm276, %v561, %v563
      %v565 = vrot.slane %v541, 1
      %v566 = vsel %vm276, %v563, %v565
      %v567 = vrot.slane %v542, 1
      %v568 = vsel %vm276, %v565, %v567
      %v577 = vadd.f32 %v516, %v554
      %v578 = vadd.f32 %v517, %v556
      %v579 = vadd.f32 %v518, %v558
      %v580 = vadd.f32 %v519, %v560
      %v581 = vadd.f32 %v520, %v562
      %v582 = vadd.f32 %v521, %v564
      %v583 = vadd.f32 %v522, %v566
      %v584 = vadd.f32 %v523, %v568
      %v585 = vld [vmem:[%s199 + $0x8] sm:$0xe]
      %v586 = vunpack.c.l.bf16 %v585
      %s587 = scalar_lea.vmem %s1, 7
      %v588 = vld [vmem:[%s587] sm:$0x1]
      %v590 = vlaneseq
      %v591 = vshrl.u32 %v590, 7
      %v592 = vsub.s32 0, %v591
      %v593 = vrot.slane %v588, %v592
      %v595 = vmul.f32 %v586, %v593
      %v596 = vmul.f32 %v220, %v593
      %v597 = vmul.f32 %v221, %v593
      %v598 = vmul.f32 %v222, %v593
      %v599 = vmul.f32 %v223, %v593
      %v600 = vmul.f32 %v224, %v593
      %v601 = vmul.f32 %v498, %v593
      %v602 = vmul.f32 %v499, %v593
      %v603 = vmul.f32 %v525, %v593
      %v613 = vrot.slane %v595, 2
      %v614 = vrot.slane %v596, 2
      %v615 = vsel %vm338, %v613, %v614
      %v616 = vrot.slane %v597, 2
      %v617 = vsel %vm338, %v614, %v616
      %v618 = vrot.slane %v598, 2
      %v619 = vsel %vm338, %v616, %v618
      %v620 = vrot.slane %v599, 2
      %v621 = vsel %vm338, %v618, %v620
      %v622 = vrot.slane %v600, 2
      %v623 = vsel %vm338, %v620, %v622
      %v624 = vrot.slane %v601, 2
      %v625 = vsel %vm338, %v622, %v624
      %v626 = vrot.slane %v602, 2
      %v627 = vsel %vm338, %v624, %v626
      %v628 = vrot.slane %v603, 2
      %v629 = vsel %vm338, %v626, %v628
      %v638 = vadd.f32 %v577, %v615
      %v639 = vadd.f32 %v578, %v617
      %v640 = vadd.f32 %v579, %v619
      %v641 = vadd.f32 %v580, %v621
      %v642 = vadd.f32 %v581, %v623
      %v643 = vadd.f32 %v582, %v625
      %v644 = vadd.f32 %v583, %v627
      %v645 = vadd.f32 %v584, %v629
      %v646 = vld [vmem:[%s199 + $0x28] sm:$0x3]
      %v647 = vunpack.c.l.bf16 %v646
      %s648 = scalar_lea.vmem %s1, 8
      %v649 = vld [vmem:[%s648] sm:$0x1]
      %v651 = vlaneseq
      %v652 = vshrl.u32 %v651, 7
      %v653 = vsub.s32 0, %v652
      %v654 = vrot.slane %v649, %v653
      %v656 = vmul.f32 %v586, %v654
      %v657 = vmul.f32 %v220, %v654
      %v658 = vmul.f32 %v221, %v654
      %v659 = vmul.f32 %v222, %v654
      %v660 = vmul.f32 %v223, %v654
      %v661 = vmul.f32 %v224, %v654
      %v662 = vmul.f32 %v498, %v654
      %v663 = vmul.f32 %v499, %v654
      %v664 = vmul.f32 %v647, %v654
      %v674 = vrot.slane %v656, 3
      %v675 = vrot.slane %v657, 3
      %v676 = vsel %vm400, %v674, %v675
      %v677 = vrot.slane %v658, 3
      %v678 = vsel %vm400, %v675, %v677
      %v679 = vrot.slane %v659, 3
      %v680 = vsel %vm400, %v677, %v679
      %v681 = vrot.slane %v660, 3
      %v682 = vsel %vm400, %v679, %v681
      %v683 = vrot.slane %v661, 3
      %v684 = vsel %vm400, %v681, %v683
      %v685 = vrot.slane %v662, 3
      %v686 = vsel %vm400, %v683, %v685
      %v687 = vrot.slane %v663, 3
      %v688 = vsel %vm400, %v685, %v687
      %v689 = vrot.slane %v664, 3
      %v690 = vsel %vm400, %v687, %v689
      %v699 = vadd.f32 %v638, %v676
      %v700 = vadd.f32 %v639, %v678
      %v701 = vadd.f32 %v640, %v680
      %v702 = vadd.f32 %v641, %v682
      %v703 = vadd.f32 %v642, %v684
      %v704 = vadd.f32 %v643, %v686
      %v705 = vadd.f32 %v644, %v688
      %v706 = vadd.f32 %v645, %v690
      %v707 = vld [vmem:[%s199 + $0x8] sm:$0xc]
      %v708 = vunpack.c.l.bf16 %v707
      %s709 = scalar_lea.vmem %s1, 9
      %v710 = vld [vmem:[%s709] sm:$0x1]
      %v712 = vlaneseq
      %v713 = vshrl.u32 %v712, 7
      %v714 = vsub.s32 0, %v713
      %v715 = vrot.slane %v710, %v714
      %v717 = vmul.f32 %v708, %v715
      %v718 = vmul.f32 %v220, %v715
      %v719 = vmul.f32 %v221, %v715
      %v720 = vmul.f32 %v222, %v715
      %v721 = vmul.f32 %v223, %v715
      %v722 = vmul.f32 %v224, %v715
      %v723 = vmul.f32 %v498, %v715
      %v724 = vmul.f32 %v499, %v715
      %v725 = vmul.f32 %v647, %v715
      %v735 = vrot.slane %v717, 4
      %v736 = vrot.slane %v718, 4
      %v737 = vsel %vm462, %v735, %v736
      %v738 = vrot.slane %v719, 4
      %v739 = vsel %vm462, %v736, %v738
      %v740 = vrot.slane %v720, 4
      %v741 = vsel %vm462, %v738, %v740
      %v742 = vrot.slane %v721, 4
      %v743 = vsel %vm462, %v740, %v742
      %v744 = vrot.slane %v722, 4
      %v745 = vsel %vm462, %v742, %v744
      %v746 = vrot.slane %v723, 4
      %v747 = vsel %vm462, %v744, %v746
      %v748 = vrot.slane %v724, 4
      %v749 = vsel %vm462, %v746, %v748
      %v750 = vrot.slane %v725, 4
      %v751 = vsel %vm462, %v748, %v750
      %v760 = vadd.f32 %v699, %v737
      %v761 = vadd.f32 %v700, %v739
      %v762 = vadd.f32 %v701, %v741
      %v763 = vadd.f32 %v702, %v743
      %v764 = vadd.f32 %v703, %v745
      %v765 = vadd.f32 %v704, %v747
      %v766 = vadd.f32 %v705, %v749
      %v767 = vadd.f32 %v706, %v751
      %v768 = vld [vmem:[%s199 + $0x28] sm:$0xf]
      %v769 = vld [vmem:[%s199 + $0x2c] sm:$0xf]
      %v770 = vunpack.c.l.bf16 %v768
      %v771 = vunpack.c.l.bf16 %v769
      %s772 = scalar_lea.vmem %s1, 10
      %v773 = vld [vmem:[%s772] sm:$0x1]
      %v775 = vlaneseq
      %v776 = vshrl.u32 %v775, 7
      %v777 = vsub.s32 0, %v776
      %v778 = vrot.slane %v773, %v777
      %v780 = vmul.f32 %v221, %v778
      %v781 = vmul.f32 %v222, %v778
      %v782 = vmul.f32 %v223, %v778
      %v783 = vmul.f32 %v224, %v778
      %v784 = vmul.f32 %v498, %v778
      %v785 = vmul.f32 %v499, %v778
      %v786 = vmul.f32 %v770, %v778
      %v787 = vmul.f32 %v771, %v778
      %v788 = vadd.f32 %v760, %v780
      %v789 = vadd.f32 %v761, %v781
      %v790 = vadd.f32 %v762, %v782
      %v791 = vadd.f32 %v763, %v783
      %v792 = vadd.f32 %v764, %v784
      %v793 = vadd.f32 %v765, %v785
      %v794 = vadd.f32 %v766, %v786
      %v795 = vadd.f32 %v767, %v787
      %v796 = vld [vmem:[%s199 + $0x30] sm:$0x1]
      %v797 = vunpack.c.l.bf16 %v796
      %s798 = scalar_lea.vmem %s1, 11
      %v799 = vld [vmem:[%s798] sm:$0x1]
      %v801 = vlaneseq
      %v802 = vshrl.u32 %v801, 7
      %v803 = vsub.s32 0, %v802
      %v804 = vrot.slane %v799, %v803
      %v806 = vmul.f32 %v221, %v804
      %v807 = vmul.f32 %v222, %v804
      %v808 = vmul.f32 %v223, %v804
      %v809 = vmul.f32 %v224, %v804
      %v810 = vmul.f32 %v498, %v804
      %v811 = vmul.f32 %v499, %v804
      %v812 = vmul.f32 %v770, %v804
      %v813 = vmul.f32 %v771, %v804
      %v814 = vmul.f32 %v797, %v804
      %v824 = vrot.slane %v806, 1
      %v825 = vrot.slane %v807, 1
      %v826 = vsel %vm276, %v824, %v825
      %v827 = vrot.slane %v808, 1
      %v828 = vsel %vm276, %v825, %v827
      %v829 = vrot.slane %v809, 1
      %v830 = vsel %vm276, %v827, %v829
      %v831 = vrot.slane %v810, 1
      %v832 = vsel %vm276, %v829, %v831
      %v833 = vrot.slane %v811, 1
      %v834 = vsel %vm276, %v831, %v833
      %v835 = vrot.slane %v812, 1
      %v836 = vsel %vm276, %v833, %v835
      %v837 = vrot.slane %v813, 1
      %v838 = vsel %vm276, %v835, %v837
      %v839 = vrot.slane %v814, 1
      %v840 = vsel %vm276, %v837, %v839
      %v849 = vadd.f32 %v788, %v826
      %v850 = vadd.f32 %v789, %v828
      %v851 = vadd.f32 %v790, %v830
      %v852 = vadd.f32 %v791, %v832
      %v853 = vadd.f32 %v792, %v834
      %v854 = vadd.f32 %v793, %v836
      %v855 = vadd.f32 %v794, %v838
      %v856 = vadd.f32 %v795, %v840
      %v857 = vld [vmem:[%s199 + $0x10] sm:$0xe]
      %v858 = vunpack.c.l.bf16 %v857
      %s859 = scalar_lea.vmem %s1, 12
      %v860 = vld [vmem:[%s859] sm:$0x1]
      %v862 = vlaneseq
      %v863 = vshrl.u32 %v862, 7
      %v864 = vsub.s32 0, %v863
      %v865 = vrot.slane %v860, %v864
      %v867 = vmul.f32 %v858, %v865
      %v868 = vmul.f32 %v222, %v865
      %v869 = vmul.f32 %v223, %v865
      %v870 = vmul.f32 %v224, %v865
      %v871 = vmul.f32 %v498, %v865
      %v872 = vmul.f32 %v499, %v865
      %v873 = vmul.f32 %v770, %v865
      %v874 = vmul.f32 %v771, %v865
      %v875 = vmul.f32 %v797, %v865
      %v885 = vrot.slane %v867, 2
      %v886 = vrot.slane %v868, 2
      %v887 = vsel %vm338, %v885, %v886
      %v888 = vrot.slane %v869, 2
      %v889 = vsel %vm338, %v886, %v888
      %v890 = vrot.slane %v870, 2
      %v891 = vsel %vm338, %v888, %v890
      %v892 = vrot.slane %v871, 2
      %v893 = vsel %vm338, %v890, %v892
      %v894 = vrot.slane %v872, 2
      %v895 = vsel %vm338, %v892, %v894
      %v896 = vrot.slane %v873, 2
      %v897 = vsel %vm338, %v894, %v896
      %v898 = vrot.slane %v874, 2
      %v899 = vsel %vm338, %v896, %v898
      %v900 = vrot.slane %v875, 2
      %v901 = vsel %vm338, %v898, %v900
      %v910 = vadd.f32 %v849, %v887
      %v911 = vadd.f32 %v850, %v889
      %v912 = vadd.f32 %v851, %v891
      %v913 = vadd.f32 %v852, %v893
      %v914 = vadd.f32 %v853, %v895
      %v915 = vadd.f32 %v854, %v897
      %v916 = vadd.f32 %v855, %v899
      %v917 = vadd.f32 %v856, %v901
      %v918 = vld [vmem:[%s199 + $0x30] sm:$0x3]
      %v919 = vunpack.c.l.bf16 %v918
      %s920 = scalar_lea.vmem %s1, 13
      %v921 = vld [vmem:[%s920] sm:$0x1]
      %v923 = vlaneseq
      %v924 = vshrl.u32 %v923, 7
      %v925 = vsub.s32 0, %v924
      %v926 = vrot.slane %v921, %v925
      %v928 = vmul.f32 %v858, %v926
      %v929 = vmul.f32 %v222, %v926
      %v930 = vmul.f32 %v223, %v926
      %v931 = vmul.f32 %v224, %v926
      %v932 = vmul.f32 %v498, %v926
      %v933 = vmul.f32 %v499, %v926
      %v934 = vmul.f32 %v770, %v926
      %v935 = vmul.f32 %v771, %v926
      %v936 = vmul.f32 %v919, %v926
      %v946 = vrot.slane %v928, 3
      %v947 = vrot.slane %v929, 3
      %v948 = vsel %vm400, %v946, %v947
      %v949 = vrot.slane %v930, 3
      %v950 = vsel %vm400, %v947, %v949
      %v951 = vrot.slane %v931, 3
      %v952 = vsel %vm400, %v949, %v951
      %v953 = vrot.slane %v932, 3
      %v954 = vsel %vm400, %v951, %v953
      %v955 = vrot.slane %v933, 3
      %v956 = vsel %vm400, %v953, %v955
      %v957 = vrot.slane %v934, 3
      %v958 = vsel %vm400, %v955, %v957
      %v959 = vrot.slane %v935, 3
      %v960 = vsel %vm400, %v957, %v959
      %v961 = vrot.slane %v936, 3
      %v962 = vsel %vm400, %v959, %v961
      %v971 = vadd.f32 %v910, %v948
      %v972 = vadd.f32 %v911, %v950
      %v973 = vadd.f32 %v912, %v952
      %v974 = vadd.f32 %v913, %v954
      %v975 = vadd.f32 %v914, %v956
      %v976 = vadd.f32 %v915, %v958
      %v977 = vadd.f32 %v916, %v960
      %v978 = vadd.f32 %v917, %v962
      %v979 = vld [vmem:[%s199 + $0x10] sm:$0xc]
      %v980 = vunpack.c.l.bf16 %v979
      %s981 = scalar_lea.vmem %s1, 14
      %v982 = vld [vmem:[%s981] sm:$0x1]
      %v984 = vlaneseq
      %v985 = vshrl.u32 %v984, 7
      %v986 = vsub.s32 0, %v985
      %v987 = vrot.slane %v982, %v986
      %v989 = vmul.f32 %v980, %v987
      %v990 = vmul.f32 %v222, %v987
      %v991 = vmul.f32 %v223, %v987
      %v992 = vmul.f32 %v224, %v987
      %v993 = vmul.f32 %v498, %v987
      %v994 = vmul.f32 %v499, %v987
      %v995 = vmul.f32 %v770, %v987
      %v996 = vmul.f32 %v771, %v987
      %v997 = vmul.f32 %v919, %v987
      %v1007 = vrot.slane %v989, 4
      %v1008 = vrot.slane %v990, 4
      %v1009 = vsel %vm462, %v1007, %v1008
      %v1010 = vrot.slane %v991, 4
      %v1011 = vsel %vm462, %v1008, %v1010
      %v1012 = vrot.slane %v992, 4
      %v1013 = vsel %vm462, %v1010, %v1012
      %v1014 = vrot.slane %v993, 4
      %v1015 = vsel %vm462, %v1012, %v1014
      %v1016 = vrot.slane %v994, 4
      %v1017 = vsel %vm462, %v1014, %v1016
      %v1018 = vrot.slane %v995, 4
      %v1019 = vsel %vm462, %v1016, %v1018
      %v1020 = vrot.slane %v996, 4
      %v1021 = vsel %vm462, %v1018, %v1020
      %v1022 = vrot.slane %v997, 4
      %v1023 = vsel %vm462, %v1020, %v1022
      %v1032 = vadd.f32 %v971, %v1009
      %v1033 = vadd.f32 %v972, %v1011
      %v1034 = vadd.f32 %v973, %v1013
      %v1035 = vadd.f32 %v974, %v1015
      %v1036 = vadd.f32 %v975, %v1017
      %v1037 = vadd.f32 %v976, %v1019
      %v1038 = vadd.f32 %v977, %v1021
      %v1039 = vadd.f32 %v978, %v1023
      %v1040 = vld [vmem:[%s199 + $0x30] sm:$0xf]
      %v1041 = vld [vmem:[%s199 + $0x34] sm:$0xf]
      %v1042 = vunpack.c.l.bf16 %v1040
      %v1043 = vunpack.c.l.bf16 %v1041
      %s1044 = scalar_lea.vmem %s1, 15
      %v1045 = vld [vmem:[%s1044] sm:$0x1]
      %v1047 = vlaneseq
      %v1048 = vshrl.u32 %v1047, 7
      %v1049 = vsub.s32 0, %v1048
      %v1050 = vrot.slane %v1045, %v1049
      %v1052 = vmul.f32 %v223, %v1050
      %v1053 = vmul.f32 %v224, %v1050
      %v1054 = vmul.f32 %v498, %v1050
      %v1055 = vmul.f32 %v499, %v1050
      %v1056 = vmul.f32 %v770, %v1050
      %v1057 = vmul.f32 %v771, %v1050
      %v1058 = vmul.f32 %v1042, %v1050
      %v1059 = vmul.f32 %v1043, %v1050
      %v1060 = vadd.f32 %v1032, %v1052
      %v1061 = vadd.f32 %v1033, %v1053
      %v1062 = vadd.f32 %v1034, %v1054
      %v1063 = vadd.f32 %v1035, %v1055
      %v1064 = vadd.f32 %v1036, %v1056
      %v1065 = vadd.f32 %v1037, %v1057
      %v1066 = vadd.f32 %v1038, %v1058
      %v1067 = vadd.f32 %v1039, %v1059
      %v1068 = vld [vmem:[%s199 + $0x38] sm:$0x1]
      %v1069 = vunpack.c.l.bf16 %v1068
      %s1070 = scalar_lea.vmem %s1, 16
      %v1071 = vld [vmem:[%s1070] sm:$0x1]
      %v1073 = vlaneseq
      %v1074 = vshrl.u32 %v1073, 7
      %v1075 = vsub.s32 0, %v1074
      %v1076 = vrot.slane %v1071, %v1075
      %v1078 = vmul.f32 %v223, %v1076
      %v1079 = vmul.f32 %v224, %v1076
      %v1080 = vmul.f32 %v498, %v1076
      %v1081 = vmul.f32 %v499, %v1076
      %v1082 = vmul.f32 %v770, %v1076
      %v1083 = vmul.f32 %v771, %v1076
      %v1084 = vmul.f32 %v1042, %v1076
      %v1085 = vmul.f32 %v1043, %v1076
      %v1086 = vmul.f32 %v1069, %v1076
      %v1096 = vrot.slane %v1078, 1
      %v1097 = vrot.slane %v1079, 1
      %v1098 = vsel %vm276, %v1096, %v1097
      %v1099 = vrot.slane %v1080, 1
      %v1100 = vsel %vm276, %v1097, %v1099
      %v1101 = vrot.slane %v1081, 1
      %v1102 = vsel %vm276, %v1099, %v1101
      %v1103 = vrot.slane %v1082, 1
      %v1104 = vsel %vm276, %v1101, %v1103
      %v1105 = vrot.slane %v1083, 1
      %v1106 = vsel %vm276, %v1103, %v1105
      %v1107 = vrot.slane %v1084, 1
      %v1108 = vsel %vm276, %v1105, %v1107
      %v1109 = vrot.slane %v1085, 1
      %v1110 = vsel %vm276, %v1107, %v1109
      %v1111 = vrot.slane %v1086, 1
      %v1112 = vsel %vm276, %v1109, %v1111
      %v1121 = vadd.f32 %v1060, %v1098
      %v1122 = vadd.f32 %v1061, %v1100
      %v1123 = vadd.f32 %v1062, %v1102
      %v1124 = vadd.f32 %v1063, %v1104
      %v1125 = vadd.f32 %v1064, %v1106
      %v1126 = vadd.f32 %v1065, %v1108
      %v1127 = vadd.f32 %v1066, %v1110
      %v1128 = vadd.f32 %v1067, %v1112
      %v1129 = vld [vmem:[%s199 + $0x18] sm:$0xe]
      %v1130 = vunpack.c.l.bf16 %v1129
      %s1131 = scalar_lea.vmem %s1, 17
      %v1132 = vld [vmem:[%s1131] sm:$0x1]
      %v1134 = vlaneseq
      %v1135 = vshrl.u32 %v1134, 7
      %v1136 = vsub.s32 0, %v1135
      %v1137 = vrot.slane %v1132, %v1136
      %v1139 = vmul.f32 %v1130, %v1137
      %v1140 = vmul.f32 %v224, %v1137
      %v1141 = vmul.f32 %v498, %v1137
      %v1142 = vmul.f32 %v499, %v1137
      %v1143 = vmul.f32 %v770, %v1137
      %v1144 = vmul.f32 %v771, %v1137
      %v1145 = vmul.f32 %v1042, %v1137
      %v1146 = vmul.f32 %v1043, %v1137
      %v1147 = vmul.f32 %v1069, %v1137
      %v1157 = vrot.slane %v1139, 2
      %v1158 = vrot.slane %v1140, 2
      %v1159 = vsel %vm338, %v1157, %v1158
      %v1160 = vrot.slane %v1141, 2
      %v1161 = vsel %vm338, %v1158, %v1160
      %v1162 = vrot.slane %v1142, 2
      %v1163 = vsel %vm338, %v1160, %v1162
      %v1164 = vrot.slane %v1143, 2
      %v1165 = vsel %vm338, %v1162, %v1164
      %v1166 = vrot.slane %v1144, 2
      %v1167 = vsel %vm338, %v1164, %v1166
      %v1168 = vrot.slane %v1145, 2
      %v1169 = vsel %vm338, %v1166, %v1168
      %v1170 = vrot.slane %v1146, 2
      %v1171 = vsel %vm338, %v1168, %v1170
      %v1172 = vrot.slane %v1147, 2
      %v1173 = vsel %vm338, %v1170, %v1172
      %v1182 = vadd.f32 %v1121, %v1159
      %v1183 = vadd.f32 %v1122, %v1161
      %v1184 = vadd.f32 %v1123, %v1163
      %v1185 = vadd.f32 %v1124, %v1165
      %v1186 = vadd.f32 %v1125, %v1167
      %v1187 = vadd.f32 %v1126, %v1169
      %v1188 = vadd.f32 %v1127, %v1171
      %v1189 = vadd.f32 %v1128, %v1173
      %v1190 = vld [vmem:[%s199 + $0x38] sm:$0x3]
      %v1191 = vunpack.c.l.bf16 %v1190
      %s1192 = scalar_lea.vmem %s1, 18
      %v1193 = vld [vmem:[%s1192] sm:$0x1]
      %v1195 = vlaneseq
      %v1196 = vshrl.u32 %v1195, 7
      %v1197 = vsub.s32 0, %v1196
      %v1198 = vrot.slane %v1193, %v1197
      %v1200 = vmul.f32 %v1130, %v1198
      %v1201 = vmul.f32 %v224, %v1198
      %v1202 = vmul.f32 %v498, %v1198
      %v1203 = vmul.f32 %v499, %v1198
      %v1204 = vmul.f32 %v770, %v1198
      %v1205 = vmul.f32 %v771, %v1198
      %v1206 = vmul.f32 %v1042, %v1198
      %v1207 = vmul.f32 %v1043, %v1198
      %v1208 = vmul.f32 %v1191, %v1198
      %v1218 = vrot.slane %v1200, 3
      %v1219 = vrot.slane %v1201, 3
      %v1220 = vsel %vm400, %v1218, %v1219
      %v1221 = vrot.slane %v1202, 3
      %v1222 = vsel %vm400, %v1219, %v1221
      %v1223 = vrot.slane %v1203, 3
      %v1224 = vsel %vm400, %v1221, %v1223
      %v1225 = vrot.slane %v1204, 3
      %v1226 = vsel %vm400, %v1223, %v1225
      %v1227 = vrot.slane %v1205, 3
      %v1228 = vsel %vm400, %v1225, %v1227
      %v1229 = vrot.slane %v1206, 3
      %v1230 = vsel %vm400, %v1227, %v1229
      %v1231 = vrot.slane %v1207, 3
      %v1232 = vsel %vm400, %v1229, %v1231
      %v1233 = vrot.slane %v1208, 3
      %v1234 = vsel %vm400, %v1231, %v1233
      %v1243 = vadd.f32 %v1182, %v1220
      %v1244 = vadd.f32 %v1183, %v1222
      %v1245 = vadd.f32 %v1184, %v1224
      %v1246 = vadd.f32 %v1185, %v1226
      %v1247 = vadd.f32 %v1186, %v1228
      %v1248 = vadd.f32 %v1187, %v1230
      %v1249 = vadd.f32 %v1188, %v1232
      %v1250 = vadd.f32 %v1189, %v1234
      %v1251 = vld [vmem:[%s199 + $0x18] sm:$0xc]
      %v1252 = vunpack.c.l.bf16 %v1251
      %s1253 = scalar_lea.vmem %s1, 19
      %v1254 = vld [vmem:[%s1253] sm:$0x1]
      %v1256 = vlaneseq
      %v1257 = vshrl.u32 %v1256, 7
      %v1258 = vsub.s32 0, %v1257
      %v1259 = vrot.slane %v1254, %v1258
      %v1261 = vmul.f32 %v1252, %v1259
      %v1262 = vmul.f32 %v224, %v1259
      %v1263 = vmul.f32 %v498, %v1259
      %v1264 = vmul.f32 %v499, %v1259
      %v1265 = vmul.f32 %v770, %v1259
      %v1266 = vmul.f32 %v771, %v1259
      %v1267 = vmul.f32 %v1042, %v1259
      %v1268 = vmul.f32 %v1043, %v1259
      %v1269 = vmul.f32 %v1191, %v1259
      %v1279 = vrot.slane %v1261, 4
      %v1280 = vrot.slane %v1262, 4
      %v1281 = vsel %vm462, %v1279, %v1280
      %v1282 = vrot.slane %v1263, 4
      %v1283 = vsel %vm462, %v1280, %v1282
      %v1284 = vrot.slane %v1264, 4
      %v1285 = vsel %vm462, %v1282, %v1284
      %v1286 = vrot.slane %v1265, 4
      %v1287 = vsel %vm462, %v1284, %v1286
      %v1288 = vrot.slane %v1266, 4
      %v1289 = vsel %vm462, %v1286, %v1288
      %v1290 = vrot.slane %v1267, 4
      %v1291 = vsel %vm462, %v1288, %v1290
      %v1292 = vrot.slane %v1268, 4
      %v1293 = vsel %vm462, %v1290, %v1292
      %v1294 = vrot.slane %v1269, 4
      %v1295 = vsel %vm462, %v1292, %v1294
      %v1304 = vadd.f32 %v1243, %v1281
      %v1305 = vadd.f32 %v1244, %v1283
      %v1306 = vadd.f32 %v1245, %v1285
      %v1307 = vadd.f32 %v1246, %v1287
      %v1308 = vadd.f32 %v1247, %v1289
      %v1309 = vadd.f32 %v1248, %v1291
      %v1310 = vadd.f32 %v1249, %v1293
      %v1311 = vadd.f32 %v1250, %v1295
      %v1312 = vld [vmem:[%s199 + $0x38] sm:$0xf]
      %v1313 = vld [vmem:[%s199 + $0x3c] sm:$0xf]
      %v1314 = vunpack.c.l.bf16 %v1312
      %v1315 = vunpack.c.l.bf16 %v1313
      %s1316 = scalar_lea.vmem %s1, 20
      %v1317 = vld [vmem:[%s1316] sm:$0x1]
      %v1319 = vlaneseq
      %v1320 = vshrl.u32 %v1319, 7
      %v1321 = vsub.s32 0, %v1320
      %v1322 = vrot.slane %v1317, %v1321
      %v1324 = vmul.f32 %v498, %v1322
      %v1325 = vmul.f32 %v499, %v1322
      %v1326 = vmul.f32 %v770, %v1322
      %v1327 = vmul.f32 %v771, %v1322
      %v1328 = vmul.f32 %v1042, %v1322
      %v1329 = vmul.f32 %v1043, %v1322
      %v1330 = vmul.f32 %v1314, %v1322
      %v1331 = vmul.f32 %v1315, %v1322
      %v1332 = vadd.f32 %v1304, %v1324
      %v1333 = vadd.f32 %v1305, %v1325
      %v1334 = vadd.f32 %v1306, %v1326
      %v1335 = vadd.f32 %v1307, %v1327
      %v1336 = vadd.f32 %v1308, %v1328
      %v1337 = vadd.f32 %v1309, %v1329
      %v1338 = vadd.f32 %v1310, %v1330
      %v1339 = vadd.f32 %v1311, %v1331
      %v1340 = vld [vmem:[%s199 + $0x40] sm:$0x1]
      %v1341 = vunpack.c.l.bf16 %v1340
      %s1342 = scalar_lea.vmem %s1, 21
      %v1343 = vld [vmem:[%s1342] sm:$0x1]
      %v1345 = vlaneseq
      %v1346 = vshrl.u32 %v1345, 7
      %v1347 = vsub.s32 0, %v1346
      %v1348 = vrot.slane %v1343, %v1347
      %v1350 = vmul.f32 %v498, %v1348
      %v1351 = vmul.f32 %v499, %v1348
      %v1352 = vmul.f32 %v770, %v1348
      %v1353 = vmul.f32 %v771, %v1348
      %v1354 = vmul.f32 %v1042, %v1348
      %v1355 = vmul.f32 %v1043, %v1348
      %v1356 = vmul.f32 %v1314, %v1348
      %v1357 = vmul.f32 %v1315, %v1348
      %v1358 = vmul.f32 %v1341, %v1348
      %v1368 = vrot.slane %v1350, 1
      %v1369 = vrot.slane %v1351, 1
      %v1370 = vsel %vm276, %v1368, %v1369
      %v1371 = vrot.slane %v1352, 1
      %v1372 = vsel %vm276, %v1369, %v1371
      %v1373 = vrot.slane %v1353, 1
      %v1374 = vsel %vm276, %v1371, %v1373
      %v1375 = vrot.slane %v1354, 1
      %v1376 = vsel %vm276, %v1373, %v1375
      %v1377 = vrot.slane %v1355, 1
      %v1378 = vsel %vm276, %v1375, %v1377
      %v1379 = vrot.slane %v1356, 1
      %v1380 = vsel %vm276, %v1377, %v1379
      %v1381 = vrot.slane %v1357, 1
      %v1382 = vsel %vm276, %v1379, %v1381
      %v1383 = vrot.slane %v1358, 1
      %v1384 = vsel %vm276, %v1381, %v1383
      %v1393 = vadd.f32 %v1332, %v1370
      %v1394 = vadd.f32 %v1333, %v1372
      %v1395 = vadd.f32 %v1334, %v1374
      %v1396 = vadd.f32 %v1335, %v1376
      %v1397 = vadd.f32 %v1336, %v1378
      %v1398 = vadd.f32 %v1337, %v1380
      %v1399 = vadd.f32 %v1338, %v1382
      %v1400 = vadd.f32 %v1339, %v1384
      %v1401 = vld [vmem:[%s199 + $0x20] sm:$0xe]
      %v1402 = vunpack.c.l.bf16 %v1401
      %s1403 = scalar_lea.vmem %s1, 22
      %v1404 = vld [vmem:[%s1403] sm:$0x1]
      %v1406 = vlaneseq
      %v1407 = vshrl.u32 %v1406, 7
      %v1408 = vsub.s32 0, %v1407
      %v1409 = vrot.slane %v1404, %v1408
      %v1411 = vmul.f32 %v1402, %v1409
      %v1412 = vmul.f32 %v499, %v1409
      %v1413 = vmul.f32 %v770, %v1409
      %v1414 = vmul.f32 %v771, %v1409
      %v1415 = vmul.f32 %v1042, %v1409
      %v1416 = vmul.f32 %v1043, %v1409
      %v1417 = vmul.f32 %v1314, %v1409
      %v1418 = vmul.f32 %v1315, %v1409
      %v1419 = vmul.f32 %v1341, %v1409
      %v1429 = vrot.slane %v1411, 2
      %v1430 = vrot.slane %v1412, 2
      %v1431 = vsel %vm338, %v1429, %v1430
      %v1432 = vrot.slane %v1413, 2
      %v1433 = vsel %vm338, %v1430, %v1432
      %v1434 = vrot.slane %v1414, 2
      %v1435 = vsel %vm338, %v1432, %v1434
      %v1436 = vrot.slane %v1415, 2
      %v1437 = vsel %vm338, %v1434, %v1436
      %v1438 = vrot.slane %v1416, 2
      %v1439 = vsel %vm338, %v1436, %v1438
      %v1440 = vrot.slane %v1417, 2
      %v1441 = vsel %vm338, %v1438, %v1440
      %v1442 = vrot.slane %v1418, 2
      %v1443 = vsel %vm338, %v1440, %v1442
      %v1444 = vrot.slane %v1419, 2
      %v1445 = vsel %vm338, %v1442, %v1444
      %v1454 = vadd.f32 %v1393, %v1431
      %v1455 = vadd.f32 %v1394, %v1433
      %v1456 = vadd.f32 %v1395, %v1435
      %v1457 = vadd.f32 %v1396, %v1437
      %v1458 = vadd.f32 %v1397, %v1439
      %v1459 = vadd.f32 %v1398, %v1441
      %v1460 = vadd.f32 %v1399, %v1443
      %v1461 = vadd.f32 %v1400, %v1445
      %v1462 = vld [vmem:[%s199 + $0x40] sm:$0x3]
      %v1463 = vunpack.c.l.bf16 %v1462
      %s1464 = scalar_lea.vmem %s1, 23
      %v1465 = vld [vmem:[%s1464] sm:$0x1]
      %v1467 = vlaneseq
      %v1468 = vshrl.u32 %v1467, 7
      %v1469 = vsub.s32 0, %v1468
      %v1470 = vrot.slane %v1465, %v1469
      %v1472 = vmul.f32 %v1402, %v1470
      %v1473 = vmul.f32 %v499, %v1470
      %v1474 = vmul.f32 %v770, %v1470
      %v1475 = vmul.f32 %v771, %v1470
      %v1476 = vmul.f32 %v1042, %v1470
      %v1477 = vmul.f32 %v1043, %v1470
      %v1478 = vmul.f32 %v1314, %v1470
      %v1479 = vmul.f32 %v1315, %v1470
      %v1480 = vmul.f32 %v1463, %v1470
      %v1490 = vrot.slane %v1472, 3
      %v1491 = vrot.slane %v1473, 3
      %v1492 = vsel %vm400, %v1490, %v1491
      %v1493 = vrot.slane %v1474, 3
      %v1494 = vsel %vm400, %v1491, %v1493
      %v1495 = vrot.slane %v1475, 3
      %v1496 = vsel %vm400, %v1493, %v1495
      %v1497 = vrot.slane %v1476, 3
      %v1498 = vsel %vm400, %v1495, %v1497
      %v1499 = vrot.slane %v1477, 3
      %v1500 = vsel %vm400, %v1497, %v1499
      %v1501 = vrot.slane %v1478, 3
      %v1502 = vsel %vm400, %v1499, %v1501
      %v1503 = vrot.slane %v1479, 3
      %v1504 = vsel %vm400, %v1501, %v1503
      %v1505 = vrot.slane %v1480, 3
      %v1506 = vsel %vm400, %v1503, %v1505
      %v1515 = vadd.f32 %v1454, %v1492
      %v1516 = vadd.f32 %v1455, %v1494
      %v1517 = vadd.f32 %v1456, %v1496
      %v1518 = vadd.f32 %v1457, %v1498
      %v1519 = vadd.f32 %v1458, %v1500
      %v1520 = vadd.f32 %v1459, %v1502
      %v1521 = vadd.f32 %v1460, %v1504
      %v1522 = vadd.f32 %v1461, %v1506
      %v1523 = vld [vmem:[%s199 + $0x20] sm:$0xc]
      %v1524 = vunpack.c.l.bf16 %v1523
      %s1525 = scalar_lea.vmem %s1, 24
      %v1526 = vld [vmem:[%s1525] sm:$0x1]
      %v1528 = vlaneseq
      %v1529 = vshrl.u32 %v1528, 7
      %v1530 = vsub.s32 0, %v1529
      %v1531 = vrot.slane %v1526, %v1530
      %v1533 = vmul.f32 %v1524, %v1531
      %v1534 = vmul.f32 %v499, %v1531
      %v1535 = vmul.f32 %v770, %v1531
      %v1536 = vmul.f32 %v771, %v1531
      %v1537 = vmul.f32 %v1042, %v1531
      %v1538 = vmul.f32 %v1043, %v1531
      %v1539 = vmul.f32 %v1314, %v1531
      %v1540 = vmul.f32 %v1315, %v1531
      %v1541 = vmul.f32 %v1463, %v1531
      %v1551 = vrot.slane %v1533, 4
      %v1552 = vrot.slane %v1534, 4
      %v1553 = vsel %vm462, %v1551, %v1552
      %v1554 = vrot.slane %v1535, 4
      %v1555 = vsel %vm462, %v1552, %v1554
      %v1556 = vrot.slane %v1536, 4
      %v1557 = vsel %vm462, %v1554, %v1556
      %v1558 = vrot.slane %v1537, 4
      %v1559 = vsel %vm462, %v1556, %v1558
      %v1560 = vrot.slane %v1538, 4
      %v1561 = vsel %vm462, %v1558, %v1560
      %v1562 = vrot.slane %v1539, 4
      %v1563 = vsel %vm462, %v1560, %v1562
      %v1564 = vrot.slane %v1540, 4
      %v1565 = vsel %vm462, %v1562, %v1564
      %v1566 = vrot.slane %v1541, 4
      %v1567 = vsel %vm462, %v1564, %v1566
      %v1576 = vadd.f32 %v1515, %v1553
      %v1577 = vadd.f32 %v1516, %v1555
      %v1578 = vadd.f32 %v1517, %v1557
      %v1579 = vadd.f32 %v1518, %v1559
      %v1580 = vadd.f32 %v1519, %v1561
      %v1581 = vadd.f32 %v1520, %v1563
      %v1582 = vadd.f32 %v1521, %v1565
      %v1583 = vadd.f32 %v1522, %v1567
      %vm1584 = vcmask 523264
      %v1585 = vsel %vm1584, %v1576, 0.0
      %1586 = vadd.xlane.f32.xlu0 %v1585
      %v1587 = vpop.xlane.xlu0 %1586
      %v1588 = vsel %vm1584, %v1577, 0.0
      %1589 = vadd.xlane.f32.xlu0 %v1588
      %v1590 = vpop.xlane.xlu0 %1589
      %v1591 = vsel %vm1584, %v1578, 0.0
      %1592 = vadd.xlane.f32.xlu0 %v1591
      %v1593 = vpop.xlane.xlu0 %1592
      %v1594 = vsel %vm1584, %v1579, 0.0
      %1595 = vadd.xlane.f32.xlu0 %v1594
      %v1596 = vpop.xlane.xlu0 %1595
      %v1597 = vsel %vm1584, %v1580, 0.0
      %1598 = vadd.xlane.f32.xlu0 %v1597
      %v1599 = vpop.xlane.xlu0 %1598
      %v1600 = vsel %vm1584, %v1581, 0.0
      %1601 = vadd.xlane.f32.xlu0 %v1600
      %v1602 = vpop.xlane.xlu0 %1601
      %v1603 = vsel %vm1584, %v1582, 0.0
      %1604 = vadd.xlane.f32.xlu0 %v1603
      %v1605 = vpop.xlane.xlu0 %1604
      %v1606 = vsel %vm1584, %v1583, 0.0
      %1607 = vadd.xlane.f32.xlu0 %v1606
      %v1608 = vpop.xlane.xlu0 %1607
      %v1609 = vld [vmem:[#allocation2] sm:$0x1]
      %v1611 = vlaneseq
      %v1612 = vshrl.u32 %v1611, 7
      %v1613 = vsub.s32 0, %v1612
      %v1614 = vrot.slane %v1609, %v1613
      %v1616 = vadd.f32 %v1587, %v1614
      %v1617 = vadd.f32 %v1590, %v1614
      %v1618 = vadd.f32 %v1593, %v1614
      %v1619 = vadd.f32 %v1596, %v1614
      %v1620 = vadd.f32 %v1599, %v1614
      %v1621 = vadd.f32 %v1602, %v1614
      %v1622 = vadd.f32 %v1605, %v1614
      %v1623 = vadd.f32 %v1608, %v1614
      %vm1624 = vcmask 7168
      %1625 = vst.msk [vmem:[%s208] sm:$0xff] %vm1624, %v1616
      %1626 = vst.msk [vmem:[%s208 + $0x8] sm:$0xff] %vm1624, %v1617
      %1627 = vst.msk [vmem:[%s208 + $0x10] sm:$0xff] %vm1624, %v1618
      %1628 = vst.msk [vmem:[%s208 + $0x18] sm:$0xff] %vm1624, %v1619
      %1629 = vst.msk [vmem:[%s208 + $0x20] sm:$0xff] %vm1624, %v1620
      %1630 = vst.msk [vmem:[%s208 + $0x28] sm:$0xff] %vm1624, %v1621
      %1631 = vst.msk [vmem:[%s208 + $0x30] sm:$0xff] %vm1624, %v1622
      %1632 = vst.msk [vmem:[%s208 + $0x38] sm:$0xff] %vm1624, %v1623
      %p1633 = scmp.lt.s32.totalorder %s20, 1
      %s1634 = scalar_select %p1633, %s20, 1
      %p1635 = scmp.lt.s32.totalorder %s21, 0
      %s1636 = scalar_select %p1635, %s21, 0
      %s1637 = smul.addr %s1636, 8
      %s1638 = smul.addr %s1634, 8
      %s1639 = sadd.s32 %s1637, %s1638
      %s1640 = smul.addr %s1639, 8
      %s1641 = scalar_lea.vmem %s3, %s1640
      // Predicated region
      $region33: #{scale2_forward.12} parent=31 // pred_check
        %p1642 = pneg %p118
      $region34: #{scale2_forward.12} parent=31 // pred_check_branch
        %1644 = sbr.rel (%p1642) target = $region36
      $region35: #{scale2_forward.12} parent=31 // pred_region
        _
      $region36: #{scale2_forward.12} parent=31 // pred_fallthru
        _
    $region32: #{scale2_forward.12} parent=5 // pred_fallthru
      _
    %p1645 = scmp.le.s32.totalorder 2, %s11
    // Predicated region
    $region37: #{scale2_forward.12} parent=5 // pred_check
      %p1646 = pneg %p1645
    $region38: #{scale2_forward.12} parent=5 // pred_check_branch
      %1648 = sbr.rel (%p1646) target = $region40
    $region39: #{scale2_forward.12} parent=5 // pred_region
      %s1649 = ssub.s32 %s11, 2
      // Predicated region
      $region41: #{scale2_forward.12} parent=39 // pred_check
        %p1650 = pneg %p124
      $region42: #{scale2_forward.12} parent=39 // pred_check_branch
        %1652 = sbr.rel (%p1650) target = $region44
      $region43: #{scale2_forward.12} parent=39 // pred_region
        %p1653 = scmp.lt.s32.totalorder %s22, 1
        %s1654 = scalar_select %p1653, %s22, 1
        %p1655 = scmp.lt.s32.totalorder %s23, 0
        %s1656 = scalar_select %p1655, %s23, 0
        %s1657 = smul.addr %s1656, 8
        %s1658 = smul.addr %s1654, 8
        %s1659 = sadd.s32 %s1657, %s1658
        %s1660 = smul.addr %s1659, 8
        %s1661 = scalar_lea.vmem %s3, %s1660
      $region44: #{scale2_forward.12} parent=39 // pred_fallthru
        _
    $region40: #{scale2_forward.12} parent=5 // pred_fallthru
      _
  $region6: #{scale2_forward.12} parent=0 // loop_footer
    %s15 = sadd.s32 1, %s11
  $region7: #{scale2_forward.12} parent=0 // loop_footer_branch
    %10 = sbr.rel target = $region3
  $region8: #{scale2_forward.12} parent=0 // loop_exit
    _

// kernel: scale2_forward.10
$region0: #{scale2_forward.10}
  #allocation0 [shape = 'u32[]', space=smem, size = 0x4, offset = 0x4, fixed_abs, tag = 'smem constant byte address 0x4 - core index']
  #allocation1 [shape = 'u32[144,128]{1,0:T(1,128)}', space=vmem, size = 0x12000, scoped, tag = 'internal scratch']
  %s0 = inlined_call_operand.vmem [shape: bf16[2,1,144,64], index: 0, kind: input, shape index: {}]
  %s1 = inlined_call_operand.vmem [shape: bf16[15,64,128], index: 1, kind: input, shape index: {}]
  %s2 = inlined_call_operand.vmem [shape: f32[3,64], index: 2, kind: input, shape index: {}]
  %s3 = inlined_call_operand.vmem [shape: bf16[2,1,64,64], index: 3, kind: output, shape index: {}]
  %s4 = sld [smem:[#allocation0]]
  $region45: #{scale2_forward.10} parent=0
    _
  %s6 = ssub.s32 1, %s4
  %s7 = scalar_select 0, %s6, %s4
  loop: start=0, step=1, limit=4
  $region2: #{scale2_forward.10} parent=0 // loop_pre_header
    _
  $region3: #{scale2_forward.10} parent=0 // loop_header
    %s9 = sphi 0, %s13
    %p10 = scmp.ge.s32.totalorder %s9, 4
    %s16 = sphi 0, %s28
    %s17 = sphi 0, %s24
    %s18 = sphi 0, %s16
    %s19 = sphi 0, %s17
    %s20 = sphi 0, %s18
    %s21 = sphi 0, %s19
    %s33 = sphi 0, %s35
    %s36 = sphi 0, %s33
    %s37 = sphi 0, %s36
    %s53 = sphi 0, %s37
    %s57 = sphi 0, %s57
    %s59 = sphi 0, %s57
    %s60 = sphi 0, %s59
    %s74 = sphi 0, %s60
    %s78 = sphi 0, %s78
    %s80 = sphi 0, %s78
    %s81 = sphi 0, %s80
    %s95 = sphi 0, %s81
    %s103 = sphi 0, %s105
    %s106 = sphi 0, %s103
    %s107 = sphi 0, %s106
    %s123 = sphi 0, %s107
  $region4: #{scale2_forward.10} parent=0 // loop_header_branch
    %12 = sbr.rel (%p10) target = $region8
  $region5: #{scale2_forward.10} parent=0 // loop_body
    %s14 = ssub.s32 %s9, 1
    %s15 = ssub.s32 %s9, 2
    %s22 = sadd.s32 1, %s17
    %p23 = scmp.ge.s32.totalorder %s22, 1
    %s24 = scalar_select %p23, 0, %s22
    %s25 = sadd.s32 1, %s16
    %s26 = scalar_select %p23, %s25, %s16
    %p27 = scmp.ge.s32.totalorder %s26, 2
    %s28 = scalar_select %p27, 0, %s26
    %s29 = ssub.s32 %s16, %s28
    %s30 = ssub.s32 %s17, %s24
    %s31 = sor.u32 %s29, %s30
    %p32 = scmp.eq.s32.totalorder %s31, 0
    %s34 = sadd.s32 %s33, 1
    %s35 = scalar_select %p32, %s33, %s34
    %p38 = pneg %p32
    %p39 = scmp.eq.s32.totalorder %s9, 1
    %p40 = por %p38, %p39
    %p41 = scmp.ne.s32.totalorder %s33, %s36
    %p42 = scmp.eq.s32.totalorder %s9, 0
    %p43 = por %p41, %p42
    %p44 = scmp.ne.s32.totalorder %s33, %s36
    %p45 = scmp.eq.s32.totalorder %s14, 1
    %p46 = por %p44, %p45
    %p47 = scmp.ne.s32.totalorder %s36, %s37
    %p48 = scmp.eq.s32.totalorder %s14, 0
    %p49 = por %p47, %p48
    %p50 = scmp.ne.s32.totalorder %s36, %s37
    %p51 = scmp.eq.s32.totalorder %s15, 1
    %p52 = por %p50, %p51
    %p54 = scmp.ne.s32.totalorder %s37, %s53
    %p55 = scmp.eq.s32.totalorder %s15, 0
    %p56 = por %p54, %p55
    %s58 = sadd.s32 %s57, 1
    %p61 = scmp.eq.s32.totalorder %s9, 1
    %p62 = scmp.ne.s32.totalorder %s57, %s59
    %p63 = scmp.eq.s32.totalorder %s9, 0
    %p64 = por %p62, %p63
    %p65 = scmp.ne.s32.totalorder %s57, %s59
    %p66 = scmp.eq.s32.totalorder %s14, 1
    %p67 = por %p65, %p66
    %p68 = scmp.ne.s32.totalorder %s59, %s60
    %p69 = scmp.eq.s32.totalorder %s14, 0
    %p70 = por %p68, %p69
    %p71 = scmp.ne.s32.totalorder %s59, %s60
    %p72 = scmp.eq.s32.totalorder %s15, 1
    %p73 = por %p71, %p72
    %p75 = scmp.ne.s32.totalorder %s60, %s74
    %p76 = scmp.eq.s32.totalorder %s15, 0
    %p77 = por %p75, %p76
    %s79 = sadd.s32 %s78, 1
    %p82 = scmp.eq.s32.totalorder %s9, 1
    %p83 = scmp.ne.s32.totalorder %s78, %s80
    %p84 = scmp.eq.s32.totalorder %s9, 0
    %p85 = por %p83, %p84
    %p86 = scmp.ne.s32.totalorder %s78, %s80
    %p87 = scmp.eq.s32.totalorder %s14, 1
    %p88 = por %p86, %p87
    %p89 = scmp.ne.s32.totalorder %s80, %s81
    %p90 = scmp.eq.s32.totalorder %s14, 0
    %p91 = por %p89, %p90
    %p92 = scmp.ne.s32.totalorder %s80, %s81
    %p93 = scmp.eq.s32.totalorder %s15, 1
    %p94 = por %p92, %p93
    %p96 = scmp.ne.s32.totalorder %s81, %s95
    %p97 = scmp.eq.s32.totalorder %s15, 0
    %p98 = por %p96, %p97
    %s99 = ssub.s32 %s16, %s28
    %s100 = ssub.s32 %s17, %s24
    %s101 = sor.u32 %s99, %s100
    %p102 = scmp.eq.s32.totalorder %s101, 0
    %s104 = sadd.s32 %s103, 1
    %s105 = scalar_select %p102, %s103, %s104
    %p108 = pneg %p102
    %p109 = scmp.eq.s32.totalorder %s9, 1
    %p110 = por %p108, %p109
    %p111 = scmp.ne.s32.totalorder %s103, %s106
    %p112 = scmp.eq.s32.totalorder %s9, 0
    %p113 = por %p111, %p112
    %p114 = scmp.ne.s32.totalorder %s103, %s106
    %p115 = scmp.eq.s32.totalorder %s14, 1
    %p116 = por %p114, %p115
    %p117 = scmp.ne.s32.totalorder %s106, %s107
    %p118 = scmp.eq.s32.totalorder %s14, 0
    %p119 = por %p117, %p118
    %p120 = scmp.ne.s32.totalorder %s106, %s107
    %p121 = scmp.eq.s32.totalorder %s15, 1
    %p122 = por %p120, %p121
    %p124 = scmp.ne.s32.totalorder %s107, %s123
    %p125 = scmp.eq.s32.totalorder %s15, 0
    %p126 = por %p124, %p125
    %p127 = scmp.le.s32.totalorder 1, %s9
    %p128 = scmp.lt.s32.totalorder %s9, 3
    %p129 = pnand %p127, %p128
    %p130 = pneg %p129
    // Predicated region
    $region9: #{scale2_forward.10} parent=5 // pred_check
      _
    $region10: #{scale2_forward.10} parent=5 // pred_check_branch
      %132 = sbr.rel (%p129) target = $region12
    $region11: #{scale2_forward.10} parent=5 // pred_region
      %s133 = ssub.s32 %s9, 1
      // Predicated region
      $region13: #{scale2_forward.10} parent=11 // pred_check
        %p134 = pneg %p70
      $region14: #{scale2_forward.10} parent=11 // pred_check_branch
        %136 = sbr.rel (%p134) target = $region16
      $region15: #{scale2_forward.10} parent=11 // pred_region
        _
      $region16: #{scale2_forward.10} parent=11 // pred_fallthru
        _
      // Predicated region
      $region17: #{scale2_forward.10} parent=11 // pred_check
        %p137 = pneg %p91
      $region18: #{scale2_forward.10} parent=11 // pred_check_branch
        %139 = sbr.rel (%p137) target = $region20
      $region19: #{scale2_forward.10} parent=11 // pred_region
        _
      $region20: #{scale2_forward.10} parent=11 // pred_fallthru
        _
    $region12: #{scale2_forward.10} parent=5 // pred_fallthru
      _
    %p140 = scmp.lt.s32.totalorder %s9, 2
    // Predicated region
    $region21: #{scale2_forward.10} parent=5 // pred_check
      %p141 = pneg %p140
    $region22: #{scale2_forward.10} parent=5 // pred_check_branch
      %143 = sbr.rel (%p141) target = $region24
    $region23: #{scale2_forward.10} parent=5 // pred_region
      // Predicated region
      $region25: #{scale2_forward.10} parent=23 // pred_check
        %p144 = pneg %p43
      $region26: #{scale2_forward.10} parent=23 // pred_check_branch
        %146 = sbr.rel (%p144) target = $region28
      $region27: #{scale2_forward.10} parent=23 // pred_region
        %p147 = scmp.lt.s32.totalorder %s16, 1
        %s148 = scalar_select %p147, %s16, 1
        %p149 = scmp.lt.s32.totalorder %s17, 0
        %s150 = scalar_select %p149, %s17, 0
        %s151 = smul.addr %s150, 18
        %s152 = smul.addr %s148, 18
        %s153 = sadd.s32 %s151, %s152
        %s154 = smul.addr %s153, 4
        %s155 = scalar_lea.vmem %s0, %s154
      $region28: #{scale2_forward.10} parent=23 // pred_fallthru
        _
    $region24: #{scale2_forward.10} parent=5 // pred_fallthru
      _
    %p156 = scmp.le.s32.totalorder 1, %s9
    %p157 = scmp.lt.s32.totalorder %s9, 3
    %p158 = pnand %p156, %p157
    %p159 = pneg %p158
    // Predicated region
    $region29: #{scale2_forward.10} parent=5 // pred_check
      _
    $region30: #{scale2_forward.10} parent=5 // pred_check_branch
      %161 = sbr.rel (%p158) target = $region32
    $region31: #{scale2_forward.10} parent=5 // pred_region
      %s162 = ssub.s32 %s9, 1
      %p163 = scmp.lt.s32.totalorder %s18, 1
      %s164 = scalar_select %p163, %s18, 1
      %p165 = scmp.lt.s32.totalorder %s19, 0
      %s166 = scalar_select %p165, %s19, 0
      %s167 = smul.addr %s166, 18
      %s168 = smul.addr %s164, 18
      %s169 = sadd.s32 %s167, %s168
      %s170 = smul.addr %s169, 4
      %s171 = scalar_lea.vmem %s0, %s170
      %p172 = pneg %p49
      %p173 = pneg %p46
      %p174 = pneg %p70
      %p175 = pneg %p67
      %p176 = pneg %p91
      %p177 = pneg %p88
      %p178 = pneg %p119
      %p179 = pneg %p116
      %p180 = scmp.lt.s32.totalorder %s18, 1
      %s181 = scalar_select %p180, %s18, 1
      %p182 = scmp.lt.s32.totalorder %s19, 0
      %s183 = scalar_select %p182, %s19, 0
      %s184 = smul.addr %s183, 8
      %s185 = smul.addr %s181, 8
      %s186 = sadd.s32 %s184, %s185
      %s187 = smul.addr %s186, 4
      %s188 = scalar_lea.vmem %s3, %s187
      %p189 = scmp.lt.s32.totalorder %s18, 1
      %s190 = scalar_select %p189, %s18, 1
      %p191 = scmp.lt.s32.totalorder %s19, 0
      %s192 = scalar_select %p191, %s19, 0
      %s193 = smul.addr %s192, 18
      %s194 = smul.addr %s190, 18
      %s195 = sadd.s32 %s193, %s194
      %s196 = smul.addr %s195, 4
      %s197 = scalar_lea.vmem %s0, %s196
      %p198 = scmp.lt.s32.totalorder %s18, 1
      %s199 = scalar_select %p198, %s18, 1
      %p200 = scmp.lt.s32.totalorder %s19, 0
      %s201 = scalar_select %p200, %s19, 0
      %s202 = smul.addr %s201, 8
      %s203 = smul.addr %s199, 8
      %s204 = sadd.s32 %s202, %s203
      %s205 = smul.addr %s204, 4
      %s206 = scalar_lea.vmem %s3, %s205
      %v208 = vld [vmem:[%s197] sm:$0xf]
      %v209 = vld [vmem:[%s197 + $0x4] sm:$0xf]
      %v210 = vld [vmem:[%s197 + $0x8] sm:$0xf]
      %v211 = vld [vmem:[%s197 + $0xc] sm:$0xf]
      %v212 = vld [vmem:[%s197 + $0x10] sm:$0xf]
      %v213 = vld [vmem:[%s197 + $0x14] sm:$0xf]
      %v214 = vld [vmem:[%s197 + $0x18] sm:$0xf]
      %v215 = vld [vmem:[%s197 + $0x1c] sm:$0xf]
      %v216 = vld [vmem:[%s197 + $0x20] sm:$0x1]
      %v217 = vld [vmem:[%s1] sm:$0xf]
      %v218 = vld [vmem:[%s1 + $0x4] sm:$0xf]
      %v219 = vld [vmem:[%s1 + $0x8] sm:$0xf]
      %v220 = vld [vmem:[%s1 + $0xc] sm:$0xf]
      %v221 = vld [vmem:[%s1 + $0x10] sm:$0xf]
      %v222 = vld [vmem:[%s1 + $0x14] sm:$0xf]
      %v223 = vld [vmem:[%s1 + $0x18] sm:$0xf]
      %v224 = vld [vmem:[%s1 + $0x1c] sm:$0xf]
      %v225 = vld [vmem:[%s197] sm:$0xe]
      %v226 = vld [vmem:[%s197 + $0x20] sm:$0x3]
      %s227 = scalar_lea.vmem %s1, 32
      %v228 = vld [vmem:[%s227] sm:$0xf]
      %v229 = vld [vmem:[%s227 + $0x4] sm:$0xf]
      %v230 = vld [vmem:[%s227 + $0x8] sm:$0xf]
      %v231 = vld [vmem:[%s227 + $0xc] sm:$0xf]
      %v232 = vld [vmem:[%s227 + $0x10] sm:$0xf]
      %v233 = vld [vmem:[%s227 + $0x14] sm:$0xf]
      %v234 = vld [vmem:[%s227 + $0x18] sm:$0xf]
      %v235 = vld [vmem:[%s227 + $0x1c] sm:$0xf]
      %v245 = vunpack.c.l.b16 %v225
      %v246 = vunpack.c.l.b16 %v209
      %v247 = vunpack.c.l.b16 %v210
      %v248 = vunpack.c.l.b16 %v211
      %v249 = vunpack.c.l.b16 %v212
      %v250 = vunpack.c.l.b16 %v213
      %v251 = vunpack.c.l.b16 %v214
      %v252 = vunpack.c.l.b16 %v215
      %v253 = vunpack.c.l.b16 %v226
      %v254 = vpack.c.b16 %v246, %v245
      %v255 = vpack.c.b16 %v248, %v247
      %v256 = vpack.c.b16 %v250, %v249
      %v257 = vpack.c.b16 %v252, %v251
      %v258 = vpack.c.b16 %v253, %v253
      %vm259 = vcmask 1046528
      %v260 = vrot.slane %v254, 1
      %v261 = vrot.slane %v255, 1
      %v262 = vsel %vm259, %v260, %v261
      %v263 = vrot.slane %v256, 1
      %v264 = vsel %vm259, %v261, %v263
      %v265 = vrot.slane %v257, 1
      %v266 = vsel %vm259, %v263, %v265
      %v267 = vrot.slane %v258, 1
      %v268 = vsel %vm259, %v265, %v267
      %v277 = vunpack.c.l.b16 %v228
      %v278 = vunpack.c.l.b16 %v229
      %v279 = vunpack.c.l.b16 %v230
      %v280 = vunpack.c.l.b16 %v231
      %v281 = vunpack.c.l.b16 %v232
      %v282 = vunpack.c.l.b16 %v233
      %v283 = vunpack.c.l.b16 %v234
      %v284 = vunpack.c.l.b16 %v235
      %v285 = vpack.c.b16 %v278, %v277
      %v286 = vpack.c.b16 %v280, %v279
      %v287 = vpack.c.b16 %v282, %v281
      %v288 = vpack.c.b16 %v284, %v283
      %vm293 = vcmask 523264
      %v295 = vsel %vm293, %v262, 0
      %v298 = vsel %vm293, %v264, 0
      %v301 = vsel %vm293, %v266, 0
      %v304 = vsel %vm293, %v268, 0
      %v307 = vsel %vm293, %v267, 0
      %309 = vmatprep.subr.bf16.mxu0 0
      %310 = vmatpush1.bf16.msra.mxu0 %v285
      %311 = vmatprep.subr.bf16.mxu0 0
      %312 = vmatpush1.bf16.msra.mxu0 %v286
      %313 = vmatprep.subr.bf16.mxu0 0
      %314 = vmatpush1.bf16.msra.mxu0 %v287
      %315 = vmatprep.subr.bf16.mxu0 0
      %316 = vmatpush1.bf16.msra.mxu0 %v288
      %317 = vmatprep.subr.bf16.mxu0 0
      %318 = vmatpush1.bf16.msra.mxu0 0
      %319 = vmatprep.subr.bf16.mxu0 0
      %320 = vmatpush1.bf16.msra.mxu0 0
      %321 = vmatprep.subr.bf16.mxu0 0
      %322 = vmatpush1.bf16.msra.mxu0 0
      %323 = vmatprep.subr.bf16.mxu0 0
      %324 = vmatpush1.bf16.msra.mxu0 0
      %325 = vmatprep.subr.bf16.mxu0 0
      %326 = vmatpush1.bf16.msra.mxu0 0
      %327 = vmatprep.subr.bf16.mxu0 0
      %328 = vmatpush1.bf16.msra.mxu0 0
      %329 = vmatprep.subr.bf16.mxu0 0
      %330 = vmatpush1.bf16.msra.mxu0 0
      %331 = vmatprep.subr.bf16.mxu0 0
      %332 = vmatpush1.bf16.msra.mxu0 0
      %333 = vmatprep.subr.bf16.mxu0 0
      %334 = vmatpush1.bf16.msra.mxu0 0
      %335 = vmatprep.subr.bf16.mxu0 0
      %336 = vmatpush1.bf16.msra.mxu0 0
      %337 = vmatprep.subr.bf16.mxu0 0
      %338 = vmatpush1.bf16.msra.mxu0 0
      %339 = vmatprep.subr.bf16.mxu0 0
      %340 = vmatpush1.bf16.msra.mxu0 0
      %341 = vmatprep.mubr.bf16.mxu0 0
      %342 = vmatmul.mubr.bf16.gmra.mrb[0].mxu0 %v295
      %v343 = vpop.f32.mrb[0].mxu0
      %v344 = vadd.f32 0.0, %v343
      %v345 = vpop.f32.mrb[0].mxu0
      %v346 = vpop.f32.mrb[0].mxu0
      %v347 = vadd.f32 0.0, %v346
      %v348 = vpop.f32.mrb[0].mxu0
      %349 = vmatprep.mubr.bf16.mxu0 0
      %350 = vmatmul.mubr.bf16.gmra.mrb[0].mxu0 %v298
      %v351 = vpop.f32.mrb[0].mxu0
      %v352 = vadd.f32 0.0, %v351
      %v353 = vpop.f32.mrb[0].mxu0
      %v354 = vpop.f32.mrb[0].mxu0
      %v355 = vadd.f32 0.0, %v354
      %v356 = vpop.f32.mrb[0].mxu0
      %357 = vmatprep.mubr.bf16.mxu0 0
      %358 = vmatmul.mubr.bf16.gmra.mrb[0].mxu0 %v301
      %v359 = vpop.f32.mrb[0].mxu0
      %v360 = vadd.f32 0.0, %v359
      %v361 = vpop.f32.mrb[0].mxu0
      %v362 = vpop.f32.mrb[0].mxu0
      %v363 = vadd.f32 0.0, %v362
      %v364 = vpop.f32.mrb[0].mxu0
      %365 = vmatprep.mubr.bf16.mxu0 0
      %366 = vmatmul.mubr.bf16.gmra.mrb[0].mxu0 %v304
      %v367 = vpop.f32.mrb[0].mxu0
      %v368 = vadd.f32 0.0, %v367
      %v369 = vpop.f32.mrb[0].mxu0
      %v370 = vpop.f32.mrb[0].mxu0
      %v371 = vadd.f32 0.0, %v370
      %v372 = vpop.f32.mrb[0].mxu0
      %373 = vmatprep.mubr.bf16.mxu0 0
      %374 = vmatmul.mubr.bf16.gmra.mrb[0].mxu0 %v307
      %v375 = vpop.f32.mrb[0].mxu0
      %v376 = vadd.f32 0.0, %v375
      %v377 = vpop.f32.mrb[0].mxu0
      %v378 = vpop.f32.mrb[0].mxu0
      %v379 = vpop.f32.mrb[0].mxu0
      %380 = vdwg.mxu0
      %v383 = vunpack.c.l.b16 %v208
      %v384 = vunpack.c.l.b16 %v216
      %v385 = vpack.c.b16 %v246, %v383
      %v386 = vpack.c.b16 %v384, %v384
      %v395 = vunpack.c.l.b16 %v217
      %v396 = vunpack.c.l.b16 %v218
      %v397 = vunpack.c.l.b16 %v219
      %v398 = vunpack.c.l.b16 %v220
      %v399 = vunpack.c.l.b16 %v221
      %v400 = vunpack.c.l.b16 %v222
      %v401 = vunpack.c.l.b16 %v223
      %v402 = vunpack.c.l.b16 %v224
      %v403 = vpack.c.b16 %v396, %v395
      %v404 = vpack.c.b16 %v398, %v397
      %v405 = vpack.c.b16 %v400, %v399
      %v406 = vpack.c.b16 %v402, %v401
      %v412 = vsel %vm293, %v385, 0
      %v415 = vsel %vm293, %v255, 0
      %v418 = vsel %vm293, %v256, 0
      %v421 = vsel %vm293, %v257, 0
      %v424 = vsel %vm293, %v386, 0
      %426 = vmatprep.subr.bf16.mxu0 0
      %427 = vmatpush1.bf16.msra.mxu0 %v403
      %428 = vmatprep.subr.bf16.mxu0 0
      %429 = vmatpush1.bf16.msra.mxu0 %v404
      %430 = vmatprep.subr.bf16.mxu0 0
      %431 = vmatpush1.bf16.msra.mxu0 %v405
      %432 = vmatprep.subr.bf16.mxu0 0
      %433 = vmatpush1.bf16.msra.mxu0 %v406
      %434 = vmatprep.subr.bf16.mxu0 0
      %435 = vmatpush1.bf16.msra.mxu0 0
      %436 = vmatprep.subr.bf16.mxu0 0
      %437 = vmatpush1.bf16.msra.mxu0 0
      %438 = vmatprep.subr.bf16.mxu0 0
      %439 = vmatpush1.bf16.msra.mxu0 0
      %440 = vmatprep.subr.bf16.mxu0 0
      %441 = vmatpush1.bf16.msra.mxu0 0
      %442 = vmatprep.subr.bf16.mxu0 0
      %443 = vmatpush1.bf16.msra.mxu0 0
      %444 = vmatprep.subr.bf16.mxu0 0
      %445 = vmatpush1.bf16.msra.mxu0 0
      %446 = vmatprep.subr.bf16.mxu0 0
      %447 = vmatpush1.bf16.msra.mxu0 0
      %448 = vmatprep.subr.bf16.mxu0 0
      %449 = vmatpush1.bf16.msra.mxu0 0
      %450 = vmatprep.subr.bf16.mxu0 0
      %451 = vmatpush1.bf16.msra.mxu0 0
      %452 = vmatprep.subr.bf16.mxu0 0
      %453 = vmatpush1.bf16.msra.mxu0 0
      %454 = vmatprep.subr.bf16.mxu0 0
      %455 = vmatpush1.bf16.msra.mxu0 0
      %456 = vmatprep.subr.bf16.mxu0 0
      %457 = vmatpush1.bf16.msra.mxu0 0
      %458 = vmatprep.mubr.bf16.mxu0 0
      %459 = vmatmul.mubr.bf16.gmra.mrb[0].mxu0 %v412
      %v460 = vpop.f32.mrb[0].mxu0
      %v461 = vadd.f32 %v344, %v460
      %v462 = vpop.f32.mrb[0].mxu0
      %v463 = vpop.f32.mrb[0].mxu0
      %v464 = vadd.f32 %v347, %v463
      %v465 = vpop.f32.mrb[0].mxu0
      %466 = vmatprep.mubr.bf16.mxu0 0
      %467 = vmatmul.mubr.bf16.gmra.mrb[0].mxu0 %v415
      %v468 = vpop.f32.mrb[0].mxu0
      %v469 = vadd.f32 %v352, %v468
      %v470 = vpop.f32.mrb[0].mxu0
      %v471 = vpop.f32.mrb[0].mxu0
      %v472 = vadd.f32 %v355, %v471
      %v473 = vpop.f32.mrb[0].mxu0
      %474 = vmatprep.mubr.bf16.mxu0 0
      %475 = vmatmul.mubr.bf16.gmra.mrb[0].mxu0 %v418
      %v476 = vpop.f32.mrb[0].mxu0
      %v477 = vadd.f32 %v360, %v476
      %v478 = vpop.f32.mrb[0].mxu0
      %v479 = vpop.f32.mrb[0].mxu0
      %v480 = vadd.f32 %v363, %v479
      %v481 = vpop.f32.mrb[0].mxu0
      %482 = vmatprep.mubr.bf16.mxu0 0
      %483 = vmatmul.mubr.bf16.gmra.mrb[0].mxu0 %v421
      %v484 = vpop.f32.mrb[0].mxu0
      %v485 = vadd.f32 %v368, %v484
      %v486 = vpop.f32.mrb[0].mxu0
      %v487 = vpop.f32.mrb[0].mxu0
      %v488 = vadd.f32 %v371, %v487
      %v489 = vpop.f32.mrb[0].mxu0
      %490 = vmatprep.mubr.bf16.mxu0 0
      %491 = vmatmul.mubr.bf16.gmra.mrb[0].mxu0 %v424
      %v492 = vpop.f32.mrb[0].mxu0
      %v493 = vadd.f32 %v376, %v492
      %v494 = vpop.f32.mrb[0].mxu0
      %v495 = vpop.f32.mrb[0].mxu0
      %v496 = vpop.f32.mrb[0].mxu0
      %497 = vdwg.mxu0
      %v498 = vld [vmem:[%s197] sm:$0xc]
      %v499 = vld [vmem:[%s197 + $0x20] sm:$0x7]
      %s500 = scalar_lea.vmem %s1, 64
      %v501 = vld [vmem:[%s500] sm:$0xf]
      %v502 = vld [vmem:[%s500 + $0x4] sm:$0xf]
      %v503 = vld [vmem:[%s500 + $0x8] sm:$0xf]
      %v504 = vld [vmem:[%s500 + $0xc] sm:$0xf]
      %v505 = vld [vmem:[%s500 + $0x10] sm:$0xf]
      %v506 = vld [vmem:[%s500 + $0x14] sm:$0xf]
      %v507 = vld [vmem:[%s500 + $0x18] sm:$0xf]
      %v508 = vld [vmem:[%s500 + $0x1c] sm:$0xf]
      %v511 = vunpack.c.l.b16 %v498
      %v512 = vunpack.c.l.b16 %v499
      %v513 = vpack.c.b16 %v246, %v511
      %v514 = vpack.c.b16 %v512, %v512
      %vm515 = vcmask 1045504
      %v516 = vrot.slane %v513, 2
      %v517 = vrot.slane %v255, 2
      %v518 = vsel %vm515, %v516, %v517
      %v519 = vrot.slane %v256, 2
      %v520 = vsel %vm515, %v517, %v519
      %v521 = vrot.slane %v257, 2
      %v522 = vsel %vm515, %v519, %v521
      %v523 = vrot.slane %v514, 2
      %v524 = vsel %vm515, %v521, %v523
      %v533 = vunpack.c.l.b16 %v501
      %v534 = vunpack.c.l.b16 %v502
      %v535 = vunpack.c.l.b16 %v503
      %v536 = vunpack.c.l.b16 %v504
      %v537 = vunpack.c.l.b16 %v505
      %v538 = vunpack.c.l.b16 %v506
      %v539 = vunpack.c.l.b16 %v507
      %v540 = vunpack.c.l.b16 %v508
      %v541 = vpack.c.b16 %v534, %v533
      %v542 = vpack.c.b16 %v536, %v535
      %v543 = vpack.c.b16 %v538, %v537
      %v544 = vpack.c.b16 %v540, %v539
      %v550 = vsel %vm293, %v518, 0
      %v553 = vsel %vm293, %v520, 0
      %v556 = vsel %vm293, %v522, 0
      %v559 = vsel %vm293, %v524, 0
      %v562 = vsel %vm293, %v523, 0
      %564 = vmatprep.subr.bf16.mxu0 0
      %565 = vmatpush1.bf16.msra.mxu0 %v541
      %566 = vmatprep.subr.bf16.mxu0 0
      %567 = vmatpush1.bf16.msra.mxu0 %v542
      %568 = vmatprep.subr.bf16.mxu0 0
      %569 = vmatpush1.bf16.msra.mxu0 %v543
      %570 = vmatprep.subr.bf16.mxu0 0
      %571 = vmatpush1.bf16.msra.mxu0 %v544
      %572 = vmatprep.subr.bf16.mxu0 0
      %573 = vmatpush1.bf16.msra.mxu0 0
      %574 = vmatprep.subr.bf16.mxu0 0
      %575 = vmatpush1.bf16.msra.mxu0 0
      %576 = vmatprep.subr.bf16.mxu0 0
      %577 = vmatpush1.bf16.msra.mxu0 0
      %578 = vmatprep.subr.bf16.mxu0 0
      %579 = vmatpush1.bf16.msra.mxu0 0
      %580 = vmatprep.subr.bf16.mxu0 0
      %581 = vmatpush1.bf16.msra.mxu0 0
      %582 = vmatprep.subr.bf16.mxu0 0
      %583 = vmatpush1.bf16.msra.mxu0 0
      %584 = vmatprep.subr.bf16.mxu0 0
      %585 = vmatpush1.bf16.msra.mxu0 0
      %586 = vmatprep.subr.bf16.mxu0 0
      %587 = vmatpush1.bf16.msra.mxu0 0
      %588 = vmatprep.subr.bf16.mxu0 0
      %589 = vmatpush1.bf16.msra.mxu0 0
      %590 = vmatprep.subr.bf16.mxu0 0
      %591 = vmatpush1.bf16.msra.mxu0 0
      %592 = vmatprep.subr.bf16.mxu0 0
      %593 = vmatpush1.bf16.msra.mxu0 0
      %594 = vmatprep.subr.bf16.mxu0 0
      %595 = vmatpush1.bf16.msra.mxu0 0
      %596 = vmatprep.mubr.bf16.mxu0 0
      %597 = vmatmul.mubr.bf16.gmra.mrb[0].mxu0 %v550
      %v598 = vpop.f32.mrb[0].mxu0
      %v599 = vadd.f32 0.0, %v598
      %v600 = vpop.f32.mrb[0].mxu0
      %v601 = vpop.f32.mrb[0].mxu0
      %v602 = vadd.f32 0.0, %v601
      %v603 = vpop.f32.mrb[0].mxu0
      %604 = vmatprep.mubr.bf16.mxu0 0
      %605 = vmatmul.mubr.bf16.gmra.mrb[0].mxu0 %v553
      %v606 = vpop.f32.mrb[0].mxu0
      %v607 = vadd.f32 0.0, %v606
      %v608 = vpop.f32.mrb[0].mxu0
      %v609 = vpop.f32.mrb[0].mxu0
      %v610 = vadd.f32 0.0, %v609
      %v611 = vpop.f32.mrb[0].mxu0
      %612 = vmatprep.mubr.bf16.mxu0 0
      %613 = vmatmul.mubr.bf16.gmra.mrb[0].mxu0 %v556
      %v614 = vpop.f32.mrb[0].mxu0
      %v615 = vadd.f32 0.0, %v614
      %v616 = vpop.f32.mrb[0].mxu0
      %v617 = vpop.f32.mrb[0].mxu0
      %v618 = vadd.f32 0.0, %v617
      %v619 = vpop.f32.mrb[0].mxu0
      %620 = vmatprep.mubr.bf16.mxu0 0
      %621 = vmatmul.mubr.bf16.gmra.mrb[0].mxu0 %v559
      %v622 = vpop.f32.mrb[0].mxu0
      %v623 = vadd.f32 0.0, %v622
      %v624 = vpop.f32.mrb[0].mxu0
      %v625 = vpop.f32.mrb[0].mxu0
      %v626 = vadd.f32 0.0, %v625
      %v627 = vpop.f32.mrb[0].mxu0
      %628 = vmatprep.mubr.bf16.mxu0 0
      %629 = vmatmul.mubr.bf16.gmra.mrb[0].mxu0 %v562
      %v630 = vpop.f32.mrb[0].mxu0
      %v631 = vadd.f32 0.0, %v630
      %v632 = vpop.f32.mrb[0].mxu0
      %v633 = vpop.f32.mrb[0].mxu0
      %v634 = vpop.f32.mrb[0].mxu0
      %635 = vdwg.mxu0
      %v636 = vadd.f32 %v461, %v599
      %v637 = vadd.f32 %v464, %v602
      %v638 = vadd.f32 %v469, %v607
      %v639 = vadd.f32 %v472, %v610
      %v640 = vadd.f32 %v477, %v615
      %v641 = vadd.f32 %v480, %v618
      %v642 = vadd.f32 %v485, %v623
      %v643 = vadd.f32 %v488, %v626
      %v644 = vadd.f32 %v493, %v631
      %v645 = vld [vmem:[%s197 + $0x8] sm:$0xf]
      %v646 = vld [vmem:[%s197 + $0xc] sm:$0xf]
      %v647 = vld [vmem:[%s197 + $0x10] sm:$0xf]
      %v648 = vld [vmem:[%s197 + $0x14] sm:$0xf]
      %v649 = vld [vmem:[%s197 + $0x18] sm:$0xf]
      %v650 = vld [vmem:[%s197 + $0x1c] sm:$0xf]
      %v651 = vld [vmem:[%s197 + $0x20] sm:$0xf]
      %v652 = vld [vmem:[%s197 + $0x24] sm:$0xf]
      %v653 = vld [vmem:[%s197 + $0x28] sm:$0x1]
      %s654 = scalar_lea.vmem %s1, 96
      %v655 = vld [vmem:[%s654] sm:$0xf]
      %v656 = vld [vmem:[%s654 + $0x4] sm:$0xf]
      %v657 = vld [vmem:[%s654 + $0x8] sm:$0xf]
      %v658 = vld [vmem:[%s654 + $0xc] sm:$0xf]
      %v659 = vld [vmem:[%s654 + $0x10] sm:$0xf]
      %v660 = vld [vmem:[%s654 + $0x14] sm:$0xf]
      %v661 = vld [vmem:[%s654 + $0x18] sm:$0xf]
      %v662 = vld [vmem:[%s654 + $0x1c] sm:$0xf]
      %v672 = vunpack.c.l.b16 %v645
      %v673 = vunpack.c.l.b16 %v646
      %v674 = vunpack.c.l.b16 %v647
      %v675 = vunpack.c.l.b16 %v648
      %v676 = vunpack.c.l.b16 %v649
      %v677 = vunpack.c.l.b16 %v650
      %v678 = vunpack.c.l.b16 %v651
      %v679 = vunpack.c.l.b16 %v652
      %v680 = vunpack.c.l.b16 %v653
      %v681 = vpack.c.b16 %v673, %v672
      %v682 = vpack.c.b16 %v675, %v674
      %v683 = vpack.c.b16 %v677, %v676
      %v684 = vpack.c.b16 %v679, %v678
      %v685 = vpack.c.b16 %v680, %v680
      %v694 = vunpack.c.l.b16 %v655
      %v695 = vunpack.c.l.b16 %v656
      %v696 = vunpack.c.l.b16 %v657
      %v697 = vunpack.c.l.b16 %v658
      %v698 = vunpack.c.l.b16 %v659
      %v699 = vunpack.c.l.b16 %v660
      %v700 = vunpack.c.l.b16 %v661
      %v701 = vunpack.c.l.b16 %v662
      %v702 = vpack.c.b16 %v695, %v694
      %v703 = vpack.c.b16 %v697, %v696
      %v704 = vpack.c.b16 %v699, %v698
      %v705 = vpack.c.b16 %v701, %v700
      %v711 = vsel %vm293, %v681, 0
      %v714 = vsel %vm293, %v682, 0
      %v717 = vsel %vm293, %v683, 0
      %v720 = vsel %vm293, %v684, 0
      %v723 = vsel %vm293, %v685, 0
      %725 = vmatprep.subr.bf16.mxu0 0
      %726 = vmatpush1.bf16.msra.mxu0 %v702
      %727 = vmatprep.subr.bf16.mxu0 0
      %728 = vmatpush1.bf16.msra.mxu0 %v703
      %729 = vmatprep.subr.bf16.mxu0 0
      %730 = vmatpush1.bf16.msra.mxu0 %v704
      %731 = vmatprep.subr.bf16.mxu0 0
      %732 = vmatpush1.bf16.msra.mxu0 %v705
      %733 = vmatprep.subr.bf16.mxu0 0
      %734 = vmatpush1.bf16.msra.mxu0 0
      %735 = vmatprep.subr.bf16.mxu0 0
      %736 = vmatpush1.bf16.msra.mxu0 0
      %737 = vmatprep.subr.bf16.mxu0 0
      %738 = vmatpush1.bf16.msra.mxu0 0
      %739 = vmatprep.subr.bf16.mxu0 0
      %740 = vmatpush1.bf16.msra.mxu0 0
      %741 = vmatprep.subr.bf16.mxu0 0
      %742 = vmatpush1.bf16.msra.mxu0 0
      %743 = vmatprep.subr.bf16.mxu0 0
      %744 = vmatpush1.bf16.msra.mxu0 0
      %745 = vmatprep.subr.bf16.mxu0 0
      %746 = vmatpush1.bf16.msra.mxu0 0
      %747 = vmatprep.subr.bf16.mxu0 0
      %748 = vmatpush1.bf16.msra.mxu0 0
      %749 = vmatprep.subr.bf16.mxu0 0
      %750 = vmatpush1.bf16.msra.mxu0 0
      %751 = vmatprep.subr.bf16.mxu0 0
      %752 = vmatpush1.bf16.msra.mxu0 0
      %753 = vmatprep.subr.bf16.mxu0 0
      %754 = vmatpush1.bf16.msra.mxu0 0
      %755 = vmatprep.subr.bf16.mxu0 0
      %756 = vmatpush1.bf16.msra.mxu0 0
      %757 = vmatprep.mubr.bf16.mxu0 0
      %758 = vmatmul.mubr.bf16.gmra.mrb[0].mxu0 %v711
      %v759 = vpop.f32.mrb[0].mxu0
      %v760 = vadd.f32 0.0, %v759
      %v761 = vpop.f32.mrb[0].mxu0
      %v762 = vpop.f32.mrb[0].mxu0
      %v763 = vadd.f32 0.0, %v762
      %v764 = vpop.f32.mrb[0].mxu0
      %765 = vmatprep.mubr.bf16.mxu0 0
      %766 = vmatmul.mubr.bf16.gmra.mrb[0].mxu0 %v714
      %v767 = vpop.f32.mrb[0].mxu0
      %v768 = vadd.f32 0.0, %v767
      %v769 = vpop.f32.mrb[0].mxu0
      %v770 = vpop.f32.mrb[0].mxu0
      %v771 = vadd.f32 0.0, %v770
      %v772 = vpop.f32.mrb[0].mxu0
      %773 = vmatprep.mubr.bf16.mxu0 0
      %774 = vmatmul.mubr.bf16.gmra.mrb[0].mxu0 %v717
      %v775 = vpop.f32.mrb[0].mxu0
      %v776 = vadd.f32 0.0, %v775
      %v777 = vpop.f32.mrb[0].mxu0
      %v778 = vpop.f32.mrb[0].mxu0
      %v779 = vadd.f32 0.0, %v778
      %v780 = vpop.f32.mrb[0].mxu0
      %781 = vmatprep.mubr.bf16.mxu0 0
      %782 = vmatmul.mubr.bf16.gmra.mrb[0].mxu0 %v720
      %v783 = vpop.f32.mrb[0].mxu0
      %v784 = vadd.f32 0.0, %v783
      %v785 = vpop.f32.mrb[0].mxu0
      %v786 = vpop.f32.mrb[0].mxu0
      %v787 = vadd.f32 0.0, %v786
      %v788 = vpop.f32.mrb[0].mxu0
      %789 = vmatprep.mubr.bf16.mxu0 0
      %790 = vmatmul.mubr.bf16.gmra.mrb[0].mxu0 %v723
      %v791 = vpop.f32.mrb[0].mxu0
      %v792 = vadd.f32 0.0, %v791
      %v793 = vpop.f32.mrb[0].mxu0
      %v794 = vpop.f32.mrb[0].mxu0
      %v795 = vpop.f32.mrb[0].mxu0
      %796 = vdwg.mxu0
      %v797 = vadd.f32 %v636, %v760
      %v798 = vadd.f32 %v637, %v763
      %v799 = vadd.f32 %v638, %v768
      %v800 = vadd.f32 %v639, %v771
      %v801 = vadd.f32 %v640, %v776
      %v802 = vadd.f32 %v641, %v779
      %v803 = vadd.f32 %v642, %v784
      %v804 = vadd.f32 %v643, %v787
      %v805 = vadd.f32 %v644, %v792
      %v806 = vld [vmem:[%s197 + $0x8] sm:$0xe]
      %v807 = vld [vmem:[%s197 + $0x28] sm:$0x3]
      %s808 = scalar_lea.vmem %s1, 128
      %v809 = vld [vmem:[%s808] sm:$0xf]
      %v810 = vld [vmem:[%s808 + $0x4] sm:$0xf]
      %v811 = vld [vmem:[%s808 + $0x8] sm:$0xf]
      %v812 = vld [vmem:[%s808 + $0xc] sm:$0xf]
      %v813 = vld [vmem:[%s808 + $0x10] sm:$0xf]
      %v814 = vld [vmem:[%s808 + $0x14] sm:$0xf]
      %v815 = vld [vmem:[%s808 + $0x18] sm:$0xf]
      %v816 = vld [vmem:[%s808 + $0x1c] sm:$0xf]
      %v819 = vunpack.c.l.b16 %v806
      %v820 = vunpack.c.l.b16 %v807
      %v821 = vpack.c.b16 %v673, %v819
      %v822 = vpack.c.b16 %v820, %v820
      %v823 = vrot.slane %v821, 1
      %v824 = vrot.slane %v682, 1
      %v825 = vsel %vm259, %v823, %v824
      %v826 = vrot.slane %v683, 1
      %v827 = vsel %vm259, %v824, %v826
      %v828 = vrot.slane %v684, 1
      %v829 = vsel %vm259, %v826, %v828
      %v830 = vrot.slane %v822, 1
      %v831 = vsel %vm259, %v828, %v830
      %v840 = vunpack.c.l.b16 %v809
      %v841 = vunpack.c.l.b16 %v810
      %v842 = vunpack.c.l.b16 %v811
      %v843 = vunpack.c.l.b16 %v812
      %v844 = vunpack.c.l.b16 %v813
      %v845 = vunpack.c.l.b16 %v814
      %v846 = vunpack.c.l.b16 %v815
      %v847 = vunpack.c.l.b16 %v816
      %v848 = vpack.c.b16 %v841, %v840
      %v849 = vpack.c.b16 %v843, %v842
      %v850 = vpack.c.b16 %v845, %v844
      %v851 = vpack.c.b16 %v847, %v846
      %v857 = vsel %vm293, %v825, 0
      %v860 = vsel %vm293, %v827, 0
      %v863 = vsel %vm293, %v829, 0
      %v866 = vsel %vm293, %v831, 0
      %v869 = vsel %vm293, %v830, 0
      %871 = vmatprep.subr.bf16.mxu0 0
      %872 = vmatpush1.bf16.msra.mxu0 %v848
      %873 = vmatprep.subr.bf16.mxu0 0
      %874 = vmatpush1.bf16.msra.mxu0 %v849
      %875 = vmatprep.subr.bf16.mxu0 0
      %876 = vmatpush1.bf16.msra.mxu0 %v850
      %877 = vmatprep.subr.bf16.mxu0 0
      %878 = vmatpush1.bf16.msra.mxu0 %v851
      %879 = vmatprep.subr.bf16.mxu0 0
      %880 = vmatpush1.bf16.msra.mxu0 0
      %881 = vmatprep.subr.bf16.mxu0 0
      %882 = vmatpush1.bf16.msra.mxu0 0
      %883 = vmatprep.subr.bf16.mxu0 0
      %884 = vmatpush1.bf16.msra.mxu0 0
      %885 = vmatprep.subr.bf16.mxu0 0
      %886 = vmatpush1.bf16.msra.mxu0 0
      %887 = vmatprep.subr.bf16.mxu0 0
      %888 = vmatpush1.bf16.msra.mxu0 0
      %889 = vmatprep.subr.bf16.mxu0 0
      %890 = vmatpush1.bf16.msra.mxu0 0
      %891 = vmatprep.subr.bf16.mxu0 0
      %892 = vmatpush1.bf16.msra.mxu0 0
      %893 = vmatprep.subr.bf16.mxu0 0
      %894 = vmatpush1.bf16.msra.mxu0 0
      %895 = vmatprep.subr.bf16.mxu0 0
      %896 = vmatpush1.bf16.msra.mxu0 0
      %897 = vmatprep.subr.bf16.mxu0 0
      %898 = vmatpush1.bf16.msra.mxu0 0
      %899 = vmatprep.subr.bf16.mxu0 0
      %900 = vmatpush1.bf16.msra.mxu0 0
      %901 = vmatprep.subr.bf16.mxu0 0
      %902 = vmatpush1.bf16.msra.mxu0 0
      %903 = vmatprep.mubr.bf16.mxu0 0
      %904 = vmatmul.mubr.bf16.gmra.mrb[0].mxu0 %v857
      %v905 = vpop.f32.mrb[0].mxu0
      %v906 = vadd.f32 0.0, %v905
      %v907 = vpop.f32.mrb[0].mxu0
      %v908 = vpop.f32.mrb[0].mxu0
      %v909 = vadd.f32 0.0, %v908
      %v910 = vpop.f32.mrb[0].mxu0
      %911 = vmatprep.mubr.bf16.mxu0 0
      %912 = vmatmul.mubr.bf16.gmra.mrb[0].mxu0 %v860
      %v913 = vpop.f32.mrb[0].mxu0
      %v914 = vadd.f32 0.0, %v913
      %v915 = vpop.f32.mrb[0].mxu0
      %v916 = vpop.f32.mrb[0].mxu0
      %v917 = vadd.f32 0.0, %v916
      %v918 = vpop.f32.mrb[0].mxu0
      %919 = vmatprep.mubr.bf16.mxu0 0
      %920 = vmatmul.mubr.bf16.gmra.mrb[0].mxu0 %v863
      %v921 = vpop.f32.mrb[0].mxu0
      %v922 = vadd.f32 0.0, %v921
      %v923 = vpop.f32.mrb[0].mxu0
      %v924 = vpop.f32.mrb[0].mxu0
      %v925 = vadd.f32 0.0, %v924
      %v926 = vpop.f32.mrb[0].mxu0
      %927 = vmatprep.mubr.bf16.mxu0 0
      %928 = vmatmul.mubr.bf16.gmra.mrb[0].mxu0 %v866
      %v929 = vpop.f32.mrb[0].mxu0
      %v930 = vadd.f32 0.0, %v929
      %v931 = vpop.f32.mrb[0].mxu0
      %v932 = vpop.f32.mrb[0].mxu0
      %v933 = vadd.f32 0.0, %v932
      %v934 = vpop.f32.mrb[0].mxu0
      %935 = vmatprep.mubr.bf16.mxu0 0
      %936 = vmatmul.mubr.bf16.gmra.mrb[0].mxu0 %v869
      %v937 = vpop.f32.mrb[0].mxu0
      %v938 = vadd.f32 0.0, %v937
      %v939 = vpop.f32.mrb[0].mxu0
      %v940 = vpop.f32.mrb[0].mxu0
      %v941 = vpop.f32.mrb[0].mxu0
      %942 = vdwg.mxu0
      %v943 = vadd.f32 %v797, %v906
      %v944 = vadd.f32 %v798, %v909
      %v945 = vadd.f32 %v799, %v914
      %v946 = vadd.f32 %v800, %v917
      %v947 = vadd.f32 %v801, %v922
      %v948 = vadd.f32 %v802, %v925
      %v949 = vadd.f32 %v803, %v930
      %v950 = vadd.f32 %v804, %v933
      %v951 = vadd.f32 %v805, %v938
      %v952 = vld [vmem:[%s197 + $0x8] sm:$0xc]
      %v953 = vld [vmem:[%s197 + $0x28] sm:$0x7]
      %s954 = scalar_lea.vmem %s1, 160
      %v955 = vld [vmem:[%s954] sm:$0xf]
      %v956 = vld [vmem:[%s954 + $0x4] sm:$0xf]
      %v957 = vld [vmem:[%s954 + $0x8] sm:$0xf]
      %v958 = vld [vmem:[%s954 + $0xc] sm:$0xf]
      %v959 = vld [vmem:[%s954 + $0x10] sm:$0xf]
      %v960 = vld [vmem:[%s954 + $0x14] sm:$0xf]
      %v961 = vld [vmem:[%s954 + $0x18] sm:$0xf]
      %v962 = vld [vmem:[%s954 + $0x1c] sm:$0xf]
      %v965 = vunpack.c.l.b16 %v952
      %v966 = vunpack.c.l.b16 %v953
      %v967 = vpack.c.b16 %v673, %v965
      %v968 = vpack.c.b16 %v966, %v966
      %v969 = vrot.slane %v967, 2
      %v970 = vrot.slane %v682, 2
      %v971 = vsel %vm515, %v969, %v970
      %v972 = vrot.slane %v683, 2
      %v973 = vsel %vm515, %v970, %v972
      %v974 = vrot.slane %v684, 2
      %v975 = vsel %vm515, %v972, %v974
      %v976 = vrot.slane %v968, 2
      %v977 = vsel %vm515, %v974, %v976
      %v986 = vunpack.c.l.b16 %v955
      %v987 = vunpack.c.l.b16 %v956
      %v988 = vunpack.c.l.b16 %v957
      %v989 = vunpack.c.l.b16 %v958
      %v990 = vunpack.c.l.b16 %v959
      %v991 = vunpack.c.l.b16 %v960
      %v992 = vunpack.c.l.b16 %v961
      %v993 = vunpack.c.l.b16 %v962
      %v994 = vpack.c.b16 %v987, %v986
      %v995 = vpack.c.b16 %v989, %v988
      %v996 = vpack.c.b16 %v991, %v990
      %v997 = vpack.c.b16 %v993, %v992
      %v1003 = vsel %vm293, %v971, 0
      %v1006 = vsel %vm293, %v973, 0
      %v1009 = vsel %vm293, %v975, 0
      %v1012 = vsel %vm293, %v977, 0
      %v1015 = vsel %vm293, %v976, 0
      %1017 = vmatprep.subr.bf16.mxu0 0
      %1018 = vmatpush1.bf16.msra.mxu0 %v994
      %1019 = vmatprep.subr.bf16.mxu0 0
      %1020 = vmatpush1.bf16.msra.mxu0 %v995
      %1021 = vmatprep.subr.bf16.mxu0 0
      %1022 = vmatpush1.bf16.msra.mxu0 %v996
      %1023 = vmatprep.subr.bf16.mxu0 0
      %1024 = vmatpush1.bf16.msra.mxu0 %v997
      %1025 = vmatprep.subr.bf16.mxu0 0
      %1026 = vmatpush1.bf16.msra.mxu0 0
      %1027 = vmatprep.subr.bf16.mxu0 0
      %1028 = vmatpush1.bf16.msra.mxu0 0
      %1029 = vmatprep.subr.bf16.mxu0 0
      %1030 = vmatpush1.bf16.msra.mxu0 0
      %1031 = vmatprep.subr.bf16.mxu0 0
      %1032 = vmatpush1.bf16.msra.mxu0 0
      %1033 = vmatprep.subr.bf16.mxu0 0
      %1034 = vmatpush1.bf16.msra.mxu0 0
      %1035 = vmatprep.subr.bf16.mxu0 0
      %1036 = vmatpush1.bf16.msra.mxu0 0
      %1037 = vmatprep.subr.bf16.mxu0 0
      %1038 = vmatpush1.bf16.msra.mxu0 0
      %1039 = vmatprep.subr.bf16.mxu0 0
      %1040 = vmatpush1.bf16.msra.mxu0 0
      %1041 = vmatprep.subr.bf16.mxu0 0
      %1042 = vmatpush1.bf16.msra.mxu0 0
      %1043 = vmatprep.subr.bf16.mxu0 0
      %1044 = vmatpush1.bf16.msra.mxu0 0
      %1045 = vmatprep.subr.bf16.mxu0 0
      %1046 = vmatpush1.bf16.msra.mxu0 0
      %1047 = vmatprep.subr.bf16.mxu0 0
      %1048 = vmatpush1.bf16.msra.mxu0 0
      %1049 = vmatprep.mubr.bf16.mxu0 0
      %1050 = vmatmul.mubr.bf16.gmra.mrb[0].mxu0 %v1003
      %v1051 = vpop.f32.mrb[0].mxu0
      %v1052 = vadd.f32 0.0, %v1051
      %v1053 = vpop.f32.mrb[0].mxu0
      %v1054 = vpop.f32.mrb[0].mxu0
      %v1055 = vadd.f32 0.0, %v1054
      %v1056 = vpop.f32.mrb[0].mxu0
      %1057 = vmatprep.mubr.bf16.mxu0 0
      %1058 = vmatmul.mubr.bf16.gmra.mrb[0].mxu0 %v1006
      %v1059 = vpop.f32.mrb[0].mxu0
      %v1060 = vadd.f32 0.0, %v1059
      %v1061 = vpop.f32.mrb[0].mxu0
      %v1062 = vpop.f32.mrb[0].mxu0
      %v1063 = vadd.f32 0.0, %v1062
      %v1064 = vpop.f32.mrb[0].mxu0
      %1065 = vmatprep.mubr.bf16.mxu0 0
      %1066 = vmatmul.mubr.bf16.gmra.mrb[0].mxu0 %v1009
      %v1067 = vpop.f32.mrb[0].mxu0
      %v1068 = vadd.f32 0.0, %v1067
      %v1069 = vpop.f32.mrb[0].mxu0
      %v1070 = vpop.f32.mrb[0].mxu0
      %v1071 = vadd.f32 0.0, %v1070
      %v1072 = vpop.f32.mrb[0].mxu0
      %1073 = vmatprep.mubr.bf16.mxu0 0
      %1074 = vmatmul.mubr.bf16.gmra.mrb[0].mxu0 %v1012
      %v1075 = vpop.f32.mrb[0].mxu0
      %v1076 = vadd.f32 0.0, %v1075
      %v1077 = vpop.f32.mrb[0].mxu0
      %v1078 = vpop.f32.mrb[0].mxu0
      %v1079 = vadd.f32 0.0, %v1078
      %v1080 = vpop.f32.mrb[0].mxu0
      %1081 = vmatprep.mubr.bf16.mxu0 0
      %1082 = vmatmul.mubr.bf16.gmra.mrb[0].mxu0 %v1015
      %v1083 = vpop.f32.mrb[0].mxu0
      %v1084 = vadd.f32 0.0, %v1083
      %v1085 = vpop.f32.mrb[0].mxu0
      %v1086 = vpop.f32.mrb[0].mxu0
      %v1087 = vpop.f32.mrb[0].mxu0
      %1088 = vdwg.mxu0
      %v1089 = vadd.f32 %v943, %v1052
      %v1090 = vadd.f32 %v944, %v1055
      %v1091 = vadd.f32 %v945, %v1060
      %v1092 = vadd.f32 %v946, %v1063
      %v1093 = vadd.f32 %v947, %v1068
      %v1094 = vadd.f32 %v948, %v1071
      %v1095 = vadd.f32 %v949, %v1076
      %v1096 = vadd.f32 %v950, %v1079
      %v1097 = vadd.f32 %v951, %v1084
      %v1098 = vld [vmem:[%s197 + $0x10] sm:$0xf]
      %v1099 = vld [vmem:[%s197 + $0x14] sm:$0xf]
      %v1100 = vld [vmem:[%s197 + $0x18] sm:$0xf]
      %v1101 = vld [vmem:[%s197 + $0x1c] sm:$0xf]
      %v1102 = vld [vmem:[%s197 + $0x20] sm:$0xf]
      %v1103 = vld [vmem:[%s197 + $0x24] sm:$0xf]
      %v1104 = vld [vmem:[%s197 + $0x28] sm:$0xf]
      %v1105 = vld [vmem:[%s197 + $0x2c] sm:$0xf]
      %v1106 = vld [vmem:[%s197 + $0x30] sm:$0x1]
      %s1107 = scalar_lea.vmem %s1, 192
      %v1108 = vld [vmem:[%s1107] sm:$0xf]
      %v1109 = vld [vmem:[%s1107 + $0x4] sm:$0xf]
      %v1110 = vld [vmem:[%s1107 + $0x8] sm:$0xf]
      %v1111 = vld [vmem:[%s1107 + $0xc] sm:$0xf]
      %v1112 = vld [vmem:[%s1107 + $0x10] sm:$0xf]
      %v1113 = vld [vmem:[%s1107 + $0x14] sm:$0xf]
      %v1114 = vld [vmem:[%s1107 + $0x18] sm:$0xf]
      %v1115 = vld [vmem:[%s1107 + $0x1c] sm:$0xf]
      %v1125 = vunpack.c.l.b16 %v1098
      %v1126 = vunpack.c.l.b16 %v1099
      %v1127 = vunpack.c.l.b16 %v1100
      %v1128 = vunpack.c.l.b16 %v1101
      %v1129 = vunpack.c.l.b16 %v1102
      %v1130 = vunpack.c.l.b16 %v1103
      %v1131 = vunpack.c.l.b16 %v1104
      %v1132 = vunpack.c.l.b16 %v1105
      %v1133 = vunpack.c.l.b16 %v1106
      %v1134 = vpack.c.b16 %v1126, %v1125
      %v1135 = vpack.c.b16 %v1128, %v1127
      %v1136 = vpack.c.b16 %v1130, %v1129
      %v1137 = vpack.c.b16 %v1132, %v1131
      %v1138 = vpack.c.b16 %v1133, %v1133
      %v1147 = vunpack.c.l.b16 %v1108
      %v1148 = vunpack.c.l.b16 %v1109
      %v1149 = vunpack.c.l.b16 %v1110
      %v1150 = vunpack.c.l.b16 %v1111
      %v1151 = vunpack.c.l.b16 %v1112
      %v1152 = vunpack.c.l.b16 %v1113
      %v1153 = vunpack.c.l.b16 %v1114
      %v1154 = vunpack.c.l.b16 %v1115
      %v1155 = vpack.c.b16 %v1148, %v1147
      %v1156 = vpack.c.b16 %v1150, %v1149
      %v1157 = vpack.c.b16 %v1152, %v1151
      %v1158 = vpack.c.b16 %v1154, %v1153
      %v1164 = vsel %vm293, %v1134, 0
      %v1167 = vsel %vm293, %v1135, 0
      %v1170 = vsel %vm293, %v1136, 0
      %v1173 = vsel %vm293, %v1137, 0
      %v1176 = vsel %vm293, %v1138, 0
      %1178 = vmatprep.subr.bf16.mxu0 0
      %1179 = vmatpush1.bf16.msra.mxu0 %v1155
      %1180 = vmatprep.subr.bf16.mxu0 0
      %1181 = vmatpush1.bf16.msra.mxu0 %v1156
      %1182 = vmatprep.subr.bf16.mxu0 0
      %1183 = vmatpush1.bf16.msra.mxu0 %v1157
      %1184 = vmatprep.subr.bf16.mxu0 0
      %1185 = vmatpush1.bf16.msra.mxu0 %v1158
      %1186 = vmatprep.subr.bf16.mxu0 0
      %1187 = vmatpush1.bf16.msra.mxu0 0
      %1188 = vmatprep.subr.bf16.mxu0 0
      %1189 = vmatpush1.bf16.msra.mxu0 0
      %1190 = vmatprep.subr.bf16.mxu0 0
      %1191 = vmatpush1.bf16.msra.mxu0 0
      %1192 = vmatprep.subr.bf16.mxu0 0
      %1193 = vmatpush1.bf16.msra.mxu0 0
      %1194 = vmatprep.subr.bf16.mxu0 0
      %1195 = vmatpush1.bf16.msra.mxu0 0
      %1196 = vmatprep.subr.bf16.mxu0 0
      %1197 = vmatpush1.bf16.msra.mxu0 0
      %1198 = vmatprep.subr.bf16.mxu0 0
      %1199 = vmatpush1.bf16.msra.mxu0 0
      %1200 = vmatprep.subr.bf16.mxu0 0
      %1201 = vmatpush1.bf16.msra.mxu0 0
      %1202 = vmatprep.subr.bf16.mxu0 0
      %1203 = vmatpush1.bf16.msra.mxu0 0
      %1204 = vmatprep.subr.bf16.mxu0 0
      %1205 = vmatpush1.bf16.msra.mxu0 0
      %1206 = vmatprep.subr.bf16.mxu0 0
      %1207 = vmatpush1.bf16.msra.mxu0 0
      %1208 = vmatprep.subr.bf16.mxu0 0
      %1209 = vmatpush1.bf16.msra.mxu0 0
      %1210 = vmatprep.mubr.bf16.mxu0 0
      %1211 = vmatmul.mubr.bf16.gmra.mrb[0].mxu0 %v1164
      %v1212 = vpop.f32.mrb[0].mxu0
      %v1213 = vadd.f32 0.0, %v1212
      %v1214 = vpop.f32.mrb[0].mxu0
      %v1215 = vpop.f32.mrb[0].mxu0
      %v1216 = vadd.f32 0.0, %v1215
      %v1217 = vpop.f32.mrb[0].mxu0
      %1218 = vmatprep.mubr.bf16.mxu0 0
      %1219 = vmatmul.mubr.bf16.gmra.mrb[0].mxu0 %v1167
      %v1220 = vpop.f32.mrb[0].mxu0
      %v1221 = vadd.f32 0.0, %v1220
      %v1222 = vpop.f32.mrb[0].mxu0
      %v1223 = vpop.f32.mrb[0].mxu0
      %v1224 = vadd.f32 0.0, %v1223
      %v1225 = vpop.f32.mrb[0].mxu0
      %1226 = vmatprep.mubr.bf16.mxu0 0
      %1227 = vmatmul.mubr.bf16.gmra.mrb[0].mxu0 %v1170
      %v1228 = vpop.f32.mrb[0].mxu0
      %v1229 = vadd.f32 0.0, %v1228
      %v1230 = vpop.f32.mrb[0].mxu0
      %v1231 = vpop.f32.mrb[0].mxu0
      %v1232 = vadd.f32 0.0, %v1231
      %v1233 = vpop.f32.mrb[0].mxu0
      %1234 = vmatprep.mubr.bf16.mxu0 0
      %1235 = vmatmul.mubr.bf16.gmra.mrb[0].mxu0 %v1173
      %v1236 = vpop.f32.mrb[0].mxu0
      %v1237 = vadd.f32 0.0, %v1236
      %v1238 = vpop.f32.mrb[0].mxu0
      %v1239 = vpop.f32.mrb[0].mxu0
      %v1240 = vadd.f32 0.0, %v1239
      %v1241 = vpop.f32.mrb[0].mxu0
      %1242 = vmatprep.mubr.bf16.mxu0 0
      %1243 = vmatmul.mubr.bf16.gmra.mrb[0].mxu0 %v1176
      %v1244 = vpop.f32.mrb[0].mxu0
      %v1245 = vadd.f32 0.0, %v1244
      %v1246 = vpop.f32.mrb[0].mxu0
      %v1247 = vpop.f32.mrb[0].mxu0
      %v1248 = vpop.f32.mrb[0].mxu0
      %1249 = vdwg.mxu0
      %v1250 = vadd.f32 %v1089, %v1213
      %v1251 = vadd.f32 %v1090, %v1216
      %v1252 = vadd.f32 %v1091, %v1221
      %v1253 = vadd.f32 %v1092, %v1224
      %v1254 = vadd.f32 %v1093, %v1229
      %v1255 = vadd.f32 %v1094, %v1232
      %v1256 = vadd.f32 %v1095, %v1237
      %v1257 = vadd.f32 %v1096, %v1240
      %v1258 = vadd.f32 %v1097, %v1245
      %v1259 = vld [vmem:[%s197 + $0x10] sm:$0xe]
      %v1260 = vld [vmem:[%s197 + $0x30] sm:$0x3]
      %s1261 = scalar_lea.vmem %s1, 224
      %v1262 = vld [vmem:[%s1261] sm:$0xf]
      %v1263 = vld [vmem:[%s1261 + $0x4] sm:$0xf]
      %v1264 = vld [vmem:[%s1261 + $0x8] sm:$0xf]
      %v1265 = vld [vmem:[%s1261 + $0xc] sm:$0xf]
      %v1266 = vld [vmem:[%s1261 + $0x10] sm:$0xf]
      %v1267 = vld [vmem:[%s1261 + $0x14] sm:$0xf]
      %v1268 = vld [vmem:[%s1261 + $0x18] sm:$0xf]
      %v1269 = vld [vmem:[%s1261 + $0x1c] sm:$0xf]
      %v1272 = vunpack.c.l.b16 %v1259
      %v1273 = vunpack.c.l.b16 %v1260
      %v1274 = vpack.c.b16 %v1126, %v1272
      %v1275 = vpack.c.b16 %v1273, %v1273
      %v1276 = vrot.slane %v1274, 1
      %v1277 = vrot.slane %v1135, 1
      %v1278 = vsel %vm259, %v1276, %v1277
      %v1279 = vrot.slane %v1136, 1
      %v1280 = vsel %vm259, %v1277, %v1279
      %v1281 = vrot.slane %v1137, 1
      %v1282 = vsel %vm259, %v1279, %v1281
      %v1283 = vrot.slane %v1275, 1
      %v1284 = vsel %vm259, %v1281, %v1283
      %v1293 = vunpack.c.l.b16 %v1262
      %v1294 = vunpack.c.l.b16 %v1263
      %v1295 = vunpack.c.l.b16 %v1264
      %v1296 = vunpack.c.l.b16 %v1265
      %v1297 = vunpack.c.l.b16 %v1266
      %v1298 = vunpack.c.l.b16 %v1267
      %v1299 = vunpack.c.l.b16 %v1268
      %v1300 = vunpack.c.l.b16 %v1269
      %v1301 = vpack.c.b16 %v1294, %v1293
      %v1302 = vpack.c.b16 %v1296, %v1295
      %v1303 = vpack.c.b16 %v1298, %v1297
      %v1304 = vpack.c.b16 %v1300, %v1299
      %v1310 = vsel %vm293, %v1278, 0
      %v1313 = vsel %vm293, %v1280, 0
      %v1316 = vsel %vm293, %v1282, 0
      %v1319 = vsel %vm293, %v1284, 0
      %v1322 = vsel %vm293, %v1283, 0
      %1324 = vmatprep.subr.bf16.mxu0 0
      %1325 = vmatpush1.bf16.msra.mxu0 %v1301
      %1326 = vmatprep.subr.bf16.mxu0 0
      %1327 = vmatpush1.bf16.msra.mxu0 %v1302
      %1328 = vmatprep.subr.bf16.mxu0 0
      %1329 = vmatpush1.bf16.msra.mxu0 %v1303
      %1330 = vmatprep.subr.bf16.mxu0 0
      %1331 = vmatpush1.bf16.msra.mxu0 %v1304
      %1332 = vmatprep.subr.bf16.mxu0 0
      %1333 = vmatpush1.bf16.msra.mxu0 0
      %1334 = vmatprep.subr.bf16.mxu0 0
      %1335 = vmatpush1.bf16.msra.mxu0 0
      %1336 = vmatprep.subr.bf16.mxu0 0
      %1337 = vmatpush1.bf16.msra.mxu0 0
      %1338 = vmatprep.subr.bf16.mxu0 0
      %1339 = vmatpush1.bf16.msra.mxu0 0
      %1340 = vmatprep.subr.bf16.mxu0 0
      %1341 = vmatpush1.bf16.msra.mxu0 0
      %1342 = vmatprep.subr.bf16.mxu0 0
      %1343 = vmatpush1.bf16.msra.mxu0 0
      %1344 = vmatprep.subr.bf16.mxu0 0
      %1345 = vmatpush1.bf16.msra.mxu0 0
      %1346 = vmatprep.subr.bf16.mxu0 0
      %1347 = vmatpush1.bf16.msra.mxu0 0
      %1348 = vmatprep.subr.bf16.mxu0 0
      %1349 = vmatpush1.bf16.msra.mxu0 0
      %1350 = vmatprep.subr.bf16.mxu0 0
      %1351 = vmatpush1.bf16.msra.mxu0 0
      %1352 = vmatprep.subr.bf16.mxu0 0
      %1353 = vmatpush1.bf16.msra.mxu0 0
      %1354 = vmatprep.subr.bf16.mxu0 0
      %1355 = vmatpush1.bf16.msra.mxu0 0
      %1356 = vmatprep.mubr.bf16.mxu0 0
      %1357 = vmatmul.mubr.bf16.gmra.mrb[0].mxu0 %v1310
      %v1358 = vpop.f32.mrb[0].mxu0
      %v1359 = vadd.f32 0.0, %v1358
      %v1360 = vpop.f32.mrb[0].mxu0
      %v1361 = vpop.f32.mrb[0].mxu0
      %v1362 = vadd.f32 0.0, %v1361
      %v1363 = vpop.f32.mrb[0].mxu0
      %1364 = vmatprep.mubr.bf16.mxu0 0
      %1365 = vmatmul.mubr.bf16.gmra.mrb[0].mxu0 %v1313
      %v1366 = vpop.f32.mrb[0].mxu0
      %v1367 = vadd.f32 0.0, %v1366
      %v1368 = vpop.f32.mrb[0].mxu0
      %v1369 = vpop.f32.mrb[0].mxu0
      %v1370 = vadd.f32 0.0, %v1369
      %v1371 = vpop.f32.mrb[0].mxu0
      %1372 = vmatprep.mubr.bf16.mxu0 0
      %1373 = vmatmul.mubr.bf16.gmra.mrb[0].mxu0 %v1316
      %v1374 = vpop.f32.mrb[0].mxu0
      %v1375 = vadd.f32 0.0, %v1374
      %v1376 = vpop.f32.mrb[0].mxu0
      %v1377 = vpop.f32.mrb[0].mxu0
      %v1378 = vadd.f32 0.0, %v1377
      %v1379 = vpop.f32.mrb[0].mxu0
      %1380 = vmatprep.mubr.bf16.mxu0 0
      %1381 = vmatmul.mubr.bf16.gmra.mrb[0].mxu0 %v1319
      %v1382 = vpop.f32.mrb[0].mxu0
      %v1383 = vadd.f32 0.0, %v1382
      %v1384 = vpop.f32.mrb[0].mxu0
      %v1385 = vpop.f32.mrb[0].mxu0
      %v1386 = vadd.f32 0.0, %v1385
      %v1387 = vpop.f32.mrb[0].mxu0
      %1388 = vmatprep.mubr.bf16.mxu0 0
      %1389 = vmatmul.mubr.bf16.gmra.mrb[0].mxu0 %v1322
      %v1390 = vpop.f32.mrb[0].mxu0
      %v1391 = vadd.f32 0.0, %v1390
      %v1392 = vpop.f32.mrb[0].mxu0
      %v1393 = vpop.f32.mrb[0].mxu0
      %v1394 = vpop.f32.mrb[0].mxu0
      %1395 = vdwg.mxu0
      %v1396 = vadd.f32 %v1250, %v1359
      %v1397 = vadd.f32 %v1251, %v1362
      %v1398 = vadd.f32 %v1252, %v1367
      %v1399 = vadd.f32 %v1253, %v1370
      %v1400 = vadd.f32 %v1254, %v1375
      %v1401 = vadd.f32 %v1255, %v1378
      %v1402 = vadd.f32 %v1256, %v1383
      %v1403 = vadd.f32 %v1257, %v1386
      %v1404 = vadd.f32 %v1258, %v1391
      %v1405 = vld [vmem:[%s197 + $0x10] sm:$0xc]
      %v1406 = vld [vmem:[%s197 + $0x30] sm:$0x7]
      %s1407 = scalar_lea.vmem %s1, 256
      %v1408 = vld [vmem:[%s1407] sm:$0xf]
      %v1409 = vld [vmem:[%s1407 + $0x4] sm:$0xf]
      %v1410 = vld [vmem:[%s1407 + $0x8] sm:$0xf]
      %v1411 = vld [vmem:[%s1407 + $0xc] sm:$0xf]
      %v1412 = vld [vmem:[%s1407 + $0x10] sm:$0xf]
      %v1413 = vld [vmem:[%s1407 + $0x14] sm:$0xf]
      %v1414 = vld [vmem:[%s1407 + $0x18] sm:$0xf]
      %v1415 = vld [vmem:[%s1407 + $0x1c] sm:$0xf]
      %v1418 = vunpack.c.l.b16 %v1405
      %v1419 = vunpack.c.l.b16 %v1406
      %v1420 = vpack.c.b16 %v1126, %v1418
      %v1421 = vpack.c.b16 %v1419, %v1419
      %v1422 = vrot.slane %v1420, 2
      %v1423 = vrot.slane %v1135, 2
      %v1424 = vsel %vm515, %v1422, %v1423
      %v1425 = vrot.slane %v1136, 2
      %v1426 = vsel %vm515, %v1423, %v1425
      %v1427 = vrot.slane %v1137, 2
      %v1428 = vsel %vm515, %v1425, %v1427
      %v1429 = vrot.slane %v1421, 2
      %v1430 = vsel %vm515, %v1427, %v1429
      %v1439 = vunpack.c.l.b16 %v1408
      %v1440 = vunpack.c.l.b16 %v1409
      %v1441 = vunpack.c.l.b16 %v1410
      %v1442 = vunpack.c.l.b16 %v1411
      %v1443 = vunpack.c.l.b16 %v1412
      %v1444 = vunpack.c.l.b16 %v1413
      %v1445 = vunpack.c.l.b16 %v1414
      %v1446 = vunpack.c.l.b16 %v1415
      %v1447 = vpack.c.b16 %v1440, %v1439
      %v1448 = vpack.c.b16 %v1442, %v1441
      %v1449 = vpack.c.b16 %v1444, %v1443
      %v1450 = vpack.c.b16 %v1446, %v1445
      %v1456 = vsel %vm293, %v1424, 0
      %v1459 = vsel %vm293, %v1426, 0
      %v1462 = vsel %vm293, %v1428, 0
      %v1465 = vsel %vm293, %v1430, 0
      %v1468 = vsel %vm293, %v1429, 0
      %1470 = vmatprep.subr.bf16.mxu0 0
      %1471 = vmatpush1.bf16.msra.mxu0 %v1447
      %1472 = vmatprep.subr.bf16.mxu0 0
      %1473 = vmatpush1.bf16.msra.mxu0 %v1448
      %1474 = vmatprep.subr.bf16.mxu0 0
      %1475 = vmatpush1.bf16.msra.mxu0 %v1449
      %1476 = vmatprep.subr.bf16.mxu0 0
      %1477 = vmatpush1.bf16.msra.mxu0 %v1450
      %1478 = vmatprep.subr.bf16.mxu0 0
      %1479 = vmatpush1.bf16.msra.mxu0 0
      %1480 = vmatprep.subr.bf16.mxu0 0
      %1481 = vmatpush1.bf16.msra.mxu0 0
      %1482 = vmatprep.subr.bf16.mxu0 0
      %1483 = vmatpush1.bf16.msra.mxu0 0
      %1484 = vmatprep.subr.bf16.mxu0 0
      %1485 = vmatpush1.bf16.msra.mxu0 0
      %1486 = vmatprep.subr.bf16.mxu0 0
      %1487 = vmatpush1.bf16.msra.mxu0 0
      %1488 = vmatprep.subr.bf16.mxu0 0
      %1489 = vmatpush1.bf16.msra.mxu0 0
      %1490 = vmatprep.subr.bf16.mxu0 0
      %1491 = vmatpush1.bf16.msra.mxu0 0
      %1492 = vmatprep.subr.bf16.mxu0 0
      %1493 = vmatpush1.bf16.msra.mxu0 0
      %1494 = vmatprep.subr.bf16.mxu0 0
      %1495 = vmatpush1.bf16.msra.mxu0 0
      %1496 = vmatprep.subr.bf16.mxu0 0
      %1497 = vmatpush1.bf16.msra.mxu0 0
      %1498 = vmatprep.subr.bf16.mxu0 0
      %1499 = vmatpush1.bf16.msra.mxu0 0
      %1500 = vmatprep.subr.bf16.mxu0 0
      %1501 = vmatpush1.bf16.msra.mxu0 0
      %1502 = vmatprep.mubr.bf16.mxu0 0
      %1503 = vmatmul.mubr.bf16.gmra.mrb[0].mxu0 %v1456
      %v1504 = vpop.f32.mrb[0].mxu0
      %v1505 = vadd.f32 0.0, %v1504
      %v1506 = vpop.f32.mrb[0].mxu0
      %v1507 = vpop.f32.mrb[0].mxu0
      %v1508 = vadd.f32 0.0, %v1507
      %v1509 = vpop.f32.mrb[0].mxu0
      %1510 = vmatprep.mubr.bf16.mxu0 0
      %1511 = vmatmul.mubr.bf16.gmra.mrb[0].mxu0 %v1459
      %v1512 = vpop.f32.mrb[0].mxu0
      %v1513 = vadd.f32 0.0, %v1512
      %v1514 = vpop.f32.mrb[0].mxu0
      %v1515 = vpop.f32.mrb[0].mxu0
      %v1516 = vadd.f32 0.0, %v1515
      %v1517 = vpop.f32.mrb[0].mxu0
      %1518 = vmatprep.mubr.bf16.mxu0 0
      %1519 = vmatmul.mubr.bf16.gmra.mrb[0].mxu0 %v1462
      %v1520 = vpop.f32.mrb[0].mxu0
      %v1521 = vadd.f32 0.0, %v1520
      %v1522 = vpop.f32.mrb[0].mxu0
      %v1523 = vpop.f32.mrb[0].mxu0
      %v1524 = vadd.f32 0.0, %v1523
      %v1525 = vpop.f32.mrb[0].mxu0
      %1526 = vmatprep.mubr.bf16.mxu0 0
      %1527 = vmatmul.mubr.bf16.gmra.mrb[0].mxu0 %v1465
      %v1528 = vpop.f32.mrb[0].mxu0
      %v1529 = vadd.f32 0.0, %v1528
      %v1530 = vpop.f32.mrb[0].mxu0
      %v1531 = vpop.f32.mrb[0].mxu0
      %v1532 = vadd.f32 0.0, %v1531
      %v1533 = vpop.f32.mrb[0].mxu0
      %1534 = vmatprep.mubr.bf16.mxu0 0
      %1535 = vmatmul.mubr.bf16.gmra.mrb[0].mxu0 %v1468
      %v1536 = vpop.f32.mrb[0].mxu0
      %v1537 = vadd.f32 0.0, %v1536
      %v1538 = vpop.f32.mrb[0].mxu0
      %v1539 = vpop.f32.mrb[0].mxu0
      %v1540 = vpop.f32.mrb[0].mxu0
      %1541 = vdwg.mxu0
      %v1542 = vadd.f32 %v1396, %v1505
      %v1543 = vadd.f32 %v1397, %v1508
      %v1544 = vadd.f32 %v1398, %v1513
      %v1545 = vadd.f32 %v1399, %v1516
      %v1546 = vadd.f32 %v1400, %v1521
      %v1547 = vadd.f32 %v1401, %v1524
      %v1548 = vadd.f32 %v1402, %v1529
      %v1549 = vadd.f32 %v1403, %v1532
      %v1550 = vadd.f32 %v1404, %v1537
      %v1551 = vld [vmem:[%s197 + $0x18] sm:$0xf]
      %v1552 = vld [vmem:[%s197 + $0x1c] sm:$0xf]
      %v1553 = vld [vmem:[%s197 + $0x20] sm:$0xf]
      %v1554 = vld [vmem:[%s197 + $0x24] sm:$0xf]
      %v1555 = vld [vmem:[%s197 + $0x28] sm:$0xf]
      %v1556 = vld [vmem:[%s197 + $0x2c] sm:$0xf]
      %v1557 = vld [vmem:[%s197 + $0x30] sm:$0xf]
      %v1558 = vld [vmem:[%s197 + $0x34] sm:$0xf]
      %v1559 = vld [vmem:[%s197 + $0x38] sm:$0x1]
      %s1560 = scalar_lea.vmem %s1, 288
      %v1561 = vld [vmem:[%s1560] sm:$0xf]
      %v1562 = vld [vmem:[%s1560 + $0x4] sm:$0xf]
      %v1563 = vld [vmem:[%s1560 + $0x8] sm:$0xf]
      %v1564 = vld [vmem:[%s1560 + $0xc] sm:$0xf]
      %v1565 = vld [vmem:[%s1560 + $0x10] sm:$0xf]
      %v1566 = vld [vmem:[%s1560 + $0x14] sm:$0xf]
      %v1567 = vld [vmem:[%s1560 + $0x18] sm:$0xf]
      %v1568 = vld [vmem:[%s1560 + $0x1c] sm:$0xf]
      %v1578 = vunpack.c.l.b16 %v1551
      %v1579 = vunpack.c.l.b16 %v1552
      %v1580 = vunpack.c.l.b16 %v1553
      %v1581 = vunpack.c.l.b16 %v1554
      %v1582 = vunpack.c.l.b16 %v1555
      %v1583 = vunpack.c.l.b16 %v1556
      %v1584 = vunpack.c.l.b16 %v1557
      %v1585 = vunpack.c.l.b16 %v1558
      %v1586 = vunpack.c.l.b16 %v1559
      %v1587 = vpack.c.b16 %v1579, %v1578
      %v1588 = vpack.c.b16 %v1581, %v1580
      %v1589 = vpack.c.b16 %v1583, %v1582
      %v1590 = vpack.c.b16 %v1585, %v1584
      %v1591 = vpack.c.b16 %v1586, %v1586
      %v1600 = vunpack.c.l.b16 %v1561
      %v1601 = vunpack.c.l.b16 %v1562
      %v1602 = vunpack.c.l.b16 %v1563
      %v1603 = vunpack.c.l.b16 %v1564
      %v1604 = vunpack.c.l.b16 %v1565
      %v1605 = vunpack.c.l.b16 %v1566
      %v1606 = vunpack.c.l.b16 %v1567
      %v1607 = vunpack.c.l.b16 %v1568
      %v1608 = vpack.c.b16 %v1601, %v1600
      %v1609 = vpack.c.b16 %v1603, %v1602
      %v1610 = vpack.c.b16 %v1605, %v1604
      %v1611 = vpack.c.b16 %v1607, %v1606
      %v1617 = vsel %vm293, %v1587, 0
      %v1620 = vsel %vm293, %v1588, 0
      %v1623 = vsel %vm293, %v1589, 0
      %v1626 = vsel %vm293, %v1590, 0
      %v1629 = vsel %vm293, %v1591, 0
      %1631 = vmatprep.subr.bf16.mxu0 0
      %1632 = vmatpush1.bf16.msra.mxu0 %v1608
      %1633 = vmatprep.subr.bf16.mxu0 0
      %1634 = vmatpush1.bf16.msra.mxu0 %v1609
      %1635 = vmatprep.subr.bf16.mxu0 0
      %1636 = vmatpush1.bf16.msra.mxu0 %v1610
      %1637 = vmatprep.subr.bf16.mxu0 0
      %1638 = vmatpush1.bf16.msra.mxu0 %v1611
      %1639 = vmatprep.subr.bf16.mxu0 0
      %1640 = vmatpush1.bf16.msra.mxu0 0
      %1641 = vmatprep.subr.bf16.mxu0 0
      %1642 = vmatpush1.bf16.msra.mxu0 0
      %1643 = vmatprep.subr.bf16.mxu0 0
      %1644 = vmatpush1.bf16.msra.mxu0 0
      %1645 = vmatprep.subr.bf16.mxu0 0
      %1646 = vmatpush1.bf16.msra.mxu0 0
      %1647 = vmatprep.subr.bf16.mxu0 0
      %1648 = vmatpush1.bf16.msra.mxu0 0
      %1649 = vmatprep.subr.bf16.mxu0 0
      %1650 = vmatpush1.bf16.msra.mxu0 0
      %1651 = vmatprep.subr.bf16.mxu0 0
      %1652 = vmatpush1.bf16.msra.mxu0 0
      %1653 = vmatprep.subr.bf16.mxu0 0
      %1654 = vmatpush1.bf16.msra.mxu0 0
      %1655 = vmatprep.subr.bf16.mxu0 0
      %1656 = vmatpush1.bf16.msra.mxu0 0
      %1657 = vmatprep.subr.bf16.mxu0 0
      %1658 = vmatpush1.bf16.msra.mxu0 0
      %1659 = vmatprep.subr.bf16.mxu0 0
      %1660 = vmatpush1.bf16.msra.mxu0 0
      %1661 = vmatprep.subr.bf16.mxu0 0
      %1662 = vmatpush1.bf16.msra.mxu0 0
      %1663 = vmatprep.mubr.bf16.mxu0 0
      %1664 = vmatmul.mubr.bf16.gmra.mrb[0].mxu0 %v1617
      %v1665 = vpop.f32.mrb[0].mxu0
      %v1666 = vadd.f32 0.0, %v1665
      %v1667 = vpop.f32.mrb[0].mxu0
      %v1668 = vpop.f32.mrb[0].mxu0
      %v1669 = vadd.f32 0.0, %v1668
      %v1670 = vpop.f32.mrb[0].mxu0
      %1671 = vmatprep.mubr.bf16.mxu0 0
      %1672 = vmatmul.mubr.bf16.gmra.mrb[0].mxu0 %v1620
      %v1673 = vpop.f32.mrb[0].mxu0
      %v1674 = vadd.f32 0.0, %v1673
      %v1675 = vpop.f32.mrb[0].mxu0
      %v1676 = vpop.f32.mrb[0].mxu0
      %v1677 = vadd.f32 0.0, %v1676
      %v1678 = vpop.f32.mrb[0].mxu0
      %1679 = vmatprep.mubr.bf16.mxu0 0
      %1680 = vmatmul.mubr.bf16.gmra.mrb[0].mxu0 %v1623
      %v1681 = vpop.f32.mrb[0].mxu0
      %v1682 = vadd.f32 0.0, %v1681
      %v1683 = vpop.f32.mrb[0].mxu0
      %v1684 = vpop.f32.mrb[0].mxu0
      %v1685 = vadd.f32 0.0, %v1684
      %v1686 = vpop.f32.mrb[0].mxu0
      %1687 = vmatprep.mubr.bf16.mxu0 0
      %1688 = vmatmul.mubr.bf16.gmra.mrb[0].mxu0 %v1626
      %v1689 = vpop.f32.mrb[0].mxu0
      %v1690 = vadd.f32 0.0, %v1689
      %v1691 = vpop.f32.mrb[0].mxu0
      %v1692 = vpop.f32.mrb[0].mxu0
      %v1693 = vadd.f32 0.0, %v1692
      %v1694 = vpop.f32.mrb[0].mxu0
      %1695 = vmatprep.mubr.bf16.mxu0 0
      %1696 = vmatmul.mubr.bf16.gmra.mrb[0].mxu0 %v1629
      %v1697 = vpop.f32.mrb[0].mxu0
      %v1698 = vadd.f32 0.0, %v1697
      %v1699 = vpop.f32.mrb[0].mxu0
      %v1700 = vpop.f32.mrb[0].mxu0
      %v1701 = vpop.f32.mrb[0].mxu0
      %1702 = vdwg.mxu0
      %v1703 = vadd.f32 %v1542, %v1666
      %v1704 = vadd.f32 %v1543, %v1669
      %v1705 = vadd.f32 %v1544, %v1674
      %v1706 = vadd.f32 %v1545, %v1677
      %v1707 = vadd.f32 %v1546, %v1682
      %v1708 = vadd.f32 %v1547, %v1685
      %v1709 = vadd.f32 %v1548, %v1690
      %v1710 = vadd.f32 %v1549, %v1693
      %v1711 = vadd.f32 %v1550, %v1698
      %v1712 = vld [vmem:[%s197 + $0x18] sm:$0xe]
      %v1713 = vld [vmem:[%s197 + $0x38] sm:$0x3]
      %s1714 = scalar_lea.vmem %s1, 320
      %v1715 = vld [vmem:[%s1714] sm:$0xf]
      %v1716 = vld [vmem:[%s1714 + $0x4] sm:$0xf]
      %v1717 = vld [vmem:[%s1714 + $0x8] sm:$0xf]
      %v1718 = vld [vmem:[%s1714 + $0xc] sm:$0xf]
      %v1719 = vld [vmem:[%s1714 + $0x10] sm:$0xf]
      %v1720 = vld [vmem:[%s1714 + $0x14] sm:$0xf]
      %v1721 = vld [vmem:[%s1714 + $0x18] sm:$0xf]
      %v1722 = vld [vmem:[%s1714 + $0x1c] sm:$0xf]
      %v1725 = vunpack.c.l.b16 %v1712
      %v1726 = vunpack.c.l.b16 %v1713
      %v1727 = vpack.c.b16 %v1579, %v1725
      %v1728 = vpack.c.b16 %v1726, %v1726
      %v1729 = vrot.slane %v1727, 1
      %v1730 = vrot.slane %v1588, 1
      %v1731 = vsel %vm259, %v1729, %v1730
      %v1732 = vrot.slane %v1589, 1
      %v1733 = vsel %vm259, %v1730, %v1732
      %v1734 = vrot.slane %v1590, 1
      %v1735 = vsel %vm259, %v1732, %v1734
      %v1736 = vrot.slane %v1728, 1
      %v1737 = vsel %vm259, %v1734, %v1736
      %v1746 = vunpack.c.l.b16 %v1715
      %v1747 = vunpack.c.l.b16 %v1716
      %v1748 = vunpack.c.l.b16 %v1717
      %v1749 = vunpack.c.l.b16 %v1718
      %v1750 = vunpack.c.l.b16 %v1719
      %v1751 = vunpack.c.l.b16 %v1720
      %v1752 = vunpack.c.l.b16 %v1721
      %v1753 = vunpack.c.l.b16 %v1722
      %v1754 = vpack.c.b16 %v1747, %v1746
      %v1755 = vpack.c.b16 %v1749, %v1748
      %v1756 = vpack.c.b16 %v1751, %v1750
      %v1757 = vpack.c.b16 %v1753, %v1752
      %v1763 = vsel %vm293, %v1731, 0
      %v1766 = vsel %vm293, %v1733, 0
      %v1769 = vsel %vm293, %v1735, 0
      %v1772 = vsel %vm293, %v1737, 0
      %v1775 = vsel %vm293, %v1736, 0
      %1777 = vmatprep.subr.bf16.mxu0 0
      %1778 = vmatpush1.bf16.msra.mxu0 %v1754
      %1779 = vmatprep.subr.bf16.mxu0 0
      %1780 = vmatpush1.bf16.msra.mxu0 %v1755
      %1781 = vmatprep.subr.bf16.mxu0 0
      %1782 = vmatpush1.bf16.msra.mxu0 %v1756
      %1783 = vmatprep.subr.bf16.mxu0 0
      %1784 = vmatpush1.bf16.msra.mxu0 %v1757
      %1785 = vmatprep.subr.bf16.mxu0 0
      %1786 = vmatpush1.bf16.msra.mxu0 0
      %1787 = vmatprep.subr.bf16.mxu0 0
      %1788 = vmatpush1.bf16.msra.mxu0 0
      %1789 = vmatprep.subr.bf16.mxu0 0
      %1790 = vmatpush1.bf16.msra.mxu0 0
      %1791 = vmatprep.subr.bf16.mxu0 0
      %1792 = vmatpush1.bf16.msra.mxu0 0
      %1793 = vmatprep.subr.bf16.mxu0 0
      %1794 = vmatpush1.bf16.msra.mxu0 0
      %1795 = vmatprep.subr.bf16.mxu0 0
      %1796 = vmatpush1.bf16.msra.mxu0 0
      %1797 = vmatprep.subr.bf16.mxu0 0
      %1798 = vmatpush1.bf16.msra.mxu0 0
      %1799 = vmatprep.subr.bf16.mxu0 0
      %1800 = vmatpush1.bf16.msra.mxu0 0
      %1801 = vmatprep.subr.bf16.mxu0 0
      %1802 = vmatpush1.bf16.msra.mxu0 0
      %1803 = vmatprep.subr.bf16.mxu0 0
      %1804 = vmatpush1.bf16.msra.mxu0 0
      %1805 = vmatprep.subr.bf16.mxu0 0
      %1806 = vmatpush1.bf16.msra.mxu0 0
      %1807 = vmatprep.subr.bf16.mxu0 0
      %1808 = vmatpush1.bf16.msra.mxu0 0
      %1809 = vmatprep.mubr.bf16.mxu0 0
      %1810 = vmatmul.mubr.bf16.gmra.mrb[0].mxu0 %v1763
      %v1811 = vpop.f32.mrb[0].mxu0
      %v1812 = vadd.f32 0.0, %v1811
      %v1813 = vpop.f32.mrb[0].mxu0
      %v1814 = vpop.f32.mrb[0].mxu0
      %v1815 = vadd.f32 0.0, %v1814
      %v1816 = vpop.f32.mrb[0].mxu0
      %1817 = vmatprep.mubr.bf16.mxu0 0
      %1818 = vmatmul.mubr.bf16.gmra.mrb[0].mxu0 %v1766
      %v1819 = vpop.f32.mrb[0].mxu0
      %v1820 = vadd.f32 0.0, %v1819
      %v1821 = vpop.f32.mrb[0].mxu0
      %v1822 = vpop.f32.mrb[0].mxu0
      %v1823 = vadd.f32 0.0, %v1822
      %v1824 = vpop.f32.mrb[0].mxu0
      %1825 = vmatprep.mubr.bf16.mxu0 0
      %1826 = vmatmul.mubr.bf16.gmra.mrb[0].mxu0 %v1769
      %v1827 = vpop.f32.mrb[0].mxu0
      %v1828 = vadd.f32 0.0, %v1827
      %v1829 = vpop.f32.mrb[0].mxu0
      %v1830 = vpop.f32.mrb[0].mxu0
      %v1831 = vadd.f32 0.0, %v1830
      %v1832 = vpop.f32.mrb[0].mxu0
      %1833 = vmatprep.mubr.bf16.mxu0 0
      %1834 = vmatmul.mubr.bf16.gmra.mrb[0].mxu0 %v1772
      %v1835 = vpop.f32.mrb[0].mxu0
      %v1836 = vadd.f32 0.0, %v1835
      %v1837 = vpop.f32.mrb[0].mxu0
      %v1838 = vpop.f32.mrb[0].mxu0
      %v1839 = vadd.f32 0.0, %v1838
      %v1840 = vpop.f32.mrb[0].mxu0
      %1841 = vmatprep.mubr.bf16.mxu0 0
      %1842 = vmatmul.mubr.bf16.gmra.mrb[0].mxu0 %v1775
      %v1843 = vpop.f32.mrb[0].mxu0
      %v1844 = vadd.f32 0.0, %v1843
      %v1845 = vpop.f32.mrb[0].mxu0
      %v1846 = vpop.f32.mrb[0].mxu0
      %v1847 = vpop.f32.mrb[0].mxu0
      %1848 = vdwg.mxu0
      %v1849 = vadd.f32 %v1703, %v1812
      %v1850 = vadd.f32 %v1704, %v1815
      %v1851 = vadd.f32 %v1705, %v1820
      %v1852 = vadd.f32 %v1706, %v1823
      %v1853 = vadd.f32 %v1707, %v1828
      %v1854 = vadd.f32 %v1708, %v1831
      %v1855 = vadd.f32 %v1709, %v1836
      %v1856 = vadd.f32 %v1710, %v1839
      %v1857 = vadd.f32 %v1711, %v1844
      %v1858 = vld [vmem:[%s197 + $0x18] sm:$0xc]
      %v1859 = vld [vmem:[%s197 + $0x38] sm:$0x7]
      %s1860 = scalar_lea.vmem %s1, 352
      %v1861 = vld [vmem:[%s1860] sm:$0xf]
      %v1862 = vld [vmem:[%s1860 + $0x4] sm:$0xf]
      %v1863 = vld [vmem:[%s1860 + $0x8] sm:$0xf]
      %v1864 = vld [vmem:[%s1860 + $0xc] sm:$0xf]
      %v1865 = vld [vmem:[%s1860 + $0x10] sm:$0xf]
      %v1866 = vld [vmem:[%s1860 + $0x14] sm:$0xf]
      %v1867 = vld [vmem:[%s1860 + $0x18] sm:$0xf]
      %v1868 = vld [vmem:[%s1860 + $0x1c] sm:$0xf]
      %v1871 = vunpack.c.l.b16 %v1858
      %v1872 = vunpack.c.l.b16 %v1859
      %v1873 = vpack.c.b16 %v1579, %v1871
      %v1874 = vpack.c.b16 %v1872, %v1872
      %v1875 = vrot.slane %v1873, 2
      %v1876 = vrot.slane %v1588, 2
      %v1877 = vsel %vm515, %v1875, %v1876
      %v1878 = vrot.slane %v1589, 2
      %v1879 = vsel %vm515, %v1876, %v1878
      %v1880 = vrot.slane %v1590, 2
      %v1881 = vsel %vm515, %v1878, %v1880
      %v1882 = vrot.slane %v1874, 2
      %v1883 = vsel %vm515, %v1880, %v1882
      %v1892 = vunpack.c.l.b16 %v1861
      %v1893 = vunpack.c.l.b16 %v1862
      %v1894 = vunpack.c.l.b16 %v1863
      %v1895 = vunpack.c.l.b16 %v1864
      %v1896 = vunpack.c.l.b16 %v1865
      %v1897 = vunpack.c.l.b16 %v1866
      %v1898 = vunpack.c.l.b16 %v1867
      %v1899 = vunpack.c.l.b16 %v1868
      %v1900 = vpack.c.b16 %v1893, %v1892
      %v1901 = vpack.c.b16 %v1895, %v1894
      %v1902 = vpack.c.b16 %v1897, %v1896
      %v1903 = vpack.c.b16 %v1899, %v1898
      %v1909 = vsel %vm293, %v1877, 0
      %v1912 = vsel %vm293, %v1879, 0
      %v1915 = vsel %vm293, %v1881, 0
      %v1918 = vsel %vm293, %v1883, 0
      %v1921 = vsel %vm293, %v1882, 0
      %1923 = vmatprep.subr.bf16.mxu0 0
      %1924 = vmatpush1.bf16.msra.mxu0 %v1900
      %1925 = vmatprep.subr.bf16.mxu0 0
      %1926 = vmatpush1.bf16.msra.mxu0 %v1901
      %1927 = vmatprep.subr.bf16.mxu0 0
      %1928 = vmatpush1.bf16.msra.mxu0 %v1902
      %1929 = vmatprep.subr.bf16.mxu0 0
      %1930 = vmatpush1.bf16.msra.mxu0 %v1903
      %1931 = vmatprep.subr.bf16.mxu0 0
      %1932 = vmatpush1.bf16.msra.mxu0 0
      %1933 = vmatprep.subr.bf16.mxu0 0
      %1934 = vmatpush1.bf16.msra.mxu0 0
      %1935 = vmatprep.subr.bf16.mxu0 0
      %1936 = vmatpush1.bf16.msra.mxu0 0
      %1937 = vmatprep.subr.bf16.mxu0 0
      %1938 = vmatpush1.bf16.msra.mxu0 0
      %1939 = vmatprep.subr.bf16.mxu0 0
      %1940 = vmatpush1.bf16.msra.mxu0 0
      %1941 = vmatprep.subr.bf16.mxu0 0
      %1942 = vmatpush1.bf16.msra.mxu0 0
      %1943 = vmatprep.subr.bf16.mxu0 0
      %1944 = vmatpush1.bf16.msra.mxu0 0
      %1945 = vmatprep.subr.bf16.mxu0 0
      %1946 = vmatpush1.bf16.msra.mxu0 0
      %1947 = vmatprep.subr.bf16.mxu0 0
      %1948 = vmatpush1.bf16.msra.mxu0 0
      %1949 = vmatprep.subr.bf16.mxu0 0
      %1950 = vmatpush1.bf16.msra.mxu0 0
      %1951 = vmatprep.subr.bf16.mxu0 0
      %1952 = vmatpush1.bf16.msra.mxu0 0
      %1953 = vmatprep.subr.bf16.mxu0 0
      %1954 = vmatpush1.bf16.msra.mxu0 0
      %1955 = vmatprep.mubr.bf16.mxu0 0
      %1956 = vmatmul.mubr.bf16.gmra.mrb[0].mxu0 %v1909
      %v1957 = vpop.f32.mrb[0].mxu0
      %v1958 = vadd.f32 0.0, %v1957
      %v1959 = vpop.f32.mrb[0].mxu0
      %v1960 = vpop.f32.mrb[0].mxu0
      %v1961 = vadd.f32 0.0, %v1960
      %v1962 = vpop.f32.mrb[0].mxu0
      %1963 = vmatprep.mubr.bf16.mxu0 0
      %1964 = vmatmul.mubr.bf16.gmra.mrb[0].mxu0 %v1912
      %v1965 = vpop.f32.mrb[0].mxu0
      %v1966 = vadd.f32 0.0, %v1965
      %v1967 = vpop.f32.mrb[0].mxu0
      %v1968 = vpop.f32.mrb[0].mxu0
      %v1969 = vadd.f32 0.0, %v1968
      %v1970 = vpop.f32.mrb[0].mxu0
      %1971 = vmatprep.mubr.bf16.mxu0 0
      %1972 = vmatmul.mubr.bf16.gmra.mrb[0].mxu0 %v1915
      %v1973 = vpop.f32.mrb[0].mxu0
      %v1974 = vadd.f32 0.0, %v1973
      %v1975 = vpop.f32.mrb[0].mxu0
      %v1976 = vpop.f32.mrb[0].mxu0
      %v1977 = vadd.f32 0.0, %v1976
      %v1978 = vpop.f32.mrb[0].mxu0
      %1979 = vmatprep.mubr.bf16.mxu0 0
      %1980 = vmatmul.mubr.bf16.gmra.mrb[0].mxu0 %v1918
      %v1981 = vpop.f32.mrb[0].mxu0
      %v1982 = vadd.f32 0.0, %v1981
      %v1983 = vpop.f32.mrb[0].mxu0
      %v1984 = vpop.f32.mrb[0].mxu0
      %v1985 = vadd.f32 0.0, %v1984
      %v1986 = vpop.f32.mrb[0].mxu0
      %1987 = vmatprep.mubr.bf16.mxu0 0
      %1988 = vmatmul.mubr.bf16.gmra.mrb[0].mxu0 %v1921
      %v1989 = vpop.f32.mrb[0].mxu0
      %v1990 = vadd.f32 0.0, %v1989
      %v1991 = vpop.f32.mrb[0].mxu0
      %v1992 = vpop.f32.mrb[0].mxu0
      %v1993 = vpop.f32.mrb[0].mxu0
      %1994 = vdwg.mxu0
      %v1995 = vadd.f32 %v1849, %v1958
      %v1996 = vadd.f32 %v1850, %v1961
      %v1997 = vadd.f32 %v1851, %v1966
      %v1998 = vadd.f32 %v1852, %v1969
      %v1999 = vadd.f32 %v1853, %v1974
      %v2000 = vadd.f32 %v1854, %v1977
      %v2001 = vadd.f32 %v1855, %v1982
      %v2002 = vadd.f32 %v1856, %v1985
      %v2003 = vadd.f32 %v1857, %v1990
      %v2004 = vld [vmem:[%s197 + $0x20] sm:$0xf]
      %v2005 = vld [vmem:[%s197 + $0x24] sm:$0xf]
      %v2006 = vld [vmem:[%s197 + $0x28] sm:$0xf]
      %v2007 = vld [vmem:[%s197 + $0x2c] sm:$0xf]
      %v2008 = vld [vmem:[%s197 + $0x30] sm:$0xf]
      %v2009 = vld [vmem:[%s197 + $0x34] sm:$0xf]
      %v2010 = vld [vmem:[%s197 + $0x38] sm:$0xf]
      %v2011 = vld [vmem:[%s197 + $0x3c] sm:$0xf]
      %v2012 = vld [vmem:[%s197 + $0x40] sm:$0x1]
      %s2013 = scalar_lea.vmem %s1, 384
      %v2014 = vld [vmem:[%s2013] sm:$0xf]
      %v2015 = vld [vmem:[%s2013 + $0x4] sm:$0xf]
      %v2016 = vld [vmem:[%s2013 + $0x8] sm:$0xf]
      %v2017 = vld [vmem:[%s2013 + $0xc] sm:$0xf]
      %v2018 = vld [vmem:[%s2013 + $0x10] sm:$0xf]
      %v2019 = vld [vmem:[%s2013 + $0x14] sm:$0xf]
      %v2020 = vld [vmem:[%s2013 + $0x18] sm:$0xf]
      %v2021 = vld [vmem:[%s2013 + $0x1c] sm:$0xf]
      %v2031 = vunpack.c.l.b16 %v2004
      %v2032 = vunpack.c.l.b16 %v2005
      %v2033 = vunpack.c.l.b16 %v2006
      %v2034 = vunpack.c.l.b16 %v2007
      %v2035 = vunpack.c.l.b16 %v2008
      %v2036 = vunpack.c.l.b16 %v2009
      %v2037 = vunpack.c.l.b16 %v2010
      %v2038 = vunpack.c.l.b16 %v2011
      %v2039 = vunpack.c.l.b16 %v2012
      %v2040 = vpack.c.b16 %v2032, %v2031
      %v2041 = vpack.c.b16 %v2034, %v2033
      %v2042 = vpack.c.b16 %v2036, %v2035
      %v2043 = vpack.c.b16 %v2038, %v2037
      %v2044 = vpack.c.b16 %v2039, %v2039
      %v2053 = vunpack.c.l.b16 %v2014
      %v2054 = vunpack.c.l.b16 %v2015
      %v2055 = vunpack.c.l.b16 %v2016
      %v2056 = vunpack.c.l.b16 %v2017
      %v2057 = vunpack.c.l.b16 %v2018
      %v2058 = vunpack.c.l.b16 %v2019
      %v2059 = vunpack.c.l.b16 %v2020
      %v2060 = vunpack.c.l.b16 %v2021
      %v2061 = vpack.c.b16 %v2054, %v2053
      %v2062 = vpack.c.b16 %v2056, %v2055
      %v2063 = vpack.c.b16 %v2058, %v2057
      %v2064 = vpack.c.b16 %v2060, %v2059
      %v2070 = vsel %vm293, %v2040, 0
      %v2073 = vsel %vm293, %v2041, 0
      %v2076 = vsel %vm293, %v2042, 0
      %v2079 = vsel %vm293, %v2043, 0
      %v2082 = vsel %vm293, %v2044, 0
      %2084 = vmatprep.subr.bf16.mxu0 0
      %2085 = vmatpush1.bf16.msra.mxu0 %v2061
      %2086 = vmatprep.subr.bf16.mxu0 0
      %2087 = vmatpush1.bf16.msra.mxu0 %v2062
      %2088 = vmatprep.subr.bf16.mxu0 0
      %2089 = vmatpush1.bf16.msra.mxu0 %v2063
      %2090 = vmatprep.subr.bf16.mxu0 0
      %2091 = vmatpush1.bf16.msra.mxu0 %v2064
      %2092 = vmatprep.subr.bf16.mxu0 0
      %2093 = vmatpush1.bf16.msra.mxu0 0
      %2094 = vmatprep.subr.bf16.mxu0 0
      %2095 = vmatpush1.bf16.msra.mxu0 0
      %2096 = vmatprep.subr.bf16.mxu0 0
      %2097 = vmatpush1.bf16.msra.mxu0 0
      %2098 = vmatprep.subr.bf16.mxu0 0
      %2099 = vmatpush1.bf16.msra.mxu0 0
      %2100 = vmatprep.subr.bf16.mxu0 0
      %2101 = vmatpush1.bf16.msra.mxu0 0
      %2102 = vmatprep.subr.bf16.mxu0 0
      %2103 = vmatpush1.bf16.msra.mxu0 0
      %2104 = vmatprep.subr.bf16.mxu0 0
      %2105 = vmatpush1.bf16.msra.mxu0 0
      %2106 = vmatprep.subr.bf16.mxu0 0
      %2107 = vmatpush1.bf16.msra.mxu0 0
      %2108 = vmatprep.subr.bf16.mxu0 0
      %2109 = vmatpush1.bf16.msra.mxu0 0
      %2110 = vmatprep.subr.bf16.mxu0 0
      %2111 = vmatpush1.bf16.msra.mxu0 0
      %2112 = vmatprep.subr.bf16.mxu0 0
      %2113 = vmatpush1.bf16.msra.mxu0 0
      %2114 = vmatprep.subr.bf16.mxu0 0
      %2115 = vmatpush1.bf16.msra.mxu0 0
      %2116 = vmatprep.mubr.bf16.mxu0 0
      %2117 = vmatmul.mubr.bf16.gmra.mrb[0].mxu0 %v2070
      %v2118 = vpop.f32.mrb[0].mxu0
      %v2119 = vadd.f32 0.0, %v2118
      %v2120 = vpop.f32.mrb[0].mxu0
      %v2121 = vpop.f32.mrb[0].mxu0
      %v2122 = vadd.f32 0.0, %v2121
      %v2123 = vpop.f32.mrb[0].mxu0
      %2124 = vmatprep.mubr.bf16.mxu0 0
      %2125 = vmatmul.mubr.bf16.gmra.mrb[0].mxu0 %v2073
      %v2126 = vpop.f32.mrb[0].mxu0
      %v2127 = vadd.f32 0.0, %v2126
      %v2128 = vpop.f32.mrb[0].mxu0
      %v2129 = vpop.f32.mrb[0].mxu0
      %v2130 = vadd.f32 0.0, %v2129
      %v2131 = vpop.f32.mrb[0].mxu0
      %2132 = vmatprep.mubr.bf16.mxu0 0
      %2133 = vmatmul.mubr.bf16.gmra.mrb[0].mxu0 %v2076
      %v2134 = vpop.f32.mrb[0].mxu0
      %v2135 = vadd.f32 0.0, %v2134
      %v2136 = vpop.f32.mrb[0].mxu0
      %v2137 = vpop.f32.mrb[0].mxu0
      %v2138 = vadd.f32 0.0, %v2137
      %v2139 = vpop.f32.mrb[0].mxu0
      %2140 = vmatprep.mubr.bf16.mxu0 0
      %2141 = vmatmul.mubr.bf16.gmra.mrb[0].mxu0 %v2079
      %v2142 = vpop.f32.mrb[0].mxu0
      %v2143 = vadd.f32 0.0, %v2142
      %v2144 = vpop.f32.mrb[0].mxu0
      %v2145 = vpop.f32.mrb[0].mxu0
      %v2146 = vadd.f32 0.0, %v2145
      %v2147 = vpop.f32.mrb[0].mxu0
      %2148 = vmatprep.mubr.bf16.mxu0 0
      %2149 = vmatmul.mubr.bf16.gmra.mrb[0].mxu0 %v2082
      %v2150 = vpop.f32.mrb[0].mxu0
      %v2151 = vadd.f32 0.0, %v2150
      %v2152 = vpop.f32.mrb[0].mxu0
      %v2153 = vpop.f32.mrb[0].mxu0
      %v2154 = vpop.f32.mrb[0].mxu0
      %2155 = vdwg.mxu0
      %v2156 = vadd.f32 %v1995, %v2119
      %v2157 = vadd.f32 %v1996, %v2122
      %v2158 = vadd.f32 %v1997, %v2127
      %v2159 = vadd.f32 %v1998, %v2130
      %v2160 = vadd.f32 %v1999, %v2135
      %v2161 = vadd.f32 %v2000, %v2138
      %v2162 = vadd.f32 %v2001, %v2143
      %v2163 = vadd.f32 %v2002, %v2146
      %v2164 = vadd.f32 %v2003, %v2151
      %v2165 = vld [vmem:[%s197 + $0x20] sm:$0xe]
      %v2166 = vld [vmem:[%s197 + $0x40] sm:$0x3]
      %s2167 = scalar_lea.vmem %s1, 416
      %v2168 = vld [vmem:[%s2167] sm:$0xf]
      %v2169 = vld [vmem:[%s2167 + $0x4] sm:$0xf]
      %v2170 = vld [vmem:[%s2167 + $0x8] sm:$0xf]
      %v2171 = vld [vmem:[%s2167 + $0xc] sm:$0xf]
      %v2172 = vld [vmem:[%s2167 + $0x10] sm:$0xf]
      %v2173 = vld [vmem:[%s2167 + $0x14] sm:$0xf]
      %v2174 = vld [vmem:[%s2167 + $0x18] sm:$0xf]
      %v2175 = vld [vmem:[%s2167 + $0x1c] sm:$0xf]
      %v2178 = vunpack.c.l.b16 %v2165
      %v2179 = vunpack.c.l.b16 %v2166
      %v2180 = vpack.c.b16 %v2032, %v2178
      %v2181 = vpack.c.b16 %v2179, %v2179
      %v2182 = vrot.slane %v2180, 1
      %v2183 = vrot.slane %v2041, 1
      %v2184 = vsel %vm259, %v2182, %v2183
      %v2185 = vrot.slane %v2042, 1
      %v2186 = vsel %vm259, %v2183, %v2185
      %v2187 = vrot.slane %v2043, 1
      %v2188 = vsel %vm259, %v2185, %v2187
      %v2189 = vrot.slane %v2181, 1
      %v2190 = vsel %vm259, %v2187, %v2189
      %v2199 = vunpack.c.l.b16 %v2168
      %v2200 = vunpack.c.l.b16 %v2169
      %v2201 = vunpack.c.l.b16 %v2170
      %v2202 = vunpack.c.l.b16 %v2171
      %v2203 = vunpack.c.l.b16 %v2172
      %v2204 = vunpack.c.l.b16 %v2173
      %v2205 = vunpack.c.l.b16 %v2174
      %v2206 = vunpack.c.l.b16 %v2175
      %v2207 = vpack.c.b16 %v2200, %v2199
      %v2208 = vpack.c.b16 %v2202, %v2201
      %v2209 = vpack.c.b16 %v2204, %v2203
      %v2210 = vpack.c.b16 %v2206, %v2205
      %v2216 = vsel %vm293, %v2184, 0
      %v2219 = vsel %vm293, %v2186, 0
      %v2222 = vsel %vm293, %v2188, 0
      %v2225 = vsel %vm293, %v2190, 0
      %v2228 = vsel %vm293, %v2189, 0
      %2230 = vmatprep.subr.bf16.mxu0 0
      %2231 = vmatpush1.bf16.msra.mxu0 %v2207
      %2232 = vmatprep.subr.bf16.mxu0 0
      %2233 = vmatpush1.bf16.msra.mxu0 %v2208
      %2234 = vmatprep.subr.bf16.mxu0 0
      %2235 = vmatpush1.bf16.msra.mxu0 %v2209
      %2236 = vmatprep.subr.bf16.mxu0 0
      %2237 = vmatpush1.bf16.msra.mxu0 %v2210
      %2238 = vmatprep.subr.bf16.mxu0 0
      %2239 = vmatpush1.bf16.msra.mxu0 0
      %2240 = vmatprep.subr.bf16.mxu0 0
      %2241 = vmatpush1.bf16.msra.mxu0 0
      %2242 = vmatprep.subr.bf16.mxu0 0
      %2243 = vmatpush1.bf16.msra.mxu0 0
      %2244 = vmatprep.subr.bf16.mxu0 0
      %2245 = vmatpush1.bf16.msra.mxu0 0
      %2246 = vmatprep.subr.bf16.mxu0 0
      %2247 = vmatpush1.bf16.msra.mxu0 0
      %2248 = vmatprep.subr.bf16.mxu0 0
      %2249 = vmatpush1.bf16.msra.mxu0 0
      %2250 = vmatprep.subr.bf16.mxu0 0
      %2251 = vmatpush1.bf16.msra.mxu0 0
      %2252 = vmatprep.subr.bf16.mxu0 0
      %2253 = vmatpush1.bf16.msra.mxu0 0
      %2254 = vmatprep.subr.bf16.mxu0 0
      %2255 = vmatpush1.bf16.msra.mxu0 0
      %2256 = vmatprep.subr.bf16.mxu0 0
      %2257 = vmatpush1.bf16.msra.mxu0 0
      %2258 = vmatprep.subr.bf16.mxu0 0
      %2259 = vmatpush1.bf16.msra.mxu0 0
      %2260 = vmatprep.subr.bf16.mxu0 0
      %2261 = vmatpush1.bf16.msra.mxu0 0
      %2262 = vmatprep.mubr.bf16.mxu0 0
      %2263 = vmatmul.mubr.bf16.gmra.mrb[0].mxu0 %v2216
      %v2264 = vpop.f32.mrb[0].mxu0
      %v2265 = vadd.f32 0.0, %v2264
      %v2266 = vpop.f32.mrb[0].mxu0
      %v2267 = vpop.f32.mrb[0].mxu0
      %v2268 = vadd.f32 0.0, %v2267
      %v2269 = vpop.f32.mrb[0].mxu0
      %2270 = vmatprep.mubr.bf16.mxu0 0
      %2271 = vmatmul.mubr.bf16.gmra.mrb[0].mxu0 %v2219
      %v2272 = vpop.f32.mrb[0].mxu0
      %v2273 = vadd.f32 0.0, %v2272
      %v2274 = vpop.f32.mrb[0].mxu0
      %v2275 = vpop.f32.mrb[0].mxu0
      %v2276 = vadd.f32 0.0, %v2275
      %v2277 = vpop.f32.mrb[0].mxu0
      %2278 = vmatprep.mubr.bf16.mxu0 0
      %2279 = vmatmul.mubr.bf16.gmra.mrb[0].mxu0 %v2222
      %v2280 = vpop.f32.mrb[0].mxu0
      %v2281 = vadd.f32 0.0, %v2280
      %v2282 = vpop.f32.mrb[0].mxu0
      %v2283 = vpop.f32.mrb[0].mxu0
      %v2284 = vadd.f32 0.0, %v2283
      %v2285 = vpop.f32.mrb[0].mxu0
      %2286 = vmatprep.mubr.bf16.mxu0 0
      %2287 = vmatmul.mubr.bf16.gmra.mrb[0].mxu0 %v2225
      %v2288 = vpop.f32.mrb[0].mxu0
      %v2289 = vadd.f32 0.0, %v2288
      %v2290 = vpop.f32.mrb[0].mxu0
      %v2291 = vpop.f32.mrb[0].mxu0
      %v2292 = vadd.f32 0.0, %v2291
      %v2293 = vpop.f32.mrb[0].mxu0
      %2294 = vmatprep.mubr.bf16.mxu0 0
      %2295 = vmatmul.mubr.bf16.gmra.mrb[0].mxu0 %v2228
      %v2296 = vpop.f32.mrb[0].mxu0
      %v2297 = vadd.f32 0.0, %v2296
      %v2298 = vpop.f32.mrb[0].mxu0
      %v2299 = vpop.f32.mrb[0].mxu0
      %v2300 = vpop.f32.mrb[0].mxu0
      %2301 = vdwg.mxu0
      %v2302 = vadd.f32 %v2156, %v2265
      %v2303 = vadd.f32 %v2157, %v2268
      %v2304 = vadd.f32 %v2158, %v2273
      %v2305 = vadd.f32 %v2159, %v2276
      %v2306 = vadd.f32 %v2160, %v2281
      %v2307 = vadd.f32 %v2161, %v2284
      %v2308 = vadd.f32 %v2162, %v2289
      %v2309 = vadd.f32 %v2163, %v2292
      %v2310 = vadd.f32 %v2164, %v2297
      %v2311 = vld [vmem:[%s197 + $0x20] sm:$0xc]
      %v2312 = vld [vmem:[%s197 + $0x40] sm:$0x7]
      %s2313 = scalar_lea.vmem %s1, 448
      %v2314 = vld [vmem:[%s2313] sm:$0xf]
      %v2315 = vld [vmem:[%s2313 + $0x4] sm:$0xf]
      %v2316 = vld [vmem:[%s2313 + $0x8] sm:$0xf]
      %v2317 = vld [vmem:[%s2313 + $0xc] sm:$0xf]
      %v2318 = vld [vmem:[%s2313 + $0x10] sm:$0xf]
      %v2319 = vld [vmem:[%s2313 + $0x14] sm:$0xf]
      %v2320 = vld [vmem:[%s2313 + $0x18] sm:$0xf]
      %v2321 = vld [vmem:[%s2313 + $0x1c] sm:$0xf]
      %v2324 = vunpack.c.l.b16 %v2311
      %v2325 = vunpack.c.l.b16 %v2312
      %v2326 = vpack.c.b16 %v2032, %v2324
      %v2327 = vpack.c.b16 %v2325, %v2325
      %v2328 = vrot.slane %v2326, 2
      %v2329 = vrot.slane %v2041, 2
      %v2330 = vsel %vm515, %v2328, %v2329
      %v2331 = vrot.slane %v2042, 2
      %v2332 = vsel %vm515, %v2329, %v2331
      %v2333 = vrot.slane %v2043, 2
      %v2334 = vsel %vm515, %v2331, %v2333
      %v2335 = vrot.slane %v2327, 2
      %v2336 = vsel %vm515, %v2333, %v2335
      %v2345 = vunpack.c.l.b16 %v2314
      %v2346 = vunpack.c.l.b16 %v2315
      %v2347 = vunpack.c.l.b16 %v2316
      %v2348 = vunpack.c.l.b16 %v2317
      %v2349 = vunpack.c.l.b16 %v2318
      %v2350 = vunpack.c.l.b16 %v2319
      %v2351 = vunpack.c.l.b16 %v2320
      %v2352 = vunpack.c.l.b16 %v2321
      %v2353 = vpack.c.b16 %v2346, %v2345
      %v2354 = vpack.c.b16 %v2348, %v2347
      %v2355 = vpack.c.b16 %v2350, %v2349
      %v2356 = vpack.c.b16 %v2352, %v2351
      %v2362 = vsel %vm293, %v2330, 0
      %v2365 = vsel %vm293, %v2332, 0
      %v2368 = vsel %vm293, %v2334, 0
      %v2371 = vsel %vm293, %v2336, 0
      %v2374 = vsel %vm293, %v2335, 0
      %2376 = vmatprep.subr.bf16.mxu0 0
      %2377 = vmatpush1.bf16.msra.mxu0 %v2353
      %2378 = vmatprep.subr.bf16.mxu0 0
      %2379 = vmatpush1.bf16.msra.mxu0 %v2354
      %2380 = vmatprep.subr.bf16.mxu0 0
      %2381 = vmatpush1.bf16.msra.mxu0 %v2355
      %2382 = vmatprep.subr.bf16.mxu0 0
      %2383 = vmatpush1.bf16.msra.mxu0 %v2356
      %2384 = vmatprep.subr.bf16.mxu0 0
      %2385 = vmatpush1.bf16.msra.mxu0 0
      %2386 = vmatprep.subr.bf16.mxu0 0
      %2387 = vmatpush1.bf16.msra.mxu0 0
      %2388 = vmatprep.subr.bf16.mxu0 0
      %2389 = vmatpush1.bf16.msra.mxu0 0
      %2390 = vmatprep.subr.bf16.mxu0 0
      %2391 = vmatpush1.bf16.msra.mxu0 0
      %2392 = vmatprep.subr.bf16.mxu0 0
      %2393 = vmatpush1.bf16.msra.mxu0 0
      %2394 = vmatprep.subr.bf16.mxu0 0
      %2395 = vmatpush1.bf16.msra.mxu0 0
      %2396 = vmatprep.subr.bf16.mxu0 0
      %2397 = vmatpush1.bf16.msra.mxu0 0
      %2398 = vmatprep.subr.bf16.mxu0 0
      %2399 = vmatpush1.bf16.msra.mxu0 0
      %2400 = vmatprep.subr.bf16.mxu0 0
      %2401 = vmatpush1.bf16.msra.mxu0 0
      %2402 = vmatprep.subr.bf16.mxu0 0
      %2403 = vmatpush1.bf16.msra.mxu0 0
      %2404 = vmatprep.subr.bf16.mxu0 0
      %2405 = vmatpush1.bf16.msra.mxu0 0
      %2406 = vmatprep.subr.bf16.mxu0 0
      %2407 = vmatpush1.bf16.msra.mxu0 0
      %2408 = vmatprep.mubr.bf16.mxu0 0
      %2409 = vmatmul.mubr.bf16.gmra.mrb[0].mxu0 %v2362
      %v2410 = vpop.f32.mrb[0].mxu0
      %v2411 = vadd.f32 0.0, %v2410
      %v2412 = vpop.f32.mrb[0].mxu0
      %v2413 = vpop.f32.mrb[0].mxu0
      %v2414 = vadd.f32 0.0, %v2413
      %v2415 = vpop.f32.mrb[0].mxu0
      %2416 = vmatprep.mubr.bf16.mxu0 0
      %2417 = vmatmul.mubr.bf16.gmra.mrb[0].mxu0 %v2365
      %v2418 = vpop.f32.mrb[0].mxu0
      %v2419 = vadd.f32 0.0, %v2418
      %v2420 = vpop.f32.mrb[0].mxu0
      %v2421 = vpop.f32.mrb[0].mxu0
      %v2422 = vadd.f32 0.0, %v2421
      %v2423 = vpop.f32.mrb[0].mxu0
      %2424 = vmatprep.mubr.bf16.mxu0 0
      %2425 = vmatmul.mubr.bf16.gmra.mrb[0].mxu0 %v2368
      %v2426 = vpop.f32.mrb[0].mxu0
      %v2427 = vadd.f32 0.0, %v2426
      %v2428 = vpop.f32.mrb[0].mxu0
      %v2429 = vpop.f32.mrb[0].mxu0
      %v2430 = vadd.f32 0.0, %v2429
      %v2431 = vpop.f32.mrb[0].mxu0
      %2432 = vmatprep.mubr.bf16.mxu0 0
      %2433 = vmatmul.mubr.bf16.gmra.mrb[0].mxu0 %v2371
      %v2434 = vpop.f32.mrb[0].mxu0
      %v2435 = vadd.f32 0.0, %v2434
      %v2436 = vpop.f32.mrb[0].mxu0
      %v2437 = vpop.f32.mrb[0].mxu0
      %v2438 = vadd.f32 0.0, %v2437
      %v2439 = vpop.f32.mrb[0].mxu0
      %2440 = vmatprep.mubr.bf16.mxu0 0
      %2441 = vmatmul.mubr.bf16.gmra.mrb[0].mxu0 %v2374
      %v2442 = vpop.f32.mrb[0].mxu0
      %v2443 = vadd.f32 0.0, %v2442
      %v2444 = vpop.f32.mrb[0].mxu0
      %v2445 = vpop.f32.mrb[0].mxu0
      %v2446 = vpop.f32.mrb[0].mxu0
      %2447 = vdwg.mxu0
      %v2448 = vadd.f32 %v2302, %v2411
      %v2449 = vadd.f32 %v2303, %v2414
      %v2450 = vadd.f32 %v2304, %v2419
      %v2451 = vadd.f32 %v2305, %v2422
      %v2452 = vadd.f32 %v2306, %v2427
      %v2453 = vadd.f32 %v2307, %v2430
      %v2454 = vadd.f32 %v2308, %v2435
      %v2455 = vadd.f32 %v2309, %v2438
      %v2456 = vadd.f32 %v2310, %v2443
      %vm2466 = vcmask 1046528
      %v2467 = vrot.slane %v2448, 1
      %v2468 = vrot.slane %v2449, 1
      %v2469 = vsel %vm2466, %v2467, %v2468
      %v2470 = vrot.slane %v2450, 1
      %v2471 = vsel %vm2466, %v2468, %v2470
      %v2472 = vrot.slane %v2451, 1
      %v2473 = vsel %vm2466, %v2470, %v2472
      %v2474 = vrot.slane %v2452, 1
      %v2475 = vsel %vm2466, %v2472, %v2474
      %v2476 = vrot.slane %v2453, 1
      %v2477 = vsel %vm2466, %v2474, %v2476
      %v2478 = vrot.slane %v2454, 1
      %v2479 = vsel %vm2466, %v2476, %v2478
      %v2480 = vrot.slane %v2455, 1
      %v2481 = vsel %vm2466, %v2478, %v2480
      %v2482 = vrot.slane %v2456, 1
      %v2483 = vsel %vm2466, %v2480, %v2482
      %2484 = vrot.lane.b32.xlu0 %v2469, 64
      %v2485 = vpop.permute.xlu0 %2484
      %2486 = vrot.lane.b32.xlu0 %v2471, 64
      %v2487 = vpop.permute.xlu0 %2486
      %2488 = vrot.lane.b32.xlu0 %v2473, 64
      %v2489 = vpop.permute.xlu0 %2488
      %2490 = vrot.lane.b32.xlu0 %v2475, 64
      %v2491 = vpop.permute.xlu0 %2490
      %2492 = vrot.lane.b32.xlu0 %v2477, 64
      %v2493 = vpop.permute.xlu0 %2492
      %2494 = vrot.lane.b32.xlu0 %v2479, 64
      %v2495 = vpop.permute.xlu0 %2494
      %2496 = vrot.lane.b32.xlu0 %v2481, 64
      %v2497 = vpop.permute.xlu0 %2496
      %2498 = vrot.lane.b32.xlu0 %v2483, 64
      %v2499 = vpop.permute.xlu0 %2498
      %v2508 = vadd.f32 %v2448, %v2485
      %v2509 = vadd.f32 %v2449, %v2487
      %v2510 = vadd.f32 %v2450, %v2489
      %v2511 = vadd.f32 %v2451, %v2491
      %v2512 = vadd.f32 %v2452, %v2493
      %v2513 = vadd.f32 %v2453, %v2495
      %v2514 = vadd.f32 %v2454, %v2497
      %v2515 = vadd.f32 %v2455, %v2499
      %v2516 = vld [vmem:[%s2] sm:$0x1]
      %v2517 = vlaneseq
      %v2518 = vshrl.u32 %v2517, 7
      %v2519 = vsub.s32 0, %v2518
      %v2520 = vrot.slane %v2516, %v2519
      %v2521 = vadd.f32 %v2508, %v2520
      %v2522 = vadd.f32 %v2509, %v2520
      %v2523 = vadd.f32 %v2510, %v2520
      %v2524 = vadd.f32 %v2511, %v2520
      %v2525 = vadd.f32 %v2512, %v2520
      %v2526 = vadd.f32 %v2513, %v2520
      %v2527 = vadd.f32 %v2514, %v2520
      %v2528 = vadd.f32 %v2515, %v2520
      %v2529 = vmax.f32 %v2521, 0.0
      %v2530 = vmax.f32 %v2522, 0.0
      %v2531 = vmax.f32 %v2523, 0.0
      %v2532 = vmax.f32 %v2524, 0.0
      %v2533 = vmax.f32 %v2525, 0.0
      %v2534 = vmax.f32 %v2526, 0.0
      %v2535 = vmax.f32 %v2527, 0.0
      %v2536 = vmax.f32 %v2528, 0.0
      %v2537 = vld [vmem:[%s2 + $0x1] sm:$0x1]
      %v2538 = vlaneseq
      %v2539 = vshrl.u32 %v2538, 7
      %v2540 = vsub.s32 0, %v2539
      %v2541 = vrot.slane %v2537, %v2540
      %v2542 = vmul.f32 %v2529, %v2541
      %v2543 = vmul.f32 %v2530, %v2541
      %v2544 = vmul.f32 %v2531, %v2541
      %v2545 = vmul.f32 %v2532, %v2541
      %v2546 = vmul.f32 %v2533, %v2541
      %v2547 = vmul.f32 %v2534, %v2541
      %v2548 = vmul.f32 %v2535, %v2541
      %v2549 = vmul.f32 %v2536, %v2541
      %v2550 = vld [vmem:[%s2 + $0x2] sm:$0x1]
      %v2551 = vlaneseq
      %v2552 = vshrl.u32 %v2551, 7
      %v2553 = vsub.s32 0, %v2552
      %v2554 = vrot.slane %v2550, %v2553
      %v2555 = vadd.f32 %v2542, %v2554
      %v2556 = vadd.f32 %v2543, %v2554
      %v2557 = vadd.f32 %v2544, %v2554
      %v2558 = vadd.f32 %v2545, %v2554
      %v2559 = vadd.f32 %v2546, %v2554
      %v2560 = vadd.f32 %v2547, %v2554
      %v2561 = vadd.f32 %v2548, %v2554
      %v2562 = vadd.f32 %v2549, %v2554
      %v2563 = vpack.c.bf16 %v2556, %v2555
      %v2564 = vpack.c.bf16 %v2558, %v2557
      %v2565 = vpack.c.bf16 %v2560, %v2559
      %v2566 = vpack.c.bf16 %v2562, %v2561
      %v2571 = vunpack.c.l.b16 %v2563
      %v2572 = vunpack.c.h.b16 %v2563
      %v2573 = vunpack.c.l.b16 %v2564
      %v2574 = vunpack.c.h.b16 %v2564
      %v2575 = vunpack.c.l.b16 %v2565
      %v2576 = vunpack.c.h.b16 %v2565
      %v2577 = vunpack.c.l.b16 %v2566
      %v2578 = vunpack.c.h.b16 %v2566
      %v2579 = vpack.c.b16 %v2571, %v2571
      %v2580 = vpack.c.b16 %v2572, %v2572
      %v2581 = vpack.c.b16 %v2573, %v2573
      %v2582 = vpack.c.b16 %v2574, %v2574
      %v2583 = vpack.c.b16 %v2575, %v2575
      %v2584 = vpack.c.b16 %v2576, %v2576
      %v2585 = vpack.c.b16 %v2577, %v2577
      %v2586 = vpack.c.b16 %v2578, %v2578
      %vm2595 = vcmask 519168
      %2596 = vst.msk [vmem:[%s206] sm:$0xf] %vm2595, %v2579
      %2597 = vst.msk [vmem:[%s206 + $0x4] sm:$0xf] %vm2595, %v2580
      %2598 = vst.msk [vmem:[%s206 + $0x8] sm:$0xf] %vm2595, %v2581
      %2599 = vst.msk [vmem:[%s206 + $0xc] sm:$0xf] %vm2595, %v2582
      %2600 = vst.msk [vmem:[%s206 + $0x10] sm:$0xf] %vm2595, %v2583
      %2601 = vst.msk [vmem:[%s206 + $0x14] sm:$0xf] %vm2595, %v2584
      %2602 = vst.msk [vmem:[%s206 + $0x18] sm:$0xf] %vm2595, %v2585
      %2603 = vst.msk [vmem:[%s206 + $0x1c] sm:$0xf] %vm2595, %v2586
      %p2604 = scmp.lt.s32.totalorder %s18, 1
      %s2605 = scalar_select %p2604, %s18, 1
      %p2606 = scmp.lt.s32.totalorder %s19, 0
      %s2607 = scalar_select %p2606, %s19, 0
      %s2608 = smul.addr %s2607, 8
      %s2609 = smul.addr %s2605, 8
      %s2610 = sadd.s32 %s2608, %s2609
      %s2611 = smul.addr %s2610, 4
      %s2612 = scalar_lea.vmem %s3, %s2611
      // Predicated region
      $region33: #{scale2_forward.10} parent=31 // pred_check
        %p2613 = pneg %p116
      $region34: #{scale2_forward.10} parent=31 // pred_check_branch
        %2615 = sbr.rel (%p2613) target = $region36
      $region35: #{scale2_forward.10} parent=31 // pred_region
        _
      $region36: #{scale2_forward.10} parent=31 // pred_fallthru
        _
    $region32: #{scale2_forward.10} parent=5 // pred_fallthru
      _
    %p2616 = scmp.le.s32.totalorder 2, %s9
    // Predicated region
    $region37: #{scale2_forward.10} parent=5 // pred_check
      %p2617 = pneg %p2616
    $region38: #{scale2_forward.10} parent=5 // pred_check_branch
      %2619 = sbr.rel (%p2617) target = $region40
    $region39: #{scale2_forward.10} parent=5 // pred_region
      %s2620 = ssub.s32 %s9, 2
      // Predicated region
      $region41: #{scale2_forward.10} parent=39 // pred_check
        %p2621 = pneg %p122
      $region42: #{scale2_forward.10} parent=39 // pred_check_branch
        %2623 = sbr.rel (%p2621) target = $region44
      $region43: #{scale2_forward.10} parent=39 // pred_region
        %p2624 = scmp.lt.s32.totalorder %s20, 1
        %s2625 = scalar_select %p2624, %s20, 1
        %p2626 = scmp.lt.s32.totalorder %s21, 0
        %s2627 = scalar_select %p2626, %s21, 0
        %s2628 = smul.addr %s2627, 8
        %s2629 = smul.addr %s2625, 8
        %s2630 = sadd.s32 %s2628, %s2629
        %s2631 = smul.addr %s2630, 4
        %s2632 = scalar_lea.vmem %s3, %s2631
      $region44: #{scale2_forward.10} parent=39 // pred_fallthru
        _
    $region40: #{scale2_forward.10} parent=5 // pred_fallthru
      _
  $region6: #{scale2_forward.10} parent=0 // loop_footer
    %s13 = sadd.s32 1, %s9
  $region7: #{scale2_forward.10} parent=0 // loop_footer_branch
    %8 = sbr.rel target = $region3
  $region8: #{scale2_forward.10} parent=0 // loop_exit
    _

</llo_original>
